<compile_context>
chip_gen: v7x
topology: tpu7x:2x2x1
jax: 0.10.0
libtpu: 0.0.40
codegen_flags: <defaults>
</compile_context>

<pallas_src>
import jax
import jax.numpy as jnp
from jax.experimental import pallas as pl
from jax.experimental.pallas import tpu as pltpu


_zero2 = lambda i: (0, 0)  # every kernel operand is a full-array 2-D block


# ---------------------------------------------------------------------------
# The fused Pallas kernel
# ---------------------------------------------------------------------------

def _snn_fused_kernel(x_ref, st1_ref, st2_ref, st3_ref,
                      w1_ref, lp1_ref, w2_ref, lp2_ref,
                      w3_ref, lp3_ref, w4_ref, b4_ref,
                      st1_o, st2_o, st3_o, out_o):
    f32, bf16 = jnp.float32, jnp.bfloat16
    B8 = out_o.shape[0]                  # padded batch (multiple of 8)
    M1 = 4 * 7 * 7 * B8                  # layer-1 rows (phase layout, padded)
    M2 = 36 * B8                         # layer-2 rows (6x6 spatial)

    # ---- layer 1: ConvLIF(1 -> 32, k=3, s=2) : one (M1, 9) x (9, 32) matmul + LIF ----
    ff1 = jnp.dot(x_ref[...], w1_ref[...], preferred_element_type=f32)
    i1 = lp1_ref[0:1, :] * st1_ref[0:M1, :] + ff1
    v1 = lp1_ref[1:2, :] * st1_ref[M1:2 * M1, :] * (1.0 - st1_ref[2 * M1:3 * M1, :]) + i1
    s1 = (v1 - lp1_ref[2:3, :] > 0.0).astype(f32)
    st1_o[0:M1, :] = i1
    st1_o[M1:2 * M1, :] = v1
    st1_o[2 * M1:3 * M1, :] = s1

    # ---- layer 2: ConvLIF(32 -> 64, k=3, s=2) : in-VMEM im2col + one (M2,288)x(288,64) dot ----
    # All tap slices are contiguous, 8-aligned row ranges of the live s1 value.
    a_parts = []
    for dy in range(3):
        for dx in range(3):
            p = (dy % 2) * 2 + (dx % 2)          # stride-2 phase of the layer-1 row
            rows = []
            for j2 in range(6):                  # conv2 output height index
                r0 = ((p * 7 + j2 + dy // 2) * 7 + dx // 2) * B8
                rows.append(s1[r0:r0 + 6 * B8, :])          # (6*B8, 32)
            a_parts.append(jnp.concatenate(rows, axis=0))   # (M2, 32)
    a2 = jnp.concatenate(a_parts, axis=1).astype(bf16)      # (M2, 288) im2col patches
    ff2 = jnp.dot(a2, w2_ref[...], preferred_element_type=f32)   # (M2, 64)
    i2 = lp2_ref[0:1, :] * st2_ref[0:M2, :] + ff2
    v2 = lp2_ref[1:2, :] * st2_ref[M2:2 * M2, :] * (1.0 - st2_ref[2 * M2:3 * M2, :]) + i2
    s2 = (v2 - lp2_ref[2:3, :] > 0.0).astype(f32)
    st2_o[0:M2, :] = i2
    st2_o[M2:2 * M2, :] = v2
    st2_o[2 * M2:3 * M2, :] = s2

    # ---- layer 3: LinearLIF(2304 -> 256) : one (B8, 2304) x (2304, 256) dot ----
    s2_flat = jnp.concatenate(
        [s2[hw * B8:(hw + 1) * B8, :] for hw in range(36)], axis=1).astype(bf16)  # (B8, 2304)
    ff3 = jnp.dot(s2_flat, w3_ref[...], preferred_element_type=f32)               # (B8, 256)
    i3 = lp3_ref[0:1, :] * st3_ref[0:B8, :] + ff3
    v3 = lp3_ref[1:2, :] * st3_ref[B8:2 * B8, :] * (1.0 - st3_ref[2 * B8:3 * B8, :]) + i3
    s3 = (v3 - lp3_ref[2:3, :] > 0.0).astype(f32)
    st3_o[0:B8, :] = i3
    st3_o[B8:2 * B8, :] = v3
    st3_o[2 * B8:3 * B8, :] = s3

    # ---- layer 4: Linear(256 -> 10), lane-padded to 128 for a dense store ----
    out_o[...] = jnp.dot(s3.astype(bf16), w4_ref[...], preferred_element_type=f32) + b4_ref[...]


# ---------------------------------------------------------------------------
# Host-side glue: input tap/phase layout, parameter packing, forward wrapper
# ---------------------------------------------------------------------------

def _round_up8(n):
    return ((n + 7) // 8) * 8


def _build_conv1_taps(x, B8):
    """(B,1,28,28) NCHW -> (196*B8, 9): 9 conv1 taps in lanes, rows in 8-aligned phase layout.

    Row order matches the kernel's layer-1 layout; out-of-range (spatially padded) output
    positions and padded batch rows are zero, so their LIF state stays exactly zero.
    """
    B = x.shape[0]
    xb = jnp.pad(x[:, 0], ((0, B8 - B), (0, 2), (0, 2)))               # (B8, 30, 30)
    jj = jnp.arange(7)
    taps = []
    for dy in range(3):
        for dx in range(3):
            phases = []
            for ph in range(2):
                for pw in range(2):
                    sl = xb[:, 2 * ph + dy:2 * ph + dy + 25:4,
                               2 * pw + dx:2 * pw + dx + 25:4]         # (B8, 7, 7)
                    m = ((jj < 7 - ph)[:, None] & (jj < 7 - pw)[None, :]).astype(sl.dtype)
                    phases.append((sl * m[None]).transpose(1, 2, 0))   # (7, 7, B8)
            taps.append(jnp.stack(phases, axis=0))                     # (4, 7, 7, B8)
    xt = jnp.stack(taps, axis=-1)                                      # (4, 7, 7, B8, 9)
    return xt.reshape(4 * 7 * 7 * B8, 9)


def init_lif_params(n):
    # matches torch init_lif_params: leak_i = leak_v = 0.9, thresh = 1.0 (per channel)
    return dict(leak_i=jnp.full((n,), 0.9, jnp.float32),
                leak_v=jnp.full((n,), 0.9, jnp.float32),
                thresh=jnp.full((n,), 1.0, jnp.float32))


def init_params(key):
    k1, k2, k3, k4, k5 = jax.random.split(key, 5)
    return dict(
        w1=jax.random.normal(k1, (32, 1, 3, 3), jnp.float32) / jnp.sqrt(9.0),
        w2=jax.random.normal(k2, (64, 32, 3, 3), jnp.float32) / jnp.sqrt(32.0 * 9.0),
        w3=jax.random.normal(k3, (2304, 256), jnp.float32) / jnp.sqrt(2304.0),
        w4=jax.random.normal(k4, (256, 10), jnp.float32) / jnp.sqrt(256.0),
        b4=(jax.random.normal(k5, (1, 10), jnp.float32) * 0.01),
        lif1=init_lif_params(32),
        lif2=init_lif_params(64),
        lif3=init_lif_params(256),
    )


def pack_params(p):
    """One-time conversion of torch-layout params to the kernel's layouts (bf16 MXU weights)."""
    bf16 = jnp.bfloat16
    w1 = p["w1"].reshape(32, 9).T                                        # (9, 32) f32: [tap, c_out]
    w2 = p["w2"].transpose(2, 3, 1, 0).reshape(9 * 32, 64).astype(bf16)  # (288, 64): [t*32+ci, co]
    # kernel lane hw*64 + c  <->  torch NCHW-flatten row c*36 + hw
    w3 = (p["w3"].reshape(64, 36, 256).transpose(1, 0, 2)
          .reshape(2304, 256).astype(bf16))
    w4 = jnp.pad(p["w4"], ((0, 0), (0, 128 - 10))).astype(bf16)          # lane-dense logits
    b4 = jnp.pad(p["b4"], ((0, 0), (0, 128 - 10)))                       # f32
    lp = lambda d: jnp.stack([d["leak_i"].reshape(-1),
                              d["leak_v"].reshape(-1),
                              d["thresh"].reshape(-1)], axis=0)
    return dict(w1=w1, w2=w2, w3=w3, w4=w4, b4=b4,
                lp1=lp(p["lif1"]), lp2=lp(p["lif2"]), lp3=lp(p["lif3"]))


def reset_state():
    return [None] * 3


def _model_forward(kparams, states, input_):
    """Mirrors Model.forward(states, input_). input_: (B,1,28,28) NCHW, params from pack_params."""
    B, C, H, W = input_.shape
    assert (C, H, W) == (1, 28, 28)
    B8 = _round_up8(B)
    M1, M2 = 196 * B8, 36 * B8
    xt = _build_conv1_taps(input_, B8)

    st1 = states[0] if states[0] is not None else jnp.zeros((3 * M1, 32), jnp.float32)
    st2 = states[1] if states[1] is not None else jnp.zeros((3 * M2, 64), jnp.float32)
    st3 = states[2] if states[2] is not None else jnp.zeros((3 * B8, 256), jnp.float32)

    ins = (xt, st1, st2, st3,
           kparams["w1"], kparams["lp1"], kparams["w2"], kparams["lp2"],
           kparams["w3"], kparams["lp3"], kparams["w4"], kparams["b4"])
    out_shapes = (jax.ShapeDtypeStruct((3 * M1, 32), jnp.float32),
                  jax.ShapeDtypeStruct((3 * M2, 64), jnp.float32),
                  jax.ShapeDtypeStruct((3 * B8, 256), jnp.float32),
                  jax.ShapeDtypeStruct((B8, 128), jnp.float32))

    # ~3 MB live in VMEM (weights 1.3 MB bf16 + state/activations); well under the 16/32 MiB
    # scoped-VMEM defaults on v5e/v6e/v7x, so no explicit vmem_limit_bytes needed at this B.
    st1n, st2n, st3n, out_pad = pl.pallas_call(
        _snn_fused_kernel,
        grid=(1,),
        in_specs=[pl.BlockSpec(a.shape, _zero2) for a in ins],
        out_specs=tuple(pl.BlockSpec(s.shape, _zero2) for s in out_shapes),
        out_shape=out_shapes,
        compiler_params=pltpu.CompilerParams(dimension_semantics=("arbitrary",)),
    )(*ins)

    return [st1n, st2n, st3n], out_pad[:B, :10]


model_forward = jax.jit(_model_forward)


# ---------------------------------------------------------------------------
# Pure-JAX reference pieces (layer-local, used only for the self-check below)
# ---------------------------------------------------------------------------

def _phase_rows_to_spatial(rows, B, B8, C):
    """Kernel layer-1 rows (196*B8, C) -> (B, 13, 13, C) NHWC."""
    r = rows.reshape(4, 7, 7, B8, C)
    out = jnp.zeros((B, 13, 13, C), rows.dtype)
    for ph in range(2):
        for pw in range(2):
            blk = r[2 * ph + pw, :7 - ph, :7 - pw, :B]                 # (Hp, Wp, B, C)
            out = out.at[:, ph:13:2, pw:13:2, :].set(jnp.transpose(blk, (2, 0, 1, 3)))
    return out


def _ref_conv(x_nhwc, w_torch, stride):
    """Valid-padding, bias-free conv.  x: (B,H,W,Cin), w: (Cout,Cin,3,3) -> (B,OH,OW,Cout)."""
    B, H, W, C = x_nhwc.shape
    Cout = w_torch.shape[0]
    OH = (H - 3) // stride + 1
    OW = (W - 3) // stride + 1
    cols = []
    for dy in range(3):
        for dx in range(3):
            cols.append(x_nhwc[:, dy:dy + stride * (OH - 1) + 1:stride,
                                  dx:dx + stride * (OW - 1) + 1:stride, :])
    pmat = jnp.stack(cols, axis=3).reshape(B * OH * OW, 9 * C)
    wmat = w_torch.transpose(2, 3, 1, 0).reshape(9 * C, Cout)
    y = jnp.dot(pmat, wmat, precision=jax.lax.Precision.HIGHEST)
    return y.reshape(B, OH, OW, Cout)


def _check(name, got, want):
    err = float(jnp.max(jnp.abs(got - want)))
    lim = 5e-2 * (1.0 + float(jnp.max(jnp.abs(want))))
    assert err < lim, f"{name}: max abs err {err} (limit {lim})"


if __name__ == "__main__":
    key = jax.random.PRNGKey(0)
    params = init_params(key)
    kparams = pack_params(params)

    B = 2
    B8 = _round_up8(B)
    x = jax.random.normal(jax.random.PRNGKey(0), (B, 1, 28, 28), jnp.float32)

    states, out = model_forward(kparams, reset_state(), x)
    jax.block_until_ready(out)
    for st in states:
        jax.block_until_ready(st)

    M1, M2 = 196 * B8, 36 * B8
    assert out.shape == (B, 10), out.shape
    assert states[0].shape == (3 * M1, 32)
    assert states[1].shape == (3 * M2, 64)
    assert states[2].shape == (3 * B8, 256)

    # Layer-local correctness check against a pure-JAX reference (each layer's ff is
    # recomputed from the kernel's own upstream spikes, so it is robust to spike flips;
    # bf16 MXU weights stay well inside the 5e-2 relative tolerance).
    st1n, st2n, st3n = states
    i1 = _phase_rows_to_spatial(st1n[0:M1], B, B8, 32)
    s1 = _phase_rows_to_spatial(st1n[2 * M1:3 * M1], B, B8, 32)
    _check("conv1", i1, _ref_conv(jnp.transpose(x, (0, 2, 3, 1)), params["w1"], 2))

    i2 = st2n[0:M2].reshape(6, 6, B8, 64)[:, :, :B].transpose(2, 0, 1, 3)
    _check("conv2", i2, _ref_conv(s1, params["w2"], 2))

    s2 = st2n[2 * M2:3 * M2].reshape(6, 6, B8, 64)[:, :, :B].transpose(2, 0, 1, 3)
    s2_flat = jnp.transpose(s2, (0, 3, 1, 2)).reshape(B, -1)           # torch .view(b, -1) on NCHW
    _check("fc3", st3n[0:B],
           jnp.dot(s2_flat, params["w3"], precision=jax.lax.Precision.HIGHEST))

    s3 = st3n[2 * B8:2 * B8 + B]
    _check("fc4", out,
           jnp.dot(s3, params["w4"], precision=jax.lax.Precision.HIGHEST) + params["b4"])

    # Second step: thread the state back through (recurrent path smoke test).
    states2, out2 = model_forward(kparams, states, x)
    jax.block_until_ready(out2)
    assert out2.shape == (B, 10)

    print("KERNEL_OK")
</pallas_src>

<mosaic_0001>
module attributes {stable_mosaic.version = 11 : i64} {
  func.func @_snn_fused_kernel(%arg0: i32, %arg1: memref<1568x9xf32, #tpu.memory_space<vmem>>, %arg2: memref<4704x32xf32, #tpu.memory_space<vmem>>, %arg3: memref<864x64xf32, #tpu.memory_space<vmem>>, %arg4: memref<24x256xf32, #tpu.memory_space<vmem>>, %arg5: memref<9x32xf32, #tpu.memory_space<vmem>>, %arg6: memref<3x32xf32, #tpu.memory_space<vmem>>, %arg7: memref<288x64xbf16, #tpu.memory_space<vmem>>, %arg8: memref<3x64xf32, #tpu.memory_space<vmem>>, %arg9: memref<2304x256xbf16, #tpu.memory_space<vmem>>, %arg10: memref<3x256xf32, #tpu.memory_space<vmem>>, %arg11: memref<256x128xbf16, #tpu.memory_space<vmem>>, %arg12: memref<1x128xf32, #tpu.memory_space<vmem>>, %arg13: memref<4704x32xf32, #tpu.memory_space<vmem>>, %arg14: memref<864x64xf32, #tpu.memory_space<vmem>>, %arg15: memref<24x256xf32, #tpu.memory_space<vmem>>, %arg16: memref<8x128xf32, #tpu.memory_space<vmem>>) attributes {dimension_semantics = [#tpu.dimension_semantics<arbitrary>], iteration_bounds = array<i64: 1>, scalar_prefetch = 0 : i64, scratch_operands = 0 : i64, tpu.core_type = #tpu.core_type<tc>, window_params = [{pipeline_mode = #tpu.pipeline_mode<synchronous>, transform_indices = @transform_0, window_bounds = array<i64: 1568, 9>}, {pipeline_mode = #tpu.pipeline_mode<synchronous>, transform_indices = @transform_1, window_bounds = array<i64: 4704, 32>}, {pipeline_mode = #tpu.pipeline_mode<synchronous>, transform_indices = @transform_2, window_bounds = array<i64: 864, 64>}, {pipeline_mode = #tpu.pipeline_mode<synchronous>, transform_indices = @transform_3, window_bounds = array<i64: 24, 256>}, {pipeline_mode = #tpu.pipeline_mode<synchronous>, transform_indices = @transform_4, window_bounds = array<i64: 9, 32>}, {pipeline_mode = #tpu.pipeline_mode<synchronous>, transform_indices = @transform_5, window_bounds = array<i64: 3, 32>}, {pipeline_mode = #tpu.pipeline_mode<synchronous>, transform_indices = @transform_6, window_bounds = array<i64: 288, 64>}, {pipeline_mode = #tpu.pipeline_mode<synchronous>, transform_indices = @transform_7, window_bounds = array<i64: 3, 64>}, {pipeline_mode = #tpu.pipeline_mode<synchronous>, transform_indices = @transform_8, window_bounds = array<i64: 2304, 256>}, {pipeline_mode = #tpu.pipeline_mode<synchronous>, transform_indices = @transform_9, window_bounds = array<i64: 3, 256>}, {pipeline_mode = #tpu.pipeline_mode<synchronous>, transform_indices = @transform_10, window_bounds = array<i64: 256, 128>}, {pipeline_mode = #tpu.pipeline_mode<synchronous>, transform_indices = @transform_11, window_bounds = array<i64: 1, 128>}, {pipeline_mode = #tpu.pipeline_mode<synchronous>, transform_indices = @transform_12, window_bounds = array<i64: 4704, 32>}, {pipeline_mode = #tpu.pipeline_mode<synchronous>, transform_indices = @transform_13, window_bounds = array<i64: 864, 64>}, {pipeline_mode = #tpu.pipeline_mode<synchronous>, transform_indices = @transform_14, window_bounds = array<i64: 24, 256>}, {pipeline_mode = #tpu.pipeline_mode<synchronous>, transform_indices = @transform_15, window_bounds = array<i64: 8, 128>}]} {
    %c0 = arith.constant 0 : index
    %c0_0 = arith.constant 0 : index
    %0 = vector.load %arg1[%c0, %c0_0] : memref<1568x9xf32, #tpu.memory_space<vmem>>, vector<1568x9xf32>
    %c0_1 = arith.constant 0 : index
    %c0_2 = arith.constant 0 : index
    %1 = vector.load %arg5[%c0_1, %c0_2] : memref<9x32xf32, #tpu.memory_space<vmem>>, vector<9x32xf32>
    %cst = arith.constant dense<0.000000e+00> : vector<1568x32xf32>
    %2 = tpu.matmul %0, %1, %cst {dimension_numbers = #tpu.dot_dimension_numbers<[1], [0], [0], [1], [0, 0, 1, 1], [], []>} : vector<1568x9xf32>, vector<9x32xf32>, vector<1568x32xf32> -> vector<1568x32xf32>
    %c0_3 = arith.constant 0 : index
    %c0_4 = arith.constant 0 : index
    %3 = vector.load %arg6[%c0_3, %c0_4] : memref<3x32xf32, #tpu.memory_space<vmem>>, vector<1x32xf32>
    %c0_5 = arith.constant 0 : index
    %c0_6 = arith.constant 0 : index
    %4 = vector.load %arg2[%c0_5, %c0_6] : memref<4704x32xf32, #tpu.memory_space<vmem>>, vector<1568x32xf32>
    %5 = vector.broadcast %3 : vector<1x32xf32> to vector<1568x32xf32>
    %6 = arith.mulf %5, %4 : vector<1568x32xf32>
    %7 = arith.addf %6, %2 : vector<1568x32xf32>
    %c1 = arith.constant 1 : index
    %c0_7 = arith.constant 0 : index
    %8 = vector.load %arg6[%c1, %c0_7] : memref<3x32xf32, #tpu.memory_space<vmem>>, vector<1x32xf32>
    %c1568 = arith.constant 1568 : index
    %c0_8 = arith.constant 0 : index
    %9 = vector.load %arg2[%c1568, %c0_8] : memref<4704x32xf32, #tpu.memory_space<vmem>>, vector<1568x32xf32>
    %10 = vector.broadcast %8 : vector<1x32xf32> to vector<1568x32xf32>
    %11 = arith.mulf %10, %9 : vector<1568x32xf32>
    %c3136 = arith.constant 3136 : index
    %c0_9 = arith.constant 0 : index
    %12 = vector.load %arg2[%c3136, %c0_9] : memref<4704x32xf32, #tpu.memory_space<vmem>>, vector<1568x32xf32>
    %cst_10 = arith.constant 1.000000e+00 : f32
    %13 = vector.broadcast %cst_10 : f32 to vector<1568x32xf32>
    %14 = arith.subf %13, %12 : vector<1568x32xf32>
    %15 = arith.mulf %11, %14 : vector<1568x32xf32>
    %16 = arith.addf %15, %7 : vector<1568x32xf32>
    %c2 = arith.constant 2 : index
    %c0_11 = arith.constant 0 : index
    %17 = vector.load %arg6[%c2, %c0_11] : memref<3x32xf32, #tpu.memory_space<vmem>>, vector<1x32xf32>
    %18 = vector.broadcast %17 : vector<1x32xf32> to vector<1568x32xf32>
    %19 = arith.subf %16, %18 : vector<1568x32xf32>
    %cst_12 = arith.constant 0.000000e+00 : f32
    %20 = vector.broadcast %cst_12 : f32 to vector<1568x32xf32>
    %21 = arith.cmpf ogt, %19, %20 : vector<1568x32xf32>
    %22 = arith.extui %21 : vector<1568x32xi1> to vector<1568x32xi32>
    %23 = arith.sitofp %22 : vector<1568x32xi32> to vector<1568x32xf32>
    %c0_13 = arith.constant 0 : index
    %c0_14 = arith.constant 0 : index
    %24 = vector.load %arg13[%c0_13, %c0_14] : memref<4704x32xf32, #tpu.memory_space<vmem>>, vector<1568x32xf32>
    tpu.vector_store %arg13[%c0_13, %c0_14], %7 {strides = array<i32>} : memref<4704x32xf32, #tpu.memory_space<vmem>>, vector<1568x32xf32>,
    %c1568_15 = arith.constant 1568 : index
    %c0_16 = arith.constant 0 : index
    %25 = vector.load %arg13[%c1568_15, %c0_16] : memref<4704x32xf32, #tpu.memory_space<vmem>>, vector<1568x32xf32>
    tpu.vector_store %arg13[%c1568_15, %c0_16], %16 {strides = array<i32>} : memref<4704x32xf32, #tpu.memory_space<vmem>>, vector<1568x32xf32>,
    %c3136_17 = arith.constant 3136 : index
    %c0_18 = arith.constant 0 : index
    %26 = vector.load %arg13[%c3136_17, %c0_18] : memref<4704x32xf32, #tpu.memory_space<vmem>>, vector<1568x32xf32>
    tpu.vector_store %arg13[%c3136_17, %c0_18], %23 {strides = array<i32>} : memref<4704x32xf32, #tpu.memory_space<vmem>>, vector<1568x32xf32>,
    %27 = vector.extract_strided_slice %23 {offsets = [0, 0], sizes = [48, 32], strides = [1, 1]} : vector<1568x32xf32> to vector<48x32xf32>
    %28 = vector.extract_strided_slice %23 {offsets = [56, 0], sizes = [48, 32], strides = [1, 1]} : vector<1568x32xf32> to vector<48x32xf32>
    %29 = vector.extract_strided_slice %23 {offsets = [112, 0], sizes = [48, 32], strides = [1, 1]} : vector<1568x32xf32> to vector<48x32xf32>
    %30 = vector.extract_strided_slice %23 {offsets = [168, 0], sizes = [48, 32], strides = [1, 1]} : vector<1568x32xf32> to vector<48x32xf32>
    %31 = vector.extract_strided_slice %23 {offsets = [224, 0], sizes = [48, 32], strides = [1, 1]} : vector<1568x32xf32> to vector<48x32xf32>
    %32 = vector.extract_strided_slice %23 {offsets = [280, 0], sizes = [48, 32], strides = [1, 1]} : vector<1568x32xf32> to vector<48x32xf32>
    %33 = tpu.concatenate %27, %28, %29, %30, %31, %32 in 0 : vector<48x32xf32>, vector<48x32xf32>, vector<48x32xf32>, vector<48x32xf32>, vector<48x32xf32>, vector<48x32xf32> -> vector<288x32xf32>
    %34 = vector.extract_strided_slice %23 {offsets = [392, 0], sizes = [48, 32], strides = [1, 1]} : vector<1568x32xf32> to vector<48x32xf32>
    %35 = vector.extract_strided_slice %23 {offsets = [448, 0], sizes = [48, 32], strides = [1, 1]} : vector<1568x32xf32> to vector<48x32xf32>
    %36 = vector.extract_strided_slice %23 {offsets = [504, 0], sizes = [48, 32], strides = [1, 1]} : vector<1568x32xf32> to vector<48x32xf32>
    %37 = vector.extract_strided_slice %23 {offsets = [560, 0], sizes = [48, 32], strides = [1, 1]} : vector<1568x32xf32> to vector<48x32xf32>
    %38 = vector.extract_strided_slice %23 {offsets = [616, 0], sizes = [48, 32], strides = [1, 1]} : vector<1568x32xf32> to vector<48x32xf32>
    %39 = vector.extract_strided_slice %23 {offsets = [672, 0], sizes = [48, 32], strides = [1, 1]} : vector<1568x32xf32> to vector<48x32xf32>
    %40 = tpu.concatenate %34, %35, %36, %37, %38, %39 in 0 : vector<48x32xf32>, vector<48x32xf32>, vector<48x32xf32>, vector<48x32xf32>, vector<48x32xf32>, vector<48x32xf32> -> vector<288x32xf32>
    %41 = vector.extract_strided_slice %23 {offsets = [8, 0], sizes = [48, 32], strides = [1, 1]} : vector<1568x32xf32> to vector<48x32xf32>
    %42 = vector.extract_strided_slice %23 {offsets = [64, 0], sizes = [48, 32], strides = [1, 1]} : vector<1568x32xf32> to vector<48x32xf32>
    %43 = vector.extract_strided_slice %23 {offsets = [120, 0], sizes = [48, 32], strides = [1, 1]} : vector<1568x32xf32> to vector<48x32xf32>
    %44 = vector.extract_strided_slice %23 {offsets = [176, 0], sizes = [48, 32], strides = [1, 1]} : vector<1568x32xf32> to vector<48x32xf32>
    %45 = vector.extract_strided_slice %23 {offsets = [232, 0], sizes = [48, 32], strides = [1, 1]} : vector<1568x32xf32> to vector<48x32xf32>
    %46 = vector.extract_strided_slice %23 {offsets = [288, 0], sizes = [48, 32], strides = [1, 1]} : vector<1568x32xf32> to vector<48x32xf32>
    %47 = tpu.concatenate %41, %42, %43, %44, %45, %46 in 0 : vector<48x32xf32>, vector<48x32xf32>, vector<48x32xf32>, vector<48x32xf32>, vector<48x32xf32>, vector<48x32xf32> -> vector<288x32xf32>
    %48 = vector.extract_strided_slice %23 {offsets = [784, 0], sizes = [48, 32], strides = [1, 1]} : vector<1568x32xf32> to vector<48x32xf32>
    %49 = vector.extract_strided_slice %23 {offsets = [840, 0], sizes = [48, 32], strides = [1, 1]} : vector<1568x32xf32> to vector<48x32xf32>
    %50 = vector.extract_strided_slice %23 {offsets = [896, 0], sizes = [48, 32], strides = [1, 1]} : vector<1568x32xf32> to vector<48x32xf32>
    %51 = vector.extract_strided_slice %23 {offsets = [952, 0], sizes = [48, 32], strides = [1, 1]} : vector<1568x32xf32> to vector<48x32xf32>
    %52 = vector.extract_strided_slice %23 {offsets = [1008, 0], sizes = [48, 32], strides = [1, 1]} : vector<1568x32xf32> to vector<48x32xf32>
    %53 = vector.extract_strided_slice %23 {offsets = [1064, 0], sizes = [48, 32], strides = [1, 1]} : vector<1568x32xf32> to vector<48x32xf32>
    %54 = tpu.concatenate %48, %49, %50, %51, %52, %53 in 0 : vector<48x32xf32>, vector<48x32xf32>, vector<48x32xf32>, vector<48x32xf32>, vector<48x32xf32>, vector<48x32xf32> -> vector<288x32xf32>
    %55 = vector.extract_strided_slice %23 {offsets = [1176, 0], sizes = [48, 32], strides = [1, 1]} : vector<1568x32xf32> to vector<48x32xf32>
    %56 = vector.extract_strided_slice %23 {offsets = [1232, 0], sizes = [48, 32], strides = [1, 1]} : vector<1568x32xf32> to vector<48x32xf32>
    %57 = vector.extract_strided_slice %23 {offsets = [1288, 0], sizes = [48, 32], strides = [1, 1]} : vector<1568x32xf32> to vector<48x32xf32>
    %58 = vector.extract_strided_slice %23 {offsets = [1344, 0], sizes = [48, 32], strides = [1, 1]} : vector<1568x32xf32> to vector<48x32xf32>
    %59 = vector.extract_strided_slice %23 {offsets = [1400, 0], sizes = [48, 32], strides = [1, 1]} : vector<1568x32xf32> to vector<48x32xf32>
    %60 = vector.extract_strided_slice %23 {offsets = [1456, 0], sizes = [48, 32], strides = [1, 1]} : vector<1568x32xf32> to vector<48x32xf32>
    %61 = tpu.concatenate %55, %56, %57, %58, %59, %60 in 0 : vector<48x32xf32>, vector<48x32xf32>, vector<48x32xf32>, vector<48x32xf32>, vector<48x32xf32>, vector<48x32xf32> -> vector<288x32xf32>
    %62 = vector.extract_strided_slice %23 {offsets = [792, 0], sizes = [48, 32], strides = [1, 1]} : vector<1568x32xf32> to vector<48x32xf32>
    %63 = vector.extract_strided_slice %23 {offsets = [848, 0], sizes = [48, 32], strides = [1, 1]} : vector<1568x32xf32> to vector<48x32xf32>
    %64 = vector.extract_strided_slice %23 {offsets = [904, 0], sizes = [48, 32], strides = [1, 1]} : vector<1568x32xf32> to vector<48x32xf32>
    %65 = vector.extract_strided_slice %23 {offsets = [960, 0], sizes = [48, 32], strides = [1, 1]} : vector<1568x32xf32> to vector<48x32xf32>
    %66 = vector.extract_strided_slice %23 {offsets = [1016, 0], sizes = [48, 32], strides = [1, 1]} : vector<1568x32xf32> to vector<48x32xf32>
    %67 = vector.extract_strided_slice %23 {offsets = [1072, 0], sizes = [48, 32], strides = [1, 1]} : vector<1568x32xf32> to vector<48x32xf32>
    %68 = tpu.concatenate %62, %63, %64, %65, %66, %67 in 0 : vector<48x32xf32>, vector<48x32xf32>, vector<48x32xf32>, vector<48x32xf32>, vector<48x32xf32>, vector<48x32xf32> -> vector<288x32xf32>
    %69 = vector.extract_strided_slice %23 {offsets = [56, 0], sizes = [48, 32], strides = [1, 1]} : vector<1568x32xf32> to vector<48x32xf32>
    %70 = vector.extract_strided_slice %23 {offsets = [112, 0], sizes = [48, 32], strides = [1, 1]} : vector<1568x32xf32> to vector<48x32xf32>
    %71 = vector.extract_strided_slice %23 {offsets = [168, 0], sizes = [48, 32], strides = [1, 1]} : vector<1568x32xf32> to vector<48x32xf32>
    %72 = vector.extract_strided_slice %23 {offsets = [224, 0], sizes = [48, 32], strides = [1, 1]} : vector<1568x32xf32> to vector<48x32xf32>
    %73 = vector.extract_strided_slice %23 {offsets = [280, 0], sizes = [48, 32], strides = [1, 1]} : vector<1568x32xf32> to vector<48x32xf32>
    %74 = vector.extract_strided_slice %23 {offsets = [336, 0], sizes = [48, 32], strides = [1, 1]} : vector<1568x32xf32> to vector<48x32xf32>
    %75 = tpu.concatenate %69, %70, %71, %72, %73, %74 in 0 : vector<48x32xf32>, vector<48x32xf32>, vector<48x32xf32>, vector<48x32xf32>, vector<48x32xf32>, vector<48x32xf32> -> vector<288x32xf32>
    %76 = vector.extract_strided_slice %23 {offsets = [448, 0], sizes = [48, 32], strides = [1, 1]} : vector<1568x32xf32> to vector<48x32xf32>
    %77 = vector.extract_strided_slice %23 {offsets = [504, 0], sizes = [48, 32], strides = [1, 1]} : vector<1568x32xf32> to vector<48x32xf32>
    %78 = vector.extract_strided_slice %23 {offsets = [560, 0], sizes = [48, 32], strides = [1, 1]} : vector<1568x32xf32> to vector<48x32xf32>
    %79 = vector.extract_strided_slice %23 {offsets = [616, 0], sizes = [48, 32], strides = [1, 1]} : vector<1568x32xf32> to vector<48x32xf32>
    %80 = vector.extract_strided_slice %23 {offsets = [672, 0], sizes = [48, 32], strides = [1, 1]} : vector<1568x32xf32> to vector<48x32xf32>
    %81 = vector.extract_strided_slice %23 {offsets = [728, 0], sizes = [48, 32], strides = [1, 1]} : vector<1568x32xf32> to vector<48x32xf32>
    %82 = tpu.concatenate %76, %77, %78, %79, %80, %81 in 0 : vector<48x32xf32>, vector<48x32xf32>, vector<48x32xf32>, vector<48x32xf32>, vector<48x32xf32>, vector<48x32xf32> -> vector<288x32xf32>
    %83 = vector.extract_strided_slice %23 {offsets = [64, 0], sizes = [48, 32], strides = [1, 1]} : vector<1568x32xf32> to vector<48x32xf32>
    %84 = vector.extract_strided_slice %23 {offsets = [120, 0], sizes = [48, 32], strides = [1, 1]} : vector<1568x32xf32> to vector<48x32xf32>
    %85 = vector.extract_strided_slice %23 {offsets = [176, 0], sizes = [48, 32], strides = [1, 1]} : vector<1568x32xf32> to vector<48x32xf32>
    %86 = vector.extract_strided_slice %23 {offsets = [232, 0], sizes = [48, 32], strides = [1, 1]} : vector<1568x32xf32> to vector<48x32xf32>
    %87 = vector.extract_strided_slice %23 {offsets = [288, 0], sizes = [48, 32], strides = [1, 1]} : vector<1568x32xf32> to vector<48x32xf32>
    %88 = vector.extract_strided_slice %23 {offsets = [344, 0], sizes = [48, 32], strides = [1, 1]} : vector<1568x32xf32> to vector<48x32xf32>
    %89 = tpu.concatenate %83, %84, %85, %86, %87, %88 in 0 : vector<48x32xf32>, vector<48x32xf32>, vector<48x32xf32>, vector<48x32xf32>, vector<48x32xf32>, vector<48x32xf32> -> vector<288x32xf32>
    %90 = tpu.concatenate %33, %40, %47, %54, %61, %68, %75, %82, %89 in 1 : vector<288x32xf32>, vector<288x32xf32>, vector<288x32xf32>, vector<288x32xf32>, vector<288x32xf32>, vector<288x32xf32>, vector<288x32xf32>, vector<288x32xf32>, vector<288x32xf32> -> vector<288x288xf32>
    %91 = arith.truncf %90 : vector<288x288xf32> to vector<288x288xbf16>
    %c0_19 = arith.constant 0 : index
    %c0_20 = arith.constant 0 : index
    %92 = vector.load %arg7[%c0_19, %c0_20] : memref<288x64xbf16, #tpu.memory_space<vmem>>, vector<288x64xbf16>
    %cst_21 = arith.constant dense<0.000000e+00> : vector<288x64xf32>
    %93 = tpu.matmul %91, %92, %cst_21 {dimension_numbers = #tpu.dot_dimension_numbers<[1], [0], [0], [1], [0, 0, 1, 1], [], []>} : vector<288x288xbf16>, vector<288x64xbf16>, vector<288x64xf32> -> vector<288x64xf32>
    %c0_22 = arith.constant 0 : index
    %c0_23 = arith.constant 0 : index
    %94 = vector.load %arg8[%c0_22, %c0_23] : memref<3x64xf32, #tpu.memory_space<vmem>>, vector<1x64xf32>
    %c0_24 = arith.constant 0 : index
    %c0_25 = arith.constant 0 : index
    %95 = vector.load %arg3[%c0_24, %c0_25] : memref<864x64xf32, #tpu.memory_space<vmem>>, vector<288x64xf32>
    %96 = vector.broadcast %94 : vector<1x64xf32> to vector<288x64xf32>
    %97 = arith.mulf %96, %95 : vector<288x64xf32>
    %98 = arith.addf %97, %93 : vector<288x64xf32>
    %c1_26 = arith.constant 1 : index
    %c0_27 = arith.constant 0 : index
    %99 = vector.load %arg8[%c1_26, %c0_27] : memref<3x64xf32, #tpu.memory_space<vmem>>, vector<1x64xf32>
    %c288 = arith.constant 288 : index
    %c0_28 = arith.constant 0 : index
    %100 = vector.load %arg3[%c288, %c0_28] : memref<864x64xf32, #tpu.memory_space<vmem>>, vector<288x64xf32>
    %101 = vector.broadcast %99 : vector<1x64xf32> to vector<288x64xf32>
    %102 = arith.mulf %101, %100 : vector<288x64xf32>
    %c576 = arith.constant 576 : index
    %c0_29 = arith.constant 0 : index
    %103 = vector.load %arg3[%c576, %c0_29] : memref<864x64xf32, #tpu.memory_space<vmem>>, vector<288x64xf32>
    %cst_30 = arith.constant 1.000000e+00 : f32
    %104 = vector.broadcast %cst_30 : f32 to vector<288x64xf32>
    %105 = arith.subf %104, %103 : vector<288x64xf32>
    %106 = arith.mulf %102, %105 : vector<288x64xf32>
    %107 = arith.addf %106, %98 : vector<288x64xf32>
    %c2_31 = arith.constant 2 : index
    %c0_32 = arith.constant 0 : index
    %108 = vector.load %arg8[%c2_31, %c0_32] : memref<3x64xf32, #tpu.memory_space<vmem>>, vector<1x64xf32>
    %109 = vector.broadcast %108 : vector<1x64xf32> to vector<288x64xf32>
    %110 = arith.subf %107, %109 : vector<288x64xf32>
    %cst_33 = arith.constant 0.000000e+00 : f32
    %111 = vector.broadcast %cst_33 : f32 to vector<288x64xf32>
    %112 = arith.cmpf ogt, %110, %111 : vector<288x64xf32>
    %113 = arith.extui %112 : vector<288x64xi1> to vector<288x64xi32>
    %114 = arith.sitofp %113 : vector<288x64xi32> to vector<288x64xf32>
    %c0_34 = arith.constant 0 : index
    %c0_35 = arith.constant 0 : index
    %115 = vector.load %arg14[%c0_34, %c0_35] : memref<864x64xf32, #tpu.memory_space<vmem>>, vector<288x64xf32>
    tpu.vector_store %arg14[%c0_34, %c0_35], %98 {strides = array<i32>} : memref<864x64xf32, #tpu.memory_space<vmem>>, vector<288x64xf32>,
    %c288_36 = arith.constant 288 : index
    %c0_37 = arith.constant 0 : index
    %116 = vector.load %arg14[%c288_36, %c0_37] : memref<864x64xf32, #tpu.memory_space<vmem>>, vector<288x64xf32>
    tpu.vector_store %arg14[%c288_36, %c0_37], %107 {strides = array<i32>} : memref<864x64xf32, #tpu.memory_space<vmem>>, vector<288x64xf32>,
    %c576_38 = arith.constant 576 : index
    %c0_39 = arith.constant 0 : index
    %117 = vector.load %arg14[%c576_38, %c0_39] : memref<864x64xf32, #tpu.memory_space<vmem>>, vector<288x64xf32>
    tpu.vector_store %arg14[%c576_38, %c0_39], %114 {strides = array<i32>} : memref<864x64xf32, #tpu.memory_space<vmem>>, vector<288x64xf32>,
    %118 = vector.extract_strided_slice %114 {offsets = [0, 0], sizes = [8, 64], strides = [1, 1]} : vector<288x64xf32> to vector<8x64xf32>
    %119 = vector.extract_strided_slice %114 {offsets = [8, 0], sizes = [8, 64], strides = [1, 1]} : vector<288x64xf32> to vector<8x64xf32>
    %120 = vector.extract_strided_slice %114 {offsets = [16, 0], sizes = [8, 64], strides = [1, 1]} : vector<288x64xf32> to vector<8x64xf32>
    %121 = vector.extract_strided_slice %114 {offsets = [24, 0], sizes = [8, 64], strides = [1, 1]} : vector<288x64xf32> to vector<8x64xf32>
    %122 = vector.extract_strided_slice %114 {offsets = [32, 0], sizes = [8, 64], strides = [1, 1]} : vector<288x64xf32> to vector<8x64xf32>
    %123 = vector.extract_strided_slice %114 {offsets = [40, 0], sizes = [8, 64], strides = [1, 1]} : vector<288x64xf32> to vector<8x64xf32>
    %124 = vector.extract_strided_slice %114 {offsets = [48, 0], sizes = [8, 64], strides = [1, 1]} : vector<288x64xf32> to vector<8x64xf32>
    %125 = vector.extract_strided_slice %114 {offsets = [56, 0], sizes = [8, 64], strides = [1, 1]} : vector<288x64xf32> to vector<8x64xf32>
    %126 = vector.extract_strided_slice %114 {offsets = [64, 0], sizes = [8, 64], strides = [1, 1]} : vector<288x64xf32> to vector<8x64xf32>
    %127 = vector.extract_strided_slice %114 {offsets = [72, 0], sizes = [8, 64], strides = [1, 1]} : vector<288x64xf32> to vector<8x64xf32>
    %128 = vector.extract_strided_slice %114 {offsets = [80, 0], sizes = [8, 64], strides = [1, 1]} : vector<288x64xf32> to vector<8x64xf32>
    %129 = vector.extract_strided_slice %114 {offsets = [88, 0], sizes = [8, 64], strides = [1, 1]} : vector<288x64xf32> to vector<8x64xf32>
    %130 = vector.extract_strided_slice %114 {offsets = [96, 0], sizes = [8, 64], strides = [1, 1]} : vector<288x64xf32> to vector<8x64xf32>
    %131 = vector.extract_strided_slice %114 {offsets = [104, 0], sizes = [8, 64], strides = [1, 1]} : vector<288x64xf32> to vector<8x64xf32>
    %132 = vector.extract_strided_slice %114 {offsets = [112, 0], sizes = [8, 64], strides = [1, 1]} : vector<288x64xf32> to vector<8x64xf32>
    %133 = vector.extract_strided_slice %114 {offsets = [120, 0], sizes = [8, 64], strides = [1, 1]} : vector<288x64xf32> to vector<8x64xf32>
    %134 = vector.extract_strided_slice %114 {offsets = [128, 0], sizes = [8, 64], strides = [1, 1]} : vector<288x64xf32> to vector<8x64xf32>
    %135 = vector.extract_strided_slice %114 {offsets = [136, 0], sizes = [8, 64], strides = [1, 1]} : vector<288x64xf32> to vector<8x64xf32>
    %136 = vector.extract_strided_slice %114 {offsets = [144, 0], sizes = [8, 64], strides = [1, 1]} : vector<288x64xf32> to vector<8x64xf32>
    %137 = vector.extract_strided_slice %114 {offsets = [152, 0], sizes = [8, 64], strides = [1, 1]} : vector<288x64xf32> to vector<8x64xf32>
    %138 = vector.extract_strided_slice %114 {offsets = [160, 0], sizes = [8, 64], strides = [1, 1]} : vector<288x64xf32> to vector<8x64xf32>
    %139 = vector.extract_strided_slice %114 {offsets = [168, 0], sizes = [8, 64], strides = [1, 1]} : vector<288x64xf32> to vector<8x64xf32>
    %140 = vector.extract_strided_slice %114 {offsets = [176, 0], sizes = [8, 64], strides = [1, 1]} : vector<288x64xf32> to vector<8x64xf32>
    %141 = vector.extract_strided_slice %114 {offsets = [184, 0], sizes = [8, 64], strides = [1, 1]} : vector<288x64xf32> to vector<8x64xf32>
    %142 = vector.extract_strided_slice %114 {offsets = [192, 0], sizes = [8, 64], strides = [1, 1]} : vector<288x64xf32> to vector<8x64xf32>
    %143 = vector.extract_strided_slice %114 {offsets = [200, 0], sizes = [8, 64], strides = [1, 1]} : vector<288x64xf32> to vector<8x64xf32>
    %144 = vector.extract_strided_slice %114 {offsets = [208, 0], sizes = [8, 64], strides = [1, 1]} : vector<288x64xf32> to vector<8x64xf32>
    %145 = vector.extract_strided_slice %114 {offsets = [216, 0], sizes = [8, 64], strides = [1, 1]} : vector<288x64xf32> to vector<8x64xf32>
    %146 = vector.extract_strided_slice %114 {offsets = [224, 0], sizes = [8, 64], strides = [1, 1]} : vector<288x64xf32> to vector<8x64xf32>
    %147 = vector.extract_strided_slice %114 {offsets = [232, 0], sizes = [8, 64], strides = [1, 1]} : vector<288x64xf32> to vector<8x64xf32>
    %148 = vector.extract_strided_slice %114 {offsets = [240, 0], sizes = [8, 64], strides = [1, 1]} : vector<288x64xf32> to vector<8x64xf32>
    %149 = vector.extract_strided_slice %114 {offsets = [248, 0], sizes = [8, 64], strides = [1, 1]} : vector<288x64xf32> to vector<8x64xf32>
    %150 = vector.extract_strided_slice %114 {offsets = [256, 0], sizes = [8, 64], strides = [1, 1]} : vector<288x64xf32> to vector<8x64xf32>
    %151 = vector.extract_strided_slice %114 {offsets = [264, 0], sizes = [8, 64], strides = [1, 1]} : vector<288x64xf32> to vector<8x64xf32>
    %152 = vector.extract_strided_slice %114 {offsets = [272, 0], sizes = [8, 64], strides = [1, 1]} : vector<288x64xf32> to vector<8x64xf32>
    %153 = vector.extract_strided_slice %114 {offsets = [280, 0], sizes = [8, 64], strides = [1, 1]} : vector<288x64xf32> to vector<8x64xf32>
    %154 = tpu.concatenate %118, %119, %120, %121, %122, %123, %124, %125, %126, %127, %128, %129, %130, %131, %132, %133 in 1 : vector<8x64xf32>, vector<8x64xf32>, vector<8x64xf32>, vector<8x64xf32>, vector<8x64xf32>, vector<8x64xf32>, vector<8x64xf32>, vector<8x64xf32>, vector<8x64xf32>, vector<8x64xf32>, vector<8x64xf32>, vector<8x64xf32>, vector<8x64xf32>, vector<8x64xf32>, vector<8x64xf32>, vector<8x64xf32> -> vector<8x1024xf32>
    %155 = tpu.concatenate %134, %135, %136, %137, %138, %139, %140, %141, %142, %143, %144, %145, %146, %147, %148, %149 in 1 : vector<8x64xf32>, vector<8x64xf32>, vector<8x64xf32>, vector<8x64xf32>, vector<8x64xf32>, vector<8x64xf32>, vector<8x64xf32>, vector<8x64xf32>, vector<8x64xf32>, vector<8x64xf32>, vector<8x64xf32>, vector<8x64xf32>, vector<8x64xf32>, vector<8x64xf32>, vector<8x64xf32>, vector<8x64xf32> -> vector<8x1024xf32>
    %156 = tpu.concatenate %150, %151, %152, %153 in 1 : vector<8x64xf32>, vector<8x64xf32>, vector<8x64xf32>, vector<8x64xf32> -> vector<8x256xf32>
    %157 = tpu.concatenate %154, %155, %156 in 1 : vector<8x1024xf32>, vector<8x1024xf32>, vector<8x256xf32> -> vector<8x2304xf32>
    %158 = arith.truncf %157 : vector<8x2304xf32> to vector<8x2304xbf16>
    %c0_40 = arith.constant 0 : index
    %c0_41 = arith.constant 0 : index
    %159 = vector.load %arg9[%c0_40, %c0_41] : memref<2304x256xbf16, #tpu.memory_space<vmem>>, vector<2304x256xbf16>
    %cst_42 = arith.constant dense<0.000000e+00> : vector<8x256xf32>
    %160 = tpu.matmul %158, %159, %cst_42 {dimension_numbers = #tpu.dot_dimension_numbers<[1], [0], [0], [1], [0, 0, 1, 1], [], []>} : vector<8x2304xbf16>, vector<2304x256xbf16>, vector<8x256xf32> -> vector<8x256xf32>
    %c0_43 = arith.constant 0 : index
    %c0_44 = arith.constant 0 : index
    %161 = vector.load %arg10[%c0_43, %c0_44] : memref<3x256xf32, #tpu.memory_space<vmem>>, vector<1x256xf32>
    %c0_45 = arith.constant 0 : index
    %c0_46 = arith.constant 0 : index
    %162 = vector.load %arg4[%c0_45, %c0_46] : memref<24x256xf32, #tpu.memory_space<vmem>>, vector<8x256xf32>
    %163 = vector.broadcast %161 : vector<1x256xf32> to vector<8x256xf32>
    %164 = arith.mulf %163, %162 : vector<8x256xf32>
    %165 = arith.addf %164, %160 : vector<8x256xf32>
    %c1_47 = arith.constant 1 : index
    %c0_48 = arith.constant 0 : index
    %166 = vector.load %arg10[%c1_47, %c0_48] : memref<3x256xf32, #tpu.memory_space<vmem>>, vector<1x256xf32>
    %c8 = arith.constant 8 : index
    %c0_49 = arith.constant 0 : index
    %167 = vector.load %arg4[%c8, %c0_49] : memref<24x256xf32, #tpu.memory_space<vmem>>, vector<8x256xf32>
    %168 = vector.broadcast %166 : vector<1x256xf32> to vector<8x256xf32>
    %169 = arith.mulf %168, %167 : vector<8x256xf32>
    %c16 = arith.constant 16 : index
    %c0_50 = arith.constant 0 : index
    %170 = vector.load %arg4[%c16, %c0_50] : memref<24x256xf32, #tpu.memory_space<vmem>>, vector<8x256xf32>
    %cst_51 = arith.constant 1.000000e+00 : f32
    %171 = vector.broadcast %cst_51 : f32 to vector<8x256xf32>
    %172 = arith.subf %171, %170 : vector<8x256xf32>
    %173 = arith.mulf %169, %172 : vector<8x256xf32>
    %174 = arith.addf %173, %165 : vector<8x256xf32>
    %c2_52 = arith.constant 2 : index
    %c0_53 = arith.constant 0 : index
    %175 = vector.load %arg10[%c2_52, %c0_53] : memref<3x256xf32, #tpu.memory_space<vmem>>, vector<1x256xf32>
    %176 = vector.broadcast %175 : vector<1x256xf32> to vector<8x256xf32>
    %177 = arith.subf %174, %176 : vector<8x256xf32>
    %cst_54 = arith.constant 0.000000e+00 : f32
    %178 = vector.broadcast %cst_54 : f32 to vector<8x256xf32>
    %179 = arith.cmpf ogt, %177, %178 : vector<8x256xf32>
    %180 = arith.extui %179 : vector<8x256xi1> to vector<8x256xi32>
    %181 = arith.sitofp %180 : vector<8x256xi32> to vector<8x256xf32>
    %c0_55 = arith.constant 0 : index
    %c0_56 = arith.constant 0 : index
    %182 = vector.load %arg15[%c0_55, %c0_56] : memref<24x256xf32, #tpu.memory_space<vmem>>, vector<8x256xf32>
    tpu.vector_store %arg15[%c0_55, %c0_56], %165 {strides = array<i32>} : memref<24x256xf32, #tpu.memory_space<vmem>>, vector<8x256xf32>,
    %c8_57 = arith.constant 8 : index
    %c0_58 = arith.constant 0 : index
    %183 = vector.load %arg15[%c8_57, %c0_58] : memref<24x256xf32, #tpu.memory_space<vmem>>, vector<8x256xf32>
    tpu.vector_store %arg15[%c8_57, %c0_58], %174 {strides = array<i32>} : memref<24x256xf32, #tpu.memory_space<vmem>>, vector<8x256xf32>,
    %c16_59 = arith.constant 16 : index
    %c0_60 = arith.constant 0 : index
    %184 = vector.load %arg15[%c16_59, %c0_60] : memref<24x256xf32, #tpu.memory_space<vmem>>, vector<8x256xf32>
    tpu.vector_store %arg15[%c16_59, %c0_60], %181 {strides = array<i32>} : memref<24x256xf32, #tpu.memory_space<vmem>>, vector<8x256xf32>,
    %185 = arith.truncf %181 : vector<8x256xf32> to vector<8x256xbf16>
    %c0_61 = arith.constant 0 : index
    %c0_62 = arith.constant 0 : index
    %186 = vector.load %arg11[%c0_61, %c0_62] : memref<256x128xbf16, #tpu.memory_space<vmem>>, vector<256x128xbf16>
    %cst_63 = arith.constant dense<0.000000e+00> : vector<8x128xf32>
    %187 = tpu.matmul %185, %186, %cst_63 {dimension_numbers = #tpu.dot_dimension_numbers<[1], [0], [0], [1], [0, 0, 1, 1], [], []>} : vector<8x256xbf16>, vector<256x128xbf16>, vector<8x128xf32> -> vector<8x128xf32>
    %c0_64 = arith.constant 0 : index
    %c0_65 = arith.constant 0 : index
    %188 = vector.load %arg12[%c0_64, %c0_65] : memref<1x128xf32, #tpu.memory_space<vmem>>, vector<1x128xf32>
    %189 = vector.broadcast %188 : vector<1x128xf32> to vector<8x128xf32>
    %190 = arith.addf %187, %189 : vector<8x128xf32>
    %c0_66 = arith.constant 0 : index
    %c0_67 = arith.constant 0 : index
    %191 = vector.load %arg16[%c0_66, %c0_67] : memref<8x128xf32, #tpu.memory_space<vmem>>, vector<8x128xf32>
    tpu.vector_store %arg16[%c0_66, %c0_67], %190 {strides = array<i32>} : memref<8x128xf32, #tpu.memory_space<vmem>>, vector<8x128xf32>,
    return
  }
  func.func @transform_0(%arg0: i32) -> (i32, i32) {
    %c0_i32 = arith.constant 0 : i32
    %c0_i32_0 = arith.constant 0 : i32
    %c0_i32_1 = arith.constant 0 : i32
    return %c0_i32, %c0_i32_0 : i32, i32
  }
  func.func @transform_1(%arg0: i32) -> (i32, i32) {
    %c0_i32 = arith.constant 0 : i32
    %c0_i32_0 = arith.constant 0 : i32
    %c0_i32_1 = arith.constant 0 : i32
    return %c0_i32, %c0_i32_0 : i32, i32
  }
  func.func @transform_2(%arg0: i32) -> (i32, i32) {
    %c0_i32 = arith.constant 0 : i32
    %c0_i32_0 = arith.constant 0 : i32
    %c0_i32_1 = arith.constant 0 : i32
    return %c0_i32, %c0_i32_0 : i32, i32
  }
  func.func @transform_3(%arg0: i32) -> (i32, i32) {
    %c0_i32 = arith.constant 0 : i32
    %c0_i32_0 = arith.constant 0 : i32
    %c0_i32_1 = arith.constant 0 : i32
    return %c0_i32, %c0_i32_0 : i32, i32
  }
  func.func @transform_4(%arg0: i32) -> (i32, i32) {
    %c0_i32 = arith.constant 0 : i32
    %c0_i32_0 = arith.constant 0 : i32
    %c0_i32_1 = arith.constant 0 : i32
    return %c0_i32, %c0_i32_0 : i32, i32
  }
  func.func @transform_5(%arg0: i32) -> (i32, i32) {
    %c0_i32 = arith.constant 0 : i32
    %c0_i32_0 = arith.constant 0 : i32
    %c0_i32_1 = arith.constant 0 : i32
    return %c0_i32, %c0_i32_0 : i32, i32
  }
  func.func @transform_6(%arg0: i32) -> (i32, i32) {
    %c0_i32 = arith.constant 0 : i32
    %c0_i32_0 = arith.constant 0 : i32
    %c0_i32_1 = arith.constant 0 : i32
    return %c0_i32, %c0_i32_0 : i32, i32
  }
  func.func @transform_7(%arg0: i32) -> (i32, i32) {
    %c0_i32 = arith.constant 0 : i32
    %c0_i32_0 = arith.constant 0 : i32
    %c0_i32_1 = arith.constant 0 : i32
    return %c0_i32, %c0_i32_0 : i32, i32
  }
  func.func @transform_8(%arg0: i32) -> (i32, i32) {
    %c0_i32 = arith.constant 0 : i32
    %c0_i32_0 = arith.constant 0 : i32
    %c0_i32_1 = arith.constant 0 : i32
    return %c0_i32, %c0_i32_0 : i32, i32
  }
  func.func @transform_9(%arg0: i32) -> (i32, i32) {
    %c0_i32 = arith.constant 0 : i32
    %c0_i32_0 = arith.constant 0 : i32
    %c0_i32_1 = arith.constant 0 : i32
    return %c0_i32, %c0_i32_0 : i32, i32
  }
  func.func @transform_10(%arg0: i32) -> (i32, i32) {
    %c0_i32 = arith.constant 0 : i32
    %c0_i32_0 = arith.constant 0 : i32
    %c0_i32_1 = arith.constant 0 : i32
    return %c0_i32, %c0_i32_0 : i32, i32
  }
  func.func @transform_11(%arg0: i32) -> (i32, i32) {
    %c0_i32 = arith.constant 0 : i32
    %c0_i32_0 = arith.constant 0 : i32
    %c0_i32_1 = arith.constant 0 : i32
    return %c0_i32, %c0_i32_0 : i32, i32
  }
  func.func @transform_12(%arg0: i32) -> (i32, i32) {
    %c0_i32 = arith.constant 0 : i32
    %c0_i32_0 = arith.constant 0 : i32
    %c0_i32_1 = arith.constant 0 : i32
    return %c0_i32, %c0_i32_0 : i32, i32
  }
  func.func @transform_13(%arg0: i32) -> (i32, i32) {
    %c0_i32 = arith.constant 0 : i32
    %c0_i32_0 = arith.constant 0 : i32
    %c0_i32_1 = arith.constant 0 : i32
    return %c0_i32, %c0_i32_0 : i32, i32
  }
  func.func @transform_14(%arg0: i32) -> (i32, i32) {
    %c0_i32 = arith.constant 0 : i32
    %c0_i32_0 = arith.constant 0 : i32
    %c0_i32_1 = arith.constant 0 : i32
    return %c0_i32, %c0_i32_0 : i32, i32
  }
  func.func @transform_15(%arg0: i32) -> (i32, i32) {
    %c0_i32 = arith.constant 0 : i32
    %c0_i32_0 = arith.constant 0 : i32
    %c0_i32_1 = arith.constant 0 : i32
    return %c0_i32, %c0_i32_0 : i32, i32
  }
}

</mosaic_0001>

<llo_original>
// kernel: _model_forward.1
$region0: #{_model_forward.1}
  #allocation0 [shape = 'u32[]', space=smem, size = 0x4, offset = 0x4, fixed_abs, tag = 'smem constant byte address 0x4 - core index']
  #allocation1 [shape = 'u32[144,128]{1,0:T(1,128)}', space=vmem, size = 0x12000, scoped, tag = 'internal scratch']
  %s0 = inlined_call_operand.vmem [shape: f32[1568,9], index: 0, kind: input, shape index: {}]
  %s1 = inlined_call_operand.vmem [shape: f32[4704,32], index: 1, kind: input, shape index: {}]
  %s2 = inlined_call_operand.vmem [shape: f32[864,64], index: 2, kind: input, shape index: {}]
  %s3 = inlined_call_operand.vmem [shape: f32[24,256], index: 3, kind: input, shape index: {}]
  %s4 = inlined_call_operand.vmem [shape: f32[9,32], index: 4, kind: input, shape index: {}]
  %s5 = inlined_call_operand.vmem [shape: f32[3,32], index: 5, kind: input, shape index: {}]
  %s6 = inlined_call_operand.vmem [shape: bf16[288,64], index: 6, kind: input, shape index: {}]
  %s7 = inlined_call_operand.vmem [shape: f32[3,64], index: 7, kind: input, shape index: {}]
  %s8 = inlined_call_operand.vmem [shape: bf16[2304,256], index: 8, kind: input, shape index: {}]
  %s9 = inlined_call_operand.vmem [shape: f32[3,256], index: 9, kind: input, shape index: {}]
  %s10 = inlined_call_operand.vmem [shape: bf16[256,128], index: 10, kind: input, shape index: {}]
  %s11 = inlined_call_operand.vmem [shape: f32[1,128], index: 11, kind: input, shape index: {}]
  %s12 = inlined_call_operand.vmem [shape: f32[4704,32], index: 12, kind: output, shape index: {0}]
  %s13 = inlined_call_operand.vmem [shape: f32[864,64], index: 13, kind: output, shape index: {1}]
  %s14 = inlined_call_operand.hbm [shape: f32[24,256], index: 14, kind: output, shape index: {2}]
  %s15 = inlined_call_operand.vmem [shape: f32[8,128], index: 15, kind: output, shape index: {3}]
  %16 = xla_tuple %s12, %s13, %s14, %s15
  %s17 = sld [smem:[#allocation0]]
  $region82: #{_model_forward.1} parent=0
    _
  %s19 = ssub.s32 1, %s17
  %s20 = scalar_select 0, %s19, %s17
  $region1: #{_model_forward.1} parent=0
    #allocation2 [shape = 'u8[24576]{0}', space=vmem, size = 0x6000, scoped, tag = 'output window, operand 2, single buffered']
    #allocation3 [shape = 's32[1]{0}', space=sflag, size = 0x4, scoped, tag = 'scoped memory for _model_forward.1']
    %21 = vsyncpa [#allocation3], 0
    // Predicated region
    $region2: #{_model_forward.1} parent=1 // pred_check
      _
    $region3: #{_model_forward.1} parent=1 // pred_check_branch
      %23 = sbr.rel (0) target = $region5
    $region4: #{_model_forward.1} parent=1 // pred_region
      _
    $region5: #{_model_forward.1} parent=1 // pred_fallthru
      _
    // Predicated region
    $region6: #{_model_forward.1} parent=1 // pred_check
      _
    $region7: #{_model_forward.1} parent=1 // pred_check_branch
      %25 = sbr.rel (0) target = $region9
    $region8: #{_model_forward.1} parent=1 // pred_region
      _
    $region9: #{_model_forward.1} parent=1 // pred_fallthru
      _
    // Predicated region
    $region10: #{_model_forward.1} parent=1 // pred_check
      _
    $region11: #{_model_forward.1} parent=1 // pred_check_branch
      %27 = sbr.rel (0) target = $region13
    $region12: #{_model_forward.1} parent=1 // pred_region
      _
    $region13: #{_model_forward.1} parent=1 // pred_fallthru
      _
    // Predicated region
    $region14: #{_model_forward.1} parent=1 // pred_check
      _
    $region15: #{_model_forward.1} parent=1 // pred_check_branch
      %29 = sbr.rel (0) target = $region17
    $region16: #{_model_forward.1} parent=1 // pred_region
      _
    $region17: #{_model_forward.1} parent=1 // pred_fallthru
      _
    // Predicated region
    $region18: #{_model_forward.1} parent=1 // pred_check
      _
    $region19: #{_model_forward.1} parent=1 // pred_check_branch
      %31 = sbr.rel (0) target = $region21
    $region20: #{_model_forward.1} parent=1 // pred_region
      _
    $region21: #{_model_forward.1} parent=1 // pred_fallthru
      _
    // Predicated region
    $region22: #{_model_forward.1} parent=1 // pred_check
      _
    $region23: #{_model_forward.1} parent=1 // pred_check_branch
      %33 = sbr.rel (0) target = $region25
    $region24: #{_model_forward.1} parent=1 // pred_region
      _
    $region25: #{_model_forward.1} parent=1 // pred_fallthru
      _
    // Predicated region
    $region26: #{_model_forward.1} parent=1 // pred_check
      _
    $region27: #{_model_forward.1} parent=1 // pred_check_branch
      %35 = sbr.rel (0) target = $region29
    $region28: #{_model_forward.1} parent=1 // pred_region
      _
    $region29: #{_model_forward.1} parent=1 // pred_fallthru
      _
    // Predicated region
    $region30: #{_model_forward.1} parent=1 // pred_check
      _
    $region31: #{_model_forward.1} parent=1 // pred_check_branch
      %37 = sbr.rel (0) target = $region33
    $region32: #{_model_forward.1} parent=1 // pred_region
      _
    $region33: #{_model_forward.1} parent=1 // pred_fallthru
      _
    // Predicated region
    $region34: #{_model_forward.1} parent=1 // pred_check
      _
    $region35: #{_model_forward.1} parent=1 // pred_check_branch
      %39 = sbr.rel (0) target = $region37
    $region36: #{_model_forward.1} parent=1 // pred_region
      _
    $region37: #{_model_forward.1} parent=1 // pred_fallthru
      _
    // Predicated region
    $region38: #{_model_forward.1} parent=1 // pred_check
      _
    $region39: #{_model_forward.1} parent=1 // pred_check_branch
      %41 = sbr.rel (0) target = $region41
    $region40: #{_model_forward.1} parent=1 // pred_region
      _
    $region41: #{_model_forward.1} parent=1 // pred_fallthru
      _
    // Predicated region
    $region42: #{_model_forward.1} parent=1 // pred_check
      _
    $region43: #{_model_forward.1} parent=1 // pred_check_branch
      %43 = sbr.rel (0) target = $region45
    $region44: #{_model_forward.1} parent=1 // pred_region
      _
    $region45: #{_model_forward.1} parent=1 // pred_fallthru
      _
    // Predicated region
    $region46: #{_model_forward.1} parent=1 // pred_check
      _
    $region47: #{_model_forward.1} parent=1 // pred_check_branch
      %45 = sbr.rel (0) target = $region49
    $region48: #{_model_forward.1} parent=1 // pred_region
      _
    $region49: #{_model_forward.1} parent=1 // pred_fallthru
      _
    %v47 = vld [vmem:[%s0] sm:$0xff]
    %v48 = vld [vmem:[%s0 + $0x8] sm:$0xff]
    %v49 = vld [vmem:[%s0 + $0x10] sm:$0xff]
    %v50 = vld [vmem:[%s0 + $0x18] sm:$0xff]
    %v51 = vld [vmem:[%s0 + $0x20] sm:$0xff]
    %v52 = vld [vmem:[%s0 + $0x28] sm:$0xff]
    %v53 = vld [vmem:[%s0 + $0x30] sm:$0xff]
    %v54 = vld [vmem:[%s0 + $0x38] sm:$0xff]
    %v55 = vld [vmem:[%s0 + $0x40] sm:$0xff]
    %v56 = vld [vmem:[%s0 + $0x48] sm:$0xff]
    %v57 = vld [vmem:[%s0 + $0x50] sm:$0xff]
    %v58 = vld [vmem:[%s0 + $0x58] sm:$0xff]
    %v59 = vld [vmem:[%s0 + $0x60] sm:$0xff]
    %v60 = vld [vmem:[%s0 + $0x68] sm:$0xff]
    %v61 = vld [vmem:[%s0 + $0x70] sm:$0xff]
    %v62 = vld [vmem:[%s0 + $0x78] sm:$0xff]
    %v63 = vld [vmem:[%s0 + $0x80] sm:$0xff]
    %v64 = vld [vmem:[%s0 + $0x88] sm:$0xff]
    %v65 = vld [vmem:[%s0 + $0x90] sm:$0xff]
    %v66 = vld [vmem:[%s0 + $0x98] sm:$0xff]
    %v67 = vld [vmem:[%s0 + $0xa0] sm:$0xff]
    %v68 = vld [vmem:[%s0 + $0xa8] sm:$0xff]
    %v69 = vld [vmem:[%s0 + $0xb0] sm:$0xff]
    %v70 = vld [vmem:[%s0 + $0xb8] sm:$0xff]
    %v71 = vld [vmem:[%s0 + $0xc0] sm:$0xff]
    %v72 = vld [vmem:[%s0 + $0xc8] sm:$0xff]
    %v73 = vld [vmem:[%s0 + $0xd0] sm:$0xff]
    %v74 = vld [vmem:[%s0 + $0xd8] sm:$0xff]
    %v75 = vld [vmem:[%s0 + $0xe0] sm:$0xff]
    %v76 = vld [vmem:[%s0 + $0xe8] sm:$0xff]
    %v77 = vld [vmem:[%s0 + $0xf0] sm:$0xff]
    %v78 = vld [vmem:[%s0 + $0xf8] sm:$0xff]
    %v79 = vld [vmem:[%s0 + $0x100] sm:$0xff]
    %v80 = vld [vmem:[%s0 + $0x108] sm:$0xff]
    %v81 = vld [vmem:[%s0 + $0x110] sm:$0xff]
    %v82 = vld [vmem:[%s0 + $0x118] sm:$0xff]
    %v83 = vld [vmem:[%s0 + $0x120] sm:$0xff]
    %v84 = vld [vmem:[%s0 + $0x128] sm:$0xff]
    %v85 = vld [vmem:[%s0 + $0x130] sm:$0xff]
    %v86 = vld [vmem:[%s0 + $0x138] sm:$0xff]
    %v87 = vld [vmem:[%s0 + $0x140] sm:$0xff]
    %v88 = vld [vmem:[%s0 + $0x148] sm:$0xff]
    %v89 = vld [vmem:[%s0 + $0x150] sm:$0xff]
    %v90 = vld [vmem:[%s0 + $0x158] sm:$0xff]
    %v91 = vld [vmem:[%s0 + $0x160] sm:$0xff]
    %v92 = vld [vmem:[%s0 + $0x168] sm:$0xff]
    %v93 = vld [vmem:[%s0 + $0x170] sm:$0xff]
    %v94 = vld [vmem:[%s0 + $0x178] sm:$0xff]
    %v95 = vld [vmem:[%s0 + $0x180] sm:$0xff]
    %v96 = vld [vmem:[%s0 + $0x188] sm:$0xff]
    %v97 = vld [vmem:[%s0 + $0x190] sm:$0xff]
    %v98 = vld [vmem:[%s0 + $0x198] sm:$0xff]
    %v99 = vld [vmem:[%s0 + $0x1a0] sm:$0xff]
    %v100 = vld [vmem:[%s0 + $0x1a8] sm:$0xff]
    %v101 = vld [vmem:[%s0 + $0x1b0] sm:$0xff]
    %v102 = vld [vmem:[%s0 + $0x1b8] sm:$0xff]
    %v103 = vld [vmem:[%s0 + $0x1c0] sm:$0xff]
    %v104 = vld [vmem:[%s0 + $0x1c8] sm:$0xff]
    %v105 = vld [vmem:[%s0 + $0x1d0] sm:$0xff]
    %v106 = vld [vmem:[%s0 + $0x1d8] sm:$0xff]
    %v107 = vld [vmem:[%s0 + $0x1e0] sm:$0xff]
    %v108 = vld [vmem:[%s0 + $0x1e8] sm:$0xff]
    %v109 = vld [vmem:[%s0 + $0x1f0] sm:$0xff]
    %v110 = vld [vmem:[%s0 + $0x1f8] sm:$0xff]
    %v111 = vld [vmem:[%s0 + $0x200] sm:$0xff]
    %v112 = vld [vmem:[%s0 + $0x208] sm:$0xff]
    %v113 = vld [vmem:[%s0 + $0x210] sm:$0xff]
    %v114 = vld [vmem:[%s0 + $0x218] sm:$0xff]
    %v115 = vld [vmem:[%s0 + $0x220] sm:$0xff]
    %v116 = vld [vmem:[%s0 + $0x228] sm:$0xff]
    %v117 = vld [vmem:[%s0 + $0x230] sm:$0xff]
    %v118 = vld [vmem:[%s0 + $0x238] sm:$0xff]
    %v119 = vld [vmem:[%s0 + $0x240] sm:$0xff]
    %v120 = vld [vmem:[%s0 + $0x248] sm:$0xff]
    %v121 = vld [vmem:[%s0 + $0x250] sm:$0xff]
    %v122 = vld [vmem:[%s0 + $0x258] sm:$0xff]
    %v123 = vld [vmem:[%s0 + $0x260] sm:$0xff]
    %v124 = vld [vmem:[%s0 + $0x268] sm:$0xff]
    %v125 = vld [vmem:[%s0 + $0x270] sm:$0xff]
    %v126 = vld [vmem:[%s0 + $0x278] sm:$0xff]
    %v127 = vld [vmem:[%s0 + $0x280] sm:$0xff]
    %v128 = vld [vmem:[%s0 + $0x288] sm:$0xff]
    %v129 = vld [vmem:[%s0 + $0x290] sm:$0xff]
    %v130 = vld [vmem:[%s0 + $0x298] sm:$0xff]
    %v131 = vld [vmem:[%s0 + $0x2a0] sm:$0xff]
    %v132 = vld [vmem:[%s0 + $0x2a8] sm:$0xff]
    %v133 = vld [vmem:[%s0 + $0x2b0] sm:$0xff]
    %v134 = vld [vmem:[%s0 + $0x2b8] sm:$0xff]
    %v135 = vld [vmem:[%s0 + $0x2c0] sm:$0xff]
    %v136 = vld [vmem:[%s0 + $0x2c8] sm:$0xff]
    %v137 = vld [vmem:[%s0 + $0x2d0] sm:$0xff]
    %v138 = vld [vmem:[%s0 + $0x2d8] sm:$0xff]
    %v139 = vld [vmem:[%s0 + $0x2e0] sm:$0xff]
    %v140 = vld [vmem:[%s0 + $0x2e8] sm:$0xff]
    %v141 = vld [vmem:[%s0 + $0x2f0] sm:$0xff]
    %v142 = vld [vmem:[%s0 + $0x2f8] sm:$0xff]
    %v143 = vld [vmem:[%s0 + $0x300] sm:$0xff]
    %v144 = vld [vmem:[%s0 + $0x308] sm:$0xff]
    %v145 = vld [vmem:[%s0 + $0x310] sm:$0xff]
    %v146 = vld [vmem:[%s0 + $0x318] sm:$0xff]
    %v147 = vld [vmem:[%s0 + $0x320] sm:$0xff]
    %v148 = vld [vmem:[%s0 + $0x328] sm:$0xff]
    %v149 = vld [vmem:[%s0 + $0x330] sm:$0xff]
    %v150 = vld [vmem:[%s0 + $0x338] sm:$0xff]
    %v151 = vld [vmem:[%s0 + $0x340] sm:$0xff]
    %v152 = vld [vmem:[%s0 + $0x348] sm:$0xff]
    %v153 = vld [vmem:[%s0 + $0x350] sm:$0xff]
    %v154 = vld [vmem:[%s0 + $0x358] sm:$0xff]
    %v155 = vld [vmem:[%s0 + $0x360] sm:$0xff]
    %v156 = vld [vmem:[%s0 + $0x368] sm:$0xff]
    %v157 = vld [vmem:[%s0 + $0x370] sm:$0xff]
    %v158 = vld [vmem:[%s0 + $0x378] sm:$0xff]
    %v159 = vld [vmem:[%s0 + $0x380] sm:$0xff]
    %v160 = vld [vmem:[%s0 + $0x388] sm:$0xff]
    %v161 = vld [vmem:[%s0 + $0x390] sm:$0xff]
    %v162 = vld [vmem:[%s0 + $0x398] sm:$0xff]
    %v163 = vld [vmem:[%s0 + $0x3a0] sm:$0xff]
    %v164 = vld [vmem:[%s0 + $0x3a8] sm:$0xff]
    %v165 = vld [vmem:[%s0 + $0x3b0] sm:$0xff]
    %v166 = vld [vmem:[%s0 + $0x3b8] sm:$0xff]
    %v167 = vld [vmem:[%s0 + $0x3c0] sm:$0xff]
    %v168 = vld [vmem:[%s0 + $0x3c8] sm:$0xff]
    %v169 = vld [vmem:[%s0 + $0x3d0] sm:$0xff]
    %v170 = vld [vmem:[%s0 + $0x3d8] sm:$0xff]
    %v171 = vld [vmem:[%s0 + $0x3e0] sm:$0xff]
    %v172 = vld [vmem:[%s0 + $0x3e8] sm:$0xff]
    %v173 = vld [vmem:[%s0 + $0x3f0] sm:$0xff]
    %v174 = vld [vmem:[%s0 + $0x3f8] sm:$0xff]
    %v175 = vld [vmem:[%s0 + $0x400] sm:$0xff]
    %v176 = vld [vmem:[%s0 + $0x408] sm:$0xff]
    %v177 = vld [vmem:[%s0 + $0x410] sm:$0xff]
    %v178 = vld [vmem:[%s0 + $0x418] sm:$0xff]
    %v179 = vld [vmem:[%s0 + $0x420] sm:$0xff]
    %v180 = vld [vmem:[%s0 + $0x428] sm:$0xff]
    %v181 = vld [vmem:[%s0 + $0x430] sm:$0xff]
    %v182 = vld [vmem:[%s0 + $0x438] sm:$0xff]
    %v183 = vld [vmem:[%s0 + $0x440] sm:$0xff]
    %v184 = vld [vmem:[%s0 + $0x448] sm:$0xff]
    %v185 = vld [vmem:[%s0 + $0x450] sm:$0xff]
    %v186 = vld [vmem:[%s0 + $0x458] sm:$0xff]
    %v187 = vld [vmem:[%s0 + $0x460] sm:$0xff]
    %v188 = vld [vmem:[%s0 + $0x468] sm:$0xff]
    %v189 = vld [vmem:[%s0 + $0x470] sm:$0xff]
    %v190 = vld [vmem:[%s0 + $0x478] sm:$0xff]
    %v191 = vld [vmem:[%s0 + $0x480] sm:$0xff]
    %v192 = vld [vmem:[%s0 + $0x488] sm:$0xff]
    %v193 = vld [vmem:[%s0 + $0x490] sm:$0xff]
    %v194 = vld [vmem:[%s0 + $0x498] sm:$0xff]
    %v195 = vld [vmem:[%s0 + $0x4a0] sm:$0xff]
    %v196 = vld [vmem:[%s0 + $0x4a8] sm:$0xff]
    %v197 = vld [vmem:[%s0 + $0x4b0] sm:$0xff]
    %v198 = vld [vmem:[%s0 + $0x4b8] sm:$0xff]
    %v199 = vld [vmem:[%s0 + $0x4c0] sm:$0xff]
    %v200 = vld [vmem:[%s0 + $0x4c8] sm:$0xff]
    %v201 = vld [vmem:[%s0 + $0x4d0] sm:$0xff]
    %v202 = vld [vmem:[%s0 + $0x4d8] sm:$0xff]
    %v203 = vld [vmem:[%s0 + $0x4e0] sm:$0xff]
    %v204 = vld [vmem:[%s0 + $0x4e8] sm:$0xff]
    %v205 = vld [vmem:[%s0 + $0x4f0] sm:$0xff]
    %v206 = vld [vmem:[%s0 + $0x4f8] sm:$0xff]
    %v207 = vld [vmem:[%s0 + $0x500] sm:$0xff]
    %v208 = vld [vmem:[%s0 + $0x508] sm:$0xff]
    %v209 = vld [vmem:[%s0 + $0x510] sm:$0xff]
    %v210 = vld [vmem:[%s0 + $0x518] sm:$0xff]
    %v211 = vld [vmem:[%s0 + $0x520] sm:$0xff]
    %v212 = vld [vmem:[%s0 + $0x528] sm:$0xff]
    %v213 = vld [vmem:[%s0 + $0x530] sm:$0xff]
    %v214 = vld [vmem:[%s0 + $0x538] sm:$0xff]
    %v215 = vld [vmem:[%s0 + $0x540] sm:$0xff]
    %v216 = vld [vmem:[%s0 + $0x548] sm:$0xff]
    %v217 = vld [vmem:[%s0 + $0x550] sm:$0xff]
    %v218 = vld [vmem:[%s0 + $0x558] sm:$0xff]
    %v219 = vld [vmem:[%s0 + $0x560] sm:$0xff]
    %v220 = vld [vmem:[%s0 + $0x568] sm:$0xff]
    %v221 = vld [vmem:[%s0 + $0x570] sm:$0xff]
    %v222 = vld [vmem:[%s0 + $0x578] sm:$0xff]
    %v223 = vld [vmem:[%s0 + $0x580] sm:$0xff]
    %v224 = vld [vmem:[%s0 + $0x588] sm:$0xff]
    %v225 = vld [vmem:[%s0 + $0x590] sm:$0xff]
    %v226 = vld [vmem:[%s0 + $0x598] sm:$0xff]
    %v227 = vld [vmem:[%s0 + $0x5a0] sm:$0xff]
    %v228 = vld [vmem:[%s0 + $0x5a8] sm:$0xff]
    %v229 = vld [vmem:[%s0 + $0x5b0] sm:$0xff]
    %v230 = vld [vmem:[%s0 + $0x5b8] sm:$0xff]
    %v231 = vld [vmem:[%s0 + $0x5c0] sm:$0xff]
    %v232 = vld [vmem:[%s0 + $0x5c8] sm:$0xff]
    %v233 = vld [vmem:[%s0 + $0x5d0] sm:$0xff]
    %v234 = vld [vmem:[%s0 + $0x5d8] sm:$0xff]
    %v235 = vld [vmem:[%s0 + $0x5e0] sm:$0xff]
    %v236 = vld [vmem:[%s0 + $0x5e8] sm:$0xff]
    %v237 = vld [vmem:[%s0 + $0x5f0] sm:$0xff]
    %v238 = vld [vmem:[%s0 + $0x5f8] sm:$0xff]
    %v239 = vld [vmem:[%s0 + $0x600] sm:$0xff]
    %v240 = vld [vmem:[%s0 + $0x608] sm:$0xff]
    %v241 = vld [vmem:[%s0 + $0x610] sm:$0xff]
    %v242 = vld [vmem:[%s0 + $0x618] sm:$0xff]
    %v243 = vld [vmem:[%s4] sm:$0xff]
    %v244 = vld [vmem:[%s4 + $0x8] sm:$0x1]
    %vm245 = vcmask 72704
    %v247 = vsel %vm245, %v47, 0
    %v250 = vsel %vm245, %v48, 0
    %v253 = vsel %vm245, %v49, 0
    %v256 = vsel %vm245, %v50, 0
    %v259 = vsel %vm245, %v51, 0
    %v262 = vsel %vm245, %v52, 0
    %v265 = vsel %vm245, %v53, 0
    %v268 = vsel %vm245, %v54, 0
    %v271 = vsel %vm245, %v55, 0
    %v274 = vsel %vm245, %v56, 0
    %v277 = vsel %vm245, %v57, 0
    %v280 = vsel %vm245, %v58, 0
    %v283 = vsel %vm245, %v59, 0
    %v286 = vsel %vm245, %v60, 0
    %v289 = vsel %vm245, %v61, 0
    %v292 = vsel %vm245, %v62, 0
    %v295 = vsel %vm245, %v63, 0
    %v298 = vsel %vm245, %v64, 0
    %v301 = vsel %vm245, %v65, 0
    %v304 = vsel %vm245, %v66, 0
    %v307 = vsel %vm245, %v67, 0
    %v310 = vsel %vm245, %v68, 0
    %v313 = vsel %vm245, %v69, 0
    %v316 = vsel %vm245, %v70, 0
    %v319 = vsel %vm245, %v71, 0
    %v322 = vsel %vm245, %v72, 0
    %v325 = vsel %vm245, %v73, 0
    %v328 = vsel %vm245, %v74, 0
    %v331 = vsel %vm245, %v75, 0
    %v334 = vsel %vm245, %v76, 0
    %v337 = vsel %vm245, %v77, 0
    %v340 = vsel %vm245, %v78, 0
    %v343 = vsel %vm245, %v79, 0
    %v346 = vsel %vm245, %v80, 0
    %v349 = vsel %vm245, %v81, 0
    %v352 = vsel %vm245, %v82, 0
    %v355 = vsel %vm245, %v83, 0
    %v358 = vsel %vm245, %v84, 0
    %v361 = vsel %vm245, %v85, 0
    %v364 = vsel %vm245, %v86, 0
    %v367 = vsel %vm245, %v87, 0
    %v370 = vsel %vm245, %v88, 0
    %v373 = vsel %vm245, %v89, 0
    %v376 = vsel %vm245, %v90, 0
    %v379 = vsel %vm245, %v91, 0
    %v382 = vsel %vm245, %v92, 0
    %v385 = vsel %vm245, %v93, 0
    %v388 = vsel %vm245, %v94, 0
    %v391 = vsel %vm245, %v95, 0
    %v394 = vsel %vm245, %v96, 0
    %v397 = vsel %vm245, %v97, 0
    %v400 = vsel %vm245, %v98, 0
    %v403 = vsel %vm245, %v99, 0
    %v406 = vsel %vm245, %v100, 0
    %v409 = vsel %vm245, %v101, 0
    %v412 = vsel %vm245, %v102, 0
    %v415 = vsel %vm245, %v103, 0
    %v418 = vsel %vm245, %v104, 0
    %v421 = vsel %vm245, %v105, 0
    %v424 = vsel %vm245, %v106, 0
    %v427 = vsel %vm245, %v107, 0
    %v430 = vsel %vm245, %v108, 0
    %v433 = vsel %vm245, %v109, 0
    %v436 = vsel %vm245, %v110, 0
    %v439 = vsel %vm245, %v111, 0
    %v442 = vsel %vm245, %v112, 0
    %v445 = vsel %vm245, %v113, 0
    %v448 = vsel %vm245, %v114, 0
    %v451 = vsel %vm245, %v115, 0
    %v454 = vsel %vm245, %v116, 0
    %v457 = vsel %vm245, %v117, 0
    %v460 = vsel %vm245, %v118, 0
    %v463 = vsel %vm245, %v119, 0
    %v466 = vsel %vm245, %v120, 0
    %v469 = vsel %vm245, %v121, 0
    %v472 = vsel %vm245, %v122, 0
    %v475 = vsel %vm245, %v123, 0
    %v478 = vsel %vm245, %v124, 0
    %v481 = vsel %vm245, %v125, 0
    %v484 = vsel %vm245, %v126, 0
    %v487 = vsel %vm245, %v127, 0
    %v490 = vsel %vm245, %v128, 0
    %v493 = vsel %vm245, %v129, 0
    %v496 = vsel %vm245, %v130, 0
    %v499 = vsel %vm245, %v131, 0
    %v502 = vsel %vm245, %v132, 0
    %v505 = vsel %vm245, %v133, 0
    %v508 = vsel %vm245, %v134, 0
    %v511 = vsel %vm245, %v135, 0
    %v514 = vsel %vm245, %v136, 0
    %v517 = vsel %vm245, %v137, 0
    %v520 = vsel %vm245, %v138, 0
    %v523 = vsel %vm245, %v139, 0
    %v526 = vsel %vm245, %v140, 0
    %v529 = vsel %vm245, %v141, 0
    %v532 = vsel %vm245, %v142, 0
    %v535 = vsel %vm245, %v143, 0
    %v538 = vsel %vm245, %v144, 0
    %v541 = vsel %vm245, %v145, 0
    %v544 = vsel %vm245, %v146, 0
    %v547 = vsel %vm245, %v147, 0
    %v550 = vsel %vm245, %v148, 0
    %v553 = vsel %vm245, %v149, 0
    %v556 = vsel %vm245, %v150, 0
    %v559 = vsel %vm245, %v151, 0
    %v562 = vsel %vm245, %v152, 0
    %v565 = vsel %vm245, %v153, 0
    %v568 = vsel %vm245, %v154, 0
    %v571 = vsel %vm245, %v155, 0
    %v574 = vsel %vm245, %v156, 0
    %v577 = vsel %vm245, %v157, 0
    %v580 = vsel %vm245, %v158, 0
    %v583 = vsel %vm245, %v159, 0
    %v586 = vsel %vm245, %v160, 0
    %v589 = vsel %vm245, %v161, 0
    %v592 = vsel %vm245, %v162, 0
    %v595 = vsel %vm245, %v163, 0
    %v598 = vsel %vm245, %v164, 0
    %v601 = vsel %vm245, %v165, 0
    %v604 = vsel %vm245, %v166, 0
    %v607 = vsel %vm245, %v167, 0
    %v610 = vsel %vm245, %v168, 0
    %v613 = vsel %vm245, %v169, 0
    %v616 = vsel %vm245, %v170, 0
    %v619 = vsel %vm245, %v171, 0
    %v622 = vsel %vm245, %v172, 0
    %v625 = vsel %vm245, %v173, 0
    %v628 = vsel %vm245, %v174, 0
    %v631 = vsel %vm245, %v175, 0
    %v634 = vsel %vm245, %v176, 0
    %v637 = vsel %vm245, %v177, 0
    %v640 = vsel %vm245, %v178, 0
    %v643 = vsel %vm245, %v179, 0
    %v646 = vsel %vm245, %v180, 0
    %v649 = vsel %vm245, %v181, 0
    %v652 = vsel %vm245, %v182, 0
    %v655 = vsel %vm245, %v183, 0
    %v658 = vsel %vm245, %v184, 0
    %v661 = vsel %vm245, %v185, 0
    %v664 = vsel %vm245, %v186, 0
    %v667 = vsel %vm245, %v187, 0
    %v670 = vsel %vm245, %v188, 0
    %v673 = vsel %vm245, %v189, 0
    %v676 = vsel %vm245, %v190, 0
    %v679 = vsel %vm245, %v191, 0
    %v682 = vsel %vm245, %v192, 0
    %v685 = vsel %vm245, %v193, 0
    %v688 = vsel %vm245, %v194, 0
    %v691 = vsel %vm245, %v195, 0
    %v694 = vsel %vm245, %v196, 0
    %v697 = vsel %vm245, %v197, 0
    %v700 = vsel %vm245, %v198, 0
    %v703 = vsel %vm245, %v199, 0
    %v706 = vsel %vm245, %v200, 0
    %v709 = vsel %vm245, %v201, 0
    %v712 = vsel %vm245, %v202, 0
    %v715 = vsel %vm245, %v203, 0
    %v718 = vsel %vm245, %v204, 0
    %v721 = vsel %vm245, %v205, 0
    %v724 = vsel %vm245, %v206, 0
    %v727 = vsel %vm245, %v207, 0
    %v730 = vsel %vm245, %v208, 0
    %v733 = vsel %vm245, %v209, 0
    %v736 = vsel %vm245, %v210, 0
    %v739 = vsel %vm245, %v211, 0
    %v742 = vsel %vm245, %v212, 0
    %v745 = vsel %vm245, %v213, 0
    %v748 = vsel %vm245, %v214, 0
    %v751 = vsel %vm245, %v215, 0
    %v754 = vsel %vm245, %v216, 0
    %v757 = vsel %vm245, %v217, 0
    %v760 = vsel %vm245, %v218, 0
    %v763 = vsel %vm245, %v219, 0
    %v766 = vsel %vm245, %v220, 0
    %v769 = vsel %vm245, %v221, 0
    %v772 = vsel %vm245, %v222, 0
    %v775 = vsel %vm245, %v223, 0
    %v778 = vsel %vm245, %v224, 0
    %v781 = vsel %vm245, %v225, 0
    %v784 = vsel %vm245, %v226, 0
    %v787 = vsel %vm245, %v227, 0
    %v790 = vsel %vm245, %v228, 0
    %v793 = vsel %vm245, %v229, 0
    %v796 = vsel %vm245, %v230, 0
    %v799 = vsel %vm245, %v231, 0
    %v802 = vsel %vm245, %v232, 0
    %v805 = vsel %vm245, %v233, 0
    %v808 = vsel %vm245, %v234, 0
    %v811 = vsel %vm245, %v235, 0
    %v814 = vsel %vm245, %v236, 0
    %v817 = vsel %vm245, %v237, 0
    %v820 = vsel %vm245, %v238, 0
    %v823 = vsel %vm245, %v239, 0
    %v826 = vsel %vm245, %v240, 0
    %v829 = vsel %vm245, %v241, 0
    %v832 = vsel %vm245, %v242, 0
    %vm834 = vcmask 1040384
    %v836 = vsel %vm834, %v244, 0
    %838 = vmatprep.subr.mxu0 0.0
    %839 = vmatpush1.msra.mxu0 %v243
    %840 = vmatprep.subr.mxu0 0.0
    %841 = vmatpush1.msra.mxu0 %v836
    %842 = vmatprep.subr.mxu0 0.0
    %843 = vmatpush1.msra.mxu0 0.0
    %844 = vmatprep.subr.mxu0 0.0
    %845 = vmatpush1.msra.mxu0 0.0
    %846 = vmatprep.subr.mxu0 0.0
    %847 = vmatpush1.msra.mxu0 0.0
    %848 = vmatprep.subr.mxu0 0.0
    %849 = vmatpush1.msra.mxu0 0.0
    %850 = vmatprep.subr.mxu0 0.0
    %851 = vmatpush1.msra.mxu0 0.0
    %852 = vmatprep.subr.mxu0 0.0
    %853 = vmatpush1.msra.mxu0 0.0
    %854 = vmatprep.subr.mxu0 0.0
    %855 = vmatpush1.msra.mxu0 0.0
    %856 = vmatprep.subr.mxu0 0.0
    %857 = vmatpush1.msra.mxu0 0.0
    %858 = vmatprep.subr.mxu0 0.0
    %859 = vmatpush1.msra.mxu0 0.0
    %860 = vmatprep.subr.mxu0 0.0
    %861 = vmatpush1.msra.mxu0 0.0
    %862 = vmatprep.subr.mxu0 0.0
    %863 = vmatpush1.msra.mxu0 0.0
    %864 = vmatprep.subr.mxu0 0.0
    %865 = vmatpush1.msra.mxu0 0.0
    %866 = vmatprep.subr.mxu0 0.0
    %867 = vmatpush1.msra.mxu0 0.0
    %868 = vmatprep.subr.mxu0 0.0
    %869 = vmatpush1.msra.mxu0 0.0
    %870 = vmatprep.subr.mxu0 0.0
    %871 = vmatpush1.msra.mxu0 0.0
    %872 = vmatprep.subr.mxu0 0.0
    %873 = vmatpush1.msra.mxu0 0.0
    %874 = vmatprep.subr.mxu0 0.0
    %875 = vmatpush1.msra.mxu0 0.0
    %876 = vmatprep.subr.mxu0 0.0
    %877 = vmatpush1.msra.mxu0 0.0
    %878 = vmatprep.subr.mxu0 0.0
    %879 = vmatpush1.msra.mxu0 0.0
    %880 = vmatprep.subr.mxu0 0.0
    %881 = vmatpush1.msra.mxu0 0.0
    %882 = vmatprep.subr.mxu0 0.0
    %883 = vmatpush1.msra.mxu0 0.0
    %884 = vmatprep.subr.mxu0 0.0
    %885 = vmatpush1.msra.mxu0 0.0
    %886 = vmatprep.subr.mxu0 0.0
    %887 = vmatpush1.msra.mxu0 0.0
    %888 = vmatprep.subr.mxu0 0.0
    %889 = vmatpush1.msra.mxu0 0.0
    %890 = vmatprep.subr.mxu0 0.0
    %891 = vmatpush1.msra.mxu0 0.0
    %892 = vmatprep.subr.mxu0 0.0
    %893 = vmatpush1.msra.mxu0 0.0
    %894 = vmatprep.subr.mxu0 0.0
    %895 = vmatpush1.msra.mxu0 0.0
    %896 = vmatprep.subr.mxu0 0.0
    %897 = vmatpush1.msra.mxu0 0.0
    %898 = vmatprep.subr.mxu0 0.0
    %899 = vmatpush1.msra.mxu0 0.0
    %900 = vmatprep.subr.mxu0 0.0
    %901 = vmatpush1.msra.mxu0 0.0
    %902 = vmatprep.mubr.f32.mxu0 0.0
    %903 = vmatmul.mubr.f32.gmra.mrb[0].mxu0 %v247
    %v904 = vpop.f32.mrb[0].mxu0
    %v905 = vadd.f32 0.0, %v904
    %v906 = vpop.f32.mrb[0].mxu0
    %907 = vmatprep.mubr.f32.mxu0 0.0
    %908 = vmatmul.mubr.f32.gmra.mrb[0].mxu0 %v250
    %v909 = vpop.f32.mrb[0].mxu0
    %v910 = vadd.f32 0.0, %v909
    %v911 = vpop.f32.mrb[0].mxu0
    %912 = vmatprep.mubr.f32.mxu0 0.0
    %913 = vmatmul.mubr.f32.gmra.mrb[0].mxu0 %v253
    %v914 = vpop.f32.mrb[0].mxu0
    %v915 = vadd.f32 0.0, %v914
    %v916 = vpop.f32.mrb[0].mxu0
    %917 = vmatprep.mubr.f32.mxu0 0.0
    %918 = vmatmul.mubr.f32.gmra.mrb[0].mxu0 %v256
    %v919 = vpop.f32.mrb[0].mxu0
    %v920 = vadd.f32 0.0, %v919
    %v921 = vpop.f32.mrb[0].mxu0
    %922 = vmatprep.mubr.f32.mxu0 0.0
    %923 = vmatmul.mubr.f32.gmra.mrb[0].mxu0 %v259
    %v924 = vpop.f32.mrb[0].mxu0
    %v925 = vadd.f32 0.0, %v924
    %v926 = vpop.f32.mrb[0].mxu0
    %927 = vmatprep.mubr.f32.mxu0 0.0
    %928 = vmatmul.mubr.f32.gmra.mrb[0].mxu0 %v262
    %v929 = vpop.f32.mrb[0].mxu0
    %v930 = vadd.f32 0.0, %v929
    %v931 = vpop.f32.mrb[0].mxu0
    %932 = vmatprep.mubr.f32.mxu0 0.0
    %933 = vmatmul.mubr.f32.gmra.mrb[0].mxu0 %v265
    %v934 = vpop.f32.mrb[0].mxu0
    %v935 = vadd.f32 0.0, %v934
    %v936 = vpop.f32.mrb[0].mxu0
    %937 = vmatprep.mubr.f32.mxu0 0.0
    %938 = vmatmul.mubr.f32.gmra.mrb[0].mxu0 %v268
    %v939 = vpop.f32.mrb[0].mxu0
    %v940 = vadd.f32 0.0, %v939
    %v941 = vpop.f32.mrb[0].mxu0
    %942 = vmatprep.mubr.f32.mxu0 0.0
    %943 = vmatmul.mubr.f32.gmra.mrb[0].mxu0 %v271
    %v944 = vpop.f32.mrb[0].mxu0
    %v945 = vadd.f32 0.0, %v944
    %v946 = vpop.f32.mrb[0].mxu0
    %947 = vmatprep.mubr.f32.mxu0 0.0
    %948 = vmatmul.mubr.f32.gmra.mrb[0].mxu0 %v274
    %v949 = vpop.f32.mrb[0].mxu0
    %v950 = vadd.f32 0.0, %v949
    %v951 = vpop.f32.mrb[0].mxu0
    %952 = vmatprep.mubr.f32.mxu0 0.0
    %953 = vmatmul.mubr.f32.gmra.mrb[0].mxu0 %v277
    %v954 = vpop.f32.mrb[0].mxu0
    %v955 = vadd.f32 0.0, %v954
    %v956 = vpop.f32.mrb[0].mxu0
    %957 = vmatprep.mubr.f32.mxu0 0.0
    %958 = vmatmul.mubr.f32.gmra.mrb[0].mxu0 %v280
    %v959 = vpop.f32.mrb[0].mxu0
    %v960 = vadd.f32 0.0, %v959
    %v961 = vpop.f32.mrb[0].mxu0
    %962 = vmatprep.mubr.f32.mxu0 0.0
    %963 = vmatmul.mubr.f32.gmra.mrb[0].mxu0 %v283
    %v964 = vpop.f32.mrb[0].mxu0
    %v965 = vadd.f32 0.0, %v964
    %v966 = vpop.f32.mrb[0].mxu0
    %967 = vmatprep.mubr.f32.mxu0 0.0
    %968 = vmatmul.mubr.f32.gmra.mrb[0].mxu0 %v286
    %v969 = vpop.f32.mrb[0].mxu0
    %v970 = vadd.f32 0.0, %v969
    %v971 = vpop.f32.mrb[0].mxu0
    %972 = vmatprep.mubr.f32.mxu0 0.0
    %973 = vmatmul.mubr.f32.gmra.mrb[0].mxu0 %v289
    %v974 = vpop.f32.mrb[0].mxu0
    %v975 = vadd.f32 0.0, %v974
    %v976 = vpop.f32.mrb[0].mxu0
    %977 = vmatprep.mubr.f32.mxu0 0.0
    %978 = vmatmul.mubr.f32.gmra.mrb[0].mxu0 %v292
    %v979 = vpop.f32.mrb[0].mxu0
    %v980 = vadd.f32 0.0, %v979
    %v981 = vpop.f32.mrb[0].mxu0
    %982 = vmatprep.mubr.f32.mxu0 0.0
    %983 = vmatmul.mubr.f32.gmra.mrb[0].mxu0 %v295
    %v984 = vpop.f32.mrb[0].mxu0
    %v985 = vadd.f32 0.0, %v984
    %v986 = vpop.f32.mrb[0].mxu0
    %987 = vmatprep.mubr.f32.mxu0 0.0
    %988 = vmatmul.mubr.f32.gmra.mrb[0].mxu0 %v298
    %v989 = vpop.f32.mrb[0].mxu0
    %v990 = vadd.f32 0.0, %v989
    %v991 = vpop.f32.mrb[0].mxu0
    %992 = vmatprep.mubr.f32.mxu0 0.0
    %993 = vmatmul.mubr.f32.gmra.mrb[0].mxu0 %v301
    %v994 = vpop.f32.mrb[0].mxu0
    %v995 = vadd.f32 0.0, %v994
    %v996 = vpop.f32.mrb[0].mxu0
    %997 = vmatprep.mubr.f32.mxu0 0.0
    %998 = vmatmul.mubr.f32.gmra.mrb[0].mxu0 %v304
    %v999 = vpop.f32.mrb[0].mxu0
    %v1000 = vadd.f32 0.0, %v999
    %v1001 = vpop.f32.mrb[0].mxu0
    %1002 = vmatprep.mubr.f32.mxu0 0.0
    %1003 = vmatmul.mubr.f32.gmra.mrb[0].mxu0 %v307
    %v1004 = vpop.f32.mrb[0].mxu0
    %v1005 = vadd.f32 0.0, %v1004
    %v1006 = vpop.f32.mrb[0].mxu0
    %1007 = vmatprep.mubr.f32.mxu0 0.0
    %1008 = vmatmul.mubr.f32.gmra.mrb[0].mxu0 %v310
    %v1009 = vpop.f32.mrb[0].mxu0
    %v1010 = vadd.f32 0.0, %v1009
    %v1011 = vpop.f32.mrb[0].mxu0
    %1012 = vmatprep.mubr.f32.mxu0 0.0
    %1013 = vmatmul.mubr.f32.gmra.mrb[0].mxu0 %v313
    %v1014 = vpop.f32.mrb[0].mxu0
    %v1015 = vadd.f32 0.0, %v1014
    %v1016 = vpop.f32.mrb[0].mxu0
    %1017 = vmatprep.mubr.f32.mxu0 0.0
    %1018 = vmatmul.mubr.f32.gmra.mrb[0].mxu0 %v316
    %v1019 = vpop.f32.mrb[0].mxu0
    %v1020 = vadd.f32 0.0, %v1019
    %v1021 = vpop.f32.mrb[0].mxu0
    %1022 = vmatprep.mubr.f32.mxu0 0.0
    %1023 = vmatmul.mubr.f32.gmra.mrb[0].mxu0 %v319
    %v1024 = vpop.f32.mrb[0].mxu0
    %v1025 = vadd.f32 0.0, %v1024
    %v1026 = vpop.f32.mrb[0].mxu0
    %1027 = vmatprep.mubr.f32.mxu0 0.0
    %1028 = vmatmul.mubr.f32.gmra.mrb[0].mxu0 %v322
    %v1029 = vpop.f32.mrb[0].mxu0
    %v1030 = vadd.f32 0.0, %v1029
    %v1031 = vpop.f32.mrb[0].mxu0
    %1032 = vmatprep.mubr.f32.mxu0 0.0
    %1033 = vmatmul.mubr.f32.gmra.mrb[0].mxu0 %v325
    %v1034 = vpop.f32.mrb[0].mxu0
    %v1035 = vadd.f32 0.0, %v1034
    %v1036 = vpop.f32.mrb[0].mxu0
    %1037 = vmatprep.mubr.f32.mxu0 0.0
    %1038 = vmatmul.mubr.f32.gmra.mrb[0].mxu0 %v328
    %v1039 = vpop.f32.mrb[0].mxu0
    %v1040 = vadd.f32 0.0, %v1039
    %v1041 = vpop.f32.mrb[0].mxu0
    %1042 = vmatprep.mubr.f32.mxu0 0.0
    %1043 = vmatmul.mubr.f32.gmra.mrb[0].mxu0 %v331
    %v1044 = vpop.f32.mrb[0].mxu0
    %v1045 = vadd.f32 0.0, %v1044
    %v1046 = vpop.f32.mrb[0].mxu0
    %1047 = vmatprep.mubr.f32.mxu0 0.0
    %1048 = vmatmul.mubr.f32.gmra.mrb[0].mxu0 %v334
    %v1049 = vpop.f32.mrb[0].mxu0
    %v1050 = vadd.f32 0.0, %v1049
    %v1051 = vpop.f32.mrb[0].mxu0
    %1052 = vmatprep.mubr.f32.mxu0 0.0
    %1053 = vmatmul.mubr.f32.gmra.mrb[0].mxu0 %v337
    %v1054 = vpop.f32.mrb[0].mxu0
    %v1055 = vadd.f32 0.0, %v1054
    %v1056 = vpop.f32.mrb[0].mxu0
    %1057 = vmatprep.mubr.f32.mxu0 0.0
    %1058 = vmatmul.mubr.f32.gmra.mrb[0].mxu0 %v340
    %v1059 = vpop.f32.mrb[0].mxu0
    %v1060 = vadd.f32 0.0, %v1059
    %v1061 = vpop.f32.mrb[0].mxu0
    %1062 = vmatprep.mubr.f32.mxu0 0.0
    %1063 = vmatmul.mubr.f32.gmra.mrb[0].mxu0 %v343
    %v1064 = vpop.f32.mrb[0].mxu0
    %v1065 = vadd.f32 0.0, %v1064
    %v1066 = vpop.f32.mrb[0].mxu0
    %1067 = vmatprep.mubr.f32.mxu0 0.0
    %1068 = vmatmul.mubr.f32.gmra.mrb[0].mxu0 %v346
    %v1069 = vpop.f32.mrb[0].mxu0
    %v1070 = vadd.f32 0.0, %v1069
    %v1071 = vpop.f32.mrb[0].mxu0
    %1072 = vmatprep.mubr.f32.mxu0 0.0
    %1073 = vmatmul.mubr.f32.gmra.mrb[0].mxu0 %v349
    %v1074 = vpop.f32.mrb[0].mxu0
    %v1075 = vadd.f32 0.0, %v1074
    %v1076 = vpop.f32.mrb[0].mxu0
    %1077 = vmatprep.mubr.f32.mxu0 0.0
    %1078 = vmatmul.mubr.f32.gmra.mrb[0].mxu0 %v352
    %v1079 = vpop.f32.mrb[0].mxu0
    %v1080 = vadd.f32 0.0, %v1079
    %v1081 = vpop.f32.mrb[0].mxu0
    %1082 = vmatprep.mubr.f32.mxu0 0.0
    %1083 = vmatmul.mubr.f32.gmra.mrb[0].mxu0 %v355
    %v1084 = vpop.f32.mrb[0].mxu0
    %v1085 = vadd.f32 0.0, %v1084
    %v1086 = vpop.f32.mrb[0].mxu0
    %1087 = vmatprep.mubr.f32.mxu0 0.0
    %1088 = vmatmul.mubr.f32.gmra.mrb[0].mxu0 %v358
    %v1089 = vpop.f32.mrb[0].mxu0
    %v1090 = vadd.f32 0.0, %v1089
    %v1091 = vpop.f32.mrb[0].mxu0
    %1092 = vmatprep.mubr.f32.mxu0 0.0
    %1093 = vmatmul.mubr.f32.gmra.mrb[0].mxu0 %v361
    %v1094 = vpop.f32.mrb[0].mxu0
    %v1095 = vadd.f32 0.0, %v1094
    %v1096 = vpop.f32.mrb[0].mxu0
    %1097 = vmatprep.mubr.f32.mxu0 0.0
    %1098 = vmatmul.mubr.f32.gmra.mrb[0].mxu0 %v364
    %v1099 = vpop.f32.mrb[0].mxu0
    %v1100 = vadd.f32 0.0, %v1099
    %v1101 = vpop.f32.mrb[0].mxu0
    %1102 = vmatprep.mubr.f32.mxu0 0.0
    %1103 = vmatmul.mubr.f32.gmra.mrb[0].mxu0 %v367
    %v1104 = vpop.f32.mrb[0].mxu0
    %v1105 = vadd.f32 0.0, %v1104
    %v1106 = vpop.f32.mrb[0].mxu0
    %1107 = vmatprep.mubr.f32.mxu0 0.0
    %1108 = vmatmul.mubr.f32.gmra.mrb[0].mxu0 %v370
    %v1109 = vpop.f32.mrb[0].mxu0
    %v1110 = vadd.f32 0.0, %v1109
    %v1111 = vpop.f32.mrb[0].mxu0
    %1112 = vmatprep.mubr.f32.mxu0 0.0
    %1113 = vmatmul.mubr.f32.gmra.mrb[0].mxu0 %v373
    %v1114 = vpop.f32.mrb[0].mxu0
    %v1115 = vadd.f32 0.0, %v1114
    %v1116 = vpop.f32.mrb[0].mxu0
    %1117 = vmatprep.mubr.f32.mxu0 0.0
    %1118 = vmatmul.mubr.f32.gmra.mrb[0].mxu0 %v376
    %v1119 = vpop.f32.mrb[0].mxu0
    %v1120 = vadd.f32 0.0, %v1119
    %v1121 = vpop.f32.mrb[0].mxu0
    %1122 = vmatprep.mubr.f32.mxu0 0.0
    %1123 = vmatmul.mubr.f32.gmra.mrb[0].mxu0 %v379
    %v1124 = vpop.f32.mrb[0].mxu0
    %v1125 = vadd.f32 0.0, %v1124
    %v1126 = vpop.f32.mrb[0].mxu0
    %1127 = vmatprep.mubr.f32.mxu0 0.0
    %1128 = vmatmul.mubr.f32.gmra.mrb[0].mxu0 %v382
    %v1129 = vpop.f32.mrb[0].mxu0
    %v1130 = vadd.f32 0.0, %v1129
    %v1131 = vpop.f32.mrb[0].mxu0
    %1132 = vmatprep.mubr.f32.mxu0 0.0
    %1133 = vmatmul.mubr.f32.gmra.mrb[0].mxu0 %v385
    %v1134 = vpop.f32.mrb[0].mxu0
    %v1135 = vadd.f32 0.0, %v1134
    %v1136 = vpop.f32.mrb[0].mxu0
    %1137 = vmatprep.mubr.f32.mxu0 0.0
    %1138 = vmatmul.mubr.f32.gmra.mrb[0].mxu0 %v388
    %v1139 = vpop.f32.mrb[0].mxu0
    %v1140 = vadd.f32 0.0, %v1139
    %v1141 = vpop.f32.mrb[0].mxu0
    %1142 = vmatprep.mubr.f32.mxu0 0.0
    %1143 = vmatmul.mubr.f32.gmra.mrb[0].mxu0 %v391
    %v1144 = vpop.f32.mrb[0].mxu0
    %v1145 = vadd.f32 0.0, %v1144
    %v1146 = vpop.f32.mrb[0].mxu0
    %1147 = vmatprep.mubr.f32.mxu0 0.0
    %1148 = vmatmul.mubr.f32.gmra.mrb[0].mxu0 %v394
    %v1149 = vpop.f32.mrb[0].mxu0
    %v1150 = vadd.f32 0.0, %v1149
    %v1151 = vpop.f32.mrb[0].mxu0
    %1152 = vmatprep.mubr.f32.mxu0 0.0
    %1153 = vmatmul.mubr.f32.gmra.mrb[0].mxu0 %v397
    %v1154 = vpop.f32.mrb[0].mxu0
    %v1155 = vadd.f32 0.0, %v1154
    %v1156 = vpop.f32.mrb[0].mxu0
    %1157 = vmatprep.mubr.f32.mxu0 0.0
    %1158 = vmatmul.mubr.f32.gmra.mrb[0].mxu0 %v400
    %v1159 = vpop.f32.mrb[0].mxu0
    %v1160 = vadd.f32 0.0, %v1159
    %v1161 = vpop.f32.mrb[0].mxu0
    %1162 = vmatprep.mubr.f32.mxu0 0.0
    %1163 = vmatmul.mubr.f32.gmra.mrb[0].mxu0 %v403
    %v1164 = vpop.f32.mrb[0].mxu0
    %v1165 = vadd.f32 0.0, %v1164
    %v1166 = vpop.f32.mrb[0].mxu0
    %1167 = vmatprep.mubr.f32.mxu0 0.0
    %1168 = vmatmul.mubr.f32.gmra.mrb[0].mxu0 %v406
    %v1169 = vpop.f32.mrb[0].mxu0
    %v1170 = vadd.f32 0.0, %v1169
    %v1171 = vpop.f32.mrb[0].mxu0
    %1172 = vmatprep.mubr.f32.mxu0 0.0
    %1173 = vmatmul.mubr.f32.gmra.mrb[0].mxu0 %v409
    %v1174 = vpop.f32.mrb[0].mxu0
    %v1175 = vadd.f32 0.0, %v1174
    %v1176 = vpop.f32.mrb[0].mxu0
    %1177 = vmatprep.mubr.f32.mxu0 0.0
    %1178 = vmatmul.mubr.f32.gmra.mrb[0].mxu0 %v412
    %v1179 = vpop.f32.mrb[0].mxu0
    %v1180 = vadd.f32 0.0, %v1179
    %v1181 = vpop.f32.mrb[0].mxu0
    %1182 = vmatprep.mubr.f32.mxu0 0.0
    %1183 = vmatmul.mubr.f32.gmra.mrb[0].mxu0 %v415
    %v1184 = vpop.f32.mrb[0].mxu0
    %v1185 = vadd.f32 0.0, %v1184
    %v1186 = vpop.f32.mrb[0].mxu0
    %1187 = vmatprep.mubr.f32.mxu0 0.0
    %1188 = vmatmul.mubr.f32.gmra.mrb[0].mxu0 %v418
    %v1189 = vpop.f32.mrb[0].mxu0
    %v1190 = vadd.f32 0.0, %v1189
    %v1191 = vpop.f32.mrb[0].mxu0
    %1192 = vmatprep.mubr.f32.mxu0 0.0
    %1193 = vmatmul.mubr.f32.gmra.mrb[0].mxu0 %v421
    %v1194 = vpop.f32.mrb[0].mxu0
    %v1195 = vadd.f32 0.0, %v1194
    %v1196 = vpop.f32.mrb[0].mxu0
    %1197 = vmatprep.mubr.f32.mxu0 0.0
    %1198 = vmatmul.mubr.f32.gmra.mrb[0].mxu0 %v424
    %v1199 = vpop.f32.mrb[0].mxu0
    %v1200 = vadd.f32 0.0, %v1199
    %v1201 = vpop.f32.mrb[0].mxu0
    %1202 = vmatprep.mubr.f32.mxu0 0.0
    %1203 = vmatmul.mubr.f32.gmra.mrb[0].mxu0 %v427
    %v1204 = vpop.f32.mrb[0].mxu0
    %v1205 = vadd.f32 0.0, %v1204
    %v1206 = vpop.f32.mrb[0].mxu0
    %1207 = vmatprep.mubr.f32.mxu0 0.0
    %1208 = vmatmul.mubr.f32.gmra.mrb[0].mxu0 %v430
    %v1209 = vpop.f32.mrb[0].mxu0
    %v1210 = vadd.f32 0.0, %v1209
    %v1211 = vpop.f32.mrb[0].mxu0
    %1212 = vmatprep.mubr.f32.mxu0 0.0
    %1213 = vmatmul.mubr.f32.gmra.mrb[0].mxu0 %v433
    %v1214 = vpop.f32.mrb[0].mxu0
    %v1215 = vadd.f32 0.0, %v1214
    %v1216 = vpop.f32.mrb[0].mxu0
    %1217 = vmatprep.mubr.f32.mxu0 0.0
    %1218 = vmatmul.mubr.f32.gmra.mrb[0].mxu0 %v436
    %v1219 = vpop.f32.mrb[0].mxu0
    %v1220 = vadd.f32 0.0, %v1219
    %v1221 = vpop.f32.mrb[0].mxu0
    %1222 = vmatprep.mubr.f32.mxu0 0.0
    %1223 = vmatmul.mubr.f32.gmra.mrb[0].mxu0 %v439
    %v1224 = vpop.f32.mrb[0].mxu0
    %v1225 = vadd.f32 0.0, %v1224
    %v1226 = vpop.f32.mrb[0].mxu0
    %1227 = vmatprep.mubr.f32.mxu0 0.0
    %1228 = vmatmul.mubr.f32.gmra.mrb[0].mxu0 %v442
    %v1229 = vpop.f32.mrb[0].mxu0
    %v1230 = vadd.f32 0.0, %v1229
    %v1231 = vpop.f32.mrb[0].mxu0
    %1232 = vmatprep.mubr.f32.mxu0 0.0
    %1233 = vmatmul.mubr.f32.gmra.mrb[0].mxu0 %v445
    %v1234 = vpop.f32.mrb[0].mxu0
    %v1235 = vadd.f32 0.0, %v1234
    %v1236 = vpop.f32.mrb[0].mxu0
    %1237 = vmatprep.mubr.f32.mxu0 0.0
    %1238 = vmatmul.mubr.f32.gmra.mrb[0].mxu0 %v448
    %v1239 = vpop.f32.mrb[0].mxu0
    %v1240 = vadd.f32 0.0, %v1239
    %v1241 = vpop.f32.mrb[0].mxu0
    %1242 = vmatprep.mubr.f32.mxu0 0.0
    %1243 = vmatmul.mubr.f32.gmra.mrb[0].mxu0 %v451
    %v1244 = vpop.f32.mrb[0].mxu0
    %v1245 = vadd.f32 0.0, %v1244
    %v1246 = vpop.f32.mrb[0].mxu0
    %1247 = vmatprep.mubr.f32.mxu0 0.0
    %1248 = vmatmul.mubr.f32.gmra.mrb[0].mxu0 %v454
    %v1249 = vpop.f32.mrb[0].mxu0
    %v1250 = vadd.f32 0.0, %v1249
    %v1251 = vpop.f32.mrb[0].mxu0
    %1252 = vmatprep.mubr.f32.mxu0 0.0
    %1253 = vmatmul.mubr.f32.gmra.mrb[0].mxu0 %v457
    %v1254 = vpop.f32.mrb[0].mxu0
    %v1255 = vadd.f32 0.0, %v1254
    %v1256 = vpop.f32.mrb[0].mxu0
    %1257 = vmatprep.mubr.f32.mxu0 0.0
    %1258 = vmatmul.mubr.f32.gmra.mrb[0].mxu0 %v460
    %v1259 = vpop.f32.mrb[0].mxu0
    %v1260 = vadd.f32 0.0, %v1259
    %v1261 = vpop.f32.mrb[0].mxu0
    %1262 = vmatprep.mubr.f32.mxu0 0.0
    %1263 = vmatmul.mubr.f32.gmra.mrb[0].mxu0 %v463
    %v1264 = vpop.f32.mrb[0].mxu0
    %v1265 = vadd.f32 0.0, %v1264
    %v1266 = vpop.f32.mrb[0].mxu0
    %1267 = vmatprep.mubr.f32.mxu0 0.0
    %1268 = vmatmul.mubr.f32.gmra.mrb[0].mxu0 %v466
    %v1269 = vpop.f32.mrb[0].mxu0
    %v1270 = vadd.f32 0.0, %v1269
    %v1271 = vpop.f32.mrb[0].mxu0
    %1272 = vmatprep.mubr.f32.mxu0 0.0
    %1273 = vmatmul.mubr.f32.gmra.mrb[0].mxu0 %v469
    %v1274 = vpop.f32.mrb[0].mxu0
    %v1275 = vadd.f32 0.0, %v1274
    %v1276 = vpop.f32.mrb[0].mxu0
    %1277 = vmatprep.mubr.f32.mxu0 0.0
    %1278 = vmatmul.mubr.f32.gmra.mrb[0].mxu0 %v472
    %v1279 = vpop.f32.mrb[0].mxu0
    %v1280 = vadd.f32 0.0, %v1279
    %v1281 = vpop.f32.mrb[0].mxu0
    %1282 = vmatprep.mubr.f32.mxu0 0.0
    %1283 = vmatmul.mubr.f32.gmra.mrb[0].mxu0 %v475
    %v1284 = vpop.f32.mrb[0].mxu0
    %v1285 = vadd.f32 0.0, %v1284
    %v1286 = vpop.f32.mrb[0].mxu0
    %1287 = vmatprep.mubr.f32.mxu0 0.0
    %1288 = vmatmul.mubr.f32.gmra.mrb[0].mxu0 %v478
    %v1289 = vpop.f32.mrb[0].mxu0
    %v1290 = vadd.f32 0.0, %v1289
    %v1291 = vpop.f32.mrb[0].mxu0
    %1292 = vmatprep.mubr.f32.mxu0 0.0
    %1293 = vmatmul.mubr.f32.gmra.mrb[0].mxu0 %v481
    %v1294 = vpop.f32.mrb[0].mxu0
    %v1295 = vadd.f32 0.0, %v1294
    %v1296 = vpop.f32.mrb[0].mxu0
    %1297 = vmatprep.mubr.f32.mxu0 0.0
    %1298 = vmatmul.mubr.f32.gmra.mrb[0].mxu0 %v484
    %v1299 = vpop.f32.mrb[0].mxu0
    %v1300 = vadd.f32 0.0, %v1299
    %v1301 = vpop.f32.mrb[0].mxu0
    %1302 = vmatprep.mubr.f32.mxu0 0.0
    %1303 = vmatmul.mubr.f32.gmra.mrb[0].mxu0 %v487
    %v1304 = vpop.f32.mrb[0].mxu0
    %v1305 = vadd.f32 0.0, %v1304
    %v1306 = vpop.f32.mrb[0].mxu0
    %1307 = vmatprep.mubr.f32.mxu0 0.0
    %1308 = vmatmul.mubr.f32.gmra.mrb[0].mxu0 %v490
    %v1309 = vpop.f32.mrb[0].mxu0
    %v1310 = vadd.f32 0.0, %v1309
    %v1311 = vpop.f32.mrb[0].mxu0
    %1312 = vmatprep.mubr.f32.mxu0 0.0
    %1313 = vmatmul.mubr.f32.gmra.mrb[0].mxu0 %v493
    %v1314 = vpop.f32.mrb[0].mxu0
    %v1315 = vadd.f32 0.0, %v1314
    %v1316 = vpop.f32.mrb[0].mxu0
    %1317 = vmatprep.mubr.f32.mxu0 0.0
    %1318 = vmatmul.mubr.f32.gmra.mrb[0].mxu0 %v496
    %v1319 = vpop.f32.mrb[0].mxu0
    %v1320 = vadd.f32 0.0, %v1319
    %v1321 = vpop.f32.mrb[0].mxu0
    %1322 = vmatprep.mubr.f32.mxu0 0.0
    %1323 = vmatmul.mubr.f32.gmra.mrb[0].mxu0 %v499
    %v1324 = vpop.f32.mrb[0].mxu0
    %v1325 = vadd.f32 0.0, %v1324
    %v1326 = vpop.f32.mrb[0].mxu0
    %1327 = vmatprep.mubr.f32.mxu0 0.0
    %1328 = vmatmul.mubr.f32.gmra.mrb[0].mxu0 %v502
    %v1329 = vpop.f32.mrb[0].mxu0
    %v1330 = vadd.f32 0.0, %v1329
    %v1331 = vpop.f32.mrb[0].mxu0
    %1332 = vmatprep.mubr.f32.mxu0 0.0
    %1333 = vmatmul.mubr.f32.gmra.mrb[0].mxu0 %v505
    %v1334 = vpop.f32.mrb[0].mxu0
    %v1335 = vadd.f32 0.0, %v1334
    %v1336 = vpop.f32.mrb[0].mxu0
    %1337 = vmatprep.mubr.f32.mxu0 0.0
    %1338 = vmatmul.mubr.f32.gmra.mrb[0].mxu0 %v508
    %v1339 = vpop.f32.mrb[0].mxu0
    %v1340 = vadd.f32 0.0, %v1339
    %v1341 = vpop.f32.mrb[0].mxu0
    %1342 = vmatprep.mubr.f32.mxu0 0.0
    %1343 = vmatmul.mubr.f32.gmra.mrb[0].mxu0 %v511
    %v1344 = vpop.f32.mrb[0].mxu0
    %v1345 = vadd.f32 0.0, %v1344
    %v1346 = vpop.f32.mrb[0].mxu0
    %1347 = vmatprep.mubr.f32.mxu0 0.0
    %1348 = vmatmul.mubr.f32.gmra.mrb[0].mxu0 %v514
    %v1349 = vpop.f32.mrb[0].mxu0
    %v1350 = vadd.f32 0.0, %v1349
    %v1351 = vpop.f32.mrb[0].mxu0
    %1352 = vmatprep.mubr.f32.mxu0 0.0
    %1353 = vmatmul.mubr.f32.gmra.mrb[0].mxu0 %v517
    %v1354 = vpop.f32.mrb[0].mxu0
    %v1355 = vadd.f32 0.0, %v1354
    %v1356 = vpop.f32.mrb[0].mxu0
    %1357 = vmatprep.mubr.f32.mxu0 0.0
    %1358 = vmatmul.mubr.f32.gmra.mrb[0].mxu0 %v520
    %v1359 = vpop.f32.mrb[0].mxu0
    %v1360 = vadd.f32 0.0, %v1359
    %v1361 = vpop.f32.mrb[0].mxu0
    %1362 = vmatprep.mubr.f32.mxu0 0.0
    %1363 = vmatmul.mubr.f32.gmra.mrb[0].mxu0 %v523
    %v1364 = vpop.f32.mrb[0].mxu0
    %v1365 = vadd.f32 0.0, %v1364
    %v1366 = vpop.f32.mrb[0].mxu0
    %1367 = vmatprep.mubr.f32.mxu0 0.0
    %1368 = vmatmul.mubr.f32.gmra.mrb[0].mxu0 %v526
    %v1369 = vpop.f32.mrb[0].mxu0
    %v1370 = vadd.f32 0.0, %v1369
    %v1371 = vpop.f32.mrb[0].mxu0
    %1372 = vmatprep.mubr.f32.mxu0 0.0
    %1373 = vmatmul.mubr.f32.gmra.mrb[0].mxu0 %v529
    %v1374 = vpop.f32.mrb[0].mxu0
    %v1375 = vadd.f32 0.0, %v1374
    %v1376 = vpop.f32.mrb[0].mxu0
    %1377 = vmatprep.mubr.f32.mxu0 0.0
    %1378 = vmatmul.mubr.f32.gmra.mrb[0].mxu0 %v532
    %v1379 = vpop.f32.mrb[0].mxu0
    %v1380 = vadd.f32 0.0, %v1379
    %v1381 = vpop.f32.mrb[0].mxu0
    %1382 = vmatprep.mubr.f32.mxu0 0.0
    %1383 = vmatmul.mubr.f32.gmra.mrb[0].mxu0 %v535
    %v1384 = vpop.f32.mrb[0].mxu0
    %v1385 = vadd.f32 0.0, %v1384
    %v1386 = vpop.f32.mrb[0].mxu0
    %1387 = vmatprep.mubr.f32.mxu0 0.0
    %1388 = vmatmul.mubr.f32.gmra.mrb[0].mxu0 %v538
    %v1389 = vpop.f32.mrb[0].mxu0
    %v1390 = vadd.f32 0.0, %v1389
    %v1391 = vpop.f32.mrb[0].mxu0
    %1392 = vmatprep.mubr.f32.mxu0 0.0
    %1393 = vmatmul.mubr.f32.gmra.mrb[0].mxu0 %v541
    %v1394 = vpop.f32.mrb[0].mxu0
    %v1395 = vadd.f32 0.0, %v1394
    %v1396 = vpop.f32.mrb[0].mxu0
    %1397 = vmatprep.mubr.f32.mxu0 0.0
    %1398 = vmatmul.mubr.f32.gmra.mrb[0].mxu0 %v544
    %v1399 = vpop.f32.mrb[0].mxu0
    %v1400 = vadd.f32 0.0, %v1399
    %v1401 = vpop.f32.mrb[0].mxu0
    %1402 = vmatprep.mubr.f32.mxu0 0.0
    %1403 = vmatmul.mubr.f32.gmra.mrb[0].mxu0 %v547
    %v1404 = vpop.f32.mrb[0].mxu0
    %v1405 = vadd.f32 0.0, %v1404
    %v1406 = vpop.f32.mrb[0].mxu0
    %1407 = vmatprep.mubr.f32.mxu0 0.0
    %1408 = vmatmul.mubr.f32.gmra.mrb[0].mxu0 %v550
    %v1409 = vpop.f32.mrb[0].mxu0
    %v1410 = vadd.f32 0.0, %v1409
    %v1411 = vpop.f32.mrb[0].mxu0
    %1412 = vmatprep.mubr.f32.mxu0 0.0
    %1413 = vmatmul.mubr.f32.gmra.mrb[0].mxu0 %v553
    %v1414 = vpop.f32.mrb[0].mxu0
    %v1415 = vadd.f32 0.0, %v1414
    %v1416 = vpop.f32.mrb[0].mxu0
    %1417 = vmatprep.mubr.f32.mxu0 0.0
    %1418 = vmatmul.mubr.f32.gmra.mrb[0].mxu0 %v556
    %v1419 = vpop.f32.mrb[0].mxu0
    %v1420 = vadd.f32 0.0, %v1419
    %v1421 = vpop.f32.mrb[0].mxu0
    %1422 = vmatprep.mubr.f32.mxu0 0.0
    %1423 = vmatmul.mubr.f32.gmra.mrb[0].mxu0 %v559
    %v1424 = vpop.f32.mrb[0].mxu0
    %v1425 = vadd.f32 0.0, %v1424
    %v1426 = vpop.f32.mrb[0].mxu0
    %1427 = vmatprep.mubr.f32.mxu0 0.0
    %1428 = vmatmul.mubr.f32.gmra.mrb[0].mxu0 %v562
    %v1429 = vpop.f32.mrb[0].mxu0
    %v1430 = vadd.f32 0.0, %v1429
    %v1431 = vpop.f32.mrb[0].mxu0
    %1432 = vmatprep.mubr.f32.mxu0 0.0
    %1433 = vmatmul.mubr.f32.gmra.mrb[0].mxu0 %v565
    %v1434 = vpop.f32.mrb[0].mxu0
    %v1435 = vadd.f32 0.0, %v1434
    %v1436 = vpop.f32.mrb[0].mxu0
    %1437 = vmatprep.mubr.f32.mxu0 0.0
    %1438 = vmatmul.mubr.f32.gmra.mrb[0].mxu0 %v568
    %v1439 = vpop.f32.mrb[0].mxu0
    %v1440 = vadd.f32 0.0, %v1439
    %v1441 = vpop.f32.mrb[0].mxu0
    %1442 = vmatprep.mubr.f32.mxu0 0.0
    %1443 = vmatmul.mubr.f32.gmra.mrb[0].mxu0 %v571
    %v1444 = vpop.f32.mrb[0].mxu0
    %v1445 = vadd.f32 0.0, %v1444
    %v1446 = vpop.f32.mrb[0].mxu0
    %1447 = vmatprep.mubr.f32.mxu0 0.0
    %1448 = vmatmul.mubr.f32.gmra.mrb[0].mxu0 %v574
    %v1449 = vpop.f32.mrb[0].mxu0
    %v1450 = vadd.f32 0.0, %v1449
    %v1451 = vpop.f32.mrb[0].mxu0
    %1452 = vmatprep.mubr.f32.mxu0 0.0
    %1453 = vmatmul.mubr.f32.gmra.mrb[0].mxu0 %v577
    %v1454 = vpop.f32.mrb[0].mxu0
    %v1455 = vadd.f32 0.0, %v1454
    %v1456 = vpop.f32.mrb[0].mxu0
    %1457 = vmatprep.mubr.f32.mxu0 0.0
    %1458 = vmatmul.mubr.f32.gmra.mrb[0].mxu0 %v580
    %v1459 = vpop.f32.mrb[0].mxu0
    %v1460 = vadd.f32 0.0, %v1459
    %v1461 = vpop.f32.mrb[0].mxu0
    %1462 = vmatprep.mubr.f32.mxu0 0.0
    %1463 = vmatmul.mubr.f32.gmra.mrb[0].mxu0 %v583
    %v1464 = vpop.f32.mrb[0].mxu0
    %v1465 = vadd.f32 0.0, %v1464
    %v1466 = vpop.f32.mrb[0].mxu0
    %1467 = vmatprep.mubr.f32.mxu0 0.0
    %1468 = vmatmul.mubr.f32.gmra.mrb[0].mxu0 %v586
    %v1469 = vpop.f32.mrb[0].mxu0
    %v1470 = vadd.f32 0.0, %v1469
    %v1471 = vpop.f32.mrb[0].mxu0
    %1472 = vmatprep.mubr.f32.mxu0 0.0
    %1473 = vmatmul.mubr.f32.gmra.mrb[0].mxu0 %v589
    %v1474 = vpop.f32.mrb[0].mxu0
    %v1475 = vadd.f32 0.0, %v1474
    %v1476 = vpop.f32.mrb[0].mxu0
    %1477 = vmatprep.mubr.f32.mxu0 0.0
    %1478 = vmatmul.mubr.f32.gmra.mrb[0].mxu0 %v592
    %v1479 = vpop.f32.mrb[0].mxu0
    %v1480 = vadd.f32 0.0, %v1479
    %v1481 = vpop.f32.mrb[0].mxu0
    %1482 = vmatprep.mubr.f32.mxu0 0.0
    %1483 = vmatmul.mubr.f32.gmra.mrb[0].mxu0 %v595
    %v1484 = vpop.f32.mrb[0].mxu0
    %v1485 = vadd.f32 0.0, %v1484
    %v1486 = vpop.f32.mrb[0].mxu0
    %1487 = vmatprep.mubr.f32.mxu0 0.0
    %1488 = vmatmul.mubr.f32.gmra.mrb[0].mxu0 %v598
    %v1489 = vpop.f32.mrb[0].mxu0
    %v1490 = vadd.f32 0.0, %v1489
    %v1491 = vpop.f32.mrb[0].mxu0
    %1492 = vmatprep.mubr.f32.mxu0 0.0
    %1493 = vmatmul.mubr.f32.gmra.mrb[0].mxu0 %v601
    %v1494 = vpop.f32.mrb[0].mxu0
    %v1495 = vadd.f32 0.0, %v1494
    %v1496 = vpop.f32.mrb[0].mxu0
    %1497 = vmatprep.mubr.f32.mxu0 0.0
    %1498 = vmatmul.mubr.f32.gmra.mrb[0].mxu0 %v604
    %v1499 = vpop.f32.mrb[0].mxu0
    %v1500 = vadd.f32 0.0, %v1499
    %v1501 = vpop.f32.mrb[0].mxu0
    %1502 = vmatprep.mubr.f32.mxu0 0.0
    %1503 = vmatmul.mubr.f32.gmra.mrb[0].mxu0 %v607
    %v1504 = vpop.f32.mrb[0].mxu0
    %v1505 = vadd.f32 0.0, %v1504
    %v1506 = vpop.f32.mrb[0].mxu0
    %1507 = vmatprep.mubr.f32.mxu0 0.0
    %1508 = vmatmul.mubr.f32.gmra.mrb[0].mxu0 %v610
    %v1509 = vpop.f32.mrb[0].mxu0
    %v1510 = vadd.f32 0.0, %v1509
    %v1511 = vpop.f32.mrb[0].mxu0
    %1512 = vmatprep.mubr.f32.mxu0 0.0
    %1513 = vmatmul.mubr.f32.gmra.mrb[0].mxu0 %v613
    %v1514 = vpop.f32.mrb[0].mxu0
    %v1515 = vadd.f32 0.0, %v1514
    %v1516 = vpop.f32.mrb[0].mxu0
    %1517 = vmatprep.mubr.f32.mxu0 0.0
    %1518 = vmatmul.mubr.f32.gmra.mrb[0].mxu0 %v616
    %v1519 = vpop.f32.mrb[0].mxu0
    %v1520 = vadd.f32 0.0, %v1519
    %v1521 = vpop.f32.mrb[0].mxu0
    %1522 = vmatprep.mubr.f32.mxu0 0.0
    %1523 = vmatmul.mubr.f32.gmra.mrb[0].mxu0 %v619
    %v1524 = vpop.f32.mrb[0].mxu0
    %v1525 = vadd.f32 0.0, %v1524
    %v1526 = vpop.f32.mrb[0].mxu0
    %1527 = vmatprep.mubr.f32.mxu0 0.0
    %1528 = vmatmul.mubr.f32.gmra.mrb[0].mxu0 %v622
    %v1529 = vpop.f32.mrb[0].mxu0
    %v1530 = vadd.f32 0.0, %v1529
    %v1531 = vpop.f32.mrb[0].mxu0
    %1532 = vmatprep.mubr.f32.mxu0 0.0
    %1533 = vmatmul.mubr.f32.gmra.mrb[0].mxu0 %v625
    %v1534 = vpop.f32.mrb[0].mxu0
    %v1535 = vadd.f32 0.0, %v1534
    %v1536 = vpop.f32.mrb[0].mxu0
    %1537 = vmatprep.mubr.f32.mxu0 0.0
    %1538 = vmatmul.mubr.f32.gmra.mrb[0].mxu0 %v628
    %v1539 = vpop.f32.mrb[0].mxu0
    %v1540 = vadd.f32 0.0, %v1539
    %v1541 = vpop.f32.mrb[0].mxu0
    %1542 = vmatprep.mubr.f32.mxu0 0.0
    %1543 = vmatmul.mubr.f32.gmra.mrb[0].mxu0 %v631
    %v1544 = vpop.f32.mrb[0].mxu0
    %v1545 = vadd.f32 0.0, %v1544
    %v1546 = vpop.f32.mrb[0].mxu0
    %1547 = vmatprep.mubr.f32.mxu0 0.0
    %1548 = vmatmul.mubr.f32.gmra.mrb[0].mxu0 %v634
    %v1549 = vpop.f32.mrb[0].mxu0
    %v1550 = vadd.f32 0.0, %v1549
    %v1551 = vpop.f32.mrb[0].mxu0
    %1552 = vmatprep.mubr.f32.mxu0 0.0
    %1553 = vmatmul.mubr.f32.gmra.mrb[0].mxu0 %v637
    %v1554 = vpop.f32.mrb[0].mxu0
    %v1555 = vadd.f32 0.0, %v1554
    %v1556 = vpop.f32.mrb[0].mxu0
    %1557 = vmatprep.mubr.f32.mxu0 0.0
    %1558 = vmatmul.mubr.f32.gmra.mrb[0].mxu0 %v640
    %v1559 = vpop.f32.mrb[0].mxu0
    %v1560 = vadd.f32 0.0, %v1559
    %v1561 = vpop.f32.mrb[0].mxu0
    %1562 = vmatprep.mubr.f32.mxu0 0.0
    %1563 = vmatmul.mubr.f32.gmra.mrb[0].mxu0 %v643
    %v1564 = vpop.f32.mrb[0].mxu0
    %v1565 = vadd.f32 0.0, %v1564
    %v1566 = vpop.f32.mrb[0].mxu0
    %1567 = vmatprep.mubr.f32.mxu0 0.0
    %1568 = vmatmul.mubr.f32.gmra.mrb[0].mxu0 %v646
    %v1569 = vpop.f32.mrb[0].mxu0
    %v1570 = vadd.f32 0.0, %v1569
    %v1571 = vpop.f32.mrb[0].mxu0
    %1572 = vmatprep.mubr.f32.mxu0 0.0
    %1573 = vmatmul.mubr.f32.gmra.mrb[0].mxu0 %v649
    %v1574 = vpop.f32.mrb[0].mxu0
    %v1575 = vadd.f32 0.0, %v1574
    %v1576 = vpop.f32.mrb[0].mxu0
    %1577 = vmatprep.mubr.f32.mxu0 0.0
    %1578 = vmatmul.mubr.f32.gmra.mrb[0].mxu0 %v652
    %v1579 = vpop.f32.mrb[0].mxu0
    %v1580 = vadd.f32 0.0, %v1579
    %v1581 = vpop.f32.mrb[0].mxu0
    %1582 = vmatprep.mubr.f32.mxu0 0.0
    %1583 = vmatmul.mubr.f32.gmra.mrb[0].mxu0 %v655
    %v1584 = vpop.f32.mrb[0].mxu0
    %v1585 = vadd.f32 0.0, %v1584
    %v1586 = vpop.f32.mrb[0].mxu0
    %1587 = vmatprep.mubr.f32.mxu0 0.0
    %1588 = vmatmul.mubr.f32.gmra.mrb[0].mxu0 %v658
    %v1589 = vpop.f32.mrb[0].mxu0
    %v1590 = vadd.f32 0.0, %v1589
    %v1591 = vpop.f32.mrb[0].mxu0
    %1592 = vmatprep.mubr.f32.mxu0 0.0
    %1593 = vmatmul.mubr.f32.gmra.mrb[0].mxu0 %v661
    %v1594 = vpop.f32.mrb[0].mxu0
    %v1595 = vadd.f32 0.0, %v1594
    %v1596 = vpop.f32.mrb[0].mxu0
    %1597 = vmatprep.mubr.f32.mxu0 0.0
    %1598 = vmatmul.mubr.f32.gmra.mrb[0].mxu0 %v664
    %v1599 = vpop.f32.mrb[0].mxu0
    %v1600 = vadd.f32 0.0, %v1599
    %v1601 = vpop.f32.mrb[0].mxu0
    %1602 = vmatprep.mubr.f32.mxu0 0.0
    %1603 = vmatmul.mubr.f32.gmra.mrb[0].mxu0 %v667
    %v1604 = vpop.f32.mrb[0].mxu0
    %v1605 = vadd.f32 0.0, %v1604
    %v1606 = vpop.f32.mrb[0].mxu0
    %1607 = vmatprep.mubr.f32.mxu0 0.0
    %1608 = vmatmul.mubr.f32.gmra.mrb[0].mxu0 %v670
    %v1609 = vpop.f32.mrb[0].mxu0
    %v1610 = vadd.f32 0.0, %v1609
    %v1611 = vpop.f32.mrb[0].mxu0
    %1612 = vmatprep.mubr.f32.mxu0 0.0
    %1613 = vmatmul.mubr.f32.gmra.mrb[0].mxu0 %v673
    %v1614 = vpop.f32.mrb[0].mxu0
    %v1615 = vadd.f32 0.0, %v1614
    %v1616 = vpop.f32.mrb[0].mxu0
    %1617 = vmatprep.mubr.f32.mxu0 0.0
    %1618 = vmatmul.mubr.f32.gmra.mrb[0].mxu0 %v676
    %v1619 = vpop.f32.mrb[0].mxu0
    %v1620 = vadd.f32 0.0, %v1619
    %v1621 = vpop.f32.mrb[0].mxu0
    %1622 = vmatprep.mubr.f32.mxu0 0.0
    %1623 = vmatmul.mubr.f32.gmra.mrb[0].mxu0 %v679
    %v1624 = vpop.f32.mrb[0].mxu0
    %v1625 = vadd.f32 0.0, %v1624
    %v1626 = vpop.f32.mrb[0].mxu0
    %1627 = vmatprep.mubr.f32.mxu0 0.0
    %1628 = vmatmul.mubr.f32.gmra.mrb[0].mxu0 %v682
    %v1629 = vpop.f32.mrb[0].mxu0
    %v1630 = vadd.f32 0.0, %v1629
    %v1631 = vpop.f32.mrb[0].mxu0
    %1632 = vmatprep.mubr.f32.mxu0 0.0
    %1633 = vmatmul.mubr.f32.gmra.mrb[0].mxu0 %v685
    %v1634 = vpop.f32.mrb[0].mxu0
    %v1635 = vadd.f32 0.0, %v1634
    %v1636 = vpop.f32.mrb[0].mxu0
    %1637 = vmatprep.mubr.f32.mxu0 0.0
    %1638 = vmatmul.mubr.f32.gmra.mrb[0].mxu0 %v688
    %v1639 = vpop.f32.mrb[0].mxu0
    %v1640 = vadd.f32 0.0, %v1639
    %v1641 = vpop.f32.mrb[0].mxu0
    %1642 = vmatprep.mubr.f32.mxu0 0.0
    %1643 = vmatmul.mubr.f32.gmra.mrb[0].mxu0 %v691
    %v1644 = vpop.f32.mrb[0].mxu0
    %v1645 = vadd.f32 0.0, %v1644
    %v1646 = vpop.f32.mrb[0].mxu0
    %1647 = vmatprep.mubr.f32.mxu0 0.0
    %1648 = vmatmul.mubr.f32.gmra.mrb[0].mxu0 %v694
    %v1649 = vpop.f32.mrb[0].mxu0
    %v1650 = vadd.f32 0.0, %v1649
    %v1651 = vpop.f32.mrb[0].mxu0
    %1652 = vmatprep.mubr.f32.mxu0 0.0
    %1653 = vmatmul.mubr.f32.gmra.mrb[0].mxu0 %v697
    %v1654 = vpop.f32.mrb[0].mxu0
    %v1655 = vadd.f32 0.0, %v1654
    %v1656 = vpop.f32.mrb[0].mxu0
    %1657 = vmatprep.mubr.f32.mxu0 0.0
    %1658 = vmatmul.mubr.f32.gmra.mrb[0].mxu0 %v700
    %v1659 = vpop.f32.mrb[0].mxu0
    %v1660 = vadd.f32 0.0, %v1659
    %v1661 = vpop.f32.mrb[0].mxu0
    %1662 = vmatprep.mubr.f32.mxu0 0.0
    %1663 = vmatmul.mubr.f32.gmra.mrb[0].mxu0 %v703
    %v1664 = vpop.f32.mrb[0].mxu0
    %v1665 = vadd.f32 0.0, %v1664
    %v1666 = vpop.f32.mrb[0].mxu0
    %1667 = vmatprep.mubr.f32.mxu0 0.0
    %1668 = vmatmul.mubr.f32.gmra.mrb[0].mxu0 %v706
    %v1669 = vpop.f32.mrb[0].mxu0
    %v1670 = vadd.f32 0.0, %v1669
    %v1671 = vpop.f32.mrb[0].mxu0
    %1672 = vmatprep.mubr.f32.mxu0 0.0
    %1673 = vmatmul.mubr.f32.gmra.mrb[0].mxu0 %v709
    %v1674 = vpop.f32.mrb[0].mxu0
    %v1675 = vadd.f32 0.0, %v1674
    %v1676 = vpop.f32.mrb[0].mxu0
    %1677 = vmatprep.mubr.f32.mxu0 0.0
    %1678 = vmatmul.mubr.f32.gmra.mrb[0].mxu0 %v712
    %v1679 = vpop.f32.mrb[0].mxu0
    %v1680 = vadd.f32 0.0, %v1679
    %v1681 = vpop.f32.mrb[0].mxu0
    %1682 = vmatprep.mubr.f32.mxu0 0.0
    %1683 = vmatmul.mubr.f32.gmra.mrb[0].mxu0 %v715
    %v1684 = vpop.f32.mrb[0].mxu0
    %v1685 = vadd.f32 0.0, %v1684
    %v1686 = vpop.f32.mrb[0].mxu0
    %1687 = vmatprep.mubr.f32.mxu0 0.0
    %1688 = vmatmul.mubr.f32.gmra.mrb[0].mxu0 %v718
    %v1689 = vpop.f32.mrb[0].mxu0
    %v1690 = vadd.f32 0.0, %v1689
    %v1691 = vpop.f32.mrb[0].mxu0
    %1692 = vmatprep.mubr.f32.mxu0 0.0
    %1693 = vmatmul.mubr.f32.gmra.mrb[0].mxu0 %v721
    %v1694 = vpop.f32.mrb[0].mxu0
    %v1695 = vadd.f32 0.0, %v1694
    %v1696 = vpop.f32.mrb[0].mxu0
    %1697 = vmatprep.mubr.f32.mxu0 0.0
    %1698 = vmatmul.mubr.f32.gmra.mrb[0].mxu0 %v724
    %v1699 = vpop.f32.mrb[0].mxu0
    %v1700 = vadd.f32 0.0, %v1699
    %v1701 = vpop.f32.mrb[0].mxu0
    %1702 = vmatprep.mubr.f32.mxu0 0.0
    %1703 = vmatmul.mubr.f32.gmra.mrb[0].mxu0 %v727
    %v1704 = vpop.f32.mrb[0].mxu0
    %v1705 = vadd.f32 0.0, %v1704
    %v1706 = vpop.f32.mrb[0].mxu0
    %1707 = vmatprep.mubr.f32.mxu0 0.0
    %1708 = vmatmul.mubr.f32.gmra.mrb[0].mxu0 %v730
    %v1709 = vpop.f32.mrb[0].mxu0
    %v1710 = vadd.f32 0.0, %v1709
    %v1711 = vpop.f32.mrb[0].mxu0
    %1712 = vmatprep.mubr.f32.mxu0 0.0
    %1713 = vmatmul.mubr.f32.gmra.mrb[0].mxu0 %v733
    %v1714 = vpop.f32.mrb[0].mxu0
    %v1715 = vadd.f32 0.0, %v1714
    %v1716 = vpop.f32.mrb[0].mxu0
    %1717 = vmatprep.mubr.f32.mxu0 0.0
    %1718 = vmatmul.mubr.f32.gmra.mrb[0].mxu0 %v736
    %v1719 = vpop.f32.mrb[0].mxu0
    %v1720 = vadd.f32 0.0, %v1719
    %v1721 = vpop.f32.mrb[0].mxu0
    %1722 = vmatprep.mubr.f32.mxu0 0.0
    %1723 = vmatmul.mubr.f32.gmra.mrb[0].mxu0 %v739
    %v1724 = vpop.f32.mrb[0].mxu0
    %v1725 = vadd.f32 0.0, %v1724
    %v1726 = vpop.f32.mrb[0].mxu0
    %1727 = vmatprep.mubr.f32.mxu0 0.0
    %1728 = vmatmul.mubr.f32.gmra.mrb[0].mxu0 %v742
    %v1729 = vpop.f32.mrb[0].mxu0
    %v1730 = vadd.f32 0.0, %v1729
    %v1731 = vpop.f32.mrb[0].mxu0
    %1732 = vmatprep.mubr.f32.mxu0 0.0
    %1733 = vmatmul.mubr.f32.gmra.mrb[0].mxu0 %v745
    %v1734 = vpop.f32.mrb[0].mxu0
    %v1735 = vadd.f32 0.0, %v1734
    %v1736 = vpop.f32.mrb[0].mxu0
    %1737 = vmatprep.mubr.f32.mxu0 0.0
    %1738 = vmatmul.mubr.f32.gmra.mrb[0].mxu0 %v748
    %v1739 = vpop.f32.mrb[0].mxu0
    %v1740 = vadd.f32 0.0, %v1739
    %v1741 = vpop.f32.mrb[0].mxu0
    %1742 = vmatprep.mubr.f32.mxu0 0.0
    %1743 = vmatmul.mubr.f32.gmra.mrb[0].mxu0 %v751
    %v1744 = vpop.f32.mrb[0].mxu0
    %v1745 = vadd.f32 0.0, %v1744
    %v1746 = vpop.f32.mrb[0].mxu0
    %1747 = vmatprep.mubr.f32.mxu0 0.0
    %1748 = vmatmul.mubr.f32.gmra.mrb[0].mxu0 %v754
    %v1749 = vpop.f32.mrb[0].mxu0
    %v1750 = vadd.f32 0.0, %v1749
    %v1751 = vpop.f32.mrb[0].mxu0
    %1752 = vmatprep.mubr.f32.mxu0 0.0
    %1753 = vmatmul.mubr.f32.gmra.mrb[0].mxu0 %v757
    %v1754 = vpop.f32.mrb[0].mxu0
    %v1755 = vadd.f32 0.0, %v1754
    %v1756 = vpop.f32.mrb[0].mxu0
    %1757 = vmatprep.mubr.f32.mxu0 0.0
    %1758 = vmatmul.mubr.f32.gmra.mrb[0].mxu0 %v760
    %v1759 = vpop.f32.mrb[0].mxu0
    %v1760 = vadd.f32 0.0, %v1759
    %v1761 = vpop.f32.mrb[0].mxu0
    %1762 = vmatprep.mubr.f32.mxu0 0.0
    %1763 = vmatmul.mubr.f32.gmra.mrb[0].mxu0 %v763
    %v1764 = vpop.f32.mrb[0].mxu0
    %v1765 = vadd.f32 0.0, %v1764
    %v1766 = vpop.f32.mrb[0].mxu0
    %1767 = vmatprep.mubr.f32.mxu0 0.0
    %1768 = vmatmul.mubr.f32.gmra.mrb[0].mxu0 %v766
    %v1769 = vpop.f32.mrb[0].mxu0
    %v1770 = vadd.f32 0.0, %v1769
    %v1771 = vpop.f32.mrb[0].mxu0
    %1772 = vmatprep.mubr.f32.mxu0 0.0
    %1773 = vmatmul.mubr.f32.gmra.mrb[0].mxu0 %v769
    %v1774 = vpop.f32.mrb[0].mxu0
    %v1775 = vadd.f32 0.0, %v1774
    %v1776 = vpop.f32.mrb[0].mxu0
    %1777 = vmatprep.mubr.f32.mxu0 0.0
    %1778 = vmatmul.mubr.f32.gmra.mrb[0].mxu0 %v772
    %v1779 = vpop.f32.mrb[0].mxu0
    %v1780 = vadd.f32 0.0, %v1779
    %v1781 = vpop.f32.mrb[0].mxu0
    %1782 = vmatprep.mubr.f32.mxu0 0.0
    %1783 = vmatmul.mubr.f32.gmra.mrb[0].mxu0 %v775
    %v1784 = vpop.f32.mrb[0].mxu0
    %v1785 = vadd.f32 0.0, %v1784
    %v1786 = vpop.f32.mrb[0].mxu0
    %1787 = vmatprep.mubr.f32.mxu0 0.0
    %1788 = vmatmul.mubr.f32.gmra.mrb[0].mxu0 %v778
    %v1789 = vpop.f32.mrb[0].mxu0
    %v1790 = vadd.f32 0.0, %v1789
    %v1791 = vpop.f32.mrb[0].mxu0
    %1792 = vmatprep.mubr.f32.mxu0 0.0
    %1793 = vmatmul.mubr.f32.gmra.mrb[0].mxu0 %v781
    %v1794 = vpop.f32.mrb[0].mxu0
    %v1795 = vadd.f32 0.0, %v1794
    %v1796 = vpop.f32.mrb[0].mxu0
    %1797 = vmatprep.mubr.f32.mxu0 0.0
    %1798 = vmatmul.mubr.f32.gmra.mrb[0].mxu0 %v784
    %v1799 = vpop.f32.mrb[0].mxu0
    %v1800 = vadd.f32 0.0, %v1799
    %v1801 = vpop.f32.mrb[0].mxu0
    %1802 = vmatprep.mubr.f32.mxu0 0.0
    %1803 = vmatmul.mubr.f32.gmra.mrb[0].mxu0 %v787
    %v1804 = vpop.f32.mrb[0].mxu0
    %v1805 = vadd.f32 0.0, %v1804
    %v1806 = vpop.f32.mrb[0].mxu0
    %1807 = vmatprep.mubr.f32.mxu0 0.0
    %1808 = vmatmul.mubr.f32.gmra.mrb[0].mxu0 %v790
    %v1809 = vpop.f32.mrb[0].mxu0
    %v1810 = vadd.f32 0.0, %v1809
    %v1811 = vpop.f32.mrb[0].mxu0
    %1812 = vmatprep.mubr.f32.mxu0 0.0
    %1813 = vmatmul.mubr.f32.gmra.mrb[0].mxu0 %v793
    %v1814 = vpop.f32.mrb[0].mxu0
    %v1815 = vadd.f32 0.0, %v1814
    %v1816 = vpop.f32.mrb[0].mxu0
    %1817 = vmatprep.mubr.f32.mxu0 0.0
    %1818 = vmatmul.mubr.f32.gmra.mrb[0].mxu0 %v796
    %v1819 = vpop.f32.mrb[0].mxu0
    %v1820 = vadd.f32 0.0, %v1819
    %v1821 = vpop.f32.mrb[0].mxu0
    %1822 = vmatprep.mubr.f32.mxu0 0.0
    %1823 = vmatmul.mubr.f32.gmra.mrb[0].mxu0 %v799
    %v1824 = vpop.f32.mrb[0].mxu0
    %v1825 = vadd.f32 0.0, %v1824
    %v1826 = vpop.f32.mrb[0].mxu0
    %1827 = vmatprep.mubr.f32.mxu0 0.0
    %1828 = vmatmul.mubr.f32.gmra.mrb[0].mxu0 %v802
    %v1829 = vpop.f32.mrb[0].mxu0
    %v1830 = vadd.f32 0.0, %v1829
    %v1831 = vpop.f32.mrb[0].mxu0
    %1832 = vmatprep.mubr.f32.mxu0 0.0
    %1833 = vmatmul.mubr.f32.gmra.mrb[0].mxu0 %v805
    %v1834 = vpop.f32.mrb[0].mxu0
    %v1835 = vadd.f32 0.0, %v1834
    %v1836 = vpop.f32.mrb[0].mxu0
    %1837 = vmatprep.mubr.f32.mxu0 0.0
    %1838 = vmatmul.mubr.f32.gmra.mrb[0].mxu0 %v808
    %v1839 = vpop.f32.mrb[0].mxu0
    %v1840 = vadd.f32 0.0, %v1839
    %v1841 = vpop.f32.mrb[0].mxu0
    %1842 = vmatprep.mubr.f32.mxu0 0.0
    %1843 = vmatmul.mubr.f32.gmra.mrb[0].mxu0 %v811
    %v1844 = vpop.f32.mrb[0].mxu0
    %v1845 = vadd.f32 0.0, %v1844
    %v1846 = vpop.f32.mrb[0].mxu0
    %1847 = vmatprep.mubr.f32.mxu0 0.0
    %1848 = vmatmul.mubr.f32.gmra.mrb[0].mxu0 %v814
    %v1849 = vpop.f32.mrb[0].mxu0
    %v1850 = vadd.f32 0.0, %v1849
    %v1851 = vpop.f32.mrb[0].mxu0
    %1852 = vmatprep.mubr.f32.mxu0 0.0
    %1853 = vmatmul.mubr.f32.gmra.mrb[0].mxu0 %v817
    %v1854 = vpop.f32.mrb[0].mxu0
    %v1855 = vadd.f32 0.0, %v1854
    %v1856 = vpop.f32.mrb[0].mxu0
    %1857 = vmatprep.mubr.f32.mxu0 0.0
    %1858 = vmatmul.mubr.f32.gmra.mrb[0].mxu0 %v820
    %v1859 = vpop.f32.mrb[0].mxu0
    %v1860 = vadd.f32 0.0, %v1859
    %v1861 = vpop.f32.mrb[0].mxu0
    %1862 = vmatprep.mubr.f32.mxu0 0.0
    %1863 = vmatmul.mubr.f32.gmra.mrb[0].mxu0 %v823
    %v1864 = vpop.f32.mrb[0].mxu0
    %v1865 = vadd.f32 0.0, %v1864
    %v1866 = vpop.f32.mrb[0].mxu0
    %1867 = vmatprep.mubr.f32.mxu0 0.0
    %1868 = vmatmul.mubr.f32.gmra.mrb[0].mxu0 %v826
    %v1869 = vpop.f32.mrb[0].mxu0
    %v1870 = vadd.f32 0.0, %v1869
    %v1871 = vpop.f32.mrb[0].mxu0
    %1872 = vmatprep.mubr.f32.mxu0 0.0
    %1873 = vmatmul.mubr.f32.gmra.mrb[0].mxu0 %v829
    %v1874 = vpop.f32.mrb[0].mxu0
    %v1875 = vadd.f32 0.0, %v1874
    %v1876 = vpop.f32.mrb[0].mxu0
    %1877 = vmatprep.mubr.f32.mxu0 0.0
    %1878 = vmatmul.mubr.f32.gmra.mrb[0].mxu0 %v832
    %v1879 = vpop.f32.mrb[0].mxu0
    %v1880 = vadd.f32 0.0, %v1879
    %v1881 = vpop.f32.mrb[0].mxu0
    %1882 = vdwg.mxu0
    %v1883 = vld [vmem:[%s5] sm:$0x1]
    %v1884 = vld [vmem:[%s1] sm:$0xff]
    %v1885 = vld [vmem:[%s1 + $0x8] sm:$0xff]
    %v1886 = vld [vmem:[%s1 + $0x10] sm:$0xff]
    %v1887 = vld [vmem:[%s1 + $0x18] sm:$0xff]
    %v1888 = vld [vmem:[%s1 + $0x20] sm:$0xff]
    %v1889 = vld [vmem:[%s1 + $0x28] sm:$0xff]
    %v1890 = vld [vmem:[%s1 + $0x30] sm:$0xff]
    %v1891 = vld [vmem:[%s1 + $0x38] sm:$0xff]
    %v1892 = vld [vmem:[%s1 + $0x40] sm:$0xff]
    %v1893 = vld [vmem:[%s1 + $0x48] sm:$0xff]
    %v1894 = vld [vmem:[%s1 + $0x50] sm:$0xff]
    %v1895 = vld [vmem:[%s1 + $0x58] sm:$0xff]
    %v1896 = vld [vmem:[%s1 + $0x60] sm:$0xff]
    %v1897 = vld [vmem:[%s1 + $0x68] sm:$0xff]
    %v1898 = vld [vmem:[%s1 + $0x70] sm:$0xff]
    %v1899 = vld [vmem:[%s1 + $0x78] sm:$0xff]
    %v1900 = vld [vmem:[%s1 + $0x80] sm:$0xff]
    %v1901 = vld [vmem:[%s1 + $0x88] sm:$0xff]
    %v1902 = vld [vmem:[%s1 + $0x90] sm:$0xff]
    %v1903 = vld [vmem:[%s1 + $0x98] sm:$0xff]
    %v1904 = vld [vmem:[%s1 + $0xa0] sm:$0xff]
    %v1905 = vld [vmem:[%s1 + $0xa8] sm:$0xff]
    %v1906 = vld [vmem:[%s1 + $0xb0] sm:$0xff]
    %v1907 = vld [vmem:[%s1 + $0xb8] sm:$0xff]
    %v1908 = vld [vmem:[%s1 + $0xc0] sm:$0xff]
    %v1909 = vld [vmem:[%s1 + $0xc8] sm:$0xff]
    %v1910 = vld [vmem:[%s1 + $0xd0] sm:$0xff]
    %v1911 = vld [vmem:[%s1 + $0xd8] sm:$0xff]
    %v1912 = vld [vmem:[%s1 + $0xe0] sm:$0xff]
    %v1913 = vld [vmem:[%s1 + $0xe8] sm:$0xff]
    %v1914 = vld [vmem:[%s1 + $0xf0] sm:$0xff]
    %v1915 = vld [vmem:[%s1 + $0xf8] sm:$0xff]
    %v1916 = vld [vmem:[%s1 + $0x100] sm:$0xff]
    %v1917 = vld [vmem:[%s1 + $0x108] sm:$0xff]
    %v1918 = vld [vmem:[%s1 + $0x110] sm:$0xff]
    %v1919 = vld [vmem:[%s1 + $0x118] sm:$0xff]
    %v1920 = vld [vmem:[%s1 + $0x120] sm:$0xff]
    %v1921 = vld [vmem:[%s1 + $0x128] sm:$0xff]
    %v1922 = vld [vmem:[%s1 + $0x130] sm:$0xff]
    %v1923 = vld [vmem:[%s1 + $0x138] sm:$0xff]
    %v1924 = vld [vmem:[%s1 + $0x140] sm:$0xff]
    %v1925 = vld [vmem:[%s1 + $0x148] sm:$0xff]
    %v1926 = vld [vmem:[%s1 + $0x150] sm:$0xff]
    %v1927 = vld [vmem:[%s1 + $0x158] sm:$0xff]
    %v1928 = vld [vmem:[%s1 + $0x160] sm:$0xff]
    %v1929 = vld [vmem:[%s1 + $0x168] sm:$0xff]
    %v1930 = vld [vmem:[%s1 + $0x170] sm:$0xff]
    %v1931 = vld [vmem:[%s1 + $0x178] sm:$0xff]
    %v1932 = vld [vmem:[%s1 + $0x180] sm:$0xff]
    %v1933 = vld [vmem:[%s1 + $0x188] sm:$0xff]
    %v1934 = vld [vmem:[%s1 + $0x190] sm:$0xff]
    %v1935 = vld [vmem:[%s1 + $0x198] sm:$0xff]
    %v1936 = vld [vmem:[%s1 + $0x1a0] sm:$0xff]
    %v1937 = vld [vmem:[%s1 + $0x1a8] sm:$0xff]
    %v1938 = vld [vmem:[%s1 + $0x1b0] sm:$0xff]
    %v1939 = vld [vmem:[%s1 + $0x1b8] sm:$0xff]
    %v1940 = vld [vmem:[%s1 + $0x1c0] sm:$0xff]
    %v1941 = vld [vmem:[%s1 + $0x1c8] sm:$0xff]
    %v1942 = vld [vmem:[%s1 + $0x1d0] sm:$0xff]
    %v1943 = vld [vmem:[%s1 + $0x1d8] sm:$0xff]
    %v1944 = vld [vmem:[%s1 + $0x1e0] sm:$0xff]
    %v1945 = vld [vmem:[%s1 + $0x1e8] sm:$0xff]
    %v1946 = vld [vmem:[%s1 + $0x1f0] sm:$0xff]
    %v1947 = vld [vmem:[%s1 + $0x1f8] sm:$0xff]
    %v1948 = vld [vmem:[%s1 + $0x200] sm:$0xff]
    %v1949 = vld [vmem:[%s1 + $0x208] sm:$0xff]
    %v1950 = vld [vmem:[%s1 + $0x210] sm:$0xff]
    %v1951 = vld [vmem:[%s1 + $0x218] sm:$0xff]
    %v1952 = vld [vmem:[%s1 + $0x220] sm:$0xff]
    %v1953 = vld [vmem:[%s1 + $0x228] sm:$0xff]
    %v1954 = vld [vmem:[%s1 + $0x230] sm:$0xff]
    %v1955 = vld [vmem:[%s1 + $0x238] sm:$0xff]
    %v1956 = vld [vmem:[%s1 + $0x240] sm:$0xff]
    %v1957 = vld [vmem:[%s1 + $0x248] sm:$0xff]
    %v1958 = vld [vmem:[%s1 + $0x250] sm:$0xff]
    %v1959 = vld [vmem:[%s1 + $0x258] sm:$0xff]
    %v1960 = vld [vmem:[%s1 + $0x260] sm:$0xff]
    %v1961 = vld [vmem:[%s1 + $0x268] sm:$0xff]
    %v1962 = vld [vmem:[%s1 + $0x270] sm:$0xff]
    %v1963 = vld [vmem:[%s1 + $0x278] sm:$0xff]
    %v1964 = vld [vmem:[%s1 + $0x280] sm:$0xff]
    %v1965 = vld [vmem:[%s1 + $0x288] sm:$0xff]
    %v1966 = vld [vmem:[%s1 + $0x290] sm:$0xff]
    %v1967 = vld [vmem:[%s1 + $0x298] sm:$0xff]
    %v1968 = vld [vmem:[%s1 + $0x2a0] sm:$0xff]
    %v1969 = vld [vmem:[%s1 + $0x2a8] sm:$0xff]
    %v1970 = vld [vmem:[%s1 + $0x2b0] sm:$0xff]
    %v1971 = vld [vmem:[%s1 + $0x2b8] sm:$0xff]
    %v1972 = vld [vmem:[%s1 + $0x2c0] sm:$0xff]
    %v1973 = vld [vmem:[%s1 + $0x2c8] sm:$0xff]
    %v1974 = vld [vmem:[%s1 + $0x2d0] sm:$0xff]
    %v1975 = vld [vmem:[%s1 + $0x2d8] sm:$0xff]
    %v1976 = vld [vmem:[%s1 + $0x2e0] sm:$0xff]
    %v1977 = vld [vmem:[%s1 + $0x2e8] sm:$0xff]
    %v1978 = vld [vmem:[%s1 + $0x2f0] sm:$0xff]
    %v1979 = vld [vmem:[%s1 + $0x2f8] sm:$0xff]
    %v1980 = vld [vmem:[%s1 + $0x300] sm:$0xff]
    %v1981 = vld [vmem:[%s1 + $0x308] sm:$0xff]
    %v1982 = vld [vmem:[%s1 + $0x310] sm:$0xff]
    %v1983 = vld [vmem:[%s1 + $0x318] sm:$0xff]
    %v1984 = vld [vmem:[%s1 + $0x320] sm:$0xff]
    %v1985 = vld [vmem:[%s1 + $0x328] sm:$0xff]
    %v1986 = vld [vmem:[%s1 + $0x330] sm:$0xff]
    %v1987 = vld [vmem:[%s1 + $0x338] sm:$0xff]
    %v1988 = vld [vmem:[%s1 + $0x340] sm:$0xff]
    %v1989 = vld [vmem:[%s1 + $0x348] sm:$0xff]
    %v1990 = vld [vmem:[%s1 + $0x350] sm:$0xff]
    %v1991 = vld [vmem:[%s1 + $0x358] sm:$0xff]
    %v1992 = vld [vmem:[%s1 + $0x360] sm:$0xff]
    %v1993 = vld [vmem:[%s1 + $0x368] sm:$0xff]
    %v1994 = vld [vmem:[%s1 + $0x370] sm:$0xff]
    %v1995 = vld [vmem:[%s1 + $0x378] sm:$0xff]
    %v1996 = vld [vmem:[%s1 + $0x380] sm:$0xff]
    %v1997 = vld [vmem:[%s1 + $0x388] sm:$0xff]
    %v1998 = vld [vmem:[%s1 + $0x390] sm:$0xff]
    %v1999 = vld [vmem:[%s1 + $0x398] sm:$0xff]
    %v2000 = vld [vmem:[%s1 + $0x3a0] sm:$0xff]
    %v2001 = vld [vmem:[%s1 + $0x3a8] sm:$0xff]
    %v2002 = vld [vmem:[%s1 + $0x3b0] sm:$0xff]
    %v2003 = vld [vmem:[%s1 + $0x3b8] sm:$0xff]
    %v2004 = vld [vmem:[%s1 + $0x3c0] sm:$0xff]
    %v2005 = vld [vmem:[%s1 + $0x3c8] sm:$0xff]
    %v2006 = vld [vmem:[%s1 + $0x3d0] sm:$0xff]
    %v2007 = vld [vmem:[%s1 + $0x3d8] sm:$0xff]
    %v2008 = vld [vmem:[%s1 + $0x3e0] sm:$0xff]
    %v2009 = vld [vmem:[%s1 + $0x3e8] sm:$0xff]
    %v2010 = vld [vmem:[%s1 + $0x3f0] sm:$0xff]
    %v2011 = vld [vmem:[%s1 + $0x3f8] sm:$0xff]
    %v2012 = vld [vmem:[%s1 + $0x400] sm:$0xff]
    %v2013 = vld [vmem:[%s1 + $0x408] sm:$0xff]
    %v2014 = vld [vmem:[%s1 + $0x410] sm:$0xff]
    %v2015 = vld [vmem:[%s1 + $0x418] sm:$0xff]
    %v2016 = vld [vmem:[%s1 + $0x420] sm:$0xff]
    %v2017 = vld [vmem:[%s1 + $0x428] sm:$0xff]
    %v2018 = vld [vmem:[%s1 + $0x430] sm:$0xff]
    %v2019 = vld [vmem:[%s1 + $0x438] sm:$0xff]
    %v2020 = vld [vmem:[%s1 + $0x440] sm:$0xff]
    %v2021 = vld [vmem:[%s1 + $0x448] sm:$0xff]
    %v2022 = vld [vmem:[%s1 + $0x450] sm:$0xff]
    %v2023 = vld [vmem:[%s1 + $0x458] sm:$0xff]
    %v2024 = vld [vmem:[%s1 + $0x460] sm:$0xff]
    %v2025 = vld [vmem:[%s1 + $0x468] sm:$0xff]
    %v2026 = vld [vmem:[%s1 + $0x470] sm:$0xff]
    %v2027 = vld [vmem:[%s1 + $0x478] sm:$0xff]
    %v2028 = vld [vmem:[%s1 + $0x480] sm:$0xff]
    %v2029 = vld [vmem:[%s1 + $0x488] sm:$0xff]
    %v2030 = vld [vmem:[%s1 + $0x490] sm:$0xff]
    %v2031 = vld [vmem:[%s1 + $0x498] sm:$0xff]
    %v2032 = vld [vmem:[%s1 + $0x4a0] sm:$0xff]
    %v2033 = vld [vmem:[%s1 + $0x4a8] sm:$0xff]
    %v2034 = vld [vmem:[%s1 + $0x4b0] sm:$0xff]
    %v2035 = vld [vmem:[%s1 + $0x4b8] sm:$0xff]
    %v2036 = vld [vmem:[%s1 + $0x4c0] sm:$0xff]
    %v2037 = vld [vmem:[%s1 + $0x4c8] sm:$0xff]
    %v2038 = vld [vmem:[%s1 + $0x4d0] sm:$0xff]
    %v2039 = vld [vmem:[%s1 + $0x4d8] sm:$0xff]
    %v2040 = vld [vmem:[%s1 + $0x4e0] sm:$0xff]
    %v2041 = vld [vmem:[%s1 + $0x4e8] sm:$0xff]
    %v2042 = vld [vmem:[%s1 + $0x4f0] sm:$0xff]
    %v2043 = vld [vmem:[%s1 + $0x4f8] sm:$0xff]
    %v2044 = vld [vmem:[%s1 + $0x500] sm:$0xff]
    %v2045 = vld [vmem:[%s1 + $0x508] sm:$0xff]
    %v2046 = vld [vmem:[%s1 + $0x510] sm:$0xff]
    %v2047 = vld [vmem:[%s1 + $0x518] sm:$0xff]
    %v2048 = vld [vmem:[%s1 + $0x520] sm:$0xff]
    %v2049 = vld [vmem:[%s1 + $0x528] sm:$0xff]
    %v2050 = vld [vmem:[%s1 + $0x530] sm:$0xff]
    %v2051 = vld [vmem:[%s1 + $0x538] sm:$0xff]
    %v2052 = vld [vmem:[%s1 + $0x540] sm:$0xff]
    %v2053 = vld [vmem:[%s1 + $0x548] sm:$0xff]
    %v2054 = vld [vmem:[%s1 + $0x550] sm:$0xff]
    %v2055 = vld [vmem:[%s1 + $0x558] sm:$0xff]
    %v2056 = vld [vmem:[%s1 + $0x560] sm:$0xff]
    %v2057 = vld [vmem:[%s1 + $0x568] sm:$0xff]
    %v2058 = vld [vmem:[%s1 + $0x570] sm:$0xff]
    %v2059 = vld [vmem:[%s1 + $0x578] sm:$0xff]
    %v2060 = vld [vmem:[%s1 + $0x580] sm:$0xff]
    %v2061 = vld [vmem:[%s1 + $0x588] sm:$0xff]
    %v2062 = vld [vmem:[%s1 + $0x590] sm:$0xff]
    %v2063 = vld [vmem:[%s1 + $0x598] sm:$0xff]
    %v2064 = vld [vmem:[%s1 + $0x5a0] sm:$0xff]
    %v2065 = vld [vmem:[%s1 + $0x5a8] sm:$0xff]
    %v2066 = vld [vmem:[%s1 + $0x5b0] sm:$0xff]
    %v2067 = vld [vmem:[%s1 + $0x5b8] sm:$0xff]
    %v2068 = vld [vmem:[%s1 + $0x5c0] sm:$0xff]
    %v2069 = vld [vmem:[%s1 + $0x5c8] sm:$0xff]
    %v2070 = vld [vmem:[%s1 + $0x5d0] sm:$0xff]
    %v2071 = vld [vmem:[%s1 + $0x5d8] sm:$0xff]
    %v2072 = vld [vmem:[%s1 + $0x5e0] sm:$0xff]
    %v2073 = vld [vmem:[%s1 + $0x5e8] sm:$0xff]
    %v2074 = vld [vmem:[%s1 + $0x5f0] sm:$0xff]
    %v2075 = vld [vmem:[%s1 + $0x5f8] sm:$0xff]
    %v2076 = vld [vmem:[%s1 + $0x600] sm:$0xff]
    %v2077 = vld [vmem:[%s1 + $0x608] sm:$0xff]
    %v2078 = vld [vmem:[%s1 + $0x610] sm:$0xff]
    %v2079 = vld [vmem:[%s1 + $0x618] sm:$0xff]
    %v2080 = vlaneseq
    %v2081 = vshrl.u32 %v2080, 7
    %v2082 = vsub.s32 0, %v2081
    %v2083 = vrot.slane %v1883, %v2082
    %v2084 = vmul.f32 %v2083, %v1884
    %v2085 = vmul.f32 %v2083, %v1885
    %v2086 = vmul.f32 %v2083, %v1886
    %v2087 = vmul.f32 %v2083, %v1887
    %v2088 = vmul.f32 %v2083, %v1888
    %v2089 = vmul.f32 %v2083, %v1889
    %v2090 = vmul.f32 %v2083, %v1890
    %v2091 = vmul.f32 %v2083, %v1891
    %v2092 = vmul.f32 %v2083, %v1892
    %v2093 = vmul.f32 %v2083, %v1893
    %v2094 = vmul.f32 %v2083, %v1894
    %v2095 = vmul.f32 %v2083, %v1895
    %v2096 = vmul.f32 %v2083, %v1896
    %v2097 = vmul.f32 %v2083, %v1897
    %v2098 = vmul.f32 %v2083, %v1898
    %v2099 = vmul.f32 %v2083, %v1899
    %v2100 = vmul.f32 %v2083, %v1900
    %v2101 = vmul.f32 %v2083, %v1901
    %v2102 = vmul.f32 %v2083, %v1902
    %v2103 = vmul.f32 %v2083, %v1903
    %v2104 = vmul.f32 %v2083, %v1904
    %v2105 = vmul.f32 %v2083, %v1905
    %v2106 = vmul.f32 %v2083, %v1906
    %v2107 = vmul.f32 %v2083, %v1907
    %v2108 = vmul.f32 %v2083, %v1908
    %v2109 = vmul.f32 %v2083, %v1909
    %v2110 = vmul.f32 %v2083, %v1910
    %v2111 = vmul.f32 %v2083, %v1911
    %v2112 = vmul.f32 %v2083, %v1912
    %v2113 = vmul.f32 %v2083, %v1913
    %v2114 = vmul.f32 %v2083, %v1914
    %v2115 = vmul.f32 %v2083, %v1915
    %v2116 = vmul.f32 %v2083, %v1916
    %v2117 = vmul.f32 %v2083, %v1917
    %v2118 = vmul.f32 %v2083, %v1918
    %v2119 = vmul.f32 %v2083, %v1919
    %v2120 = vmul.f32 %v2083, %v1920
    %v2121 = vmul.f32 %v2083, %v1921
    %v2122 = vmul.f32 %v2083, %v1922
    %v2123 = vmul.f32 %v2083, %v1923
    %v2124 = vmul.f32 %v2083, %v1924
    %v2125 = vmul.f32 %v2083, %v1925
    %v2126 = vmul.f32 %v2083, %v1926
    %v2127 = vmul.f32 %v2083, %v1927
    %v2128 = vmul.f32 %v2083, %v1928
    %v2129 = vmul.f32 %v2083, %v1929
    %v2130 = vmul.f32 %v2083, %v1930
    %v2131 = vmul.f32 %v2083, %v1931
    %v2132 = vmul.f32 %v2083, %v1932
    %v2133 = vmul.f32 %v2083, %v1933
    %v2134 = vmul.f32 %v2083, %v1934
    %v2135 = vmul.f32 %v2083, %v1935
    %v2136 = vmul.f32 %v2083, %v1936
    %v2137 = vmul.f32 %v2083, %v1937
    %v2138 = vmul.f32 %v2083, %v1938
    %v2139 = vmul.f32 %v2083, %v1939
    %v2140 = vmul.f32 %v2083, %v1940
    %v2141 = vmul.f32 %v2083, %v1941
    %v2142 = vmul.f32 %v2083, %v1942
    %v2143 = vmul.f32 %v2083, %v1943
    %v2144 = vmul.f32 %v2083, %v1944
    %v2145 = vmul.f32 %v2083, %v1945
    %v2146 = vmul.f32 %v2083, %v1946
    %v2147 = vmul.f32 %v2083, %v1947
    %v2148 = vmul.f32 %v2083, %v1948
    %v2149 = vmul.f32 %v2083, %v1949
    %v2150 = vmul.f32 %v2083, %v1950
    %v2151 = vmul.f32 %v2083, %v1951
    %v2152 = vmul.f32 %v2083, %v1952
    %v2153 = vmul.f32 %v2083, %v1953
    %v2154 = vmul.f32 %v2083, %v1954
    %v2155 = vmul.f32 %v2083, %v1955
    %v2156 = vmul.f32 %v2083, %v1956
    %v2157 = vmul.f32 %v2083, %v1957
    %v2158 = vmul.f32 %v2083, %v1958
    %v2159 = vmul.f32 %v2083, %v1959
    %v2160 = vmul.f32 %v2083, %v1960
    %v2161 = vmul.f32 %v2083, %v1961
    %v2162 = vmul.f32 %v2083, %v1962
    %v2163 = vmul.f32 %v2083, %v1963
    %v2164 = vmul.f32 %v2083, %v1964
    %v2165 = vmul.f32 %v2083, %v1965
    %v2166 = vmul.f32 %v2083, %v1966
    %v2167 = vmul.f32 %v2083, %v1967
    %v2168 = vmul.f32 %v2083, %v1968
    %v2169 = vmul.f32 %v2083, %v1969
    %v2170 = vmul.f32 %v2083, %v1970
    %v2171 = vmul.f32 %v2083, %v1971
    %v2172 = vmul.f32 %v2083, %v1972
    %v2173 = vmul.f32 %v2083, %v1973
    %v2174 = vmul.f32 %v2083, %v1974
    %v2175 = vmul.f32 %v2083, %v1975
    %v2176 = vmul.f32 %v2083, %v1976
    %v2177 = vmul.f32 %v2083, %v1977
    %v2178 = vmul.f32 %v2083, %v1978
    %v2179 = vmul.f32 %v2083, %v1979
    %v2180 = vmul.f32 %v2083, %v1980
    %v2181 = vmul.f32 %v2083, %v1981
    %v2182 = vmul.f32 %v2083, %v1982
    %v2183 = vmul.f32 %v2083, %v1983
    %v2184 = vmul.f32 %v2083, %v1984
    %v2185 = vmul.f32 %v2083, %v1985
    %v2186 = vmul.f32 %v2083, %v1986
    %v2187 = vmul.f32 %v2083, %v1987
    %v2188 = vmul.f32 %v2083, %v1988
    %v2189 = vmul.f32 %v2083, %v1989
    %v2190 = vmul.f32 %v2083, %v1990
    %v2191 = vmul.f32 %v2083, %v1991
    %v2192 = vmul.f32 %v2083, %v1992
    %v2193 = vmul.f32 %v2083, %v1993
    %v2194 = vmul.f32 %v2083, %v1994
    %v2195 = vmul.f32 %v2083, %v1995
    %v2196 = vmul.f32 %v2083, %v1996
    %v2197 = vmul.f32 %v2083, %v1997
    %v2198 = vmul.f32 %v2083, %v1998
    %v2199 = vmul.f32 %v2083, %v1999
    %v2200 = vmul.f32 %v2083, %v2000
    %v2201 = vmul.f32 %v2083, %v2001
    %v2202 = vmul.f32 %v2083, %v2002
    %v2203 = vmul.f32 %v2083, %v2003
    %v2204 = vmul.f32 %v2083, %v2004
    %v2205 = vmul.f32 %v2083, %v2005
    %v2206 = vmul.f32 %v2083, %v2006
    %v2207 = vmul.f32 %v2083, %v2007
    %v2208 = vmul.f32 %v2083, %v2008
    %v2209 = vmul.f32 %v2083, %v2009
    %v2210 = vmul.f32 %v2083, %v2010
    %v2211 = vmul.f32 %v2083, %v2011
    %v2212 = vmul.f32 %v2083, %v2012
    %v2213 = vmul.f32 %v2083, %v2013
    %v2214 = vmul.f32 %v2083, %v2014
    %v2215 = vmul.f32 %v2083, %v2015
    %v2216 = vmul.f32 %v2083, %v2016
    %v2217 = vmul.f32 %v2083, %v2017
    %v2218 = vmul.f32 %v2083, %v2018
    %v2219 = vmul.f32 %v2083, %v2019
    %v2220 = vmul.f32 %v2083, %v2020
    %v2221 = vmul.f32 %v2083, %v2021
    %v2222 = vmul.f32 %v2083, %v2022
    %v2223 = vmul.f32 %v2083, %v2023
    %v2224 = vmul.f32 %v2083, %v2024
    %v2225 = vmul.f32 %v2083, %v2025
    %v2226 = vmul.f32 %v2083, %v2026
    %v2227 = vmul.f32 %v2083, %v2027
    %v2228 = vmul.f32 %v2083, %v2028
    %v2229 = vmul.f32 %v2083, %v2029
    %v2230 = vmul.f32 %v2083, %v2030
    %v2231 = vmul.f32 %v2083, %v2031
    %v2232 = vmul.f32 %v2083, %v2032
    %v2233 = vmul.f32 %v2083, %v2033
    %v2234 = vmul.f32 %v2083, %v2034
    %v2235 = vmul.f32 %v2083, %v2035
    %v2236 = vmul.f32 %v2083, %v2036
    %v2237 = vmul.f32 %v2083, %v2037
    %v2238 = vmul.f32 %v2083, %v2038
    %v2239 = vmul.f32 %v2083, %v2039
    %v2240 = vmul.f32 %v2083, %v2040
    %v2241 = vmul.f32 %v2083, %v2041
    %v2242 = vmul.f32 %v2083, %v2042
    %v2243 = vmul.f32 %v2083, %v2043
    %v2244 = vmul.f32 %v2083, %v2044
    %v2245 = vmul.f32 %v2083, %v2045
    %v2246 = vmul.f32 %v2083, %v2046
    %v2247 = vmul.f32 %v2083, %v2047
    %v2248 = vmul.f32 %v2083, %v2048
    %v2249 = vmul.f32 %v2083, %v2049
    %v2250 = vmul.f32 %v2083, %v2050
    %v2251 = vmul.f32 %v2083, %v2051
    %v2252 = vmul.f32 %v2083, %v2052
    %v2253 = vmul.f32 %v2083, %v2053
    %v2254 = vmul.f32 %v2083, %v2054
    %v2255 = vmul.f32 %v2083, %v2055
    %v2256 = vmul.f32 %v2083, %v2056
    %v2257 = vmul.f32 %v2083, %v2057
    %v2258 = vmul.f32 %v2083, %v2058
    %v2259 = vmul.f32 %v2083, %v2059
    %v2260 = vmul.f32 %v2083, %v2060
    %v2261 = vmul.f32 %v2083, %v2061
    %v2262 = vmul.f32 %v2083, %v2062
    %v2263 = vmul.f32 %v2083, %v2063
    %v2264 = vmul.f32 %v2083, %v2064
    %v2265 = vmul.f32 %v2083, %v2065
    %v2266 = vmul.f32 %v2083, %v2066
    %v2267 = vmul.f32 %v2083, %v2067
    %v2268 = vmul.f32 %v2083, %v2068
    %v2269 = vmul.f32 %v2083, %v2069
    %v2270 = vmul.f32 %v2083, %v2070
    %v2271 = vmul.f32 %v2083, %v2071
    %v2272 = vmul.f32 %v2083, %v2072
    %v2273 = vmul.f32 %v2083, %v2073
    %v2274 = vmul.f32 %v2083, %v2074
    %v2275 = vmul.f32 %v2083, %v2075
    %v2276 = vmul.f32 %v2083, %v2076
    %v2277 = vmul.f32 %v2083, %v2077
    %v2278 = vmul.f32 %v2083, %v2078
    %v2279 = vmul.f32 %v2083, %v2079
    %v2280 = vadd.f32 %v2084, %v905
    %v2281 = vadd.f32 %v2085, %v910
    %v2282 = vadd.f32 %v2086, %v915
    %v2283 = vadd.f32 %v2087, %v920
    %v2284 = vadd.f32 %v2088, %v925
    %v2285 = vadd.f32 %v2089, %v930
    %v2286 = vadd.f32 %v2090, %v935
    %v2287 = vadd.f32 %v2091, %v940
    %v2288 = vadd.f32 %v2092, %v945
    %v2289 = vadd.f32 %v2093, %v950
    %v2290 = vadd.f32 %v2094, %v955
    %v2291 = vadd.f32 %v2095, %v960
    %v2292 = vadd.f32 %v2096, %v965
    %v2293 = vadd.f32 %v2097, %v970
    %v2294 = vadd.f32 %v2098, %v975
    %v2295 = vadd.f32 %v2099, %v980
    %v2296 = vadd.f32 %v2100, %v985
    %v2297 = vadd.f32 %v2101, %v990
    %v2298 = vadd.f32 %v2102, %v995
    %v2299 = vadd.f32 %v2103, %v1000
    %v2300 = vadd.f32 %v2104, %v1005
    %v2301 = vadd.f32 %v2105, %v1010
    %v2302 = vadd.f32 %v2106, %v1015
    %v2303 = vadd.f32 %v2107, %v1020
    %v2304 = vadd.f32 %v2108, %v1025
    %v2305 = vadd.f32 %v2109, %v1030
    %v2306 = vadd.f32 %v2110, %v1035
    %v2307 = vadd.f32 %v2111, %v1040
    %v2308 = vadd.f32 %v2112, %v1045
    %v2309 = vadd.f32 %v2113, %v1050
    %v2310 = vadd.f32 %v2114, %v1055
    %v2311 = vadd.f32 %v2115, %v1060
    %v2312 = vadd.f32 %v2116, %v1065
    %v2313 = vadd.f32 %v2117, %v1070
    %v2314 = vadd.f32 %v2118, %v1075
    %v2315 = vadd.f32 %v2119, %v1080
    %v2316 = vadd.f32 %v2120, %v1085
    %v2317 = vadd.f32 %v2121, %v1090
    %v2318 = vadd.f32 %v2122, %v1095
    %v2319 = vadd.f32 %v2123, %v1100
    %v2320 = vadd.f32 %v2124, %v1105
    %v2321 = vadd.f32 %v2125, %v1110
    %v2322 = vadd.f32 %v2126, %v1115
    %v2323 = vadd.f32 %v2127, %v1120
    %v2324 = vadd.f32 %v2128, %v1125
    %v2325 = vadd.f32 %v2129, %v1130
    %v2326 = vadd.f32 %v2130, %v1135
    %v2327 = vadd.f32 %v2131, %v1140
    %v2328 = vadd.f32 %v2132, %v1145
    %v2329 = vadd.f32 %v2133, %v1150
    %v2330 = vadd.f32 %v2134, %v1155
    %v2331 = vadd.f32 %v2135, %v1160
    %v2332 = vadd.f32 %v2136, %v1165
    %v2333 = vadd.f32 %v2137, %v1170
    %v2334 = vadd.f32 %v2138, %v1175
    %v2335 = vadd.f32 %v2139, %v1180
    %v2336 = vadd.f32 %v2140, %v1185
    %v2337 = vadd.f32 %v2141, %v1190
    %v2338 = vadd.f32 %v2142, %v1195
    %v2339 = vadd.f32 %v2143, %v1200
    %v2340 = vadd.f32 %v2144, %v1205
    %v2341 = vadd.f32 %v2145, %v1210
    %v2342 = vadd.f32 %v2146, %v1215
    %v2343 = vadd.f32 %v2147, %v1220
    %v2344 = vadd.f32 %v2148, %v1225
    %v2345 = vadd.f32 %v2149, %v1230
    %v2346 = vadd.f32 %v2150, %v1235
    %v2347 = vadd.f32 %v2151, %v1240
    %v2348 = vadd.f32 %v2152, %v1245
    %v2349 = vadd.f32 %v2153, %v1250
    %v2350 = vadd.f32 %v2154, %v1255
    %v2351 = vadd.f32 %v2155, %v1260
    %v2352 = vadd.f32 %v2156, %v1265
    %v2353 = vadd.f32 %v2157, %v1270
    %v2354 = vadd.f32 %v2158, %v1275
    %v2355 = vadd.f32 %v2159, %v1280
    %v2356 = vadd.f32 %v2160, %v1285
    %v2357 = vadd.f32 %v2161, %v1290
    %v2358 = vadd.f32 %v2162, %v1295
    %v2359 = vadd.f32 %v2163, %v1300
    %v2360 = vadd.f32 %v2164, %v1305
    %v2361 = vadd.f32 %v2165, %v1310
    %v2362 = vadd.f32 %v2166, %v1315
    %v2363 = vadd.f32 %v2167, %v1320
    %v2364 = vadd.f32 %v2168, %v1325
    %v2365 = vadd.f32 %v2169, %v1330
    %v2366 = vadd.f32 %v2170, %v1335
    %v2367 = vadd.f32 %v2171, %v1340
    %v2368 = vadd.f32 %v2172, %v1345
    %v2369 = vadd.f32 %v2173, %v1350
    %v2370 = vadd.f32 %v2174, %v1355
    %v2371 = vadd.f32 %v2175, %v1360
    %v2372 = vadd.f32 %v2176, %v1365
    %v2373 = vadd.f32 %v2177, %v1370
    %v2374 = vadd.f32 %v2178, %v1375
    %v2375 = vadd.f32 %v2179, %v1380
    %v2376 = vadd.f32 %v2180, %v1385
    %v2377 = vadd.f32 %v2181, %v1390
    %v2378 = vadd.f32 %v2182, %v1395
    %v2379 = vadd.f32 %v2183, %v1400
    %v2380 = vadd.f32 %v2184, %v1405
    %v2381 = vadd.f32 %v2185, %v1410
    %v2382 = vadd.f32 %v2186, %v1415
    %v2383 = vadd.f32 %v2187, %v1420
    %v2384 = vadd.f32 %v2188, %v1425
    %v2385 = vadd.f32 %v2189, %v1430
    %v2386 = vadd.f32 %v2190, %v1435
    %v2387 = vadd.f32 %v2191, %v1440
    %v2388 = vadd.f32 %v2192, %v1445
    %v2389 = vadd.f32 %v2193, %v1450
    %v2390 = vadd.f32 %v2194, %v1455
    %v2391 = vadd.f32 %v2195, %v1460
    %v2392 = vadd.f32 %v2196, %v1465
    %v2393 = vadd.f32 %v2197, %v1470
    %v2394 = vadd.f32 %v2198, %v1475
    %v2395 = vadd.f32 %v2199, %v1480
    %v2396 = vadd.f32 %v2200, %v1485
    %v2397 = vadd.f32 %v2201, %v1490
    %v2398 = vadd.f32 %v2202, %v1495
    %v2399 = vadd.f32 %v2203, %v1500
    %v2400 = vadd.f32 %v2204, %v1505
    %v2401 = vadd.f32 %v2205, %v1510
    %v2402 = vadd.f32 %v2206, %v1515
    %v2403 = vadd.f32 %v2207, %v1520
    %v2404 = vadd.f32 %v2208, %v1525
    %v2405 = vadd.f32 %v2209, %v1530
    %v2406 = vadd.f32 %v2210, %v1535
    %v2407 = vadd.f32 %v2211, %v1540
    %v2408 = vadd.f32 %v2212, %v1545
    %v2409 = vadd.f32 %v2213, %v1550
    %v2410 = vadd.f32 %v2214, %v1555
    %v2411 = vadd.f32 %v2215, %v1560
    %v2412 = vadd.f32 %v2216, %v1565
    %v2413 = vadd.f32 %v2217, %v1570
    %v2414 = vadd.f32 %v2218, %v1575
    %v2415 = vadd.f32 %v2219, %v1580
    %v2416 = vadd.f32 %v2220, %v1585
    %v2417 = vadd.f32 %v2221, %v1590
    %v2418 = vadd.f32 %v2222, %v1595
    %v2419 = vadd.f32 %v2223, %v1600
    %v2420 = vadd.f32 %v2224, %v1605
    %v2421 = vadd.f32 %v2225, %v1610
    %v2422 = vadd.f32 %v2226, %v1615
    %v2423 = vadd.f32 %v2227, %v1620
    %v2424 = vadd.f32 %v2228, %v1625
    %v2425 = vadd.f32 %v2229, %v1630
    %v2426 = vadd.f32 %v2230, %v1635
    %v2427 = vadd.f32 %v2231, %v1640
    %v2428 = vadd.f32 %v2232, %v1645
    %v2429 = vadd.f32 %v2233, %v1650
    %v2430 = vadd.f32 %v2234, %v1655
    %v2431 = vadd.f32 %v2235, %v1660
    %v2432 = vadd.f32 %v2236, %v1665
    %v2433 = vadd.f32 %v2237, %v1670
    %v2434 = vadd.f32 %v2238, %v1675
    %v2435 = vadd.f32 %v2239, %v1680
    %v2436 = vadd.f32 %v2240, %v1685
    %v2437 = vadd.f32 %v2241, %v1690
    %v2438 = vadd.f32 %v2242, %v1695
    %v2439 = vadd.f32 %v2243, %v1700
    %v2440 = vadd.f32 %v2244, %v1705
    %v2441 = vadd.f32 %v2245, %v1710
    %v2442 = vadd.f32 %v2246, %v1715
    %v2443 = vadd.f32 %v2247, %v1720
    %v2444 = vadd.f32 %v2248, %v1725
    %v2445 = vadd.f32 %v2249, %v1730
    %v2446 = vadd.f32 %v2250, %v1735
    %v2447 = vadd.f32 %v2251, %v1740
    %v2448 = vadd.f32 %v2252, %v1745
    %v2449 = vadd.f32 %v2253, %v1750
    %v2450 = vadd.f32 %v2254, %v1755
    %v2451 = vadd.f32 %v2255, %v1760
    %v2452 = vadd.f32 %v2256, %v1765
    %v2453 = vadd.f32 %v2257, %v1770
    %v2454 = vadd.f32 %v2258, %v1775
    %v2455 = vadd.f32 %v2259, %v1780
    %v2456 = vadd.f32 %v2260, %v1785
    %v2457 = vadd.f32 %v2261, %v1790
    %v2458 = vadd.f32 %v2262, %v1795
    %v2459 = vadd.f32 %v2263, %v1800
    %v2460 = vadd.f32 %v2264, %v1805
    %v2461 = vadd.f32 %v2265, %v1810
    %v2462 = vadd.f32 %v2266, %v1815
    %v2463 = vadd.f32 %v2267, %v1820
    %v2464 = vadd.f32 %v2268, %v1825
    %v2465 = vadd.f32 %v2269, %v1830
    %v2466 = vadd.f32 %v2270, %v1835
    %v2467 = vadd.f32 %v2271, %v1840
    %v2468 = vadd.f32 %v2272, %v1845
    %v2469 = vadd.f32 %v2273, %v1850
    %v2470 = vadd.f32 %v2274, %v1855
    %v2471 = vadd.f32 %v2275, %v1860
    %v2472 = vadd.f32 %v2276, %v1865
    %v2473 = vadd.f32 %v2277, %v1870
    %v2474 = vadd.f32 %v2278, %v1875
    %v2475 = vadd.f32 %v2279, %v1880
    %v2476 = vld [vmem:[%s5 + $0x1] sm:$0x1]
    %v2477 = vld [vmem:[%s1 + $0x620] sm:$0xff]
    %v2478 = vld [vmem:[%s1 + $0x628] sm:$0xff]
    %v2479 = vld [vmem:[%s1 + $0x630] sm:$0xff]
    %v2480 = vld [vmem:[%s1 + $0x638] sm:$0xff]
    %v2481 = vld [vmem:[%s1 + $0x640] sm:$0xff]
    %v2482 = vld [vmem:[%s1 + $0x648] sm:$0xff]
    %v2483 = vld [vmem:[%s1 + $0x650] sm:$0xff]
    %v2484 = vld [vmem:[%s1 + $0x658] sm:$0xff]
    %v2485 = vld [vmem:[%s1 + $0x660] sm:$0xff]
    %v2486 = vld [vmem:[%s1 + $0x668] sm:$0xff]
    %v2487 = vld [vmem:[%s1 + $0x670] sm:$0xff]
    %v2488 = vld [vmem:[%s1 + $0x678] sm:$0xff]
    %v2489 = vld [vmem:[%s1 + $0x680] sm:$0xff]
    %v2490 = vld [vmem:[%s1 + $0x688] sm:$0xff]
    %v2491 = vld [vmem:[%s1 + $0x690] sm:$0xff]
    %v2492 = vld [vmem:[%s1 + $0x698] sm:$0xff]
    %v2493 = vld [vmem:[%s1 + $0x6a0] sm:$0xff]
    %v2494 = vld [vmem:[%s1 + $0x6a8] sm:$0xff]
    %v2495 = vld [vmem:[%s1 + $0x6b0] sm:$0xff]
    %v2496 = vld [vmem:[%s1 + $0x6b8] sm:$0xff]
    %v2497 = vld [vmem:[%s1 + $0x6c0] sm:$0xff]
    %v2498 = vld [vmem:[%s1 + $0x6c8] sm:$0xff]
    %v2499 = vld [vmem:[%s1 + $0x6d0] sm:$0xff]
    %v2500 = vld [vmem:[%s1 + $0x6d8] sm:$0xff]
    %v2501 = vld [vmem:[%s1 + $0x6e0] sm:$0xff]
    %v2502 = vld [vmem:[%s1 + $0x6e8] sm:$0xff]
    %v2503 = vld [vmem:[%s1 + $0x6f0] sm:$0xff]
    %v2504 = vld [vmem:[%s1 + $0x6f8] sm:$0xff]
    %v2505 = vld [vmem:[%s1 + $0x700] sm:$0xff]
    %v2506 = vld [vmem:[%s1 + $0x708] sm:$0xff]
    %v2507 = vld [vmem:[%s1 + $0x710] sm:$0xff]
    %v2508 = vld [vmem:[%s1 + $0x718] sm:$0xff]
    %v2509 = vld [vmem:[%s1 + $0x720] sm:$0xff]
    %v2510 = vld [vmem:[%s1 + $0x728] sm:$0xff]
    %v2511 = vld [vmem:[%s1 + $0x730] sm:$0xff]
    %v2512 = vld [vmem:[%s1 + $0x738] sm:$0xff]
    %v2513 = vld [vmem:[%s1 + $0x740] sm:$0xff]
    %v2514 = vld [vmem:[%s1 + $0x748] sm:$0xff]
    %v2515 = vld [vmem:[%s1 + $0x750] sm:$0xff]
    %v2516 = vld [vmem:[%s1 + $0x758] sm:$0xff]
    %v2517 = vld [vmem:[%s1 + $0x760] sm:$0xff]
    %v2518 = vld [vmem:[%s1 + $0x768] sm:$0xff]
    %v2519 = vld [vmem:[%s1 + $0x770] sm:$0xff]
    %v2520 = vld [vmem:[%s1 + $0x778] sm:$0xff]
    %v2521 = vld [vmem:[%s1 + $0x780] sm:$0xff]
    %v2522 = vld [vmem:[%s1 + $0x788] sm:$0xff]
    %v2523 = vld [vmem:[%s1 + $0x790] sm:$0xff]
    %v2524 = vld [vmem:[%s1 + $0x798] sm:$0xff]
    %v2525 = vld [vmem:[%s1 + $0x7a0] sm:$0xff]
    %v2526 = vld [vmem:[%s1 + $0x7a8] sm:$0xff]
    %v2527 = vld [vmem:[%s1 + $0x7b0] sm:$0xff]
    %v2528 = vld [vmem:[%s1 + $0x7b8] sm:$0xff]
    %v2529 = vld [vmem:[%s1 + $0x7c0] sm:$0xff]
    %v2530 = vld [vmem:[%s1 + $0x7c8] sm:$0xff]
    %v2531 = vld [vmem:[%s1 + $0x7d0] sm:$0xff]
    %v2532 = vld [vmem:[%s1 + $0x7d8] sm:$0xff]
    %v2533 = vld [vmem:[%s1 + $0x7e0] sm:$0xff]
    %v2534 = vld [vmem:[%s1 + $0x7e8] sm:$0xff]
    %v2535 = vld [vmem:[%s1 + $0x7f0] sm:$0xff]
    %v2536 = vld [vmem:[%s1 + $0x7f8] sm:$0xff]
    %v2537 = vld [vmem:[%s1 + $0x800] sm:$0xff]
    %v2538 = vld [vmem:[%s1 + $0x808] sm:$0xff]
    %v2539 = vld [vmem:[%s1 + $0x810] sm:$0xff]
    %v2540 = vld [vmem:[%s1 + $0x818] sm:$0xff]
    %v2541 = vld [vmem:[%s1 + $0x820] sm:$0xff]
    %v2542 = vld [vmem:[%s1 + $0x828] sm:$0xff]
    %v2543 = vld [vmem:[%s1 + $0x830] sm:$0xff]
    %v2544 = vld [vmem:[%s1 + $0x838] sm:$0xff]
    %v2545 = vld [vmem:[%s1 + $0x840] sm:$0xff]
    %v2546 = vld [vmem:[%s1 + $0x848] sm:$0xff]
    %v2547 = vld [vmem:[%s1 + $0x850] sm:$0xff]
    %v2548 = vld [vmem:[%s1 + $0x858] sm:$0xff]
    %v2549 = vld [vmem:[%s1 + $0x860] sm:$0xff]
    %v2550 = vld [vmem:[%s1 + $0x868] sm:$0xff]
    %v2551 = vld [vmem:[%s1 + $0x870] sm:$0xff]
    %v2552 = vld [vmem:[%s1 + $0x878] sm:$0xff]
    %v2553 = vld [vmem:[%s1 + $0x880] sm:$0xff]
    %v2554 = vld [vmem:[%s1 + $0x888] sm:$0xff]
    %v2555 = vld [vmem:[%s1 + $0x890] sm:$0xff]
    %v2556 = vld [vmem:[%s1 + $0x898] sm:$0xff]
    %v2557 = vld [vmem:[%s1 + $0x8a0] sm:$0xff]
    %v2558 = vld [vmem:[%s1 + $0x8a8] sm:$0xff]
    %v2559 = vld [vmem:[%s1 + $0x8b0] sm:$0xff]
    %v2560 = vld [vmem:[%s1 + $0x8b8] sm:$0xff]
    %v2561 = vld [vmem:[%s1 + $0x8c0] sm:$0xff]
    %v2562 = vld [vmem:[%s1 + $0x8c8] sm:$0xff]
    %v2563 = vld [vmem:[%s1 + $0x8d0] sm:$0xff]
    %v2564 = vld [vmem:[%s1 + $0x8d8] sm:$0xff]
    %v2565 = vld [vmem:[%s1 + $0x8e0] sm:$0xff]
    %v2566 = vld [vmem:[%s1 + $0x8e8] sm:$0xff]
    %v2567 = vld [vmem:[%s1 + $0x8f0] sm:$0xff]
    %v2568 = vld [vmem:[%s1 + $0x8f8] sm:$0xff]
    %v2569 = vld [vmem:[%s1 + $0x900] sm:$0xff]
    %v2570 = vld [vmem:[%s1 + $0x908] sm:$0xff]
    %v2571 = vld [vmem:[%s1 + $0x910] sm:$0xff]
    %v2572 = vld [vmem:[%s1 + $0x918] sm:$0xff]
    %v2573 = vld [vmem:[%s1 + $0x920] sm:$0xff]
    %v2574 = vld [vmem:[%s1 + $0x928] sm:$0xff]
    %v2575 = vld [vmem:[%s1 + $0x930] sm:$0xff]
    %v2576 = vld [vmem:[%s1 + $0x938] sm:$0xff]
    %v2577 = vld [vmem:[%s1 + $0x940] sm:$0xff]
    %v2578 = vld [vmem:[%s1 + $0x948] sm:$0xff]
    %v2579 = vld [vmem:[%s1 + $0x950] sm:$0xff]
    %v2580 = vld [vmem:[%s1 + $0x958] sm:$0xff]
    %v2581 = vld [vmem:[%s1 + $0x960] sm:$0xff]
    %v2582 = vld [vmem:[%s1 + $0x968] sm:$0xff]
    %v2583 = vld [vmem:[%s1 + $0x970] sm:$0xff]
    %v2584 = vld [vmem:[%s1 + $0x978] sm:$0xff]
    %v2585 = vld [vmem:[%s1 + $0x980] sm:$0xff]
    %v2586 = vld [vmem:[%s1 + $0x988] sm:$0xff]
    %v2587 = vld [vmem:[%s1 + $0x990] sm:$0xff]
    %v2588 = vld [vmem:[%s1 + $0x998] sm:$0xff]
    %v2589 = vld [vmem:[%s1 + $0x9a0] sm:$0xff]
    %v2590 = vld [vmem:[%s1 + $0x9a8] sm:$0xff]
    %v2591 = vld [vmem:[%s1 + $0x9b0] sm:$0xff]
    %v2592 = vld [vmem:[%s1 + $0x9b8] sm:$0xff]
    %v2593 = vld [vmem:[%s1 + $0x9c0] sm:$0xff]
    %v2594 = vld [vmem:[%s1 + $0x9c8] sm:$0xff]
    %v2595 = vld [vmem:[%s1 + $0x9d0] sm:$0xff]
    %v2596 = vld [vmem:[%s1 + $0x9d8] sm:$0xff]
    %v2597 = vld [vmem:[%s1 + $0x9e0] sm:$0xff]
    %v2598 = vld [vmem:[%s1 + $0x9e8] sm:$0xff]
    %v2599 = vld [vmem:[%s1 + $0x9f0] sm:$0xff]
    %v2600 = vld [vmem:[%s1 + $0x9f8] sm:$0xff]
    %v2601 = vld [vmem:[%s1 + $0xa00] sm:$0xff]
    %v2602 = vld [vmem:[%s1 + $0xa08] sm:$0xff]
    %v2603 = vld [vmem:[%s1 + $0xa10] sm:$0xff]
    %v2604 = vld [vmem:[%s1 + $0xa18] sm:$0xff]
    %v2605 = vld [vmem:[%s1 + $0xa20] sm:$0xff]
    %v2606 = vld [vmem:[%s1 + $0xa28] sm:$0xff]
    %v2607 = vld [vmem:[%s1 + $0xa30] sm:$0xff]
    %v2608 = vld [vmem:[%s1 + $0xa38] sm:$0xff]
    %v2609 = vld [vmem:[%s1 + $0xa40] sm:$0xff]
    %v2610 = vld [vmem:[%s1 + $0xa48] sm:$0xff]
    %v2611 = vld [vmem:[%s1 + $0xa50] sm:$0xff]
    %v2612 = vld [vmem:[%s1 + $0xa58] sm:$0xff]
    %v2613 = vld [vmem:[%s1 + $0xa60] sm:$0xff]
    %v2614 = vld [vmem:[%s1 + $0xa68] sm:$0xff]
    %v2615 = vld [vmem:[%s1 + $0xa70] sm:$0xff]
    %v2616 = vld [vmem:[%s1 + $0xa78] sm:$0xff]
    %v2617 = vld [vmem:[%s1 + $0xa80] sm:$0xff]
    %v2618 = vld [vmem:[%s1 + $0xa88] sm:$0xff]
    %v2619 = vld [vmem:[%s1 + $0xa90] sm:$0xff]
    %v2620 = vld [vmem:[%s1 + $0xa98] sm:$0xff]
    %v2621 = vld [vmem:[%s1 + $0xaa0] sm:$0xff]
    %v2622 = vld [vmem:[%s1 + $0xaa8] sm:$0xff]
    %v2623 = vld [vmem:[%s1 + $0xab0] sm:$0xff]
    %v2624 = vld [vmem:[%s1 + $0xab8] sm:$0xff]
    %v2625 = vld [vmem:[%s1 + $0xac0] sm:$0xff]
    %v2626 = vld [vmem:[%s1 + $0xac8] sm:$0xff]
    %v2627 = vld [vmem:[%s1 + $0xad0] sm:$0xff]
    %v2628 = vld [vmem:[%s1 + $0xad8] sm:$0xff]
    %v2629 = vld [vmem:[%s1 + $0xae0] sm:$0xff]
    %v2630 = vld [vmem:[%s1 + $0xae8] sm:$0xff]
    %v2631 = vld [vmem:[%s1 + $0xaf0] sm:$0xff]
    %v2632 = vld [vmem:[%s1 + $0xaf8] sm:$0xff]
    %v2633 = vld [vmem:[%s1 + $0xb00] sm:$0xff]
    %v2634 = vld [vmem:[%s1 + $0xb08] sm:$0xff]
    %v2635 = vld [vmem:[%s1 + $0xb10] sm:$0xff]
    %v2636 = vld [vmem:[%s1 + $0xb18] sm:$0xff]
    %v2637 = vld [vmem:[%s1 + $0xb20] sm:$0xff]
    %v2638 = vld [vmem:[%s1 + $0xb28] sm:$0xff]
    %v2639 = vld [vmem:[%s1 + $0xb30] sm:$0xff]
    %v2640 = vld [vmem:[%s1 + $0xb38] sm:$0xff]
    %v2641 = vld [vmem:[%s1 + $0xb40] sm:$0xff]
    %v2642 = vld [vmem:[%s1 + $0xb48] sm:$0xff]
    %v2643 = vld [vmem:[%s1 + $0xb50] sm:$0xff]
    %v2644 = vld [vmem:[%s1 + $0xb58] sm:$0xff]
    %v2645 = vld [vmem:[%s1 + $0xb60] sm:$0xff]
    %v2646 = vld [vmem:[%s1 + $0xb68] sm:$0xff]
    %v2647 = vld [vmem:[%s1 + $0xb70] sm:$0xff]
    %v2648 = vld [vmem:[%s1 + $0xb78] sm:$0xff]
    %v2649 = vld [vmem:[%s1 + $0xb80] sm:$0xff]
    %v2650 = vld [vmem:[%s1 + $0xb88] sm:$0xff]
    %v2651 = vld [vmem:[%s1 + $0xb90] sm:$0xff]
    %v2652 = vld [vmem:[%s1 + $0xb98] sm:$0xff]
    %v2653 = vld [vmem:[%s1 + $0xba0] sm:$0xff]
    %v2654 = vld [vmem:[%s1 + $0xba8] sm:$0xff]
    %v2655 = vld [vmem:[%s1 + $0xbb0] sm:$0xff]
    %v2656 = vld [vmem:[%s1 + $0xbb8] sm:$0xff]
    %v2657 = vld [vmem:[%s1 + $0xbc0] sm:$0xff]
    %v2658 = vld [vmem:[%s1 + $0xbc8] sm:$0xff]
    %v2659 = vld [vmem:[%s1 + $0xbd0] sm:$0xff]
    %v2660 = vld [vmem:[%s1 + $0xbd8] sm:$0xff]
    %v2661 = vld [vmem:[%s1 + $0xbe0] sm:$0xff]
    %v2662 = vld [vmem:[%s1 + $0xbe8] sm:$0xff]
    %v2663 = vld [vmem:[%s1 + $0xbf0] sm:$0xff]
    %v2664 = vld [vmem:[%s1 + $0xbf8] sm:$0xff]
    %v2665 = vld [vmem:[%s1 + $0xc00] sm:$0xff]
    %v2666 = vld [vmem:[%s1 + $0xc08] sm:$0xff]
    %v2667 = vld [vmem:[%s1 + $0xc10] sm:$0xff]
    %v2668 = vld [vmem:[%s1 + $0xc18] sm:$0xff]
    %v2669 = vld [vmem:[%s1 + $0xc20] sm:$0xff]
    %v2670 = vld [vmem:[%s1 + $0xc28] sm:$0xff]
    %v2671 = vld [vmem:[%s1 + $0xc30] sm:$0xff]
    %v2672 = vld [vmem:[%s1 + $0xc38] sm:$0xff]
    %v2673 = vlaneseq
    %v2674 = vshrl.u32 %v2673, 7
    %v2675 = vsub.s32 0, %v2674
    %v2676 = vrot.slane %v2476, %v2675
    %v2677 = vmul.f32 %v2676, %v2477
    %v2678 = vmul.f32 %v2676, %v2478
    %v2679 = vmul.f32 %v2676, %v2479
    %v2680 = vmul.f32 %v2676, %v2480
    %v2681 = vmul.f32 %v2676, %v2481
    %v2682 = vmul.f32 %v2676, %v2482
    %v2683 = vmul.f32 %v2676, %v2483
    %v2684 = vmul.f32 %v2676, %v2484
    %v2685 = vmul.f32 %v2676, %v2485
    %v2686 = vmul.f32 %v2676, %v2486
    %v2687 = vmul.f32 %v2676, %v2487
    %v2688 = vmul.f32 %v2676, %v2488
    %v2689 = vmul.f32 %v2676, %v2489
    %v2690 = vmul.f32 %v2676, %v2490
    %v2691 = vmul.f32 %v2676, %v2491
    %v2692 = vmul.f32 %v2676, %v2492
    %v2693 = vmul.f32 %v2676, %v2493
    %v2694 = vmul.f32 %v2676, %v2494
    %v2695 = vmul.f32 %v2676, %v2495
    %v2696 = vmul.f32 %v2676, %v2496
    %v2697 = vmul.f32 %v2676, %v2497
    %v2698 = vmul.f32 %v2676, %v2498
    %v2699 = vmul.f32 %v2676, %v2499
    %v2700 = vmul.f32 %v2676, %v2500
    %v2701 = vmul.f32 %v2676, %v2501
    %v2702 = vmul.f32 %v2676, %v2502
    %v2703 = vmul.f32 %v2676, %v2503
    %v2704 = vmul.f32 %v2676, %v2504
    %v2705 = vmul.f32 %v2676, %v2505
    %v2706 = vmul.f32 %v2676, %v2506
    %v2707 = vmul.f32 %v2676, %v2507
    %v2708 = vmul.f32 %v2676, %v2508
    %v2709 = vmul.f32 %v2676, %v2509
    %v2710 = vmul.f32 %v2676, %v2510
    %v2711 = vmul.f32 %v2676, %v2511
    %v2712 = vmul.f32 %v2676, %v2512
    %v2713 = vmul.f32 %v2676, %v2513
    %v2714 = vmul.f32 %v2676, %v2514
    %v2715 = vmul.f32 %v2676, %v2515
    %v2716 = vmul.f32 %v2676, %v2516
    %v2717 = vmul.f32 %v2676, %v2517
    %v2718 = vmul.f32 %v2676, %v2518
    %v2719 = vmul.f32 %v2676, %v2519
    %v2720 = vmul.f32 %v2676, %v2520
    %v2721 = vmul.f32 %v2676, %v2521
    %v2722 = vmul.f32 %v2676, %v2522
    %v2723 = vmul.f32 %v2676, %v2523
    %v2724 = vmul.f32 %v2676, %v2524
    %v2725 = vmul.f32 %v2676, %v2525
    %v2726 = vmul.f32 %v2676, %v2526
    %v2727 = vmul.f32 %v2676, %v2527
    %v2728 = vmul.f32 %v2676, %v2528
    %v2729 = vmul.f32 %v2676, %v2529
    %v2730 = vmul.f32 %v2676, %v2530
    %v2731 = vmul.f32 %v2676, %v2531
    %v2732 = vmul.f32 %v2676, %v2532
    %v2733 = vmul.f32 %v2676, %v2533
    %v2734 = vmul.f32 %v2676, %v2534
    %v2735 = vmul.f32 %v2676, %v2535
    %v2736 = vmul.f32 %v2676, %v2536
    %v2737 = vmul.f32 %v2676, %v2537
    %v2738 = vmul.f32 %v2676, %v2538
    %v2739 = vmul.f32 %v2676, %v2539
    %v2740 = vmul.f32 %v2676, %v2540
    %v2741 = vmul.f32 %v2676, %v2541
    %v2742 = vmul.f32 %v2676, %v2542
    %v2743 = vmul.f32 %v2676, %v2543
    %v2744 = vmul.f32 %v2676, %v2544
    %v2745 = vmul.f32 %v2676, %v2545
    %v2746 = vmul.f32 %v2676, %v2546
    %v2747 = vmul.f32 %v2676, %v2547
    %v2748 = vmul.f32 %v2676, %v2548
    %v2749 = vmul.f32 %v2676, %v2549
    %v2750 = vmul.f32 %v2676, %v2550
    %v2751 = vmul.f32 %v2676, %v2551
    %v2752 = vmul.f32 %v2676, %v2552
    %v2753 = vmul.f32 %v2676, %v2553
    %v2754 = vmul.f32 %v2676, %v2554
    %v2755 = vmul.f32 %v2676, %v2555
    %v2756 = vmul.f32 %v2676, %v2556
    %v2757 = vmul.f32 %v2676, %v2557
    %v2758 = vmul.f32 %v2676, %v2558
    %v2759 = vmul.f32 %v2676, %v2559
    %v2760 = vmul.f32 %v2676, %v2560
    %v2761 = vmul.f32 %v2676, %v2561
    %v2762 = vmul.f32 %v2676, %v2562
    %v2763 = vmul.f32 %v2676, %v2563
    %v2764 = vmul.f32 %v2676, %v2564
    %v2765 = vmul.f32 %v2676, %v2565
    %v2766 = vmul.f32 %v2676, %v2566
    %v2767 = vmul.f32 %v2676, %v2567
    %v2768 = vmul.f32 %v2676, %v2568
    %v2769 = vmul.f32 %v2676, %v2569
    %v2770 = vmul.f32 %v2676, %v2570
    %v2771 = vmul.f32 %v2676, %v2571
    %v2772 = vmul.f32 %v2676, %v2572
    %v2773 = vmul.f32 %v2676, %v2573
    %v2774 = vmul.f32 %v2676, %v2574
    %v2775 = vmul.f32 %v2676, %v2575
    %v2776 = vmul.f32 %v2676, %v2576
    %v2777 = vmul.f32 %v2676, %v2577
    %v2778 = vmul.f32 %v2676, %v2578
    %v2779 = vmul.f32 %v2676, %v2579
    %v2780 = vmul.f32 %v2676, %v2580
    %v2781 = vmul.f32 %v2676, %v2581
    %v2782 = vmul.f32 %v2676, %v2582
    %v2783 = vmul.f32 %v2676, %v2583
    %v2784 = vmul.f32 %v2676, %v2584
    %v2785 = vmul.f32 %v2676, %v2585
    %v2786 = vmul.f32 %v2676, %v2586
    %v2787 = vmul.f32 %v2676, %v2587
    %v2788 = vmul.f32 %v2676, %v2588
    %v2789 = vmul.f32 %v2676, %v2589
    %v2790 = vmul.f32 %v2676, %v2590
    %v2791 = vmul.f32 %v2676, %v2591
    %v2792 = vmul.f32 %v2676, %v2592
    %v2793 = vmul.f32 %v2676, %v2593
    %v2794 = vmul.f32 %v2676, %v2594
    %v2795 = vmul.f32 %v2676, %v2595
    %v2796 = vmul.f32 %v2676, %v2596
    %v2797 = vmul.f32 %v2676, %v2597
    %v2798 = vmul.f32 %v2676, %v2598
    %v2799 = vmul.f32 %v2676, %v2599
    %v2800 = vmul.f32 %v2676, %v2600
    %v2801 = vmul.f32 %v2676, %v2601
    %v2802 = vmul.f32 %v2676, %v2602
    %v2803 = vmul.f32 %v2676, %v2603
    %v2804 = vmul.f32 %v2676, %v2604
    %v2805 = vmul.f32 %v2676, %v2605
    %v2806 = vmul.f32 %v2676, %v2606
    %v2807 = vmul.f32 %v2676, %v2607
    %v2808 = vmul.f32 %v2676, %v2608
    %v2809 = vmul.f32 %v2676, %v2609
    %v2810 = vmul.f32 %v2676, %v2610
    %v2811 = vmul.f32 %v2676, %v2611
    %v2812 = vmul.f32 %v2676, %v2612
    %v2813 = vmul.f32 %v2676, %v2613
    %v2814 = vmul.f32 %v2676, %v2614
    %v2815 = vmul.f32 %v2676, %v2615
    %v2816 = vmul.f32 %v2676, %v2616
    %v2817 = vmul.f32 %v2676, %v2617
    %v2818 = vmul.f32 %v2676, %v2618
    %v2819 = vmul.f32 %v2676, %v2619
    %v2820 = vmul.f32 %v2676, %v2620
    %v2821 = vmul.f32 %v2676, %v2621
    %v2822 = vmul.f32 %v2676, %v2622
    %v2823 = vmul.f32 %v2676, %v2623
    %v2824 = vmul.f32 %v2676, %v2624
    %v2825 = vmul.f32 %v2676, %v2625
    %v2826 = vmul.f32 %v2676, %v2626
    %v2827 = vmul.f32 %v2676, %v2627
    %v2828 = vmul.f32 %v2676, %v2628
    %v2829 = vmul.f32 %v2676, %v2629
    %v2830 = vmul.f32 %v2676, %v2630
    %v2831 = vmul.f32 %v2676, %v2631
    %v2832 = vmul.f32 %v2676, %v2632
    %v2833 = vmul.f32 %v2676, %v2633
    %v2834 = vmul.f32 %v2676, %v2634
    %v2835 = vmul.f32 %v2676, %v2635
    %v2836 = vmul.f32 %v2676, %v2636
    %v2837 = vmul.f32 %v2676, %v2637
    %v2838 = vmul.f32 %v2676, %v2638
    %v2839 = vmul.f32 %v2676, %v2639
    %v2840 = vmul.f32 %v2676, %v2640
    %v2841 = vmul.f32 %v2676, %v2641
    %v2842 = vmul.f32 %v2676, %v2642
    %v2843 = vmul.f32 %v2676, %v2643
    %v2844 = vmul.f32 %v2676, %v2644
    %v2845 = vmul.f32 %v2676, %v2645
    %v2846 = vmul.f32 %v2676, %v2646
    %v2847 = vmul.f32 %v2676, %v2647
    %v2848 = vmul.f32 %v2676, %v2648
    %v2849 = vmul.f32 %v2676, %v2649
    %v2850 = vmul.f32 %v2676, %v2650
    %v2851 = vmul.f32 %v2676, %v2651
    %v2852 = vmul.f32 %v2676, %v2652
    %v2853 = vmul.f32 %v2676, %v2653
    %v2854 = vmul.f32 %v2676, %v2654
    %v2855 = vmul.f32 %v2676, %v2655
    %v2856 = vmul.f32 %v2676, %v2656
    %v2857 = vmul.f32 %v2676, %v2657
    %v2858 = vmul.f32 %v2676, %v2658
    %v2859 = vmul.f32 %v2676, %v2659
    %v2860 = vmul.f32 %v2676, %v2660
    %v2861 = vmul.f32 %v2676, %v2661
    %v2862 = vmul.f32 %v2676, %v2662
    %v2863 = vmul.f32 %v2676, %v2663
    %v2864 = vmul.f32 %v2676, %v2664
    %v2865 = vmul.f32 %v2676, %v2665
    %v2866 = vmul.f32 %v2676, %v2666
    %v2867 = vmul.f32 %v2676, %v2667
    %v2868 = vmul.f32 %v2676, %v2668
    %v2869 = vmul.f32 %v2676, %v2669
    %v2870 = vmul.f32 %v2676, %v2670
    %v2871 = vmul.f32 %v2676, %v2671
    %v2872 = vmul.f32 %v2676, %v2672
    %v2873 = vld [vmem:[%s1 + $0xc40] sm:$0xff]
    %v2874 = vld [vmem:[%s1 + $0xc48] sm:$0xff]
    %v2875 = vld [vmem:[%s1 + $0xc50] sm:$0xff]
    %v2876 = vld [vmem:[%s1 + $0xc58] sm:$0xff]
    %v2877 = vld [vmem:[%s1 + $0xc60] sm:$0xff]
    %v2878 = vld [vmem:[%s1 + $0xc68] sm:$0xff]
    %v2879 = vld [vmem:[%s1 + $0xc70] sm:$0xff]
    %v2880 = vld [vmem:[%s1 + $0xc78] sm:$0xff]
    %v2881 = vld [vmem:[%s1 + $0xc80] sm:$0xff]
    %v2882 = vld [vmem:[%s1 + $0xc88] sm:$0xff]
    %v2883 = vld [vmem:[%s1 + $0xc90] sm:$0xff]
    %v2884 = vld [vmem:[%s1 + $0xc98] sm:$0xff]
    %v2885 = vld [vmem:[%s1 + $0xca0] sm:$0xff]
    %v2886 = vld [vmem:[%s1 + $0xca8] sm:$0xff]
    %v2887 = vld [vmem:[%s1 + $0xcb0] sm:$0xff]
    %v2888 = vld [vmem:[%s1 + $0xcb8] sm:$0xff]
    %v2889 = vld [vmem:[%s1 + $0xcc0] sm:$0xff]
    %v2890 = vld [vmem:[%s1 + $0xcc8] sm:$0xff]
    %v2891 = vld [vmem:[%s1 + $0xcd0] sm:$0xff]
    %v2892 = vld [vmem:[%s1 + $0xcd8] sm:$0xff]
    %v2893 = vld [vmem:[%s1 + $0xce0] sm:$0xff]
    %v2894 = vld [vmem:[%s1 + $0xce8] sm:$0xff]
    %v2895 = vld [vmem:[%s1 + $0xcf0] sm:$0xff]
    %v2896 = vld [vmem:[%s1 + $0xcf8] sm:$0xff]
    %v2897 = vld [vmem:[%s1 + $0xd00] sm:$0xff]
    %v2898 = vld [vmem:[%s1 + $0xd08] sm:$0xff]
    %v2899 = vld [vmem:[%s1 + $0xd10] sm:$0xff]
    %v2900 = vld [vmem:[%s1 + $0xd18] sm:$0xff]
    %v2901 = vld [vmem:[%s1 + $0xd20] sm:$0xff]
    %v2902 = vld [vmem:[%s1 + $0xd28] sm:$0xff]
    %v2903 = vld [vmem:[%s1 + $0xd30] sm:$0xff]
    %v2904 = vld [vmem:[%s1 + $0xd38] sm:$0xff]
    %v2905 = vld [vmem:[%s1 + $0xd40] sm:$0xff]
    %v2906 = vld [vmem:[%s1 + $0xd48] sm:$0xff]
    %v2907 = vld [vmem:[%s1 + $0xd50] sm:$0xff]
    %v2908 = vld [vmem:[%s1 + $0xd58] sm:$0xff]
    %v2909 = vld [vmem:[%s1 + $0xd60] sm:$0xff]
    %v2910 = vld [vmem:[%s1 + $0xd68] sm:$0xff]
    %v2911 = vld [vmem:[%s1 + $0xd70] sm:$0xff]
    %v2912 = vld [vmem:[%s1 + $0xd78] sm:$0xff]
    %v2913 = vld [vmem:[%s1 + $0xd80] sm:$0xff]
    %v2914 = vld [vmem:[%s1 + $0xd88] sm:$0xff]
    %v2915 = vld [vmem:[%s1 + $0xd90] sm:$0xff]
    %v2916 = vld [vmem:[%s1 + $0xd98] sm:$0xff]
    %v2917 = vld [vmem:[%s1 + $0xda0] sm:$0xff]
    %v2918 = vld [vmem:[%s1 + $0xda8] sm:$0xff]
    %v2919 = vld [vmem:[%s1 + $0xdb0] sm:$0xff]
    %v2920 = vld [vmem:[%s1 + $0xdb8] sm:$0xff]
    %v2921 = vld [vmem:[%s1 + $0xdc0] sm:$0xff]
    %v2922 = vld [vmem:[%s1 + $0xdc8] sm:$0xff]
    %v2923 = vld [vmem:[%s1 + $0xdd0] sm:$0xff]
    %v2924 = vld [vmem:[%s1 + $0xdd8] sm:$0xff]
    %v2925 = vld [vmem:[%s1 + $0xde0] sm:$0xff]
    %v2926 = vld [vmem:[%s1 + $0xde8] sm:$0xff]
    %v2927 = vld [vmem:[%s1 + $0xdf0] sm:$0xff]
    %v2928 = vld [vmem:[%s1 + $0xdf8] sm:$0xff]
    %v2929 = vld [vmem:[%s1 + $0xe00] sm:$0xff]
    %v2930 = vld [vmem:[%s1 + $0xe08] sm:$0xff]
    %v2931 = vld [vmem:[%s1 + $0xe10] sm:$0xff]
    %v2932 = vld [vmem:[%s1 + $0xe18] sm:$0xff]
    %v2933 = vld [vmem:[%s1 + $0xe20] sm:$0xff]
    %v2934 = vld [vmem:[%s1 + $0xe28] sm:$0xff]
    %v2935 = vld [vmem:[%s1 + $0xe30] sm:$0xff]
    %v2936 = vld [vmem:[%s1 + $0xe38] sm:$0xff]
    %v2937 = vld [vmem:[%s1 + $0xe40] sm:$0xff]
    %v2938 = vld [vmem:[%s1 + $0xe48] sm:$0xff]
    %v2939 = vld [vmem:[%s1 + $0xe50] sm:$0xff]
    %v2940 = vld [vmem:[%s1 + $0xe58] sm:$0xff]
    %v2941 = vld [vmem:[%s1 + $0xe60] sm:$0xff]
    %v2942 = vld [vmem:[%s1 + $0xe68] sm:$0xff]
    %v2943 = vld [vmem:[%s1 + $0xe70] sm:$0xff]
    %v2944 = vld [vmem:[%s1 + $0xe78] sm:$0xff]
    %v2945 = vld [vmem:[%s1 + $0xe80] sm:$0xff]
    %v2946 = vld [vmem:[%s1 + $0xe88] sm:$0xff]
    %v2947 = vld [vmem:[%s1 + $0xe90] sm:$0xff]
    %v2948 = vld [vmem:[%s1 + $0xe98] sm:$0xff]
    %v2949 = vld [vmem:[%s1 + $0xea0] sm:$0xff]
    %v2950 = vld [vmem:[%s1 + $0xea8] sm:$0xff]
    %v2951 = vld [vmem:[%s1 + $0xeb0] sm:$0xff]
    %v2952 = vld [vmem:[%s1 + $0xeb8] sm:$0xff]
    %v2953 = vld [vmem:[%s1 + $0xec0] sm:$0xff]
    %v2954 = vld [vmem:[%s1 + $0xec8] sm:$0xff]
    %v2955 = vld [vmem:[%s1 + $0xed0] sm:$0xff]
    %v2956 = vld [vmem:[%s1 + $0xed8] sm:$0xff]
    %v2957 = vld [vmem:[%s1 + $0xee0] sm:$0xff]
    %v2958 = vld [vmem:[%s1 + $0xee8] sm:$0xff]
    %v2959 = vld [vmem:[%s1 + $0xef0] sm:$0xff]
    %v2960 = vld [vmem:[%s1 + $0xef8] sm:$0xff]
    %v2961 = vld [vmem:[%s1 + $0xf00] sm:$0xff]
    %v2962 = vld [vmem:[%s1 + $0xf08] sm:$0xff]
    %v2963 = vld [vmem:[%s1 + $0xf10] sm:$0xff]
    %v2964 = vld [vmem:[%s1 + $0xf18] sm:$0xff]
    %v2965 = vld [vmem:[%s1 + $0xf20] sm:$0xff]
    %v2966 = vld [vmem:[%s1 + $0xf28] sm:$0xff]
    %v2967 = vld [vmem:[%s1 + $0xf30] sm:$0xff]
    %v2968 = vld [vmem:[%s1 + $0xf38] sm:$0xff]
    %v2969 = vld [vmem:[%s1 + $0xf40] sm:$0xff]
    %v2970 = vld [vmem:[%s1 + $0xf48] sm:$0xff]
    %v2971 = vld [vmem:[%s1 + $0xf50] sm:$0xff]
    %v2972 = vld [vmem:[%s1 + $0xf58] sm:$0xff]
    %v2973 = vld [vmem:[%s1 + $0xf60] sm:$0xff]
    %v2974 = vld [vmem:[%s1 + $0xf68] sm:$0xff]
    %v2975 = vld [vmem:[%s1 + $0xf70] sm:$0xff]
    %v2976 = vld [vmem:[%s1 + $0xf78] sm:$0xff]
    %v2977 = vld [vmem:[%s1 + $0xf80] sm:$0xff]
    %v2978 = vld [vmem:[%s1 + $0xf88] sm:$0xff]
    %v2979 = vld [vmem:[%s1 + $0xf90] sm:$0xff]
    %v2980 = vld [vmem:[%s1 + $0xf98] sm:$0xff]
    %v2981 = vld [vmem:[%s1 + $0xfa0] sm:$0xff]
    %v2982 = vld [vmem:[%s1 + $0xfa8] sm:$0xff]
    %v2983 = vld [vmem:[%s1 + $0xfb0] sm:$0xff]
    %v2984 = vld [vmem:[%s1 + $0xfb8] sm:$0xff]
    %v2985 = vld [vmem:[%s1 + $0xfc0] sm:$0xff]
    %v2986 = vld [vmem:[%s1 + $0xfc8] sm:$0xff]
    %v2987 = vld [vmem:[%s1 + $0xfd0] sm:$0xff]
    %v2988 = vld [vmem:[%s1 + $0xfd8] sm:$0xff]
    %v2989 = vld [vmem:[%s1 + $0xfe0] sm:$0xff]
    %v2990 = vld [vmem:[%s1 + $0xfe8] sm:$0xff]
    %v2991 = vld [vmem:[%s1 + $0xff0] sm:$0xff]
    %v2992 = vld [vmem:[%s1 + $0xff8] sm:$0xff]
    %v2993 = vld [vmem:[%s1 + $0x1000] sm:$0xff]
    %v2994 = vld [vmem:[%s1 + $0x1008] sm:$0xff]
    %v2995 = vld [vmem:[%s1 + $0x1010] sm:$0xff]
    %v2996 = vld [vmem:[%s1 + $0x1018] sm:$0xff]
    %v2997 = vld [vmem:[%s1 + $0x1020] sm:$0xff]
    %v2998 = vld [vmem:[%s1 + $0x1028] sm:$0xff]
    %v2999 = vld [vmem:[%s1 + $0x1030] sm:$0xff]
    %v3000 = vld [vmem:[%s1 + $0x1038] sm:$0xff]
    %v3001 = vld [vmem:[%s1 + $0x1040] sm:$0xff]
    %v3002 = vld [vmem:[%s1 + $0x1048] sm:$0xff]
    %v3003 = vld [vmem:[%s1 + $0x1050] sm:$0xff]
    %v3004 = vld [vmem:[%s1 + $0x1058] sm:$0xff]
    %v3005 = vld [vmem:[%s1 + $0x1060] sm:$0xff]
    %v3006 = vld [vmem:[%s1 + $0x1068] sm:$0xff]
    %v3007 = vld [vmem:[%s1 + $0x1070] sm:$0xff]
    %v3008 = vld [vmem:[%s1 + $0x1078] sm:$0xff]
    %v3009 = vld [vmem:[%s1 + $0x1080] sm:$0xff]
    %v3010 = vld [vmem:[%s1 + $0x1088] sm:$0xff]
    %v3011 = vld [vmem:[%s1 + $0x1090] sm:$0xff]
    %v3012 = vld [vmem:[%s1 + $0x1098] sm:$0xff]
    %v3013 = vld [vmem:[%s1 + $0x10a0] sm:$0xff]
    %v3014 = vld [vmem:[%s1 + $0x10a8] sm:$0xff]
    %v3015 = vld [vmem:[%s1 + $0x10b0] sm:$0xff]
    %v3016 = vld [vmem:[%s1 + $0x10b8] sm:$0xff]
    %v3017 = vld [vmem:[%s1 + $0x10c0] sm:$0xff]
    %v3018 = vld [vmem:[%s1 + $0x10c8] sm:$0xff]
    %v3019 = vld [vmem:[%s1 + $0x10d0] sm:$0xff]
    %v3020 = vld [vmem:[%s1 + $0x10d8] sm:$0xff]
    %v3021 = vld [vmem:[%s1 + $0x10e0] sm:$0xff]
    %v3022 = vld [vmem:[%s1 + $0x10e8] sm:$0xff]
    %v3023 = vld [vmem:[%s1 + $0x10f0] sm:$0xff]
    %v3024 = vld [vmem:[%s1 + $0x10f8] sm:$0xff]
    %v3025 = vld [vmem:[%s1 + $0x1100] sm:$0xff]
    %v3026 = vld [vmem:[%s1 + $0x1108] sm:$0xff]
    %v3027 = vld [vmem:[%s1 + $0x1110] sm:$0xff]
    %v3028 = vld [vmem:[%s1 + $0x1118] sm:$0xff]
    %v3029 = vld [vmem:[%s1 + $0x1120] sm:$0xff]
    %v3030 = vld [vmem:[%s1 + $0x1128] sm:$0xff]
    %v3031 = vld [vmem:[%s1 + $0x1130] sm:$0xff]
    %v3032 = vld [vmem:[%s1 + $0x1138] sm:$0xff]
    %v3033 = vld [vmem:[%s1 + $0x1140] sm:$0xff]
    %v3034 = vld [vmem:[%s1 + $0x1148] sm:$0xff]
    %v3035 = vld [vmem:[%s1 + $0x1150] sm:$0xff]
    %v3036 = vld [vmem:[%s1 + $0x1158] sm:$0xff]
    %v3037 = vld [vmem:[%s1 + $0x1160] sm:$0xff]
    %v3038 = vld [vmem:[%s1 + $0x1168] sm:$0xff]
    %v3039 = vld [vmem:[%s1 + $0x1170] sm:$0xff]
    %v3040 = vld [vmem:[%s1 + $0x1178] sm:$0xff]
    %v3041 = vld [vmem:[%s1 + $0x1180] sm:$0xff]
    %v3042 = vld [vmem:[%s1 + $0x1188] sm:$0xff]
    %v3043 = vld [vmem:[%s1 + $0x1190] sm:$0xff]
    %v3044 = vld [vmem:[%s1 + $0x1198] sm:$0xff]
    %v3045 = vld [vmem:[%s1 + $0x11a0] sm:$0xff]
    %v3046 = vld [vmem:[%s1 + $0x11a8] sm:$0xff]
    %v3047 = vld [vmem:[%s1 + $0x11b0] sm:$0xff]
    %v3048 = vld [vmem:[%s1 + $0x11b8] sm:$0xff]
    %v3049 = vld [vmem:[%s1 + $0x11c0] sm:$0xff]
    %v3050 = vld [vmem:[%s1 + $0x11c8] sm:$0xff]
    %v3051 = vld [vmem:[%s1 + $0x11d0] sm:$0xff]
    %v3052 = vld [vmem:[%s1 + $0x11d8] sm:$0xff]
    %v3053 = vld [vmem:[%s1 + $0x11e0] sm:$0xff]
    %v3054 = vld [vmem:[%s1 + $0x11e8] sm:$0xff]
    %v3055 = vld [vmem:[%s1 + $0x11f0] sm:$0xff]
    %v3056 = vld [vmem:[%s1 + $0x11f8] sm:$0xff]
    %v3057 = vld [vmem:[%s1 + $0x1200] sm:$0xff]
    %v3058 = vld [vmem:[%s1 + $0x1208] sm:$0xff]
    %v3059 = vld [vmem:[%s1 + $0x1210] sm:$0xff]
    %v3060 = vld [vmem:[%s1 + $0x1218] sm:$0xff]
    %v3061 = vld [vmem:[%s1 + $0x1220] sm:$0xff]
    %v3062 = vld [vmem:[%s1 + $0x1228] sm:$0xff]
    %v3063 = vld [vmem:[%s1 + $0x1230] sm:$0xff]
    %v3064 = vld [vmem:[%s1 + $0x1238] sm:$0xff]
    %v3065 = vld [vmem:[%s1 + $0x1240] sm:$0xff]
    %v3066 = vld [vmem:[%s1 + $0x1248] sm:$0xff]
    %v3067 = vld [vmem:[%s1 + $0x1250] sm:$0xff]
    %v3068 = vld [vmem:[%s1 + $0x1258] sm:$0xff]
    %v3069 = vsub.f32 1.0, %v2873
    %v3070 = vsub.f32 1.0, %v2874
    %v3071 = vsub.f32 1.0, %v2875
    %v3072 = vsub.f32 1.0, %v2876
    %v3073 = vsub.f32 1.0, %v2877
    %v3074 = vsub.f32 1.0, %v2878
    %v3075 = vsub.f32 1.0, %v2879
    %v3076 = vsub.f32 1.0, %v2880
    %v3077 = vsub.f32 1.0, %v2881
    %v3078 = vsub.f32 1.0, %v2882
    %v3079 = vsub.f32 1.0, %v2883
    %v3080 = vsub.f32 1.0, %v2884
    %v3081 = vsub.f32 1.0, %v2885
    %v3082 = vsub.f32 1.0, %v2886
    %v3083 = vsub.f32 1.0, %v2887
    %v3084 = vsub.f32 1.0, %v2888
    %v3085 = vsub.f32 1.0, %v2889
    %v3086 = vsub.f32 1.0, %v2890
    %v3087 = vsub.f32 1.0, %v2891
    %v3088 = vsub.f32 1.0, %v2892
    %v3089 = vsub.f32 1.0, %v2893
    %v3090 = vsub.f32 1.0, %v2894
    %v3091 = vsub.f32 1.0, %v2895
    %v3092 = vsub.f32 1.0, %v2896
    %v3093 = vsub.f32 1.0, %v2897
    %v3094 = vsub.f32 1.0, %v2898
    %v3095 = vsub.f32 1.0, %v2899
    %v3096 = vsub.f32 1.0, %v2900
    %v3097 = vsub.f32 1.0, %v2901
    %v3098 = vsub.f32 1.0, %v2902
    %v3099 = vsub.f32 1.0, %v2903
    %v3100 = vsub.f32 1.0, %v2904
    %v3101 = vsub.f32 1.0, %v2905
    %v3102 = vsub.f32 1.0, %v2906
    %v3103 = vsub.f32 1.0, %v2907
    %v3104 = vsub.f32 1.0, %v2908
    %v3105 = vsub.f32 1.0, %v2909
    %v3106 = vsub.f32 1.0, %v2910
    %v3107 = vsub.f32 1.0, %v2911
    %v3108 = vsub.f32 1.0, %v2912
    %v3109 = vsub.f32 1.0, %v2913
    %v3110 = vsub.f32 1.0, %v2914
    %v3111 = vsub.f32 1.0, %v2915
    %v3112 = vsub.f32 1.0, %v2916
    %v3113 = vsub.f32 1.0, %v2917
    %v3114 = vsub.f32 1.0, %v2918
    %v3115 = vsub.f32 1.0, %v2919
    %v3116 = vsub.f32 1.0, %v2920
    %v3117 = vsub.f32 1.0, %v2921
    %v3118 = vsub.f32 1.0, %v2922
    %v3119 = vsub.f32 1.0, %v2923
    %v3120 = vsub.f32 1.0, %v2924
    %v3121 = vsub.f32 1.0, %v2925
    %v3122 = vsub.f32 1.0, %v2926
    %v3123 = vsub.f32 1.0, %v2927
    %v3124 = vsub.f32 1.0, %v2928
    %v3125 = vsub.f32 1.0, %v2929
    %v3126 = vsub.f32 1.0, %v2930
    %v3127 = vsub.f32 1.0, %v2931
    %v3128 = vsub.f32 1.0, %v2932
    %v3129 = vsub.f32 1.0, %v2933
    %v3130 = vsub.f32 1.0, %v2934
    %v3131 = vsub.f32 1.0, %v2935
    %v3132 = vsub.f32 1.0, %v2936
    %v3133 = vsub.f32 1.0, %v2937
    %v3134 = vsub.f32 1.0, %v2938
    %v3135 = vsub.f32 1.0, %v2939
    %v3136 = vsub.f32 1.0, %v2940
    %v3137 = vsub.f32 1.0, %v2941
    %v3138 = vsub.f32 1.0, %v2942
    %v3139 = vsub.f32 1.0, %v2943
    %v3140 = vsub.f32 1.0, %v2944
    %v3141 = vsub.f32 1.0, %v2945
    %v3142 = vsub.f32 1.0, %v2946
    %v3143 = vsub.f32 1.0, %v2947
    %v3144 = vsub.f32 1.0, %v2948
    %v3145 = vsub.f32 1.0, %v2949
    %v3146 = vsub.f32 1.0, %v2950
    %v3147 = vsub.f32 1.0, %v2951
    %v3148 = vsub.f32 1.0, %v2952
    %v3149 = vsub.f32 1.0, %v2953
    %v3150 = vsub.f32 1.0, %v2954
    %v3151 = vsub.f32 1.0, %v2955
    %v3152 = vsub.f32 1.0, %v2956
    %v3153 = vsub.f32 1.0, %v2957
    %v3154 = vsub.f32 1.0, %v2958
    %v3155 = vsub.f32 1.0, %v2959
    %v3156 = vsub.f32 1.0, %v2960
    %v3157 = vsub.f32 1.0, %v2961
    %v3158 = vsub.f32 1.0, %v2962
    %v3159 = vsub.f32 1.0, %v2963
    %v3160 = vsub.f32 1.0, %v2964
    %v3161 = vsub.f32 1.0, %v2965
    %v3162 = vsub.f32 1.0, %v2966
    %v3163 = vsub.f32 1.0, %v2967
    %v3164 = vsub.f32 1.0, %v2968
    %v3165 = vsub.f32 1.0, %v2969
    %v3166 = vsub.f32 1.0, %v2970
    %v3167 = vsub.f32 1.0, %v2971
    %v3168 = vsub.f32 1.0, %v2972
    %v3169 = vsub.f32 1.0, %v2973
    %v3170 = vsub.f32 1.0, %v2974
    %v3171 = vsub.f32 1.0, %v2975
    %v3172 = vsub.f32 1.0, %v2976
    %v3173 = vsub.f32 1.0, %v2977
    %v3174 = vsub.f32 1.0, %v2978
    %v3175 = vsub.f32 1.0, %v2979
    %v3176 = vsub.f32 1.0, %v2980
    %v3177 = vsub.f32 1.0, %v2981
    %v3178 = vsub.f32 1.0, %v2982
    %v3179 = vsub.f32 1.0, %v2983
    %v3180 = vsub.f32 1.0, %v2984
    %v3181 = vsub.f32 1.0, %v2985
    %v3182 = vsub.f32 1.0, %v2986
    %v3183 = vsub.f32 1.0, %v2987
    %v3184 = vsub.f32 1.0, %v2988
    %v3185 = vsub.f32 1.0, %v2989
    %v3186 = vsub.f32 1.0, %v2990
    %v3187 = vsub.f32 1.0, %v2991
    %v3188 = vsub.f32 1.0, %v2992
    %v3189 = vsub.f32 1.0, %v2993
    %v3190 = vsub.f32 1.0, %v2994
    %v3191 = vsub.f32 1.0, %v2995
    %v3192 = vsub.f32 1.0, %v2996
    %v3193 = vsub.f32 1.0, %v2997
    %v3194 = vsub.f32 1.0, %v2998
    %v3195 = vsub.f32 1.0, %v2999
    %v3196 = vsub.f32 1.0, %v3000
    %v3197 = vsub.f32 1.0, %v3001
    %v3198 = vsub.f32 1.0, %v3002
    %v3199 = vsub.f32 1.0, %v3003
    %v3200 = vsub.f32 1.0, %v3004
    %v3201 = vsub.f32 1.0, %v3005
    %v3202 = vsub.f32 1.0, %v3006
    %v3203 = vsub.f32 1.0, %v3007
    %v3204 = vsub.f32 1.0, %v3008
    %v3205 = vsub.f32 1.0, %v3009
    %v3206 = vsub.f32 1.0, %v3010
    %v3207 = vsub.f32 1.0, %v3011
    %v3208 = vsub.f32 1.0, %v3012
    %v3209 = vsub.f32 1.0, %v3013
    %v3210 = vsub.f32 1.0, %v3014
    %v3211 = vsub.f32 1.0, %v3015
    %v3212 = vsub.f32 1.0, %v3016
    %v3213 = vsub.f32 1.0, %v3017
    %v3214 = vsub.f32 1.0, %v3018
    %v3215 = vsub.f32 1.0, %v3019
    %v3216 = vsub.f32 1.0, %v3020
    %v3217 = vsub.f32 1.0, %v3021
    %v3218 = vsub.f32 1.0, %v3022
    %v3219 = vsub.f32 1.0, %v3023
    %v3220 = vsub.f32 1.0, %v3024
    %v3221 = vsub.f32 1.0, %v3025
    %v3222 = vsub.f32 1.0, %v3026
    %v3223 = vsub.f32 1.0, %v3027
    %v3224 = vsub.f32 1.0, %v3028
    %v3225 = vsub.f32 1.0, %v3029
    %v3226 = vsub.f32 1.0, %v3030
    %v3227 = vsub.f32 1.0, %v3031
    %v3228 = vsub.f32 1.0, %v3032
    %v3229 = vsub.f32 1.0, %v3033
    %v3230 = vsub.f32 1.0, %v3034
    %v3231 = vsub.f32 1.0, %v3035
    %v3232 = vsub.f32 1.0, %v3036
    %v3233 = vsub.f32 1.0, %v3037
    %v3234 = vsub.f32 1.0, %v3038
    %v3235 = vsub.f32 1.0, %v3039
    %v3236 = vsub.f32 1.0, %v3040
    %v3237 = vsub.f32 1.0, %v3041
    %v3238 = vsub.f32 1.0, %v3042
    %v3239 = vsub.f32 1.0, %v3043
    %v3240 = vsub.f32 1.0, %v3044
    %v3241 = vsub.f32 1.0, %v3045
    %v3242 = vsub.f32 1.0, %v3046
    %v3243 = vsub.f32 1.0, %v3047
    %v3244 = vsub.f32 1.0, %v3048
    %v3245 = vsub.f32 1.0, %v3049
    %v3246 = vsub.f32 1.0, %v3050
    %v3247 = vsub.f32 1.0, %v3051
    %v3248 = vsub.f32 1.0, %v3052
    %v3249 = vsub.f32 1.0, %v3053
    %v3250 = vsub.f32 1.0, %v3054
    %v3251 = vsub.f32 1.0, %v3055
    %v3252 = vsub.f32 1.0, %v3056
    %v3253 = vsub.f32 1.0, %v3057
    %v3254 = vsub.f32 1.0, %v3058
    %v3255 = vsub.f32 1.0, %v3059
    %v3256 = vsub.f32 1.0, %v3060
    %v3257 = vsub.f32 1.0, %v3061
    %v3258 = vsub.f32 1.0, %v3062
    %v3259 = vsub.f32 1.0, %v3063
    %v3260 = vsub.f32 1.0, %v3064
    %v3261 = vsub.f32 1.0, %v3065
    %v3262 = vsub.f32 1.0, %v3066
    %v3263 = vsub.f32 1.0, %v3067
    %v3264 = vsub.f32 1.0, %v3068
    %v3265 = vmul.f32 %v2677, %v3069
    %v3266 = vmul.f32 %v2678, %v3070
    %v3267 = vmul.f32 %v2679, %v3071
    %v3268 = vmul.f32 %v2680, %v3072
    %v3269 = vmul.f32 %v2681, %v3073
    %v3270 = vmul.f32 %v2682, %v3074
    %v3271 = vmul.f32 %v2683, %v3075
    %v3272 = vmul.f32 %v2684, %v3076
    %v3273 = vmul.f32 %v2685, %v3077
    %v3274 = vmul.f32 %v2686, %v3078
    %v3275 = vmul.f32 %v2687, %v3079
    %v3276 = vmul.f32 %v2688, %v3080
    %v3277 = vmul.f32 %v2689, %v3081
    %v3278 = vmul.f32 %v2690, %v3082
    %v3279 = vmul.f32 %v2691, %v3083
    %v3280 = vmul.f32 %v2692, %v3084
    %v3281 = vmul.f32 %v2693, %v3085
    %v3282 = vmul.f32 %v2694, %v3086
    %v3283 = vmul.f32 %v2695, %v3087
    %v3284 = vmul.f32 %v2696, %v3088
    %v3285 = vmul.f32 %v2697, %v3089
    %v3286 = vmul.f32 %v2698, %v3090
    %v3287 = vmul.f32 %v2699, %v3091
    %v3288 = vmul.f32 %v2700, %v3092
    %v3289 = vmul.f32 %v2701, %v3093
    %v3290 = vmul.f32 %v2702, %v3094
    %v3291 = vmul.f32 %v2703, %v3095
    %v3292 = vmul.f32 %v2704, %v3096
    %v3293 = vmul.f32 %v2705, %v3097
    %v3294 = vmul.f32 %v2706, %v3098
    %v3295 = vmul.f32 %v2707, %v3099
    %v3296 = vmul.f32 %v2708, %v3100
    %v3297 = vmul.f32 %v2709, %v3101
    %v3298 = vmul.f32 %v2710, %v3102
    %v3299 = vmul.f32 %v2711, %v3103
    %v3300 = vmul.f32 %v2712, %v3104
    %v3301 = vmul.f32 %v2713, %v3105
    %v3302 = vmul.f32 %v2714, %v3106
    %v3303 = vmul.f32 %v2715, %v3107
    %v3304 = vmul.f32 %v2716, %v3108
    %v3305 = vmul.f32 %v2717, %v3109
    %v3306 = vmul.f32 %v2718, %v3110
    %v3307 = vmul.f32 %v2719, %v3111
    %v3308 = vmul.f32 %v2720, %v3112
    %v3309 = vmul.f32 %v2721, %v3113
    %v3310 = vmul.f32 %v2722, %v3114
    %v3311 = vmul.f32 %v2723, %v3115
    %v3312 = vmul.f32 %v2724, %v3116
    %v3313 = vmul.f32 %v2725, %v3117
    %v3314 = vmul.f32 %v2726, %v3118
    %v3315 = vmul.f32 %v2727, %v3119
    %v3316 = vmul.f32 %v2728, %v3120
    %v3317 = vmul.f32 %v2729, %v3121
    %v3318 = vmul.f32 %v2730, %v3122
    %v3319 = vmul.f32 %v2731, %v3123
    %v3320 = vmul.f32 %v2732, %v3124
    %v3321 = vmul.f32 %v2733, %v3125
    %v3322 = vmul.f32 %v2734, %v3126
    %v3323 = vmul.f32 %v2735, %v3127
    %v3324 = vmul.f32 %v2736, %v3128
    %v3325 = vmul.f32 %v2737, %v3129
    %v3326 = vmul.f32 %v2738, %v3130
    %v3327 = vmul.f32 %v2739, %v3131
    %v3328 = vmul.f32 %v2740, %v3132
    %v3329 = vmul.f32 %v2741, %v3133
    %v3330 = vmul.f32 %v2742, %v3134
    %v3331 = vmul.f32 %v2743, %v3135
    %v3332 = vmul.f32 %v2744, %v3136
    %v3333 = vmul.f32 %v2745, %v3137
    %v3334 = vmul.f32 %v2746, %v3138
    %v3335 = vmul.f32 %v2747, %v3139
    %v3336 = vmul.f32 %v2748, %v3140
    %v3337 = vmul.f32 %v2749, %v3141
    %v3338 = vmul.f32 %v2750, %v3142
    %v3339 = vmul.f32 %v2751, %v3143
    %v3340 = vmul.f32 %v2752, %v3144
    %v3341 = vmul.f32 %v2753, %v3145
    %v3342 = vmul.f32 %v2754, %v3146
    %v3343 = vmul.f32 %v2755, %v3147
    %v3344 = vmul.f32 %v2756, %v3148
    %v3345 = vmul.f32 %v2757, %v3149
    %v3346 = vmul.f32 %v2758, %v3150
    %v3347 = vmul.f32 %v2759, %v3151
    %v3348 = vmul.f32 %v2760, %v3152
    %v3349 = vmul.f32 %v2761, %v3153
    %v3350 = vmul.f32 %v2762, %v3154
    %v3351 = vmul.f32 %v2763, %v3155
    %v3352 = vmul.f32 %v2764, %v3156
    %v3353 = vmul.f32 %v2765, %v3157
    %v3354 = vmul.f32 %v2766, %v3158
    %v3355 = vmul.f32 %v2767, %v3159
    %v3356 = vmul.f32 %v2768, %v3160
    %v3357 = vmul.f32 %v2769, %v3161
    %v3358 = vmul.f32 %v2770, %v3162
    %v3359 = vmul.f32 %v2771, %v3163
    %v3360 = vmul.f32 %v2772, %v3164
    %v3361 = vmul.f32 %v2773, %v3165
    %v3362 = vmul.f32 %v2774, %v3166
    %v3363 = vmul.f32 %v2775, %v3167
    %v3364 = vmul.f32 %v2776, %v3168
    %v3365 = vmul.f32 %v2777, %v3169
    %v3366 = vmul.f32 %v2778, %v3170
    %v3367 = vmul.f32 %v2779, %v3171
    %v3368 = vmul.f32 %v2780, %v3172
    %v3369 = vmul.f32 %v2781, %v3173
    %v3370 = vmul.f32 %v2782, %v3174
    %v3371 = vmul.f32 %v2783, %v3175
    %v3372 = vmul.f32 %v2784, %v3176
    %v3373 = vmul.f32 %v2785, %v3177
    %v3374 = vmul.f32 %v2786, %v3178
    %v3375 = vmul.f32 %v2787, %v3179
    %v3376 = vmul.f32 %v2788, %v3180
    %v3377 = vmul.f32 %v2789, %v3181
    %v3378 = vmul.f32 %v2790, %v3182
    %v3379 = vmul.f32 %v2791, %v3183
    %v3380 = vmul.f32 %v2792, %v3184
    %v3381 = vmul.f32 %v2793, %v3185
    %v3382 = vmul.f32 %v2794, %v3186
    %v3383 = vmul.f32 %v2795, %v3187
    %v3384 = vmul.f32 %v2796, %v3188
    %v3385 = vmul.f32 %v2797, %v3189
    %v3386 = vmul.f32 %v2798, %v3190
    %v3387 = vmul.f32 %v2799, %v3191
    %v3388 = vmul.f32 %v2800, %v3192
    %v3389 = vmul.f32 %v2801, %v3193
    %v3390 = vmul.f32 %v2802, %v3194
    %v3391 = vmul.f32 %v2803, %v3195
    %v3392 = vmul.f32 %v2804, %v3196
    %v3393 = vmul.f32 %v2805, %v3197
    %v3394 = vmul.f32 %v2806, %v3198
    %v3395 = vmul.f32 %v2807, %v3199
    %v3396 = vmul.f32 %v2808, %v3200
    %v3397 = vmul.f32 %v2809, %v3201
    %v3398 = vmul.f32 %v2810, %v3202
    %v3399 = vmul.f32 %v2811, %v3203
    %v3400 = vmul.f32 %v2812, %v3204
    %v3401 = vmul.f32 %v2813, %v3205
    %v3402 = vmul.f32 %v2814, %v3206
    %v3403 = vmul.f32 %v2815, %v3207
    %v3404 = vmul.f32 %v2816, %v3208
    %v3405 = vmul.f32 %v2817, %v3209
    %v3406 = vmul.f32 %v2818, %v3210
    %v3407 = vmul.f32 %v2819, %v3211
    %v3408 = vmul.f32 %v2820, %v3212
    %v3409 = vmul.f32 %v2821, %v3213
    %v3410 = vmul.f32 %v2822, %v3214
    %v3411 = vmul.f32 %v2823, %v3215
    %v3412 = vmul.f32 %v2824, %v3216
    %v3413 = vmul.f32 %v2825, %v3217
    %v3414 = vmul.f32 %v2826, %v3218
    %v3415 = vmul.f32 %v2827, %v3219
    %v3416 = vmul.f32 %v2828, %v3220
    %v3417 = vmul.f32 %v2829, %v3221
    %v3418 = vmul.f32 %v2830, %v3222
    %v3419 = vmul.f32 %v2831, %v3223
    %v3420 = vmul.f32 %v2832, %v3224
    %v3421 = vmul.f32 %v2833, %v3225
    %v3422 = vmul.f32 %v2834, %v3226
    %v3423 = vmul.f32 %v2835, %v3227
    %v3424 = vmul.f32 %v2836, %v3228
    %v3425 = vmul.f32 %v2837, %v3229
    %v3426 = vmul.f32 %v2838, %v3230
    %v3427 = vmul.f32 %v2839, %v3231
    %v3428 = vmul.f32 %v2840, %v3232
    %v3429 = vmul.f32 %v2841, %v3233
    %v3430 = vmul.f32 %v2842, %v3234
    %v3431 = vmul.f32 %v2843, %v3235
    %v3432 = vmul.f32 %v2844, %v3236
    %v3433 = vmul.f32 %v2845, %v3237
    %v3434 = vmul.f32 %v2846, %v3238
    %v3435 = vmul.f32 %v2847, %v3239
    %v3436 = vmul.f32 %v2848, %v3240
    %v3437 = vmul.f32 %v2849, %v3241
    %v3438 = vmul.f32 %v2850, %v3242
    %v3439 = vmul.f32 %v2851, %v3243
    %v3440 = vmul.f32 %v2852, %v3244
    %v3441 = vmul.f32 %v2853, %v3245
    %v3442 = vmul.f32 %v2854, %v3246
    %v3443 = vmul.f32 %v2855, %v3247
    %v3444 = vmul.f32 %v2856, %v3248
    %v3445 = vmul.f32 %v2857, %v3249
    %v3446 = vmul.f32 %v2858, %v3250
    %v3447 = vmul.f32 %v2859, %v3251
    %v3448 = vmul.f32 %v2860, %v3252
    %v3449 = vmul.f32 %v2861, %v3253
    %v3450 = vmul.f32 %v2862, %v3254
    %v3451 = vmul.f32 %v2863, %v3255
    %v3452 = vmul.f32 %v2864, %v3256
    %v3453 = vmul.f32 %v2865, %v3257
    %v3454 = vmul.f32 %v2866, %v3258
    %v3455 = vmul.f32 %v2867, %v3259
    %v3456 = vmul.f32 %v2868, %v3260
    %v3457 = vmul.f32 %v2869, %v3261
    %v3458 = vmul.f32 %v2870, %v3262
    %v3459 = vmul.f32 %v2871, %v3263
    %v3460 = vmul.f32 %v2872, %v3264
    %v3461 = vadd.f32 %v3265, %v2280
    %v3462 = vadd.f32 %v3266, %v2281
    %v3463 = vadd.f32 %v3267, %v2282
    %v3464 = vadd.f32 %v3268, %v2283
    %v3465 = vadd.f32 %v3269, %v2284
    %v3466 = vadd.f32 %v3270, %v2285
    %v3467 = vadd.f32 %v3271, %v2286
    %v3468 = vadd.f32 %v3272, %v2287
    %v3469 = vadd.f32 %v3273, %v2288
    %v3470 = vadd.f32 %v3274, %v2289
    %v3471 = vadd.f32 %v3275, %v2290
    %v3472 = vadd.f32 %v3276, %v2291
    %v3473 = vadd.f32 %v3277, %v2292
    %v3474 = vadd.f32 %v3278, %v2293
    %v3475 = vadd.f32 %v3279, %v2294
    %v3476 = vadd.f32 %v3280, %v2295
    %v3477 = vadd.f32 %v3281, %v2296
    %v3478 = vadd.f32 %v3282, %v2297
    %v3479 = vadd.f32 %v3283, %v2298
    %v3480 = vadd.f32 %v3284, %v2299
    %v3481 = vadd.f32 %v3285, %v2300
    %v3482 = vadd.f32 %v3286, %v2301
    %v3483 = vadd.f32 %v3287, %v2302
    %v3484 = vadd.f32 %v3288, %v2303
    %v3485 = vadd.f32 %v3289, %v2304
    %v3486 = vadd.f32 %v3290, %v2305
    %v3487 = vadd.f32 %v3291, %v2306
    %v3488 = vadd.f32 %v3292, %v2307
    %v3489 = vadd.f32 %v3293, %v2308
    %v3490 = vadd.f32 %v3294, %v2309
    %v3491 = vadd.f32 %v3295, %v2310
    %v3492 = vadd.f32 %v3296, %v2311
    %v3493 = vadd.f32 %v3297, %v2312
    %v3494 = vadd.f32 %v3298, %v2313
    %v3495 = vadd.f32 %v3299, %v2314
    %v3496 = vadd.f32 %v3300, %v2315
    %v3497 = vadd.f32 %v3301, %v2316
    %v3498 = vadd.f32 %v3302, %v2317
    %v3499 = vadd.f32 %v3303, %v2318
    %v3500 = vadd.f32 %v3304, %v2319
    %v3501 = vadd.f32 %v3305, %v2320
    %v3502 = vadd.f32 %v3306, %v2321
    %v3503 = vadd.f32 %v3307, %v2322
    %v3504 = vadd.f32 %v3308, %v2323
    %v3505 = vadd.f32 %v3309, %v2324
    %v3506 = vadd.f32 %v3310, %v2325
    %v3507 = vadd.f32 %v3311, %v2326
    %v3508 = vadd.f32 %v3312, %v2327
    %v3509 = vadd.f32 %v3313, %v2328
    %v3510 = vadd.f32 %v3314, %v2329
    %v3511 = vadd.f32 %v3315, %v2330
    %v3512 = vadd.f32 %v3316, %v2331
    %v3513 = vadd.f32 %v3317, %v2332
    %v3514 = vadd.f32 %v3318, %v2333
    %v3515 = vadd.f32 %v3319, %v2334
    %v3516 = vadd.f32 %v3320, %v2335
    %v3517 = vadd.f32 %v3321, %v2336
    %v3518 = vadd.f32 %v3322, %v2337
    %v3519 = vadd.f32 %v3323, %v2338
    %v3520 = vadd.f32 %v3324, %v2339
    %v3521 = vadd.f32 %v3325, %v2340
    %v3522 = vadd.f32 %v3326, %v2341
    %v3523 = vadd.f32 %v3327, %v2342
    %v3524 = vadd.f32 %v3328, %v2343
    %v3525 = vadd.f32 %v3329, %v2344
    %v3526 = vadd.f32 %v3330, %v2345
    %v3527 = vadd.f32 %v3331, %v2346
    %v3528 = vadd.f32 %v3332, %v2347
    %v3529 = vadd.f32 %v3333, %v2348
    %v3530 = vadd.f32 %v3334, %v2349
    %v3531 = vadd.f32 %v3335, %v2350
    %v3532 = vadd.f32 %v3336, %v2351
    %v3533 = vadd.f32 %v3337, %v2352
    %v3534 = vadd.f32 %v3338, %v2353
    %v3535 = vadd.f32 %v3339, %v2354
    %v3536 = vadd.f32 %v3340, %v2355
    %v3537 = vadd.f32 %v3341, %v2356
    %v3538 = vadd.f32 %v3342, %v2357
    %v3539 = vadd.f32 %v3343, %v2358
    %v3540 = vadd.f32 %v3344, %v2359
    %v3541 = vadd.f32 %v3345, %v2360
    %v3542 = vadd.f32 %v3346, %v2361
    %v3543 = vadd.f32 %v3347, %v2362
    %v3544 = vadd.f32 %v3348, %v2363
    %v3545 = vadd.f32 %v3349, %v2364
    %v3546 = vadd.f32 %v3350, %v2365
    %v3547 = vadd.f32 %v3351, %v2366
    %v3548 = vadd.f32 %v3352, %v2367
    %v3549 = vadd.f32 %v3353, %v2368
    %v3550 = vadd.f32 %v3354, %v2369
    %v3551 = vadd.f32 %v3355, %v2370
    %v3552 = vadd.f32 %v3356, %v2371
    %v3553 = vadd.f32 %v3357, %v2372
    %v3554 = vadd.f32 %v3358, %v2373
    %v3555 = vadd.f32 %v3359, %v2374
    %v3556 = vadd.f32 %v3360, %v2375
    %v3557 = vadd.f32 %v3361, %v2376
    %v3558 = vadd.f32 %v3362, %v2377
    %v3559 = vadd.f32 %v3363, %v2378
    %v3560 = vadd.f32 %v3364, %v2379
    %v3561 = vadd.f32 %v3365, %v2380
    %v3562 = vadd.f32 %v3366, %v2381
    %v3563 = vadd.f32 %v3367, %v2382
    %v3564 = vadd.f32 %v3368, %v2383
    %v3565 = vadd.f32 %v3369, %v2384
    %v3566 = vadd.f32 %v3370, %v2385
    %v3567 = vadd.f32 %v3371, %v2386
    %v3568 = vadd.f32 %v3372, %v2387
    %v3569 = vadd.f32 %v3373, %v2388
    %v3570 = vadd.f32 %v3374, %v2389
    %v3571 = vadd.f32 %v3375, %v2390
    %v3572 = vadd.f32 %v3376, %v2391
    %v3573 = vadd.f32 %v3377, %v2392
    %v3574 = vadd.f32 %v3378, %v2393
    %v3575 = vadd.f32 %v3379, %v2394
    %v3576 = vadd.f32 %v3380, %v2395
    %v3577 = vadd.f32 %v3381, %v2396
    %v3578 = vadd.f32 %v3382, %v2397
    %v3579 = vadd.f32 %v3383, %v2398
    %v3580 = vadd.f32 %v3384, %v2399
    %v3581 = vadd.f32 %v3385, %v2400
    %v3582 = vadd.f32 %v3386, %v2401
    %v3583 = vadd.f32 %v3387, %v2402
    %v3584 = vadd.f32 %v3388, %v2403
    %v3585 = vadd.f32 %v3389, %v2404
    %v3586 = vadd.f32 %v3390, %v2405
    %v3587 = vadd.f32 %v3391, %v2406
    %v3588 = vadd.f32 %v3392, %v2407
    %v3589 = vadd.f32 %v3393, %v2408
    %v3590 = vadd.f32 %v3394, %v2409
    %v3591 = vadd.f32 %v3395, %v2410
    %v3592 = vadd.f32 %v3396, %v2411
    %v3593 = vadd.f32 %v3397, %v2412
    %v3594 = vadd.f32 %v3398, %v2413
    %v3595 = vadd.f32 %v3399, %v2414
    %v3596 = vadd.f32 %v3400, %v2415
    %v3597 = vadd.f32 %v3401, %v2416
    %v3598 = vadd.f32 %v3402, %v2417
    %v3599 = vadd.f32 %v3403, %v2418
    %v3600 = vadd.f32 %v3404, %v2419
    %v3601 = vadd.f32 %v3405, %v2420
    %v3602 = vadd.f32 %v3406, %v2421
    %v3603 = vadd.f32 %v3407, %v2422
    %v3604 = vadd.f32 %v3408, %v2423
    %v3605 = vadd.f32 %v3409, %v2424
    %v3606 = vadd.f32 %v3410, %v2425
    %v3607 = vadd.f32 %v3411, %v2426
    %v3608 = vadd.f32 %v3412, %v2427
    %v3609 = vadd.f32 %v3413, %v2428
    %v3610 = vadd.f32 %v3414, %v2429
    %v3611 = vadd.f32 %v3415, %v2430
    %v3612 = vadd.f32 %v3416, %v2431
    %v3613 = vadd.f32 %v3417, %v2432
    %v3614 = vadd.f32 %v3418, %v2433
    %v3615 = vadd.f32 %v3419, %v2434
    %v3616 = vadd.f32 %v3420, %v2435
    %v3617 = vadd.f32 %v3421, %v2436
    %v3618 = vadd.f32 %v3422, %v2437
    %v3619 = vadd.f32 %v3423, %v2438
    %v3620 = vadd.f32 %v3424, %v2439
    %v3621 = vadd.f32 %v3425, %v2440
    %v3622 = vadd.f32 %v3426, %v2441
    %v3623 = vadd.f32 %v3427, %v2442
    %v3624 = vadd.f32 %v3428, %v2443
    %v3625 = vadd.f32 %v3429, %v2444
    %v3626 = vadd.f32 %v3430, %v2445
    %v3627 = vadd.f32 %v3431, %v2446
    %v3628 = vadd.f32 %v3432, %v2447
    %v3629 = vadd.f32 %v3433, %v2448
    %v3630 = vadd.f32 %v3434, %v2449
    %v3631 = vadd.f32 %v3435, %v2450
    %v3632 = vadd.f32 %v3436, %v2451
    %v3633 = vadd.f32 %v3437, %v2452
    %v3634 = vadd.f32 %v3438, %v2453
    %v3635 = vadd.f32 %v3439, %v2454
    %v3636 = vadd.f32 %v3440, %v2455
    %v3637 = vadd.f32 %v3441, %v2456
    %v3638 = vadd.f32 %v3442, %v2457
    %v3639 = vadd.f32 %v3443, %v2458
    %v3640 = vadd.f32 %v3444, %v2459
    %v3641 = vadd.f32 %v3445, %v2460
    %v3642 = vadd.f32 %v3446, %v2461
    %v3643 = vadd.f32 %v3447, %v2462
    %v3644 = vadd.f32 %v3448, %v2463
    %v3645 = vadd.f32 %v3449, %v2464
    %v3646 = vadd.f32 %v3450, %v2465
    %v3647 = vadd.f32 %v3451, %v2466
    %v3648 = vadd.f32 %v3452, %v2467
    %v3649 = vadd.f32 %v3453, %v2468
    %v3650 = vadd.f32 %v3454, %v2469
    %v3651 = vadd.f32 %v3455, %v2470
    %v3652 = vadd.f32 %v3456, %v2471
    %v3653 = vadd.f32 %v3457, %v2472
    %v3654 = vadd.f32 %v3458, %v2473
    %v3655 = vadd.f32 %v3459, %v2474
    %v3656 = vadd.f32 %v3460, %v2475
    %v3657 = vld [vmem:[%s5 + $0x2] sm:$0x1]
    %v3658 = vlaneseq
    %v3659 = vshrl.u32 %v3658, 7
    %v3660 = vsub.s32 0, %v3659
    %v3661 = vrot.slane %v3657, %v3660
    %v3662 = vsub.f32 %v3461, %v3661
    %v3663 = vsub.f32 %v3462, %v3661
    %v3664 = vsub.f32 %v3463, %v3661
    %v3665 = vsub.f32 %v3464, %v3661
    %v3666 = vsub.f32 %v3465, %v3661
    %v3667 = vsub.f32 %v3466, %v3661
    %v3668 = vsub.f32 %v3467, %v3661
    %v3669 = vsub.f32 %v3468, %v3661
    %v3670 = vsub.f32 %v3469, %v3661
    %v3671 = vsub.f32 %v3470, %v3661
    %v3672 = vsub.f32 %v3471, %v3661
    %v3673 = vsub.f32 %v3472, %v3661
    %v3674 = vsub.f32 %v3473, %v3661
    %v3675 = vsub.f32 %v3474, %v3661
    %v3676 = vsub.f32 %v3475, %v3661
    %v3677 = vsub.f32 %v3476, %v3661
    %v3678 = vsub.f32 %v3477, %v3661
    %v3679 = vsub.f32 %v3478, %v3661
    %v3680 = vsub.f32 %v3479, %v3661
    %v3681 = vsub.f32 %v3480, %v3661
    %v3682 = vsub.f32 %v3481, %v3661
    %v3683 = vsub.f32 %v3482, %v3661
    %v3684 = vsub.f32 %v3483, %v3661
    %v3685 = vsub.f32 %v3484, %v3661
    %v3686 = vsub.f32 %v3485, %v3661
    %v3687 = vsub.f32 %v3486, %v3661
    %v3688 = vsub.f32 %v3487, %v3661
    %v3689 = vsub.f32 %v3488, %v3661
    %v3690 = vsub.f32 %v3489, %v3661
    %v3691 = vsub.f32 %v3490, %v3661
    %v3692 = vsub.f32 %v3491, %v3661
    %v3693 = vsub.f32 %v3492, %v3661
    %v3694 = vsub.f32 %v3493, %v3661
    %v3695 = vsub.f32 %v3494, %v3661
    %v3696 = vsub.f32 %v3495, %v3661
    %v3697 = vsub.f32 %v3496, %v3661
    %v3698 = vsub.f32 %v3497, %v3661
    %v3699 = vsub.f32 %v3498, %v3661
    %v3700 = vsub.f32 %v3499, %v3661
    %v3701 = vsub.f32 %v3500, %v3661
    %v3702 = vsub.f32 %v3501, %v3661
    %v3703 = vsub.f32 %v3502, %v3661
    %v3704 = vsub.f32 %v3503, %v3661
    %v3705 = vsub.f32 %v3504, %v3661
    %v3706 = vsub.f32 %v3505, %v3661
    %v3707 = vsub.f32 %v3506, %v3661
    %v3708 = vsub.f32 %v3507, %v3661
    %v3709 = vsub.f32 %v3508, %v3661
    %v3710 = vsub.f32 %v3509, %v3661
    %v3711 = vsub.f32 %v3510, %v3661
    %v3712 = vsub.f32 %v3511, %v3661
    %v3713 = vsub.f32 %v3512, %v3661
    %v3714 = vsub.f32 %v3513, %v3661
    %v3715 = vsub.f32 %v3514, %v3661
    %v3716 = vsub.f32 %v3515, %v3661
    %v3717 = vsub.f32 %v3516, %v3661
    %v3718 = vsub.f32 %v3517, %v3661
    %v3719 = vsub.f32 %v3518, %v3661
    %v3720 = vsub.f32 %v3519, %v3661
    %v3721 = vsub.f32 %v3520, %v3661
    %v3722 = vsub.f32 %v3521, %v3661
    %v3723 = vsub.f32 %v3522, %v3661
    %v3724 = vsub.f32 %v3523, %v3661
    %v3725 = vsub.f32 %v3524, %v3661
    %v3726 = vsub.f32 %v3525, %v3661
    %v3727 = vsub.f32 %v3526, %v3661
    %v3728 = vsub.f32 %v3527, %v3661
    %v3729 = vsub.f32 %v3528, %v3661
    %v3730 = vsub.f32 %v3529, %v3661
    %v3731 = vsub.f32 %v3530, %v3661
    %v3732 = vsub.f32 %v3531, %v3661
    %v3733 = vsub.f32 %v3532, %v3661
    %v3734 = vsub.f32 %v3533, %v3661
    %v3735 = vsub.f32 %v3534, %v3661
    %v3736 = vsub.f32 %v3535, %v3661
    %v3737 = vsub.f32 %v3536, %v3661
    %v3738 = vsub.f32 %v3537, %v3661
    %v3739 = vsub.f32 %v3538, %v3661
    %v3740 = vsub.f32 %v3539, %v3661
    %v3741 = vsub.f32 %v3540, %v3661
    %v3742 = vsub.f32 %v3541, %v3661
    %v3743 = vsub.f32 %v3542, %v3661
    %v3744 = vsub.f32 %v3543, %v3661
    %v3745 = vsub.f32 %v3544, %v3661
    %v3746 = vsub.f32 %v3545, %v3661
    %v3747 = vsub.f32 %v3546, %v3661
    %v3748 = vsub.f32 %v3547, %v3661
    %v3749 = vsub.f32 %v3548, %v3661
    %v3750 = vsub.f32 %v3549, %v3661
    %v3751 = vsub.f32 %v3550, %v3661
    %v3752 = vsub.f32 %v3551, %v3661
    %v3753 = vsub.f32 %v3552, %v3661
    %v3754 = vsub.f32 %v3553, %v3661
    %v3755 = vsub.f32 %v3554, %v3661
    %v3756 = vsub.f32 %v3555, %v3661
    %v3757 = vsub.f32 %v3556, %v3661
    %v3758 = vsub.f32 %v3557, %v3661
    %v3759 = vsub.f32 %v3558, %v3661
    %v3760 = vsub.f32 %v3559, %v3661
    %v3761 = vsub.f32 %v3560, %v3661
    %v3762 = vsub.f32 %v3561, %v3661
    %v3763 = vsub.f32 %v3562, %v3661
    %v3764 = vsub.f32 %v3563, %v3661
    %v3765 = vsub.f32 %v3564, %v3661
    %v3766 = vsub.f32 %v3565, %v3661
    %v3767 = vsub.f32 %v3566, %v3661
    %v3768 = vsub.f32 %v3567, %v3661
    %v3769 = vsub.f32 %v3568, %v3661
    %v3770 = vsub.f32 %v3569, %v3661
    %v3771 = vsub.f32 %v3570, %v3661
    %v3772 = vsub.f32 %v3571, %v3661
    %v3773 = vsub.f32 %v3572, %v3661
    %v3774 = vsub.f32 %v3573, %v3661
    %v3775 = vsub.f32 %v3574, %v3661
    %v3776 = vsub.f32 %v3575, %v3661
    %v3777 = vsub.f32 %v3576, %v3661
    %v3778 = vsub.f32 %v3577, %v3661
    %v3779 = vsub.f32 %v3578, %v3661
    %v3780 = vsub.f32 %v3579, %v3661
    %v3781 = vsub.f32 %v3580, %v3661
    %v3782 = vsub.f32 %v3581, %v3661
    %v3783 = vsub.f32 %v3582, %v3661
    %v3784 = vsub.f32 %v3583, %v3661
    %v3785 = vsub.f32 %v3584, %v3661
    %v3786 = vsub.f32 %v3585, %v3661
    %v3787 = vsub.f32 %v3586, %v3661
    %v3788 = vsub.f32 %v3587, %v3661
    %v3789 = vsub.f32 %v3588, %v3661
    %v3790 = vsub.f32 %v3589, %v3661
    %v3791 = vsub.f32 %v3590, %v3661
    %v3792 = vsub.f32 %v3591, %v3661
    %v3793 = vsub.f32 %v3592, %v3661
    %v3794 = vsub.f32 %v3593, %v3661
    %v3795 = vsub.f32 %v3594, %v3661
    %v3796 = vsub.f32 %v3595, %v3661
    %v3797 = vsub.f32 %v3596, %v3661
    %v3798 = vsub.f32 %v3597, %v3661
    %v3799 = vsub.f32 %v3598, %v3661
    %v3800 = vsub.f32 %v3599, %v3661
    %v3801 = vsub.f32 %v3600, %v3661
    %v3802 = vsub.f32 %v3601, %v3661
    %v3803 = vsub.f32 %v3602, %v3661
    %v3804 = vsub.f32 %v3603, %v3661
    %v3805 = vsub.f32 %v3604, %v3661
    %v3806 = vsub.f32 %v3605, %v3661
    %v3807 = vsub.f32 %v3606, %v3661
    %v3808 = vsub.f32 %v3607, %v3661
    %v3809 = vsub.f32 %v3608, %v3661
    %v3810 = vsub.f32 %v3609, %v3661
    %v3811 = vsub.f32 %v3610, %v3661
    %v3812 = vsub.f32 %v3611, %v3661
    %v3813 = vsub.f32 %v3612, %v3661
    %v3814 = vsub.f32 %v3613, %v3661
    %v3815 = vsub.f32 %v3614, %v3661
    %v3816 = vsub.f32 %v3615, %v3661
    %v3817 = vsub.f32 %v3616, %v3661
    %v3818 = vsub.f32 %v3617, %v3661
    %v3819 = vsub.f32 %v3618, %v3661
    %v3820 = vsub.f32 %v3619, %v3661
    %v3821 = vsub.f32 %v3620, %v3661
    %v3822 = vsub.f32 %v3621, %v3661
    %v3823 = vsub.f32 %v3622, %v3661
    %v3824 = vsub.f32 %v3623, %v3661
    %v3825 = vsub.f32 %v3624, %v3661
    %v3826 = vsub.f32 %v3625, %v3661
    %v3827 = vsub.f32 %v3626, %v3661
    %v3828 = vsub.f32 %v3627, %v3661
    %v3829 = vsub.f32 %v3628, %v3661
    %v3830 = vsub.f32 %v3629, %v3661
    %v3831 = vsub.f32 %v3630, %v3661
    %v3832 = vsub.f32 %v3631, %v3661
    %v3833 = vsub.f32 %v3632, %v3661
    %v3834 = vsub.f32 %v3633, %v3661
    %v3835 = vsub.f32 %v3634, %v3661
    %v3836 = vsub.f32 %v3635, %v3661
    %v3837 = vsub.f32 %v3636, %v3661
    %v3838 = vsub.f32 %v3637, %v3661
    %v3839 = vsub.f32 %v3638, %v3661
    %v3840 = vsub.f32 %v3639, %v3661
    %v3841 = vsub.f32 %v3640, %v3661
    %v3842 = vsub.f32 %v3641, %v3661
    %v3843 = vsub.f32 %v3642, %v3661
    %v3844 = vsub.f32 %v3643, %v3661
    %v3845 = vsub.f32 %v3644, %v3661
    %v3846 = vsub.f32 %v3645, %v3661
    %v3847 = vsub.f32 %v3646, %v3661
    %v3848 = vsub.f32 %v3647, %v3661
    %v3849 = vsub.f32 %v3648, %v3661
    %v3850 = vsub.f32 %v3649, %v3661
    %v3851 = vsub.f32 %v3650, %v3661
    %v3852 = vsub.f32 %v3651, %v3661
    %v3853 = vsub.f32 %v3652, %v3661
    %v3854 = vsub.f32 %v3653, %v3661
    %v3855 = vsub.f32 %v3654, %v3661
    %v3856 = vsub.f32 %v3655, %v3661
    %v3857 = vsub.f32 %v3656, %v3661
    %vm3858 = vcmp.gt.f32.partialorder %v3662, 0.0
    %vm3859 = vcmp.gt.f32.partialorder %v3663, 0.0
    %vm3860 = vcmp.gt.f32.partialorder %v3664, 0.0
    %vm3861 = vcmp.gt.f32.partialorder %v3665, 0.0
    %vm3862 = vcmp.gt.f32.partialorder %v3666, 0.0
    %vm3863 = vcmp.gt.f32.partialorder %v3667, 0.0
    %vm3864 = vcmp.gt.f32.partialorder %v3668, 0.0
    %vm3865 = vcmp.gt.f32.partialorder %v3669, 0.0
    %vm3866 = vcmp.gt.f32.partialorder %v3670, 0.0
    %vm3867 = vcmp.gt.f32.partialorder %v3671, 0.0
    %vm3868 = vcmp.gt.f32.partialorder %v3672, 0.0
    %vm3869 = vcmp.gt.f32.partialorder %v3673, 0.0
    %vm3870 = vcmp.gt.f32.partialorder %v3674, 0.0
    %vm3871 = vcmp.gt.f32.partialorder %v3675, 0.0
    %vm3872 = vcmp.gt.f32.partialorder %v3676, 0.0
    %vm3873 = vcmp.gt.f32.partialorder %v3677, 0.0
    %vm3874 = vcmp.gt.f32.partialorder %v3678, 0.0
    %vm3875 = vcmp.gt.f32.partialorder %v3679, 0.0
    %vm3876 = vcmp.gt.f32.partialorder %v3680, 0.0
    %vm3877 = vcmp.gt.f32.partialorder %v3681, 0.0
    %vm3878 = vcmp.gt.f32.partialorder %v3682, 0.0
    %vm3879 = vcmp.gt.f32.partialorder %v3683, 0.0
    %vm3880 = vcmp.gt.f32.partialorder %v3684, 0.0
    %vm3881 = vcmp.gt.f32.partialorder %v3685, 0.0
    %vm3882 = vcmp.gt.f32.partialorder %v3686, 0.0
    %vm3883 = vcmp.gt.f32.partialorder %v3687, 0.0
    %vm3884 = vcmp.gt.f32.partialorder %v3688, 0.0
    %vm3885 = vcmp.gt.f32.partialorder %v3689, 0.0
    %vm3886 = vcmp.gt.f32.partialorder %v3690, 0.0
    %vm3887 = vcmp.gt.f32.partialorder %v3691, 0.0
    %vm3888 = vcmp.gt.f32.partialorder %v3692, 0.0
    %vm3889 = vcmp.gt.f32.partialorder %v3693, 0.0
    %vm3890 = vcmp.gt.f32.partialorder %v3694, 0.0
    %vm3891 = vcmp.gt.f32.partialorder %v3695, 0.0
    %vm3892 = vcmp.gt.f32.partialorder %v3696, 0.0
    %vm3893 = vcmp.gt.f32.partialorder %v3697, 0.0
    %vm3894 = vcmp.gt.f32.partialorder %v3698, 0.0
    %vm3895 = vcmp.gt.f32.partialorder %v3699, 0.0
    %vm3896 = vcmp.gt.f32.partialorder %v3700, 0.0
    %vm3897 = vcmp.gt.f32.partialorder %v3701, 0.0
    %vm3898 = vcmp.gt.f32.partialorder %v3702, 0.0
    %vm3899 = vcmp.gt.f32.partialorder %v3703, 0.0
    %vm3900 = vcmp.gt.f32.partialorder %v3704, 0.0
    %vm3901 = vcmp.gt.f32.partialorder %v3705, 0.0
    %vm3902 = vcmp.gt.f32.partialorder %v3706, 0.0
    %vm3903 = vcmp.gt.f32.partialorder %v3707, 0.0
    %vm3904 = vcmp.gt.f32.partialorder %v3708, 0.0
    %vm3905 = vcmp.gt.f32.partialorder %v3709, 0.0
    %vm3906 = vcmp.gt.f32.partialorder %v3710, 0.0
    %vm3907 = vcmp.gt.f32.partialorder %v3711, 0.0
    %vm3908 = vcmp.gt.f32.partialorder %v3712, 0.0
    %vm3909 = vcmp.gt.f32.partialorder %v3713, 0.0
    %vm3910 = vcmp.gt.f32.partialorder %v3714, 0.0
    %vm3911 = vcmp.gt.f32.partialorder %v3715, 0.0
    %vm3912 = vcmp.gt.f32.partialorder %v3716, 0.0
    %vm3913 = vcmp.gt.f32.partialorder %v3717, 0.0
    %vm3914 = vcmp.gt.f32.partialorder %v3718, 0.0
    %vm3915 = vcmp.gt.f32.partialorder %v3719, 0.0
    %vm3916 = vcmp.gt.f32.partialorder %v3720, 0.0
    %vm3917 = vcmp.gt.f32.partialorder %v3721, 0.0
    %vm3918 = vcmp.gt.f32.partialorder %v3722, 0.0
    %vm3919 = vcmp.gt.f32.partialorder %v3723, 0.0
    %vm3920 = vcmp.gt.f32.partialorder %v3724, 0.0
    %vm3921 = vcmp.gt.f32.partialorder %v3725, 0.0
    %vm3922 = vcmp.gt.f32.partialorder %v3726, 0.0
    %vm3923 = vcmp.gt.f32.partialorder %v3727, 0.0
    %vm3924 = vcmp.gt.f32.partialorder %v3728, 0.0
    %vm3925 = vcmp.gt.f32.partialorder %v3729, 0.0
    %vm3926 = vcmp.gt.f32.partialorder %v3730, 0.0
    %vm3927 = vcmp.gt.f32.partialorder %v3731, 0.0
    %vm3928 = vcmp.gt.f32.partialorder %v3732, 0.0
    %vm3929 = vcmp.gt.f32.partialorder %v3733, 0.0
    %vm3930 = vcmp.gt.f32.partialorder %v3734, 0.0
    %vm3931 = vcmp.gt.f32.partialorder %v3735, 0.0
    %vm3932 = vcmp.gt.f32.partialorder %v3736, 0.0
    %vm3933 = vcmp.gt.f32.partialorder %v3737, 0.0
    %vm3934 = vcmp.gt.f32.partialorder %v3738, 0.0
    %vm3935 = vcmp.gt.f32.partialorder %v3739, 0.0
    %vm3936 = vcmp.gt.f32.partialorder %v3740, 0.0
    %vm3937 = vcmp.gt.f32.partialorder %v3741, 0.0
    %vm3938 = vcmp.gt.f32.partialorder %v3742, 0.0
    %vm3939 = vcmp.gt.f32.partialorder %v3743, 0.0
    %vm3940 = vcmp.gt.f32.partialorder %v3744, 0.0
    %vm3941 = vcmp.gt.f32.partialorder %v3745, 0.0
    %vm3942 = vcmp.gt.f32.partialorder %v3746, 0.0
    %vm3943 = vcmp.gt.f32.partialorder %v3747, 0.0
    %vm3944 = vcmp.gt.f32.partialorder %v3748, 0.0
    %vm3945 = vcmp.gt.f32.partialorder %v3749, 0.0
    %vm3946 = vcmp.gt.f32.partialorder %v3750, 0.0
    %vm3947 = vcmp.gt.f32.partialorder %v3751, 0.0
    %vm3948 = vcmp.gt.f32.partialorder %v3752, 0.0
    %vm3949 = vcmp.gt.f32.partialorder %v3753, 0.0
    %vm3950 = vcmp.gt.f32.partialorder %v3754, 0.0
    %vm3951 = vcmp.gt.f32.partialorder %v3755, 0.0
    %vm3952 = vcmp.gt.f32.partialorder %v3756, 0.0
    %vm3953 = vcmp.gt.f32.partialorder %v3757, 0.0
    %vm3954 = vcmp.gt.f32.partialorder %v3758, 0.0
    %vm3955 = vcmp.gt.f32.partialorder %v3759, 0.0
    %vm3956 = vcmp.gt.f32.partialorder %v3760, 0.0
    %vm3957 = vcmp.gt.f32.partialorder %v3761, 0.0
    %vm3958 = vcmp.gt.f32.partialorder %v3762, 0.0
    %vm3959 = vcmp.gt.f32.partialorder %v3763, 0.0
    %vm3960 = vcmp.gt.f32.partialorder %v3764, 0.0
    %vm3961 = vcmp.gt.f32.partialorder %v3765, 0.0
    %vm3962 = vcmp.gt.f32.partialorder %v3766, 0.0
    %vm3963 = vcmp.gt.f32.partialorder %v3767, 0.0
    %vm3964 = vcmp.gt.f32.partialorder %v3768, 0.0
    %vm3965 = vcmp.gt.f32.partialorder %v3769, 0.0
    %vm3966 = vcmp.gt.f32.partialorder %v3770, 0.0
    %vm3967 = vcmp.gt.f32.partialorder %v3771, 0.0
    %vm3968 = vcmp.gt.f32.partialorder %v3772, 0.0
    %vm3969 = vcmp.gt.f32.partialorder %v3773, 0.0
    %vm3970 = vcmp.gt.f32.partialorder %v3774, 0.0
    %vm3971 = vcmp.gt.f32.partialorder %v3775, 0.0
    %vm3972 = vcmp.gt.f32.partialorder %v3776, 0.0
    %vm3973 = vcmp.gt.f32.partialorder %v3777, 0.0
    %vm3974 = vcmp.gt.f32.partialorder %v3778, 0.0
    %vm3975 = vcmp.gt.f32.partialorder %v3779, 0.0
    %vm3976 = vcmp.gt.f32.partialorder %v3780, 0.0
    %vm3977 = vcmp.gt.f32.partialorder %v3781, 0.0
    %vm3978 = vcmp.gt.f32.partialorder %v3782, 0.0
    %vm3979 = vcmp.gt.f32.partialorder %v3783, 0.0
    %vm3980 = vcmp.gt.f32.partialorder %v3784, 0.0
    %vm3981 = vcmp.gt.f32.partialorder %v3785, 0.0
    %vm3982 = vcmp.gt.f32.partialorder %v3786, 0.0
    %vm3983 = vcmp.gt.f32.partialorder %v3787, 0.0
    %vm3984 = vcmp.gt.f32.partialorder %v3788, 0.0
    %vm3985 = vcmp.gt.f32.partialorder %v3789, 0.0
    %vm3986 = vcmp.gt.f32.partialorder %v3790, 0.0
    %vm3987 = vcmp.gt.f32.partialorder %v3791, 0.0
    %vm3988 = vcmp.gt.f32.partialorder %v3792, 0.0
    %vm3989 = vcmp.gt.f32.partialorder %v3793, 0.0
    %vm3990 = vcmp.gt.f32.partialorder %v3794, 0.0
    %vm3991 = vcmp.gt.f32.partialorder %v3795, 0.0
    %vm3992 = vcmp.gt.f32.partialorder %v3796, 0.0
    %vm3993 = vcmp.gt.f32.partialorder %v3797, 0.0
    %vm3994 = vcmp.gt.f32.partialorder %v3798, 0.0
    %vm3995 = vcmp.gt.f32.partialorder %v3799, 0.0
    %vm3996 = vcmp.gt.f32.partialorder %v3800, 0.0
    %vm3997 = vcmp.gt.f32.partialorder %v3801, 0.0
    %vm3998 = vcmp.gt.f32.partialorder %v3802, 0.0
    %vm3999 = vcmp.gt.f32.partialorder %v3803, 0.0
    %vm4000 = vcmp.gt.f32.partialorder %v3804, 0.0
    %vm4001 = vcmp.gt.f32.partialorder %v3805, 0.0
    %vm4002 = vcmp.gt.f32.partialorder %v3806, 0.0
    %vm4003 = vcmp.gt.f32.partialorder %v3807, 0.0
    %vm4004 = vcmp.gt.f32.partialorder %v3808, 0.0
    %vm4005 = vcmp.gt.f32.partialorder %v3809, 0.0
    %vm4006 = vcmp.gt.f32.partialorder %v3810, 0.0
    %vm4007 = vcmp.gt.f32.partialorder %v3811, 0.0
    %vm4008 = vcmp.gt.f32.partialorder %v3812, 0.0
    %vm4009 = vcmp.gt.f32.partialorder %v3813, 0.0
    %vm4010 = vcmp.gt.f32.partialorder %v3814, 0.0
    %vm4011 = vcmp.gt.f32.partialorder %v3815, 0.0
    %vm4012 = vcmp.gt.f32.partialorder %v3816, 0.0
    %vm4013 = vcmp.gt.f32.partialorder %v3817, 0.0
    %vm4014 = vcmp.gt.f32.partialorder %v3818, 0.0
    %vm4015 = vcmp.gt.f32.partialorder %v3819, 0.0
    %vm4016 = vcmp.gt.f32.partialorder %v3820, 0.0
    %vm4017 = vcmp.gt.f32.partialorder %v3821, 0.0
    %vm4018 = vcmp.gt.f32.partialorder %v3822, 0.0
    %vm4019 = vcmp.gt.f32.partialorder %v3823, 0.0
    %vm4020 = vcmp.gt.f32.partialorder %v3824, 0.0
    %vm4021 = vcmp.gt.f32.partialorder %v3825, 0.0
    %vm4022 = vcmp.gt.f32.partialorder %v3826, 0.0
    %vm4023 = vcmp.gt.f32.partialorder %v3827, 0.0
    %vm4024 = vcmp.gt.f32.partialorder %v3828, 0.0
    %vm4025 = vcmp.gt.f32.partialorder %v3829, 0.0
    %vm4026 = vcmp.gt.f32.partialorder %v3830, 0.0
    %vm4027 = vcmp.gt.f32.partialorder %v3831, 0.0
    %vm4028 = vcmp.gt.f32.partialorder %v3832, 0.0
    %vm4029 = vcmp.gt.f32.partialorder %v3833, 0.0
    %vm4030 = vcmp.gt.f32.partialorder %v3834, 0.0
    %vm4031 = vcmp.gt.f32.partialorder %v3835, 0.0
    %vm4032 = vcmp.gt.f32.partialorder %v3836, 0.0
    %vm4033 = vcmp.gt.f32.partialorder %v3837, 0.0
    %vm4034 = vcmp.gt.f32.partialorder %v3838, 0.0
    %vm4035 = vcmp.gt.f32.partialorder %v3839, 0.0
    %vm4036 = vcmp.gt.f32.partialorder %v3840, 0.0
    %vm4037 = vcmp.gt.f32.partialorder %v3841, 0.0
    %vm4038 = vcmp.gt.f32.partialorder %v3842, 0.0
    %vm4039 = vcmp.gt.f32.partialorder %v3843, 0.0
    %vm4040 = vcmp.gt.f32.partialorder %v3844, 0.0
    %vm4041 = vcmp.gt.f32.partialorder %v3845, 0.0
    %vm4042 = vcmp.gt.f32.partialorder %v3846, 0.0
    %vm4043 = vcmp.gt.f32.partialorder %v3847, 0.0
    %vm4044 = vcmp.gt.f32.partialorder %v3848, 0.0
    %vm4045 = vcmp.gt.f32.partialorder %v3849, 0.0
    %vm4046 = vcmp.gt.f32.partialorder %v3850, 0.0
    %vm4047 = vcmp.gt.f32.partialorder %v3851, 0.0
    %vm4048 = vcmp.gt.f32.partialorder %v3852, 0.0
    %vm4049 = vcmp.gt.f32.partialorder %v3853, 0.0
    %vm4050 = vcmp.gt.f32.partialorder %v3854, 0.0
    %vm4051 = vcmp.gt.f32.partialorder %v3855, 0.0
    %vm4052 = vcmp.gt.f32.partialorder %v3856, 0.0
    %vm4053 = vcmp.gt.f32.partialorder %v3857, 0.0
    %v4054 = vsel %vm3858, 1, 0
    %v4055 = vsel %vm3859, 1, 0
    %v4056 = vsel %vm3860, 1, 0
    %v4057 = vsel %vm3861, 1, 0
    %v4058 = vsel %vm3862, 1, 0
    %v4059 = vsel %vm3863, 1, 0
    %v4060 = vsel %vm3864, 1, 0
    %v4061 = vsel %vm3865, 1, 0
    %v4062 = vsel %vm3866, 1, 0
    %v4063 = vsel %vm3867, 1, 0
    %v4064 = vsel %vm3868, 1, 0
    %v4065 = vsel %vm3869, 1, 0
    %v4066 = vsel %vm3870, 1, 0
    %v4067 = vsel %vm3871, 1, 0
    %v4068 = vsel %vm3872, 1, 0
    %v4069 = vsel %vm3873, 1, 0
    %v4070 = vsel %vm3874, 1, 0
    %v4071 = vsel %vm3875, 1, 0
    %v4072 = vsel %vm3876, 1, 0
    %v4073 = vsel %vm3877, 1, 0
    %v4074 = vsel %vm3878, 1, 0
    %v4075 = vsel %vm3879, 1, 0
    %v4076 = vsel %vm3880, 1, 0
    %v4077 = vsel %vm3881, 1, 0
    %v4078 = vsel %vm3882, 1, 0
    %v4079 = vsel %vm3883, 1, 0
    %v4080 = vsel %vm3884, 1, 0
    %v4081 = vsel %vm3885, 1, 0
    %v4082 = vsel %vm3886, 1, 0
    %v4083 = vsel %vm3887, 1, 0
    %v4084 = vsel %vm3888, 1, 0
    %v4085 = vsel %vm3889, 1, 0
    %v4086 = vsel %vm3890, 1, 0
    %v4087 = vsel %vm3891, 1, 0
    %v4088 = vsel %vm3892, 1, 0
    %v4089 = vsel %vm3893, 1, 0
    %v4090 = vsel %vm3894, 1, 0
    %v4091 = vsel %vm3895, 1, 0
    %v4092 = vsel %vm3896, 1, 0
    %v4093 = vsel %vm3897, 1, 0
    %v4094 = vsel %vm3898, 1, 0
    %v4095 = vsel %vm3899, 1, 0
    %v4096 = vsel %vm3900, 1, 0
    %v4097 = vsel %vm3901, 1, 0
    %v4098 = vsel %vm3902, 1, 0
    %v4099 = vsel %vm3903, 1, 0
    %v4100 = vsel %vm3904, 1, 0
    %v4101 = vsel %vm3905, 1, 0
    %v4102 = vsel %vm3906, 1, 0
    %v4103 = vsel %vm3907, 1, 0
    %v4104 = vsel %vm3908, 1, 0
    %v4105 = vsel %vm3909, 1, 0
    %v4106 = vsel %vm3910, 1, 0
    %v4107 = vsel %vm3911, 1, 0
    %v4108 = vsel %vm3912, 1, 0
    %v4109 = vsel %vm3913, 1, 0
    %v4110 = vsel %vm3914, 1, 0
    %v4111 = vsel %vm3915, 1, 0
    %v4112 = vsel %vm3916, 1, 0
    %v4113 = vsel %vm3917, 1, 0
    %v4114 = vsel %vm3918, 1, 0
    %v4115 = vsel %vm3919, 1, 0
    %v4116 = vsel %vm3920, 1, 0
    %v4117 = vsel %vm3921, 1, 0
    %v4118 = vsel %vm3922, 1, 0
    %v4119 = vsel %vm3923, 1, 0
    %v4120 = vsel %vm3924, 1, 0
    %v4121 = vsel %vm3925, 1, 0
    %v4122 = vsel %vm3926, 1, 0
    %v4123 = vsel %vm3927, 1, 0
    %v4124 = vsel %vm3928, 1, 0
    %v4125 = vsel %vm3929, 1, 0
    %v4126 = vsel %vm3930, 1, 0
    %v4127 = vsel %vm3931, 1, 0
    %v4128 = vsel %vm3932, 1, 0
    %v4129 = vsel %vm3933, 1, 0
    %v4130 = vsel %vm3934, 1, 0
    %v4131 = vsel %vm3935, 1, 0
    %v4132 = vsel %vm3936, 1, 0
    %v4133 = vsel %vm3937, 1, 0
    %v4134 = vsel %vm3938, 1, 0
    %v4135 = vsel %vm3939, 1, 0
    %v4136 = vsel %vm3940, 1, 0
    %v4137 = vsel %vm3941, 1, 0
    %v4138 = vsel %vm3942, 1, 0
    %v4139 = vsel %vm3943, 1, 0
    %v4140 = vsel %vm3944, 1, 0
    %v4141 = vsel %vm3945, 1, 0
    %v4142 = vsel %vm3946, 1, 0
    %v4143 = vsel %vm3947, 1, 0
    %v4144 = vsel %vm3948, 1, 0
    %v4145 = vsel %vm3949, 1, 0
    %v4146 = vsel %vm3950, 1, 0
    %v4147 = vsel %vm3951, 1, 0
    %v4148 = vsel %vm3952, 1, 0
    %v4149 = vsel %vm3953, 1, 0
    %v4150 = vsel %vm3954, 1, 0
    %v4151 = vsel %vm3955, 1, 0
    %v4152 = vsel %vm3956, 1, 0
    %v4153 = vsel %vm3957, 1, 0
    %v4154 = vsel %vm3958, 1, 0
    %v4155 = vsel %vm3959, 1, 0
    %v4156 = vsel %vm3960, 1, 0
    %v4157 = vsel %vm3961, 1, 0
    %v4158 = vsel %vm3962, 1, 0
    %v4159 = vsel %vm3963, 1, 0
    %v4160 = vsel %vm3964, 1, 0
    %v4161 = vsel %vm3965, 1, 0
    %v4162 = vsel %vm3966, 1, 0
    %v4163 = vsel %vm3967, 1, 0
    %v4164 = vsel %vm3968, 1, 0
    %v4165 = vsel %vm3969, 1, 0
    %v4166 = vsel %vm3970, 1, 0
    %v4167 = vsel %vm3971, 1, 0
    %v4168 = vsel %vm3972, 1, 0
    %v4169 = vsel %vm3973, 1, 0
    %v4170 = vsel %vm3974, 1, 0
    %v4171 = vsel %vm3975, 1, 0
    %v4172 = vsel %vm3976, 1, 0
    %v4173 = vsel %vm3977, 1, 0
    %v4174 = vsel %vm3978, 1, 0
    %v4175 = vsel %vm3979, 1, 0
    %v4176 = vsel %vm3980, 1, 0
    %v4177 = vsel %vm3981, 1, 0
    %v4178 = vsel %vm3982, 1, 0
    %v4179 = vsel %vm3983, 1, 0
    %v4180 = vsel %vm3984, 1, 0
    %v4181 = vsel %vm3985, 1, 0
    %v4182 = vsel %vm3986, 1, 0
    %v4183 = vsel %vm3987, 1, 0
    %v4184 = vsel %vm3988, 1, 0
    %v4185 = vsel %vm3989, 1, 0
    %v4186 = vsel %vm3990, 1, 0
    %v4187 = vsel %vm3991, 1, 0
    %v4188 = vsel %vm3992, 1, 0
    %v4189 = vsel %vm3993, 1, 0
    %v4190 = vsel %vm3994, 1, 0
    %v4191 = vsel %vm3995, 1, 0
    %v4192 = vsel %vm3996, 1, 0
    %v4193 = vsel %vm3997, 1, 0
    %v4194 = vsel %vm3998, 1, 0
    %v4195 = vsel %vm3999, 1, 0
    %v4196 = vsel %vm4000, 1, 0
    %v4197 = vsel %vm4001, 1, 0
    %v4198 = vsel %vm4002, 1, 0
    %v4199 = vsel %vm4003, 1, 0
    %v4200 = vsel %vm4004, 1, 0
    %v4201 = vsel %vm4005, 1, 0
    %v4202 = vsel %vm4006, 1, 0
    %v4203 = vsel %vm4007, 1, 0
    %v4204 = vsel %vm4008, 1, 0
    %v4205 = vsel %vm4009, 1, 0
    %v4206 = vsel %vm4010, 1, 0
    %v4207 = vsel %vm4011, 1, 0
    %v4208 = vsel %vm4012, 1, 0
    %v4209 = vsel %vm4013, 1, 0
    %v4210 = vsel %vm4014, 1, 0
    %v4211 = vsel %vm4015, 1, 0
    %v4212 = vsel %vm4016, 1, 0
    %v4213 = vsel %vm4017, 1, 0
    %v4214 = vsel %vm4018, 1, 0
    %v4215 = vsel %vm4019, 1, 0
    %v4216 = vsel %vm4020, 1, 0
    %v4217 = vsel %vm4021, 1, 0
    %v4218 = vsel %vm4022, 1, 0
    %v4219 = vsel %vm4023, 1, 0
    %v4220 = vsel %vm4024, 1, 0
    %v4221 = vsel %vm4025, 1, 0
    %v4222 = vsel %vm4026, 1, 0
    %v4223 = vsel %vm4027, 1, 0
    %v4224 = vsel %vm4028, 1, 0
    %v4225 = vsel %vm4029, 1, 0
    %v4226 = vsel %vm4030, 1, 0
    %v4227 = vsel %vm4031, 1, 0
    %v4228 = vsel %vm4032, 1, 0
    %v4229 = vsel %vm4033, 1, 0
    %v4230 = vsel %vm4034, 1, 0
    %v4231 = vsel %vm4035, 1, 0
    %v4232 = vsel %vm4036, 1, 0
    %v4233 = vsel %vm4037, 1, 0
    %v4234 = vsel %vm4038, 1, 0
    %v4235 = vsel %vm4039, 1, 0
    %v4236 = vsel %vm4040, 1, 0
    %v4237 = vsel %vm4041, 1, 0
    %v4238 = vsel %vm4042, 1, 0
    %v4239 = vsel %vm4043, 1, 0
    %v4240 = vsel %vm4044, 1, 0
    %v4241 = vsel %vm4045, 1, 0
    %v4242 = vsel %vm4046, 1, 0
    %v4243 = vsel %vm4047, 1, 0
    %v4244 = vsel %vm4048, 1, 0
    %v4245 = vsel %vm4049, 1, 0
    %v4246 = vsel %vm4050, 1, 0
    %v4247 = vsel %vm4051, 1, 0
    %v4248 = vsel %vm4052, 1, 0
    %v4249 = vsel %vm4053, 1, 0
    %v4250 = vcvt.s32.f32 %v4054
    %v4251 = vcvt.s32.f32 %v4055
    %v4252 = vcvt.s32.f32 %v4056
    %v4253 = vcvt.s32.f32 %v4057
    %v4254 = vcvt.s32.f32 %v4058
    %v4255 = vcvt.s32.f32 %v4059
    %v4256 = vcvt.s32.f32 %v4060
    %v4257 = vcvt.s32.f32 %v4061
    %v4258 = vcvt.s32.f32 %v4062
    %v4259 = vcvt.s32.f32 %v4063
    %v4260 = vcvt.s32.f32 %v4064
    %v4261 = vcvt.s32.f32 %v4065
    %v4262 = vcvt.s32.f32 %v4066
    %v4263 = vcvt.s32.f32 %v4067
    %v4264 = vcvt.s32.f32 %v4068
    %v4265 = vcvt.s32.f32 %v4069
    %v4266 = vcvt.s32.f32 %v4070
    %v4267 = vcvt.s32.f32 %v4071
    %v4268 = vcvt.s32.f32 %v4072
    %v4269 = vcvt.s32.f32 %v4073
    %v4270 = vcvt.s32.f32 %v4074
    %v4271 = vcvt.s32.f32 %v4075
    %v4272 = vcvt.s32.f32 %v4076
    %v4273 = vcvt.s32.f32 %v4077
    %v4274 = vcvt.s32.f32 %v4078
    %v4275 = vcvt.s32.f32 %v4079
    %v4276 = vcvt.s32.f32 %v4080
    %v4277 = vcvt.s32.f32 %v4081
    %v4278 = vcvt.s32.f32 %v4082
    %v4279 = vcvt.s32.f32 %v4083
    %v4280 = vcvt.s32.f32 %v4084
    %v4281 = vcvt.s32.f32 %v4085
    %v4282 = vcvt.s32.f32 %v4086
    %v4283 = vcvt.s32.f32 %v4087
    %v4284 = vcvt.s32.f32 %v4088
    %v4285 = vcvt.s32.f32 %v4089
    %v4286 = vcvt.s32.f32 %v4090
    %v4287 = vcvt.s32.f32 %v4091
    %v4288 = vcvt.s32.f32 %v4092
    %v4289 = vcvt.s32.f32 %v4093
    %v4290 = vcvt.s32.f32 %v4094
    %v4291 = vcvt.s32.f32 %v4095
    %v4292 = vcvt.s32.f32 %v4096
    %v4293 = vcvt.s32.f32 %v4097
    %v4294 = vcvt.s32.f32 %v4098
    %v4295 = vcvt.s32.f32 %v4099
    %v4296 = vcvt.s32.f32 %v4100
    %v4297 = vcvt.s32.f32 %v4101
    %v4298 = vcvt.s32.f32 %v4102
    %v4299 = vcvt.s32.f32 %v4103
    %v4300 = vcvt.s32.f32 %v4104
    %v4301 = vcvt.s32.f32 %v4105
    %v4302 = vcvt.s32.f32 %v4106
    %v4303 = vcvt.s32.f32 %v4107
    %v4304 = vcvt.s32.f32 %v4108
    %v4305 = vcvt.s32.f32 %v4109
    %v4306 = vcvt.s32.f32 %v4110
    %v4307 = vcvt.s32.f32 %v4111
    %v4308 = vcvt.s32.f32 %v4112
    %v4309 = vcvt.s32.f32 %v4113
    %v4310 = vcvt.s32.f32 %v4114
    %v4311 = vcvt.s32.f32 %v4115
    %v4312 = vcvt.s32.f32 %v4116
    %v4313 = vcvt.s32.f32 %v4117
    %v4314 = vcvt.s32.f32 %v4118
    %v4315 = vcvt.s32.f32 %v4119
    %v4316 = vcvt.s32.f32 %v4120
    %v4317 = vcvt.s32.f32 %v4121
    %v4318 = vcvt.s32.f32 %v4122
    %v4319 = vcvt.s32.f32 %v4123
    %v4320 = vcvt.s32.f32 %v4124
    %v4321 = vcvt.s32.f32 %v4125
    %v4322 = vcvt.s32.f32 %v4126
    %v4323 = vcvt.s32.f32 %v4127
    %v4324 = vcvt.s32.f32 %v4128
    %v4325 = vcvt.s32.f32 %v4129
    %v4326 = vcvt.s32.f32 %v4130
    %v4327 = vcvt.s32.f32 %v4131
    %v4328 = vcvt.s32.f32 %v4132
    %v4329 = vcvt.s32.f32 %v4133
    %v4330 = vcvt.s32.f32 %v4134
    %v4331 = vcvt.s32.f32 %v4135
    %v4332 = vcvt.s32.f32 %v4136
    %v4333 = vcvt.s32.f32 %v4137
    %v4334 = vcvt.s32.f32 %v4138
    %v4335 = vcvt.s32.f32 %v4139
    %v4336 = vcvt.s32.f32 %v4140
    %v4337 = vcvt.s32.f32 %v4141
    %v4338 = vcvt.s32.f32 %v4142
    %v4339 = vcvt.s32.f32 %v4143
    %v4340 = vcvt.s32.f32 %v4144
    %v4341 = vcvt.s32.f32 %v4145
    %v4342 = vcvt.s32.f32 %v4146
    %v4343 = vcvt.s32.f32 %v4147
    %v4344 = vcvt.s32.f32 %v4148
    %v4345 = vcvt.s32.f32 %v4149
    %v4346 = vcvt.s32.f32 %v4150
    %v4347 = vcvt.s32.f32 %v4151
    %v4348 = vcvt.s32.f32 %v4152
    %v4349 = vcvt.s32.f32 %v4153
    %v4350 = vcvt.s32.f32 %v4154
    %v4351 = vcvt.s32.f32 %v4155
    %v4352 = vcvt.s32.f32 %v4156
    %v4353 = vcvt.s32.f32 %v4157
    %v4354 = vcvt.s32.f32 %v4158
    %v4355 = vcvt.s32.f32 %v4159
    %v4356 = vcvt.s32.f32 %v4160
    %v4357 = vcvt.s32.f32 %v4161
    %v4358 = vcvt.s32.f32 %v4162
    %v4359 = vcvt.s32.f32 %v4163
    %v4360 = vcvt.s32.f32 %v4164
    %v4361 = vcvt.s32.f32 %v4165
    %v4362 = vcvt.s32.f32 %v4166
    %v4363 = vcvt.s32.f32 %v4167
    %v4364 = vcvt.s32.f32 %v4168
    %v4365 = vcvt.s32.f32 %v4169
    %v4366 = vcvt.s32.f32 %v4170
    %v4367 = vcvt.s32.f32 %v4171
    %v4368 = vcvt.s32.f32 %v4172
    %v4369 = vcvt.s32.f32 %v4173
    %v4370 = vcvt.s32.f32 %v4174
    %v4371 = vcvt.s32.f32 %v4175
    %v4372 = vcvt.s32.f32 %v4176
    %v4373 = vcvt.s32.f32 %v4177
    %v4374 = vcvt.s32.f32 %v4178
    %v4375 = vcvt.s32.f32 %v4179
    %v4376 = vcvt.s32.f32 %v4180
    %v4377 = vcvt.s32.f32 %v4181
    %v4378 = vcvt.s32.f32 %v4182
    %v4379 = vcvt.s32.f32 %v4183
    %v4380 = vcvt.s32.f32 %v4184
    %v4381 = vcvt.s32.f32 %v4185
    %v4382 = vcvt.s32.f32 %v4186
    %v4383 = vcvt.s32.f32 %v4187
    %v4384 = vcvt.s32.f32 %v4188
    %v4385 = vcvt.s32.f32 %v4189
    %v4386 = vcvt.s32.f32 %v4190
    %v4387 = vcvt.s32.f32 %v4191
    %v4388 = vcvt.s32.f32 %v4192
    %v4389 = vcvt.s32.f32 %v4193
    %v4390 = vcvt.s32.f32 %v4194
    %v4391 = vcvt.s32.f32 %v4195
    %v4392 = vcvt.s32.f32 %v4196
    %v4393 = vcvt.s32.f32 %v4197
    %v4394 = vcvt.s32.f32 %v4198
    %v4395 = vcvt.s32.f32 %v4199
    %v4396 = vcvt.s32.f32 %v4200
    %v4397 = vcvt.s32.f32 %v4201
    %v4398 = vcvt.s32.f32 %v4202
    %v4399 = vcvt.s32.f32 %v4203
    %v4400 = vcvt.s32.f32 %v4204
    %v4401 = vcvt.s32.f32 %v4205
    %v4402 = vcvt.s32.f32 %v4206
    %v4403 = vcvt.s32.f32 %v4207
    %v4404 = vcvt.s32.f32 %v4208
    %v4405 = vcvt.s32.f32 %v4209
    %v4406 = vcvt.s32.f32 %v4210
    %v4407 = vcvt.s32.f32 %v4211
    %v4408 = vcvt.s32.f32 %v4212
    %v4409 = vcvt.s32.f32 %v4213
    %v4410 = vcvt.s32.f32 %v4214
    %v4411 = vcvt.s32.f32 %v4215
    %v4412 = vcvt.s32.f32 %v4216
    %v4413 = vcvt.s32.f32 %v4217
    %v4414 = vcvt.s32.f32 %v4218
    %v4415 = vcvt.s32.f32 %v4219
    %v4416 = vcvt.s32.f32 %v4220
    %v4417 = vcvt.s32.f32 %v4221
    %v4418 = vcvt.s32.f32 %v4222
    %v4419 = vcvt.s32.f32 %v4223
    %v4420 = vcvt.s32.f32 %v4224
    %v4421 = vcvt.s32.f32 %v4225
    %v4422 = vcvt.s32.f32 %v4226
    %v4423 = vcvt.s32.f32 %v4227
    %v4424 = vcvt.s32.f32 %v4228
    %v4425 = vcvt.s32.f32 %v4229
    %v4426 = vcvt.s32.f32 %v4230
    %v4427 = vcvt.s32.f32 %v4231
    %v4428 = vcvt.s32.f32 %v4232
    %v4429 = vcvt.s32.f32 %v4233
    %v4430 = vcvt.s32.f32 %v4234
    %v4431 = vcvt.s32.f32 %v4235
    %v4432 = vcvt.s32.f32 %v4236
    %v4433 = vcvt.s32.f32 %v4237
    %v4434 = vcvt.s32.f32 %v4238
    %v4435 = vcvt.s32.f32 %v4239
    %v4436 = vcvt.s32.f32 %v4240
    %v4437 = vcvt.s32.f32 %v4241
    %v4438 = vcvt.s32.f32 %v4242
    %v4439 = vcvt.s32.f32 %v4243
    %v4440 = vcvt.s32.f32 %v4244
    %v4441 = vcvt.s32.f32 %v4245
    %v4442 = vcvt.s32.f32 %v4246
    %v4443 = vcvt.s32.f32 %v4247
    %v4444 = vcvt.s32.f32 %v4248
    %v4445 = vcvt.s32.f32 %v4249
    %vm4446 = vcmask 261120
    %4447 = vst.msk [vmem:[%s12] sm:$0xff] %vm4446, %v2280
    %4448 = vst.msk [vmem:[%s12 + $0x8] sm:$0xff] %vm4446, %v2281
    %4449 = vst.msk [vmem:[%s12 + $0x10] sm:$0xff] %vm4446, %v2282
    %4450 = vst.msk [vmem:[%s12 + $0x18] sm:$0xff] %vm4446, %v2283
    %4451 = vst.msk [vmem:[%s12 + $0x20] sm:$0xff] %vm4446, %v2284
    %4452 = vst.msk [vmem:[%s12 + $0x28] sm:$0xff] %vm4446, %v2285
    %4453 = vst.msk [vmem:[%s12 + $0x30] sm:$0xff] %vm4446, %v2286
    %4454 = vst.msk [vmem:[%s12 + $0x38] sm:$0xff] %vm4446, %v2287
    %4455 = vst.msk [vmem:[%s12 + $0x40] sm:$0xff] %vm4446, %v2288
    %4456 = vst.msk [vmem:[%s12 + $0x48] sm:$0xff] %vm4446, %v2289
    %4457 = vst.msk [vmem:[%s12 + $0x50] sm:$0xff] %vm4446, %v2290
    %4458 = vst.msk [vmem:[%s12 + $0x58] sm:$0xff] %vm4446, %v2291
    %4459 = vst.msk [vmem:[%s12 + $0x60] sm:$0xff] %vm4446, %v2292
    %4460 = vst.msk [vmem:[%s12 + $0x68] sm:$0xff] %vm4446, %v2293
    %4461 = vst.msk [vmem:[%s12 + $0x70] sm:$0xff] %vm4446, %v2294
    %4462 = vst.msk [vmem:[%s12 + $0x78] sm:$0xff] %vm4446, %v2295
    %4463 = vst.msk [vmem:[%s12 + $0x80] sm:$0xff] %vm4446, %v2296
    %4464 = vst.msk [vmem:[%s12 + $0x88] sm:$0xff] %vm4446, %v2297
    %4465 = vst.msk [vmem:[%s12 + $0x90] sm:$0xff] %vm4446, %v2298
    %4466 = vst.msk [vmem:[%s12 + $0x98] sm:$0xff] %vm4446, %v2299
    %4467 = vst.msk [vmem:[%s12 + $0xa0] sm:$0xff] %vm4446, %v2300
    %4468 = vst.msk [vmem:[%s12 + $0xa8] sm:$0xff] %vm4446, %v2301
    %4469 = vst.msk [vmem:[%s12 + $0xb0] sm:$0xff] %vm4446, %v2302
    %4470 = vst.msk [vmem:[%s12 + $0xb8] sm:$0xff] %vm4446, %v2303
    %4471 = vst.msk [vmem:[%s12 + $0xc0] sm:$0xff] %vm4446, %v2304
    %4472 = vst.msk [vmem:[%s12 + $0xc8] sm:$0xff] %vm4446, %v2305
    %4473 = vst.msk [vmem:[%s12 + $0xd0] sm:$0xff] %vm4446, %v2306
    %4474 = vst.msk [vmem:[%s12 + $0xd8] sm:$0xff] %vm4446, %v2307
    %4475 = vst.msk [vmem:[%s12 + $0xe0] sm:$0xff] %vm4446, %v2308
    %4476 = vst.msk [vmem:[%s12 + $0xe8] sm:$0xff] %vm4446, %v2309
    %4477 = vst.msk [vmem:[%s12 + $0xf0] sm:$0xff] %vm4446, %v2310
    %4478 = vst.msk [vmem:[%s12 + $0xf8] sm:$0xff] %vm4446, %v2311
    %4479 = vst.msk [vmem:[%s12 + $0x100] sm:$0xff] %vm4446, %v2312
    %4480 = vst.msk [vmem:[%s12 + $0x108] sm:$0xff] %vm4446, %v2313
    %4481 = vst.msk [vmem:[%s12 + $0x110] sm:$0xff] %vm4446, %v2314
    %4482 = vst.msk [vmem:[%s12 + $0x118] sm:$0xff] %vm4446, %v2315
    %4483 = vst.msk [vmem:[%s12 + $0x120] sm:$0xff] %vm4446, %v2316
    %4484 = vst.msk [vmem:[%s12 + $0x128] sm:$0xff] %vm4446, %v2317
    %4485 = vst.msk [vmem:[%s12 + $0x130] sm:$0xff] %vm4446, %v2318
    %4486 = vst.msk [vmem:[%s12 + $0x138] sm:$0xff] %vm4446, %v2319
    %4487 = vst.msk [vmem:[%s12 + $0x140] sm:$0xff] %vm4446, %v2320
    %4488 = vst.msk [vmem:[%s12 + $0x148] sm:$0xff] %vm4446, %v2321
    %4489 = vst.msk [vmem:[%s12 + $0x150] sm:$0xff] %vm4446, %v2322
    %4490 = vst.msk [vmem:[%s12 + $0x158] sm:$0xff] %vm4446, %v2323
    %4491 = vst.msk [vmem:[%s12 + $0x160] sm:$0xff] %vm4446, %v2324
    %4492 = vst.msk [vmem:[%s12 + $0x168] sm:$0xff] %vm4446, %v2325
    %4493 = vst.msk [vmem:[%s12 + $0x170] sm:$0xff] %vm4446, %v2326
    %4494 = vst.msk [vmem:[%s12 + $0x178] sm:$0xff] %vm4446, %v2327
    %4495 = vst.msk [vmem:[%s12 + $0x180] sm:$0xff] %vm4446, %v2328
    %4496 = vst.msk [vmem:[%s12 + $0x188] sm:$0xff] %vm4446, %v2329
    %4497 = vst.msk [vmem:[%s12 + $0x190] sm:$0xff] %vm4446, %v2330
    %4498 = vst.msk [vmem:[%s12 + $0x198] sm:$0xff] %vm4446, %v2331
    %4499 = vst.msk [vmem:[%s12 + $0x1a0] sm:$0xff] %vm4446, %v2332
    %4500 = vst.msk [vmem:[%s12 + $0x1a8] sm:$0xff] %vm4446, %v2333
    %4501 = vst.msk [vmem:[%s12 + $0x1b0] sm:$0xff] %vm4446, %v2334
    %4502 = vst.msk [vmem:[%s12 + $0x1b8] sm:$0xff] %vm4446, %v2335
    %4503 = vst.msk [vmem:[%s12 + $0x1c0] sm:$0xff] %vm4446, %v2336
    %4504 = vst.msk [vmem:[%s12 + $0x1c8] sm:$0xff] %vm4446, %v2337
    %4505 = vst.msk [vmem:[%s12 + $0x1d0] sm:$0xff] %vm4446, %v2338
    %4506 = vst.msk [vmem:[%s12 + $0x1d8] sm:$0xff] %vm4446, %v2339
    %4507 = vst.msk [vmem:[%s12 + $0x1e0] sm:$0xff] %vm4446, %v2340
    %4508 = vst.msk [vmem:[%s12 + $0x1e8] sm:$0xff] %vm4446, %v2341
    %4509 = vst.msk [vmem:[%s12 + $0x1f0] sm:$0xff] %vm4446, %v2342
    %4510 = vst.msk [vmem:[%s12 + $0x1f8] sm:$0xff] %vm4446, %v2343
    %4511 = vst.msk [vmem:[%s12 + $0x200] sm:$0xff] %vm4446, %v2344
    %4512 = vst.msk [vmem:[%s12 + $0x208] sm:$0xff] %vm4446, %v2345
    %4513 = vst.msk [vmem:[%s12 + $0x210] sm:$0xff] %vm4446, %v2346
    %4514 = vst.msk [vmem:[%s12 + $0x218] sm:$0xff] %vm4446, %v2347
    %4515 = vst.msk [vmem:[%s12 + $0x220] sm:$0xff] %vm4446, %v2348
    %4516 = vst.msk [vmem:[%s12 + $0x228] sm:$0xff] %vm4446, %v2349
    %4517 = vst.msk [vmem:[%s12 + $0x230] sm:$0xff] %vm4446, %v2350
    %4518 = vst.msk [vmem:[%s12 + $0x238] sm:$0xff] %vm4446, %v2351
    %4519 = vst.msk [vmem:[%s12 + $0x240] sm:$0xff] %vm4446, %v2352
    %4520 = vst.msk [vmem:[%s12 + $0x248] sm:$0xff] %vm4446, %v2353
    %4521 = vst.msk [vmem:[%s12 + $0x250] sm:$0xff] %vm4446, %v2354
    %4522 = vst.msk [vmem:[%s12 + $0x258] sm:$0xff] %vm4446, %v2355
    %4523 = vst.msk [vmem:[%s12 + $0x260] sm:$0xff] %vm4446, %v2356
    %4524 = vst.msk [vmem:[%s12 + $0x268] sm:$0xff] %vm4446, %v2357
    %4525 = vst.msk [vmem:[%s12 + $0x270] sm:$0xff] %vm4446, %v2358
    %4526 = vst.msk [vmem:[%s12 + $0x278] sm:$0xff] %vm4446, %v2359
    %4527 = vst.msk [vmem:[%s12 + $0x280] sm:$0xff] %vm4446, %v2360
    %4528 = vst.msk [vmem:[%s12 + $0x288] sm:$0xff] %vm4446, %v2361
    %4529 = vst.msk [vmem:[%s12 + $0x290] sm:$0xff] %vm4446, %v2362
    %4530 = vst.msk [vmem:[%s12 + $0x298] sm:$0xff] %vm4446, %v2363
    %4531 = vst.msk [vmem:[%s12 + $0x2a0] sm:$0xff] %vm4446, %v2364
    %4532 = vst.msk [vmem:[%s12 + $0x2a8] sm:$0xff] %vm4446, %v2365
    %4533 = vst.msk [vmem:[%s12 + $0x2b0] sm:$0xff] %vm4446, %v2366
    %4534 = vst.msk [vmem:[%s12 + $0x2b8] sm:$0xff] %vm4446, %v2367
    %4535 = vst.msk [vmem:[%s12 + $0x2c0] sm:$0xff] %vm4446, %v2368
    %4536 = vst.msk [vmem:[%s12 + $0x2c8] sm:$0xff] %vm4446, %v2369
    %4537 = vst.msk [vmem:[%s12 + $0x2d0] sm:$0xff] %vm4446, %v2370
    %4538 = vst.msk [vmem:[%s12 + $0x2d8] sm:$0xff] %vm4446, %v2371
    %4539 = vst.msk [vmem:[%s12 + $0x2e0] sm:$0xff] %vm4446, %v2372
    %4540 = vst.msk [vmem:[%s12 + $0x2e8] sm:$0xff] %vm4446, %v2373
    %4541 = vst.msk [vmem:[%s12 + $0x2f0] sm:$0xff] %vm4446, %v2374
    %4542 = vst.msk [vmem:[%s12 + $0x2f8] sm:$0xff] %vm4446, %v2375
    %4543 = vst.msk [vmem:[%s12 + $0x300] sm:$0xff] %vm4446, %v2376
    %4544 = vst.msk [vmem:[%s12 + $0x308] sm:$0xff] %vm4446, %v2377
    %4545 = vst.msk [vmem:[%s12 + $0x310] sm:$0xff] %vm4446, %v2378
    %4546 = vst.msk [vmem:[%s12 + $0x318] sm:$0xff] %vm4446, %v2379
    %4547 = vst.msk [vmem:[%s12 + $0x320] sm:$0xff] %vm4446, %v2380
    %4548 = vst.msk [vmem:[%s12 + $0x328] sm:$0xff] %vm4446, %v2381
    %4549 = vst.msk [vmem:[%s12 + $0x330] sm:$0xff] %vm4446, %v2382
    %4550 = vst.msk [vmem:[%s12 + $0x338] sm:$0xff] %vm4446, %v2383
    %4551 = vst.msk [vmem:[%s12 + $0x340] sm:$0xff] %vm4446, %v2384
    %4552 = vst.msk [vmem:[%s12 + $0x348] sm:$0xff] %vm4446, %v2385
    %4553 = vst.msk [vmem:[%s12 + $0x350] sm:$0xff] %vm4446, %v2386
    %4554 = vst.msk [vmem:[%s12 + $0x358] sm:$0xff] %vm4446, %v2387
    %4555 = vst.msk [vmem:[%s12 + $0x360] sm:$0xff] %vm4446, %v2388
    %4556 = vst.msk [vmem:[%s12 + $0x368] sm:$0xff] %vm4446, %v2389
    %4557 = vst.msk [vmem:[%s12 + $0x370] sm:$0xff] %vm4446, %v2390
    %4558 = vst.msk [vmem:[%s12 + $0x378] sm:$0xff] %vm4446, %v2391
    %4559 = vst.msk [vmem:[%s12 + $0x380] sm:$0xff] %vm4446, %v2392
    %4560 = vst.msk [vmem:[%s12 + $0x388] sm:$0xff] %vm4446, %v2393
    %4561 = vst.msk [vmem:[%s12 + $0x390] sm:$0xff] %vm4446, %v2394
    %4562 = vst.msk [vmem:[%s12 + $0x398] sm:$0xff] %vm4446, %v2395
    %4563 = vst.msk [vmem:[%s12 + $0x3a0] sm:$0xff] %vm4446, %v2396
    %4564 = vst.msk [vmem:[%s12 + $0x3a8] sm:$0xff] %vm4446, %v2397
    %4565 = vst.msk [vmem:[%s12 + $0x3b0] sm:$0xff] %vm4446, %v2398
    %4566 = vst.msk [vmem:[%s12 + $0x3b8] sm:$0xff] %vm4446, %v2399
    %4567 = vst.msk [vmem:[%s12 + $0x3c0] sm:$0xff] %vm4446, %v2400
    %4568 = vst.msk [vmem:[%s12 + $0x3c8] sm:$0xff] %vm4446, %v2401
    %4569 = vst.msk [vmem:[%s12 + $0x3d0] sm:$0xff] %vm4446, %v2402
    %4570 = vst.msk [vmem:[%s12 + $0x3d8] sm:$0xff] %vm4446, %v2403
    %4571 = vst.msk [vmem:[%s12 + $0x3e0] sm:$0xff] %vm4446, %v2404
    %4572 = vst.msk [vmem:[%s12 + $0x3e8] sm:$0xff] %vm4446, %v2405
    %4573 = vst.msk [vmem:[%s12 + $0x3f0] sm:$0xff] %vm4446, %v2406
    %4574 = vst.msk [vmem:[%s12 + $0x3f8] sm:$0xff] %vm4446, %v2407
    %4575 = vst.msk [vmem:[%s12 + $0x400] sm:$0xff] %vm4446, %v2408
    %4576 = vst.msk [vmem:[%s12 + $0x408] sm:$0xff] %vm4446, %v2409
    %4577 = vst.msk [vmem:[%s12 + $0x410] sm:$0xff] %vm4446, %v2410
    %4578 = vst.msk [vmem:[%s12 + $0x418] sm:$0xff] %vm4446, %v2411
    %4579 = vst.msk [vmem:[%s12 + $0x420] sm:$0xff] %vm4446, %v2412
    %4580 = vst.msk [vmem:[%s12 + $0x428] sm:$0xff] %vm4446, %v2413
    %4581 = vst.msk [vmem:[%s12 + $0x430] sm:$0xff] %vm4446, %v2414
    %4582 = vst.msk [vmem:[%s12 + $0x438] sm:$0xff] %vm4446, %v2415
    %4583 = vst.msk [vmem:[%s12 + $0x440] sm:$0xff] %vm4446, %v2416
    %4584 = vst.msk [vmem:[%s12 + $0x448] sm:$0xff] %vm4446, %v2417
    %4585 = vst.msk [vmem:[%s12 + $0x450] sm:$0xff] %vm4446, %v2418
    %4586 = vst.msk [vmem:[%s12 + $0x458] sm:$0xff] %vm4446, %v2419
    %4587 = vst.msk [vmem:[%s12 + $0x460] sm:$0xff] %vm4446, %v2420
    %4588 = vst.msk [vmem:[%s12 + $0x468] sm:$0xff] %vm4446, %v2421
    %4589 = vst.msk [vmem:[%s12 + $0x470] sm:$0xff] %vm4446, %v2422
    %4590 = vst.msk [vmem:[%s12 + $0x478] sm:$0xff] %vm4446, %v2423
    %4591 = vst.msk [vmem:[%s12 + $0x480] sm:$0xff] %vm4446, %v2424
    %4592 = vst.msk [vmem:[%s12 + $0x488] sm:$0xff] %vm4446, %v2425
    %4593 = vst.msk [vmem:[%s12 + $0x490] sm:$0xff] %vm4446, %v2426
    %4594 = vst.msk [vmem:[%s12 + $0x498] sm:$0xff] %vm4446, %v2427
    %4595 = vst.msk [vmem:[%s12 + $0x4a0] sm:$0xff] %vm4446, %v2428
    %4596 = vst.msk [vmem:[%s12 + $0x4a8] sm:$0xff] %vm4446, %v2429
    %4597 = vst.msk [vmem:[%s12 + $0x4b0] sm:$0xff] %vm4446, %v2430
    %4598 = vst.msk [vmem:[%s12 + $0x4b8] sm:$0xff] %vm4446, %v2431
    %4599 = vst.msk [vmem:[%s12 + $0x4c0] sm:$0xff] %vm4446, %v2432
    %4600 = vst.msk [vmem:[%s12 + $0x4c8] sm:$0xff] %vm4446, %v2433
    %4601 = vst.msk [vmem:[%s12 + $0x4d0] sm:$0xff] %vm4446, %v2434
    %4602 = vst.msk [vmem:[%s12 + $0x4d8] sm:$0xff] %vm4446, %v2435
    %4603 = vst.msk [vmem:[%s12 + $0x4e0] sm:$0xff] %vm4446, %v2436
    %4604 = vst.msk [vmem:[%s12 + $0x4e8] sm:$0xff] %vm4446, %v2437
    %4605 = vst.msk [vmem:[%s12 + $0x4f0] sm:$0xff] %vm4446, %v2438
    %4606 = vst.msk [vmem:[%s12 + $0x4f8] sm:$0xff] %vm4446, %v2439
    %4607 = vst.msk [vmem:[%s12 + $0x500] sm:$0xff] %vm4446, %v2440
    %4608 = vst.msk [vmem:[%s12 + $0x508] sm:$0xff] %vm4446, %v2441
    %4609 = vst.msk [vmem:[%s12 + $0x510] sm:$0xff] %vm4446, %v2442
    %4610 = vst.msk [vmem:[%s12 + $0x518] sm:$0xff] %vm4446, %v2443
    %4611 = vst.msk [vmem:[%s12 + $0x520] sm:$0xff] %vm4446, %v2444
    %4612 = vst.msk [vmem:[%s12 + $0x528] sm:$0xff] %vm4446, %v2445
    %4613 = vst.msk [vmem:[%s12 + $0x530] sm:$0xff] %vm4446, %v2446
    %4614 = vst.msk [vmem:[%s12 + $0x538] sm:$0xff] %vm4446, %v2447
    %4615 = vst.msk [vmem:[%s12 + $0x540] sm:$0xff] %vm4446, %v2448
    %4616 = vst.msk [vmem:[%s12 + $0x548] sm:$0xff] %vm4446, %v2449
    %4617 = vst.msk [vmem:[%s12 + $0x550] sm:$0xff] %vm4446, %v2450
    %4618 = vst.msk [vmem:[%s12 + $0x558] sm:$0xff] %vm4446, %v2451
    %4619 = vst.msk [vmem:[%s12 + $0x560] sm:$0xff] %vm4446, %v2452
    %4620 = vst.msk [vmem:[%s12 + $0x568] sm:$0xff] %vm4446, %v2453
    %4621 = vst.msk [vmem:[%s12 + $0x570] sm:$0xff] %vm4446, %v2454
    %4622 = vst.msk [vmem:[%s12 + $0x578] sm:$0xff] %vm4446, %v2455
    %4623 = vst.msk [vmem:[%s12 + $0x580] sm:$0xff] %vm4446, %v2456
    %4624 = vst.msk [vmem:[%s12 + $0x588] sm:$0xff] %vm4446, %v2457
    %4625 = vst.msk [vmem:[%s12 + $0x590] sm:$0xff] %vm4446, %v2458
    %4626 = vst.msk [vmem:[%s12 + $0x598] sm:$0xff] %vm4446, %v2459
    %4627 = vst.msk [vmem:[%s12 + $0x5a0] sm:$0xff] %vm4446, %v2460
    %4628 = vst.msk [vmem:[%s12 + $0x5a8] sm:$0xff] %vm4446, %v2461
    %4629 = vst.msk [vmem:[%s12 + $0x5b0] sm:$0xff] %vm4446, %v2462
    %4630 = vst.msk [vmem:[%s12 + $0x5b8] sm:$0xff] %vm4446, %v2463
    %4631 = vst.msk [vmem:[%s12 + $0x5c0] sm:$0xff] %vm4446, %v2464
    %4632 = vst.msk [vmem:[%s12 + $0x5c8] sm:$0xff] %vm4446, %v2465
    %4633 = vst.msk [vmem:[%s12 + $0x5d0] sm:$0xff] %vm4446, %v2466
    %4634 = vst.msk [vmem:[%s12 + $0x5d8] sm:$0xff] %vm4446, %v2467
    %4635 = vst.msk [vmem:[%s12 + $0x5e0] sm:$0xff] %vm4446, %v2468
    %4636 = vst.msk [vmem:[%s12 + $0x5e8] sm:$0xff] %vm4446, %v2469
    %4637 = vst.msk [vmem:[%s12 + $0x5f0] sm:$0xff] %vm4446, %v2470
    %4638 = vst.msk [vmem:[%s12 + $0x5f8] sm:$0xff] %vm4446, %v2471
    %4639 = vst.msk [vmem:[%s12 + $0x600] sm:$0xff] %vm4446, %v2472
    %4640 = vst.msk [vmem:[%s12 + $0x608] sm:$0xff] %vm4446, %v2473
    %4641 = vst.msk [vmem:[%s12 + $0x610] sm:$0xff] %vm4446, %v2474
    %4642 = vst.msk [vmem:[%s12 + $0x618] sm:$0xff] %vm4446, %v2475
    %4643 = vst.msk [vmem:[%s12 + $0x620] sm:$0xff] %vm4446, %v3461
    %4644 = vst.msk [vmem:[%s12 + $0x628] sm:$0xff] %vm4446, %v3462
    %4645 = vst.msk [vmem:[%s12 + $0x630] sm:$0xff] %vm4446, %v3463
    %4646 = vst.msk [vmem:[%s12 + $0x638] sm:$0xff] %vm4446, %v3464
    %4647 = vst.msk [vmem:[%s12 + $0x640] sm:$0xff] %vm4446, %v3465
    %4648 = vst.msk [vmem:[%s12 + $0x648] sm:$0xff] %vm4446, %v3466
    %4649 = vst.msk [vmem:[%s12 + $0x650] sm:$0xff] %vm4446, %v3467
    %4650 = vst.msk [vmem:[%s12 + $0x658] sm:$0xff] %vm4446, %v3468
    %4651 = vst.msk [vmem:[%s12 + $0x660] sm:$0xff] %vm4446, %v3469
    %4652 = vst.msk [vmem:[%s12 + $0x668] sm:$0xff] %vm4446, %v3470
    %4653 = vst.msk [vmem:[%s12 + $0x670] sm:$0xff] %vm4446, %v3471
    %4654 = vst.msk [vmem:[%s12 + $0x678] sm:$0xff] %vm4446, %v3472
    %4655 = vst.msk [vmem:[%s12 + $0x680] sm:$0xff] %vm4446, %v3473
    %4656 = vst.msk [vmem:[%s12 + $0x688] sm:$0xff] %vm4446, %v3474
    %4657 = vst.msk [vmem:[%s12 + $0x690] sm:$0xff] %vm4446, %v3475
    %4658 = vst.msk [vmem:[%s12 + $0x698] sm:$0xff] %vm4446, %v3476
    %4659 = vst.msk [vmem:[%s12 + $0x6a0] sm:$0xff] %vm4446, %v3477
    %4660 = vst.msk [vmem:[%s12 + $0x6a8] sm:$0xff] %vm4446, %v3478
    %4661 = vst.msk [vmem:[%s12 + $0x6b0] sm:$0xff] %vm4446, %v3479
    %4662 = vst.msk [vmem:[%s12 + $0x6b8] sm:$0xff] %vm4446, %v3480
    %4663 = vst.msk [vmem:[%s12 + $0x6c0] sm:$0xff] %vm4446, %v3481
    %4664 = vst.msk [vmem:[%s12 + $0x6c8] sm:$0xff] %vm4446, %v3482
    %4665 = vst.msk [vmem:[%s12 + $0x6d0] sm:$0xff] %vm4446, %v3483
    %4666 = vst.msk [vmem:[%s12 + $0x6d8] sm:$0xff] %vm4446, %v3484
    %4667 = vst.msk [vmem:[%s12 + $0x6e0] sm:$0xff] %vm4446, %v3485
    %4668 = vst.msk [vmem:[%s12 + $0x6e8] sm:$0xff] %vm4446, %v3486
    %4669 = vst.msk [vmem:[%s12 + $0x6f0] sm:$0xff] %vm4446, %v3487
    %4670 = vst.msk [vmem:[%s12 + $0x6f8] sm:$0xff] %vm4446, %v3488
    %4671 = vst.msk [vmem:[%s12 + $0x700] sm:$0xff] %vm4446, %v3489
    %4672 = vst.msk [vmem:[%s12 + $0x708] sm:$0xff] %vm4446, %v3490
    %4673 = vst.msk [vmem:[%s12 + $0x710] sm:$0xff] %vm4446, %v3491
    %4674 = vst.msk [vmem:[%s12 + $0x718] sm:$0xff] %vm4446, %v3492
    %4675 = vst.msk [vmem:[%s12 + $0x720] sm:$0xff] %vm4446, %v3493
    %4676 = vst.msk [vmem:[%s12 + $0x728] sm:$0xff] %vm4446, %v3494
    %4677 = vst.msk [vmem:[%s12 + $0x730] sm:$0xff] %vm4446, %v3495
    %4678 = vst.msk [vmem:[%s12 + $0x738] sm:$0xff] %vm4446, %v3496
    %4679 = vst.msk [vmem:[%s12 + $0x740] sm:$0xff] %vm4446, %v3497
    %4680 = vst.msk [vmem:[%s12 + $0x748] sm:$0xff] %vm4446, %v3498
    %4681 = vst.msk [vmem:[%s12 + $0x750] sm:$0xff] %vm4446, %v3499
    %4682 = vst.msk [vmem:[%s12 + $0x758] sm:$0xff] %vm4446, %v3500
    %4683 = vst.msk [vmem:[%s12 + $0x760] sm:$0xff] %vm4446, %v3501
    %4684 = vst.msk [vmem:[%s12 + $0x768] sm:$0xff] %vm4446, %v3502
    %4685 = vst.msk [vmem:[%s12 + $0x770] sm:$0xff] %vm4446, %v3503
    %4686 = vst.msk [vmem:[%s12 + $0x778] sm:$0xff] %vm4446, %v3504
    %4687 = vst.msk [vmem:[%s12 + $0x780] sm:$0xff] %vm4446, %v3505
    %4688 = vst.msk [vmem:[%s12 + $0x788] sm:$0xff] %vm4446, %v3506
    %4689 = vst.msk [vmem:[%s12 + $0x790] sm:$0xff] %vm4446, %v3507
    %4690 = vst.msk [vmem:[%s12 + $0x798] sm:$0xff] %vm4446, %v3508
    %4691 = vst.msk [vmem:[%s12 + $0x7a0] sm:$0xff] %vm4446, %v3509
    %4692 = vst.msk [vmem:[%s12 + $0x7a8] sm:$0xff] %vm4446, %v3510
    %4693 = vst.msk [vmem:[%s12 + $0x7b0] sm:$0xff] %vm4446, %v3511
    %4694 = vst.msk [vmem:[%s12 + $0x7b8] sm:$0xff] %vm4446, %v3512
    %4695 = vst.msk [vmem:[%s12 + $0x7c0] sm:$0xff] %vm4446, %v3513
    %4696 = vst.msk [vmem:[%s12 + $0x7c8] sm:$0xff] %vm4446, %v3514
    %4697 = vst.msk [vmem:[%s12 + $0x7d0] sm:$0xff] %vm4446, %v3515
    %4698 = vst.msk [vmem:[%s12 + $0x7d8] sm:$0xff] %vm4446, %v3516
    %4699 = vst.msk [vmem:[%s12 + $0x7e0] sm:$0xff] %vm4446, %v3517
    %4700 = vst.msk [vmem:[%s12 + $0x7e8] sm:$0xff] %vm4446, %v3518
    %4701 = vst.msk [vmem:[%s12 + $0x7f0] sm:$0xff] %vm4446, %v3519
    %4702 = vst.msk [vmem:[%s12 + $0x7f8] sm:$0xff] %vm4446, %v3520
    %4703 = vst.msk [vmem:[%s12 + $0x800] sm:$0xff] %vm4446, %v3521
    %4704 = vst.msk [vmem:[%s12 + $0x808] sm:$0xff] %vm4446, %v3522
    %4705 = vst.msk [vmem:[%s12 + $0x810] sm:$0xff] %vm4446, %v3523
    %4706 = vst.msk [vmem:[%s12 + $0x818] sm:$0xff] %vm4446, %v3524
    %4707 = vst.msk [vmem:[%s12 + $0x820] sm:$0xff] %vm4446, %v3525
    %4708 = vst.msk [vmem:[%s12 + $0x828] sm:$0xff] %vm4446, %v3526
    %4709 = vst.msk [vmem:[%s12 + $0x830] sm:$0xff] %vm4446, %v3527
    %4710 = vst.msk [vmem:[%s12 + $0x838] sm:$0xff] %vm4446, %v3528
    %4711 = vst.msk [vmem:[%s12 + $0x840] sm:$0xff] %vm4446, %v3529
    %4712 = vst.msk [vmem:[%s12 + $0x848] sm:$0xff] %vm4446, %v3530
    %4713 = vst.msk [vmem:[%s12 + $0x850] sm:$0xff] %vm4446, %v3531
    %4714 = vst.msk [vmem:[%s12 + $0x858] sm:$0xff] %vm4446, %v3532
    %4715 = vst.msk [vmem:[%s12 + $0x860] sm:$0xff] %vm4446, %v3533
    %4716 = vst.msk [vmem:[%s12 + $0x868] sm:$0xff] %vm4446, %v3534
    %4717 = vst.msk [vmem:[%s12 + $0x870] sm:$0xff] %vm4446, %v3535
    %4718 = vst.msk [vmem:[%s12 + $0x878] sm:$0xff] %vm4446, %v3536
    %4719 = vst.msk [vmem:[%s12 + $0x880] sm:$0xff] %vm4446, %v3537
    %4720 = vst.msk [vmem:[%s12 + $0x888] sm:$0xff] %vm4446, %v3538
    %4721 = vst.msk [vmem:[%s12 + $0x890] sm:$0xff] %vm4446, %v3539
    %4722 = vst.msk [vmem:[%s12 + $0x898] sm:$0xff] %vm4446, %v3540
    %4723 = vst.msk [vmem:[%s12 + $0x8a0] sm:$0xff] %vm4446, %v3541
    %4724 = vst.msk [vmem:[%s12 + $0x8a8] sm:$0xff] %vm4446, %v3542
    %4725 = vst.msk [vmem:[%s12 + $0x8b0] sm:$0xff] %vm4446, %v3543
    %4726 = vst.msk [vmem:[%s12 + $0x8b8] sm:$0xff] %vm4446, %v3544
    %4727 = vst.msk [vmem:[%s12 + $0x8c0] sm:$0xff] %vm4446, %v3545
    %4728 = vst.msk [vmem:[%s12 + $0x8c8] sm:$0xff] %vm4446, %v3546
    %4729 = vst.msk [vmem:[%s12 + $0x8d0] sm:$0xff] %vm4446, %v3547
    %4730 = vst.msk [vmem:[%s12 + $0x8d8] sm:$0xff] %vm4446, %v3548
    %4731 = vst.msk [vmem:[%s12 + $0x8e0] sm:$0xff] %vm4446, %v3549
    %4732 = vst.msk [vmem:[%s12 + $0x8e8] sm:$0xff] %vm4446, %v3550
    %4733 = vst.msk [vmem:[%s12 + $0x8f0] sm:$0xff] %vm4446, %v3551
    %4734 = vst.msk [vmem:[%s12 + $0x8f8] sm:$0xff] %vm4446, %v3552
    %4735 = vst.msk [vmem:[%s12 + $0x900] sm:$0xff] %vm4446, %v3553
    %4736 = vst.msk [vmem:[%s12 + $0x908] sm:$0xff] %vm4446, %v3554
    %4737 = vst.msk [vmem:[%s12 + $0x910] sm:$0xff] %vm4446, %v3555
    %4738 = vst.msk [vmem:[%s12 + $0x918] sm:$0xff] %vm4446, %v3556
    %4739 = vst.msk [vmem:[%s12 + $0x920] sm:$0xff] %vm4446, %v3557
    %4740 = vst.msk [vmem:[%s12 + $0x928] sm:$0xff] %vm4446, %v3558
    %4741 = vst.msk [vmem:[%s12 + $0x930] sm:$0xff] %vm4446, %v3559
    %4742 = vst.msk [vmem:[%s12 + $0x938] sm:$0xff] %vm4446, %v3560
    %4743 = vst.msk [vmem:[%s12 + $0x940] sm:$0xff] %vm4446, %v3561
    %4744 = vst.msk [vmem:[%s12 + $0x948] sm:$0xff] %vm4446, %v3562
    %4745 = vst.msk [vmem:[%s12 + $0x950] sm:$0xff] %vm4446, %v3563
    %4746 = vst.msk [vmem:[%s12 + $0x958] sm:$0xff] %vm4446, %v3564
    %4747 = vst.msk [vmem:[%s12 + $0x960] sm:$0xff] %vm4446, %v3565
    %4748 = vst.msk [vmem:[%s12 + $0x968] sm:$0xff] %vm4446, %v3566
    %4749 = vst.msk [vmem:[%s12 + $0x970] sm:$0xff] %vm4446, %v3567
    %4750 = vst.msk [vmem:[%s12 + $0x978] sm:$0xff] %vm4446, %v3568
    %4751 = vst.msk [vmem:[%s12 + $0x980] sm:$0xff] %vm4446, %v3569
    %4752 = vst.msk [vmem:[%s12 + $0x988] sm:$0xff] %vm4446, %v3570
    %4753 = vst.msk [vmem:[%s12 + $0x990] sm:$0xff] %vm4446, %v3571
    %4754 = vst.msk [vmem:[%s12 + $0x998] sm:$0xff] %vm4446, %v3572
    %4755 = vst.msk [vmem:[%s12 + $0x9a0] sm:$0xff] %vm4446, %v3573
    %4756 = vst.msk [vmem:[%s12 + $0x9a8] sm:$0xff] %vm4446, %v3574
    %4757 = vst.msk [vmem:[%s12 + $0x9b0] sm:$0xff] %vm4446, %v3575
    %4758 = vst.msk [vmem:[%s12 + $0x9b8] sm:$0xff] %vm4446, %v3576
    %4759 = vst.msk [vmem:[%s12 + $0x9c0] sm:$0xff] %vm4446, %v3577
    %4760 = vst.msk [vmem:[%s12 + $0x9c8] sm:$0xff] %vm4446, %v3578
    %4761 = vst.msk [vmem:[%s12 + $0x9d0] sm:$0xff] %vm4446, %v3579
    %4762 = vst.msk [vmem:[%s12 + $0x9d8] sm:$0xff] %vm4446, %v3580
    %4763 = vst.msk [vmem:[%s12 + $0x9e0] sm:$0xff] %vm4446, %v3581
    %4764 = vst.msk [vmem:[%s12 + $0x9e8] sm:$0xff] %vm4446, %v3582
    %4765 = vst.msk [vmem:[%s12 + $0x9f0] sm:$0xff] %vm4446, %v3583
    %4766 = vst.msk [vmem:[%s12 + $0x9f8] sm:$0xff] %vm4446, %v3584
    %4767 = vst.msk [vmem:[%s12 + $0xa00] sm:$0xff] %vm4446, %v3585
    %4768 = vst.msk [vmem:[%s12 + $0xa08] sm:$0xff] %vm4446, %v3586
    %4769 = vst.msk [vmem:[%s12 + $0xa10] sm:$0xff] %vm4446, %v3587
    %4770 = vst.msk [vmem:[%s12 + $0xa18] sm:$0xff] %vm4446, %v3588
    %4771 = vst.msk [vmem:[%s12 + $0xa20] sm:$0xff] %vm4446, %v3589
    %4772 = vst.msk [vmem:[%s12 + $0xa28] sm:$0xff] %vm4446, %v3590
    %4773 = vst.msk [vmem:[%s12 + $0xa30] sm:$0xff] %vm4446, %v3591
    %4774 = vst.msk [vmem:[%s12 + $0xa38] sm:$0xff] %vm4446, %v3592
    %4775 = vst.msk [vmem:[%s12 + $0xa40] sm:$0xff] %vm4446, %v3593
    %4776 = vst.msk [vmem:[%s12 + $0xa48] sm:$0xff] %vm4446, %v3594
    %4777 = vst.msk [vmem:[%s12 + $0xa50] sm:$0xff] %vm4446, %v3595
    %4778 = vst.msk [vmem:[%s12 + $0xa58] sm:$0xff] %vm4446, %v3596
    %4779 = vst.msk [vmem:[%s12 + $0xa60] sm:$0xff] %vm4446, %v3597
    %4780 = vst.msk [vmem:[%s12 + $0xa68] sm:$0xff] %vm4446, %v3598
    %4781 = vst.msk [vmem:[%s12 + $0xa70] sm:$0xff] %vm4446, %v3599
    %4782 = vst.msk [vmem:[%s12 + $0xa78] sm:$0xff] %vm4446, %v3600
    %4783 = vst.msk [vmem:[%s12 + $0xa80] sm:$0xff] %vm4446, %v3601
    %4784 = vst.msk [vmem:[%s12 + $0xa88] sm:$0xff] %vm4446, %v3602
    %4785 = vst.msk [vmem:[%s12 + $0xa90] sm:$0xff] %vm4446, %v3603
    %4786 = vst.msk [vmem:[%s12 + $0xa98] sm:$0xff] %vm4446, %v3604
    %4787 = vst.msk [vmem:[%s12 + $0xaa0] sm:$0xff] %vm4446, %v3605
    %4788 = vst.msk [vmem:[%s12 + $0xaa8] sm:$0xff] %vm4446, %v3606
    %4789 = vst.msk [vmem:[%s12 + $0xab0] sm:$0xff] %vm4446, %v3607
    %4790 = vst.msk [vmem:[%s12 + $0xab8] sm:$0xff] %vm4446, %v3608
    %4791 = vst.msk [vmem:[%s12 + $0xac0] sm:$0xff] %vm4446, %v3609
    %4792 = vst.msk [vmem:[%s12 + $0xac8] sm:$0xff] %vm4446, %v3610
    %4793 = vst.msk [vmem:[%s12 + $0xad0] sm:$0xff] %vm4446, %v3611
    %4794 = vst.msk [vmem:[%s12 + $0xad8] sm:$0xff] %vm4446, %v3612
    %4795 = vst.msk [vmem:[%s12 + $0xae0] sm:$0xff] %vm4446, %v3613
    %4796 = vst.msk [vmem:[%s12 + $0xae8] sm:$0xff] %vm4446, %v3614
    %4797 = vst.msk [vmem:[%s12 + $0xaf0] sm:$0xff] %vm4446, %v3615
    %4798 = vst.msk [vmem:[%s12 + $0xaf8] sm:$0xff] %vm4446, %v3616
    %4799 = vst.msk [vmem:[%s12 + $0xb00] sm:$0xff] %vm4446, %v3617
    %4800 = vst.msk [vmem:[%s12 + $0xb08] sm:$0xff] %vm4446, %v3618
    %4801 = vst.msk [vmem:[%s12 + $0xb10] sm:$0xff] %vm4446, %v3619
    %4802 = vst.msk [vmem:[%s12 + $0xb18] sm:$0xff] %vm4446, %v3620
    %4803 = vst.msk [vmem:[%s12 + $0xb20] sm:$0xff] %vm4446, %v3621
    %4804 = vst.msk [vmem:[%s12 + $0xb28] sm:$0xff] %vm4446, %v3622
    %4805 = vst.msk [vmem:[%s12 + $0xb30] sm:$0xff] %vm4446, %v3623
    %4806 = vst.msk [vmem:[%s12 + $0xb38] sm:$0xff] %vm4446, %v3624
    %4807 = vst.msk [vmem:[%s12 + $0xb40] sm:$0xff] %vm4446, %v3625
    %4808 = vst.msk [vmem:[%s12 + $0xb48] sm:$0xff] %vm4446, %v3626
    %4809 = vst.msk [vmem:[%s12 + $0xb50] sm:$0xff] %vm4446, %v3627
    %4810 = vst.msk [vmem:[%s12 + $0xb58] sm:$0xff] %vm4446, %v3628
    %4811 = vst.msk [vmem:[%s12 + $0xb60] sm:$0xff] %vm4446, %v3629
    %4812 = vst.msk [vmem:[%s12 + $0xb68] sm:$0xff] %vm4446, %v3630
    %4813 = vst.msk [vmem:[%s12 + $0xb70] sm:$0xff] %vm4446, %v3631
    %4814 = vst.msk [vmem:[%s12 + $0xb78] sm:$0xff] %vm4446, %v3632
    %4815 = vst.msk [vmem:[%s12 + $0xb80] sm:$0xff] %vm4446, %v3633
    %4816 = vst.msk [vmem:[%s12 + $0xb88] sm:$0xff] %vm4446, %v3634
    %4817 = vst.msk [vmem:[%s12 + $0xb90] sm:$0xff] %vm4446, %v3635
    %4818 = vst.msk [vmem:[%s12 + $0xb98] sm:$0xff] %vm4446, %v3636
    %4819 = vst.msk [vmem:[%s12 + $0xba0] sm:$0xff] %vm4446, %v3637
    %4820 = vst.msk [vmem:[%s12 + $0xba8] sm:$0xff] %vm4446, %v3638
    %4821 = vst.msk [vmem:[%s12 + $0xbb0] sm:$0xff] %vm4446, %v3639
    %4822 = vst.msk [vmem:[%s12 + $0xbb8] sm:$0xff] %vm4446, %v3640
    %4823 = vst.msk [vmem:[%s12 + $0xbc0] sm:$0xff] %vm4446, %v3641
    %4824 = vst.msk [vmem:[%s12 + $0xbc8] sm:$0xff] %vm4446, %v3642
    %4825 = vst.msk [vmem:[%s12 + $0xbd0] sm:$0xff] %vm4446, %v3643
    %4826 = vst.msk [vmem:[%s12 + $0xbd8] sm:$0xff] %vm4446, %v3644
    %4827 = vst.msk [vmem:[%s12 + $0xbe0] sm:$0xff] %vm4446, %v3645
    %4828 = vst.msk [vmem:[%s12 + $0xbe8] sm:$0xff] %vm4446, %v3646
    %4829 = vst.msk [vmem:[%s12 + $0xbf0] sm:$0xff] %vm4446, %v3647
    %4830 = vst.msk [vmem:[%s12 + $0xbf8] sm:$0xff] %vm4446, %v3648
    %4831 = vst.msk [vmem:[%s12 + $0xc00] sm:$0xff] %vm4446, %v3649
    %4832 = vst.msk [vmem:[%s12 + $0xc08] sm:$0xff] %vm4446, %v3650
    %4833 = vst.msk [vmem:[%s12 + $0xc10] sm:$0xff] %vm4446, %v3651
    %4834 = vst.msk [vmem:[%s12 + $0xc18] sm:$0xff] %vm4446, %v3652
    %4835 = vst.msk [vmem:[%s12 + $0xc20] sm:$0xff] %vm4446, %v3653
    %4836 = vst.msk [vmem:[%s12 + $0xc28] sm:$0xff] %vm4446, %v3654
    %4837 = vst.msk [vmem:[%s12 + $0xc30] sm:$0xff] %vm4446, %v3655
    %4838 = vst.msk [vmem:[%s12 + $0xc38] sm:$0xff] %vm4446, %v3656
    %4839 = vst.msk [vmem:[%s12 + $0xc40] sm:$0xff] %vm4446, %v4250
    %4840 = vst.msk [vmem:[%s12 + $0xc48] sm:$0xff] %vm4446, %v4251
    %4841 = vst.msk [vmem:[%s12 + $0xc50] sm:$0xff] %vm4446, %v4252
    %4842 = vst.msk [vmem:[%s12 + $0xc58] sm:$0xff] %vm4446, %v4253
    %4843 = vst.msk [vmem:[%s12 + $0xc60] sm:$0xff] %vm4446, %v4254
    %4844 = vst.msk [vmem:[%s12 + $0xc68] sm:$0xff] %vm4446, %v4255
    %4845 = vst.msk [vmem:[%s12 + $0xc70] sm:$0xff] %vm4446, %v4256
    %4846 = vst.msk [vmem:[%s12 + $0xc78] sm:$0xff] %vm4446, %v4257
    %4847 = vst.msk [vmem:[%s12 + $0xc80] sm:$0xff] %vm4446, %v4258
    %4848 = vst.msk [vmem:[%s12 + $0xc88] sm:$0xff] %vm4446, %v4259
    %4849 = vst.msk [vmem:[%s12 + $0xc90] sm:$0xff] %vm4446, %v4260
    %4850 = vst.msk [vmem:[%s12 + $0xc98] sm:$0xff] %vm4446, %v4261
    %4851 = vst.msk [vmem:[%s12 + $0xca0] sm:$0xff] %vm4446, %v4262
    %4852 = vst.msk [vmem:[%s12 + $0xca8] sm:$0xff] %vm4446, %v4263
    %4853 = vst.msk [vmem:[%s12 + $0xcb0] sm:$0xff] %vm4446, %v4264
    %4854 = vst.msk [vmem:[%s12 + $0xcb8] sm:$0xff] %vm4446, %v4265
    %4855 = vst.msk [vmem:[%s12 + $0xcc0] sm:$0xff] %vm4446, %v4266
    %4856 = vst.msk [vmem:[%s12 + $0xcc8] sm:$0xff] %vm4446, %v4267
    %4857 = vst.msk [vmem:[%s12 + $0xcd0] sm:$0xff] %vm4446, %v4268
    %4858 = vst.msk [vmem:[%s12 + $0xcd8] sm:$0xff] %vm4446, %v4269
    %4859 = vst.msk [vmem:[%s12 + $0xce0] sm:$0xff] %vm4446, %v4270
    %4860 = vst.msk [vmem:[%s12 + $0xce8] sm:$0xff] %vm4446, %v4271
    %4861 = vst.msk [vmem:[%s12 + $0xcf0] sm:$0xff] %vm4446, %v4272
    %4862 = vst.msk [vmem:[%s12 + $0xcf8] sm:$0xff] %vm4446, %v4273
    %4863 = vst.msk [vmem:[%s12 + $0xd00] sm:$0xff] %vm4446, %v4274
    %4864 = vst.msk [vmem:[%s12 + $0xd08] sm:$0xff] %vm4446, %v4275
    %4865 = vst.msk [vmem:[%s12 + $0xd10] sm:$0xff] %vm4446, %v4276
    %4866 = vst.msk [vmem:[%s12 + $0xd18] sm:$0xff] %vm4446, %v4277
    %4867 = vst.msk [vmem:[%s12 + $0xd20] sm:$0xff] %vm4446, %v4278
    %4868 = vst.msk [vmem:[%s12 + $0xd28] sm:$0xff] %vm4446, %v4279
    %4869 = vst.msk [vmem:[%s12 + $0xd30] sm:$0xff] %vm4446, %v4280
    %4870 = vst.msk [vmem:[%s12 + $0xd38] sm:$0xff] %vm4446, %v4281
    %4871 = vst.msk [vmem:[%s12 + $0xd40] sm:$0xff] %vm4446, %v4282
    %4872 = vst.msk [vmem:[%s12 + $0xd48] sm:$0xff] %vm4446, %v4283
    %4873 = vst.msk [vmem:[%s12 + $0xd50] sm:$0xff] %vm4446, %v4284
    %4874 = vst.msk [vmem:[%s12 + $0xd58] sm:$0xff] %vm4446, %v4285
    %4875 = vst.msk [vmem:[%s12 + $0xd60] sm:$0xff] %vm4446, %v4286
    %4876 = vst.msk [vmem:[%s12 + $0xd68] sm:$0xff] %vm4446, %v4287
    %4877 = vst.msk [vmem:[%s12 + $0xd70] sm:$0xff] %vm4446, %v4288
    %4878 = vst.msk [vmem:[%s12 + $0xd78] sm:$0xff] %vm4446, %v4289
    %4879 = vst.msk [vmem:[%s12 + $0xd80] sm:$0xff] %vm4446, %v4290
    %4880 = vst.msk [vmem:[%s12 + $0xd88] sm:$0xff] %vm4446, %v4291
    %4881 = vst.msk [vmem:[%s12 + $0xd90] sm:$0xff] %vm4446, %v4292
    %4882 = vst.msk [vmem:[%s12 + $0xd98] sm:$0xff] %vm4446, %v4293
    %4883 = vst.msk [vmem:[%s12 + $0xda0] sm:$0xff] %vm4446, %v4294
    %4884 = vst.msk [vmem:[%s12 + $0xda8] sm:$0xff] %vm4446, %v4295
    %4885 = vst.msk [vmem:[%s12 + $0xdb0] sm:$0xff] %vm4446, %v4296
    %4886 = vst.msk [vmem:[%s12 + $0xdb8] sm:$0xff] %vm4446, %v4297
    %4887 = vst.msk [vmem:[%s12 + $0xdc0] sm:$0xff] %vm4446, %v4298
    %4888 = vst.msk [vmem:[%s12 + $0xdc8] sm:$0xff] %vm4446, %v4299
    %4889 = vst.msk [vmem:[%s12 + $0xdd0] sm:$0xff] %vm4446, %v4300
    %4890 = vst.msk [vmem:[%s12 + $0xdd8] sm:$0xff] %vm4446, %v4301
    %4891 = vst.msk [vmem:[%s12 + $0xde0] sm:$0xff] %vm4446, %v4302
    %4892 = vst.msk [vmem:[%s12 + $0xde8] sm:$0xff] %vm4446, %v4303
    %4893 = vst.msk [vmem:[%s12 + $0xdf0] sm:$0xff] %vm4446, %v4304
    %4894 = vst.msk [vmem:[%s12 + $0xdf8] sm:$0xff] %vm4446, %v4305
    %4895 = vst.msk [vmem:[%s12 + $0xe00] sm:$0xff] %vm4446, %v4306
    %4896 = vst.msk [vmem:[%s12 + $0xe08] sm:$0xff] %vm4446, %v4307
    %4897 = vst.msk [vmem:[%s12 + $0xe10] sm:$0xff] %vm4446, %v4308
    %4898 = vst.msk [vmem:[%s12 + $0xe18] sm:$0xff] %vm4446, %v4309
    %4899 = vst.msk [vmem:[%s12 + $0xe20] sm:$0xff] %vm4446, %v4310
    %4900 = vst.msk [vmem:[%s12 + $0xe28] sm:$0xff] %vm4446, %v4311
    %4901 = vst.msk [vmem:[%s12 + $0xe30] sm:$0xff] %vm4446, %v4312
    %4902 = vst.msk [vmem:[%s12 + $0xe38] sm:$0xff] %vm4446, %v4313
    %4903 = vst.msk [vmem:[%s12 + $0xe40] sm:$0xff] %vm4446, %v4314
    %4904 = vst.msk [vmem:[%s12 + $0xe48] sm:$0xff] %vm4446, %v4315
    %4905 = vst.msk [vmem:[%s12 + $0xe50] sm:$0xff] %vm4446, %v4316
    %4906 = vst.msk [vmem:[%s12 + $0xe58] sm:$0xff] %vm4446, %v4317
    %4907 = vst.msk [vmem:[%s12 + $0xe60] sm:$0xff] %vm4446, %v4318
    %4908 = vst.msk [vmem:[%s12 + $0xe68] sm:$0xff] %vm4446, %v4319
    %4909 = vst.msk [vmem:[%s12 + $0xe70] sm:$0xff] %vm4446, %v4320
    %4910 = vst.msk [vmem:[%s12 + $0xe78] sm:$0xff] %vm4446, %v4321
    %4911 = vst.msk [vmem:[%s12 + $0xe80] sm:$0xff] %vm4446, %v4322
    %4912 = vst.msk [vmem:[%s12 + $0xe88] sm:$0xff] %vm4446, %v4323
    %4913 = vst.msk [vmem:[%s12 + $0xe90] sm:$0xff] %vm4446, %v4324
    %4914 = vst.msk [vmem:[%s12 + $0xe98] sm:$0xff] %vm4446, %v4325
    %4915 = vst.msk [vmem:[%s12 + $0xea0] sm:$0xff] %vm4446, %v4326
    %4916 = vst.msk [vmem:[%s12 + $0xea8] sm:$0xff] %vm4446, %v4327
    %4917 = vst.msk [vmem:[%s12 + $0xeb0] sm:$0xff] %vm4446, %v4328
    %4918 = vst.msk [vmem:[%s12 + $0xeb8] sm:$0xff] %vm4446, %v4329
    %4919 = vst.msk [vmem:[%s12 + $0xec0] sm:$0xff] %vm4446, %v4330
    %4920 = vst.msk [vmem:[%s12 + $0xec8] sm:$0xff] %vm4446, %v4331
    %4921 = vst.msk [vmem:[%s12 + $0xed0] sm:$0xff] %vm4446, %v4332
    %4922 = vst.msk [vmem:[%s12 + $0xed8] sm:$0xff] %vm4446, %v4333
    %4923 = vst.msk [vmem:[%s12 + $0xee0] sm:$0xff] %vm4446, %v4334
    %4924 = vst.msk [vmem:[%s12 + $0xee8] sm:$0xff] %vm4446, %v4335
    %4925 = vst.msk [vmem:[%s12 + $0xef0] sm:$0xff] %vm4446, %v4336
    %4926 = vst.msk [vmem:[%s12 + $0xef8] sm:$0xff] %vm4446, %v4337
    %4927 = vst.msk [vmem:[%s12 + $0xf00] sm:$0xff] %vm4446, %v4338
    %4928 = vst.msk [vmem:[%s12 + $0xf08] sm:$0xff] %vm4446, %v4339
    %4929 = vst.msk [vmem:[%s12 + $0xf10] sm:$0xff] %vm4446, %v4340
    %4930 = vst.msk [vmem:[%s12 + $0xf18] sm:$0xff] %vm4446, %v4341
    %4931 = vst.msk [vmem:[%s12 + $0xf20] sm:$0xff] %vm4446, %v4342
    %4932 = vst.msk [vmem:[%s12 + $0xf28] sm:$0xff] %vm4446, %v4343
    %4933 = vst.msk [vmem:[%s12 + $0xf30] sm:$0xff] %vm4446, %v4344
    %4934 = vst.msk [vmem:[%s12 + $0xf38] sm:$0xff] %vm4446, %v4345
    %4935 = vst.msk [vmem:[%s12 + $0xf40] sm:$0xff] %vm4446, %v4346
    %4936 = vst.msk [vmem:[%s12 + $0xf48] sm:$0xff] %vm4446, %v4347
    %4937 = vst.msk [vmem:[%s12 + $0xf50] sm:$0xff] %vm4446, %v4348
    %4938 = vst.msk [vmem:[%s12 + $0xf58] sm:$0xff] %vm4446, %v4349
    %4939 = vst.msk [vmem:[%s12 + $0xf60] sm:$0xff] %vm4446, %v4350
    %4940 = vst.msk [vmem:[%s12 + $0xf68] sm:$0xff] %vm4446, %v4351
    %4941 = vst.msk [vmem:[%s12 + $0xf70] sm:$0xff] %vm4446, %v4352
    %4942 = vst.msk [vmem:[%s12 + $0xf78] sm:$0xff] %vm4446, %v4353
    %4943 = vst.msk [vmem:[%s12 + $0xf80] sm:$0xff] %vm4446, %v4354
    %4944 = vst.msk [vmem:[%s12 + $0xf88] sm:$0xff] %vm4446, %v4355
    %4945 = vst.msk [vmem:[%s12 + $0xf90] sm:$0xff] %vm4446, %v4356
    %4946 = vst.msk [vmem:[%s12 + $0xf98] sm:$0xff] %vm4446, %v4357
    %4947 = vst.msk [vmem:[%s12 + $0xfa0] sm:$0xff] %vm4446, %v4358
    %4948 = vst.msk [vmem:[%s12 + $0xfa8] sm:$0xff] %vm4446, %v4359
    %4949 = vst.msk [vmem:[%s12 + $0xfb0] sm:$0xff] %vm4446, %v4360
    %4950 = vst.msk [vmem:[%s12 + $0xfb8] sm:$0xff] %vm4446, %v4361
    %4951 = vst.msk [vmem:[%s12 + $0xfc0] sm:$0xff] %vm4446, %v4362
    %4952 = vst.msk [vmem:[%s12 + $0xfc8] sm:$0xff] %vm4446, %v4363
    %4953 = vst.msk [vmem:[%s12 + $0xfd0] sm:$0xff] %vm4446, %v4364
    %4954 = vst.msk [vmem:[%s12 + $0xfd8] sm:$0xff] %vm4446, %v4365
    %4955 = vst.msk [vmem:[%s12 + $0xfe0] sm:$0xff] %vm4446, %v4366
    %4956 = vst.msk [vmem:[%s12 + $0xfe8] sm:$0xff] %vm4446, %v4367
    %4957 = vst.msk [vmem:[%s12 + $0xff0] sm:$0xff] %vm4446, %v4368
    %4958 = vst.msk [vmem:[%s12 + $0xff8] sm:$0xff] %vm4446, %v4369
    %4959 = vst.msk [vmem:[%s12 + $0x1000] sm:$0xff] %vm4446, %v4370
    %4960 = vst.msk [vmem:[%s12 + $0x1008] sm:$0xff] %vm4446, %v4371
    %4961 = vst.msk [vmem:[%s12 + $0x1010] sm:$0xff] %vm4446, %v4372
    %4962 = vst.msk [vmem:[%s12 + $0x1018] sm:$0xff] %vm4446, %v4373
    %4963 = vst.msk [vmem:[%s12 + $0x1020] sm:$0xff] %vm4446, %v4374
    %4964 = vst.msk [vmem:[%s12 + $0x1028] sm:$0xff] %vm4446, %v4375
    %4965 = vst.msk [vmem:[%s12 + $0x1030] sm:$0xff] %vm4446, %v4376
    %4966 = vst.msk [vmem:[%s12 + $0x1038] sm:$0xff] %vm4446, %v4377
    %4967 = vst.msk [vmem:[%s12 + $0x1040] sm:$0xff] %vm4446, %v4378
    %4968 = vst.msk [vmem:[%s12 + $0x1048] sm:$0xff] %vm4446, %v4379
    %4969 = vst.msk [vmem:[%s12 + $0x1050] sm:$0xff] %vm4446, %v4380
    %4970 = vst.msk [vmem:[%s12 + $0x1058] sm:$0xff] %vm4446, %v4381
    %4971 = vst.msk [vmem:[%s12 + $0x1060] sm:$0xff] %vm4446, %v4382
    %4972 = vst.msk [vmem:[%s12 + $0x1068] sm:$0xff] %vm4446, %v4383
    %4973 = vst.msk [vmem:[%s12 + $0x1070] sm:$0xff] %vm4446, %v4384
    %4974 = vst.msk [vmem:[%s12 + $0x1078] sm:$0xff] %vm4446, %v4385
    %4975 = vst.msk [vmem:[%s12 + $0x1080] sm:$0xff] %vm4446, %v4386
    %4976 = vst.msk [vmem:[%s12 + $0x1088] sm:$0xff] %vm4446, %v4387
    %4977 = vst.msk [vmem:[%s12 + $0x1090] sm:$0xff] %vm4446, %v4388
    %4978 = vst.msk [vmem:[%s12 + $0x1098] sm:$0xff] %vm4446, %v4389
    %4979 = vst.msk [vmem:[%s12 + $0x10a0] sm:$0xff] %vm4446, %v4390
    %4980 = vst.msk [vmem:[%s12 + $0x10a8] sm:$0xff] %vm4446, %v4391
    %4981 = vst.msk [vmem:[%s12 + $0x10b0] sm:$0xff] %vm4446, %v4392
    %4982 = vst.msk [vmem:[%s12 + $0x10b8] sm:$0xff] %vm4446, %v4393
    %4983 = vst.msk [vmem:[%s12 + $0x10c0] sm:$0xff] %vm4446, %v4394
    %4984 = vst.msk [vmem:[%s12 + $0x10c8] sm:$0xff] %vm4446, %v4395
    %4985 = vst.msk [vmem:[%s12 + $0x10d0] sm:$0xff] %vm4446, %v4396
    %4986 = vst.msk [vmem:[%s12 + $0x10d8] sm:$0xff] %vm4446, %v4397
    %4987 = vst.msk [vmem:[%s12 + $0x10e0] sm:$0xff] %vm4446, %v4398
    %4988 = vst.msk [vmem:[%s12 + $0x10e8] sm:$0xff] %vm4446, %v4399
    %4989 = vst.msk [vmem:[%s12 + $0x10f0] sm:$0xff] %vm4446, %v4400
    %4990 = vst.msk [vmem:[%s12 + $0x10f8] sm:$0xff] %vm4446, %v4401
    %4991 = vst.msk [vmem:[%s12 + $0x1100] sm:$0xff] %vm4446, %v4402
    %4992 = vst.msk [vmem:[%s12 + $0x1108] sm:$0xff] %vm4446, %v4403
    %4993 = vst.msk [vmem:[%s12 + $0x1110] sm:$0xff] %vm4446, %v4404
    %4994 = vst.msk [vmem:[%s12 + $0x1118] sm:$0xff] %vm4446, %v4405
    %4995 = vst.msk [vmem:[%s12 + $0x1120] sm:$0xff] %vm4446, %v4406
    %4996 = vst.msk [vmem:[%s12 + $0x1128] sm:$0xff] %vm4446, %v4407
    %4997 = vst.msk [vmem:[%s12 + $0x1130] sm:$0xff] %vm4446, %v4408
    %4998 = vst.msk [vmem:[%s12 + $0x1138] sm:$0xff] %vm4446, %v4409
    %4999 = vst.msk [vmem:[%s12 + $0x1140] sm:$0xff] %vm4446, %v4410
    %5000 = vst.msk [vmem:[%s12 + $0x1148] sm:$0xff] %vm4446, %v4411
    %5001 = vst.msk [vmem:[%s12 + $0x1150] sm:$0xff] %vm4446, %v4412
    %5002 = vst.msk [vmem:[%s12 + $0x1158] sm:$0xff] %vm4446, %v4413
    %5003 = vst.msk [vmem:[%s12 + $0x1160] sm:$0xff] %vm4446, %v4414
    %5004 = vst.msk [vmem:[%s12 + $0x1168] sm:$0xff] %vm4446, %v4415
    %5005 = vst.msk [vmem:[%s12 + $0x1170] sm:$0xff] %vm4446, %v4416
    %5006 = vst.msk [vmem:[%s12 + $0x1178] sm:$0xff] %vm4446, %v4417
    %5007 = vst.msk [vmem:[%s12 + $0x1180] sm:$0xff] %vm4446, %v4418
    %5008 = vst.msk [vmem:[%s12 + $0x1188] sm:$0xff] %vm4446, %v4419
    %5009 = vst.msk [vmem:[%s12 + $0x1190] sm:$0xff] %vm4446, %v4420
    %5010 = vst.msk [vmem:[%s12 + $0x1198] sm:$0xff] %vm4446, %v4421
    %5011 = vst.msk [vmem:[%s12 + $0x11a0] sm:$0xff] %vm4446, %v4422
    %5012 = vst.msk [vmem:[%s12 + $0x11a8] sm:$0xff] %vm4446, %v4423
    %5013 = vst.msk [vmem:[%s12 + $0x11b0] sm:$0xff] %vm4446, %v4424
    %5014 = vst.msk [vmem:[%s12 + $0x11b8] sm:$0xff] %vm4446, %v4425
    %5015 = vst.msk [vmem:[%s12 + $0x11c0] sm:$0xff] %vm4446, %v4426
    %5016 = vst.msk [vmem:[%s12 + $0x11c8] sm:$0xff] %vm4446, %v4427
    %5017 = vst.msk [vmem:[%s12 + $0x11d0] sm:$0xff] %vm4446, %v4428
    %5018 = vst.msk [vmem:[%s12 + $0x11d8] sm:$0xff] %vm4446, %v4429
    %5019 = vst.msk [vmem:[%s12 + $0x11e0] sm:$0xff] %vm4446, %v4430
    %5020 = vst.msk [vmem:[%s12 + $0x11e8] sm:$0xff] %vm4446, %v4431
    %5021 = vst.msk [vmem:[%s12 + $0x11f0] sm:$0xff] %vm4446, %v4432
    %5022 = vst.msk [vmem:[%s12 + $0x11f8] sm:$0xff] %vm4446, %v4433
    %5023 = vst.msk [vmem:[%s12 + $0x1200] sm:$0xff] %vm4446, %v4434
    %5024 = vst.msk [vmem:[%s12 + $0x1208] sm:$0xff] %vm4446, %v4435
    %5025 = vst.msk [vmem:[%s12 + $0x1210] sm:$0xff] %vm4446, %v4436
    %5026 = vst.msk [vmem:[%s12 + $0x1218] sm:$0xff] %vm4446, %v4437
    %5027 = vst.msk [vmem:[%s12 + $0x1220] sm:$0xff] %vm4446, %v4438
    %5028 = vst.msk [vmem:[%s12 + $0x1228] sm:$0xff] %vm4446, %v4439
    %5029 = vst.msk [vmem:[%s12 + $0x1230] sm:$0xff] %vm4446, %v4440
    %5030 = vst.msk [vmem:[%s12 + $0x1238] sm:$0xff] %vm4446, %v4441
    %5031 = vst.msk [vmem:[%s12 + $0x1240] sm:$0xff] %vm4446, %v4442
    %5032 = vst.msk [vmem:[%s12 + $0x1248] sm:$0xff] %vm4446, %v4443
    %5033 = vst.msk [vmem:[%s12 + $0x1250] sm:$0xff] %vm4446, %v4444
    %5034 = vst.msk [vmem:[%s12 + $0x1258] sm:$0xff] %vm4446, %v4445
    %5071 = vrot.lane.b32.xlu0 %v4299, 32
    %v5072 = vpop.permute.xlu0 %5071
    %5073 = vrot.lane.b32.xlu0 %v4300, 32
    %v5074 = vpop.permute.xlu0 %5073
    %5075 = vrot.lane.b32.xlu0 %v4301, 32
    %v5076 = vpop.permute.xlu0 %5075
    %5077 = vrot.lane.b32.xlu0 %v4302, 32
    %v5078 = vpop.permute.xlu0 %5077
    %5079 = vrot.lane.b32.xlu0 %v4303, 32
    %v5080 = vpop.permute.xlu0 %5079
    %5081 = vrot.lane.b32.xlu0 %v4304, 32
    %v5082 = vpop.permute.xlu0 %5081
    %5083 = vrot.lane.b32.xlu0 %v4306, 32
    %v5084 = vpop.permute.xlu0 %5083
    %5085 = vrot.lane.b32.xlu0 %v4307, 32
    %v5086 = vpop.permute.xlu0 %5085
    %5087 = vrot.lane.b32.xlu0 %v4308, 32
    %v5088 = vpop.permute.xlu0 %5087
    %5089 = vrot.lane.b32.xlu0 %v4309, 32
    %v5090 = vpop.permute.xlu0 %5089
    %5091 = vrot.lane.b32.xlu0 %v4310, 32
    %v5092 = vpop.permute.xlu0 %5091
    %5093 = vrot.lane.b32.xlu0 %v4311, 32
    %v5094 = vpop.permute.xlu0 %5093
    %5095 = vrot.lane.b32.xlu0 %v4313, 32
    %v5096 = vpop.permute.xlu0 %5095
    %5097 = vrot.lane.b32.xlu0 %v4314, 32
    %v5098 = vpop.permute.xlu0 %5097
    %5099 = vrot.lane.b32.xlu0 %v4315, 32
    %v5100 = vpop.permute.xlu0 %5099
    %5101 = vrot.lane.b32.xlu0 %v4316, 32
    %v5102 = vpop.permute.xlu0 %5101
    %5103 = vrot.lane.b32.xlu0 %v4317, 32
    %v5104 = vpop.permute.xlu0 %5103
    %5105 = vrot.lane.b32.xlu0 %v4318, 32
    %v5106 = vpop.permute.xlu0 %5105
    %5107 = vrot.lane.b32.xlu0 %v4320, 32
    %v5108 = vpop.permute.xlu0 %5107
    %5109 = vrot.lane.b32.xlu0 %v4321, 32
    %v5110 = vpop.permute.xlu0 %5109
    %5111 = vrot.lane.b32.xlu0 %v4322, 32
    %v5112 = vpop.permute.xlu0 %5111
    %5113 = vrot.lane.b32.xlu0 %v4323, 32
    %v5114 = vpop.permute.xlu0 %5113
    %5115 = vrot.lane.b32.xlu0 %v4324, 32
    %v5116 = vpop.permute.xlu0 %5115
    %5117 = vrot.lane.b32.xlu0 %v4325, 32
    %v5118 = vpop.permute.xlu0 %5117
    %5119 = vrot.lane.b32.xlu0 %v4327, 32
    %v5120 = vpop.permute.xlu0 %5119
    %5121 = vrot.lane.b32.xlu0 %v4328, 32
    %v5122 = vpop.permute.xlu0 %5121
    %5123 = vrot.lane.b32.xlu0 %v4329, 32
    %v5124 = vpop.permute.xlu0 %5123
    %5125 = vrot.lane.b32.xlu0 %v4330, 32
    %v5126 = vpop.permute.xlu0 %5125
    %5127 = vrot.lane.b32.xlu0 %v4331, 32
    %v5128 = vpop.permute.xlu0 %5127
    %5129 = vrot.lane.b32.xlu0 %v4332, 32
    %v5130 = vpop.permute.xlu0 %5129
    %5131 = vrot.lane.b32.xlu0 %v4334, 32
    %v5132 = vpop.permute.xlu0 %5131
    %5133 = vrot.lane.b32.xlu0 %v4335, 32
    %v5134 = vpop.permute.xlu0 %5133
    %5135 = vrot.lane.b32.xlu0 %v4336, 32
    %v5136 = vpop.permute.xlu0 %5135
    %5137 = vrot.lane.b32.xlu0 %v4337, 32
    %v5138 = vpop.permute.xlu0 %5137
    %5139 = vrot.lane.b32.xlu0 %v4338, 32
    %v5140 = vpop.permute.xlu0 %5139
    %5141 = vrot.lane.b32.xlu0 %v4339, 32
    %v5142 = vpop.permute.xlu0 %5141
    %5215 = vrot.lane.b32.xlu0 %v4251, 64
    %v5216 = vpop.permute.xlu0 %5215
    %5217 = vrot.lane.b32.xlu0 %v4252, 64
    %v5218 = vpop.permute.xlu0 %5217
    %5219 = vrot.lane.b32.xlu0 %v4253, 64
    %v5220 = vpop.permute.xlu0 %5219
    %5221 = vrot.lane.b32.xlu0 %v4254, 64
    %v5222 = vpop.permute.xlu0 %5221
    %5223 = vrot.lane.b32.xlu0 %v4255, 64
    %v5224 = vpop.permute.xlu0 %5223
    %5225 = vrot.lane.b32.xlu0 %v4256, 64
    %v5226 = vpop.permute.xlu0 %5225
    %5227 = vrot.lane.b32.xlu0 %v4258, 64
    %v5228 = vpop.permute.xlu0 %5227
    %5229 = vrot.lane.b32.xlu0 %v4259, 64
    %v5230 = vpop.permute.xlu0 %5229
    %5231 = vrot.lane.b32.xlu0 %v4260, 64
    %v5232 = vpop.permute.xlu0 %5231
    %5233 = vrot.lane.b32.xlu0 %v4261, 64
    %v5234 = vpop.permute.xlu0 %5233
    %5235 = vrot.lane.b32.xlu0 %v4262, 64
    %v5236 = vpop.permute.xlu0 %5235
    %5237 = vrot.lane.b32.xlu0 %v4263, 64
    %v5238 = vpop.permute.xlu0 %5237
    %5239 = vrot.lane.b32.xlu0 %v4265, 64
    %v5240 = vpop.permute.xlu0 %5239
    %5241 = vrot.lane.b32.xlu0 %v4266, 64
    %v5242 = vpop.permute.xlu0 %5241
    %5243 = vrot.lane.b32.xlu0 %v4267, 64
    %v5244 = vpop.permute.xlu0 %5243
    %5245 = vrot.lane.b32.xlu0 %v4268, 64
    %v5246 = vpop.permute.xlu0 %5245
    %5247 = vrot.lane.b32.xlu0 %v4269, 64
    %v5248 = vpop.permute.xlu0 %5247
    %5249 = vrot.lane.b32.xlu0 %v4270, 64
    %v5250 = vpop.permute.xlu0 %5249
    %5251 = vrot.lane.b32.xlu0 %v4272, 64
    %v5252 = vpop.permute.xlu0 %5251
    %5253 = vrot.lane.b32.xlu0 %v4273, 64
    %v5254 = vpop.permute.xlu0 %5253
    %5255 = vrot.lane.b32.xlu0 %v4274, 64
    %v5256 = vpop.permute.xlu0 %5255
    %5257 = vrot.lane.b32.xlu0 %v4275, 64
    %v5258 = vpop.permute.xlu0 %5257
    %5259 = vrot.lane.b32.xlu0 %v4276, 64
    %v5260 = vpop.permute.xlu0 %5259
    %5261 = vrot.lane.b32.xlu0 %v4277, 64
    %v5262 = vpop.permute.xlu0 %5261
    %5263 = vrot.lane.b32.xlu0 %v4279, 64
    %v5264 = vpop.permute.xlu0 %5263
    %5265 = vrot.lane.b32.xlu0 %v4280, 64
    %v5266 = vpop.permute.xlu0 %5265
    %5267 = vrot.lane.b32.xlu0 %v4281, 64
    %v5268 = vpop.permute.xlu0 %5267
    %5269 = vrot.lane.b32.xlu0 %v4282, 64
    %v5270 = vpop.permute.xlu0 %5269
    %5271 = vrot.lane.b32.xlu0 %v4283, 64
    %v5272 = vpop.permute.xlu0 %5271
    %5273 = vrot.lane.b32.xlu0 %v4284, 64
    %v5274 = vpop.permute.xlu0 %5273
    %5275 = vrot.lane.b32.xlu0 %v4286, 64
    %v5276 = vpop.permute.xlu0 %5275
    %5277 = vrot.lane.b32.xlu0 %v4287, 64
    %v5278 = vpop.permute.xlu0 %5277
    %5279 = vrot.lane.b32.xlu0 %v4288, 64
    %v5280 = vpop.permute.xlu0 %5279
    %5281 = vrot.lane.b32.xlu0 %v4289, 64
    %v5282 = vpop.permute.xlu0 %5281
    %5283 = vrot.lane.b32.xlu0 %v4290, 64
    %v5284 = vpop.permute.xlu0 %5283
    %5285 = vrot.lane.b32.xlu0 %v4291, 64
    %v5286 = vpop.permute.xlu0 %5285
    %5359 = vrot.lane.b32.xlu0 %v4348, 96
    %v5360 = vpop.permute.xlu0 %5359
    %5361 = vrot.lane.b32.xlu0 %v4349, 96
    %v5362 = vpop.permute.xlu0 %5361
    %5363 = vrot.lane.b32.xlu0 %v4350, 96
    %v5364 = vpop.permute.xlu0 %5363
    %5365 = vrot.lane.b32.xlu0 %v4351, 96
    %v5366 = vpop.permute.xlu0 %5365
    %5367 = vrot.lane.b32.xlu0 %v4352, 96
    %v5368 = vpop.permute.xlu0 %5367
    %5369 = vrot.lane.b32.xlu0 %v4353, 96
    %v5370 = vpop.permute.xlu0 %5369
    %5371 = vrot.lane.b32.xlu0 %v4355, 96
    %v5372 = vpop.permute.xlu0 %5371
    %5373 = vrot.lane.b32.xlu0 %v4356, 96
    %v5374 = vpop.permute.xlu0 %5373
    %5375 = vrot.lane.b32.xlu0 %v4357, 96
    %v5376 = vpop.permute.xlu0 %5375
    %5377 = vrot.lane.b32.xlu0 %v4358, 96
    %v5378 = vpop.permute.xlu0 %5377
    %5379 = vrot.lane.b32.xlu0 %v4359, 96
    %v5380 = vpop.permute.xlu0 %5379
    %5381 = vrot.lane.b32.xlu0 %v4360, 96
    %v5382 = vpop.permute.xlu0 %5381
    %5383 = vrot.lane.b32.xlu0 %v4362, 96
    %v5384 = vpop.permute.xlu0 %5383
    %5385 = vrot.lane.b32.xlu0 %v4363, 96
    %v5386 = vpop.permute.xlu0 %5385
    %5387 = vrot.lane.b32.xlu0 %v4364, 96
    %v5388 = vpop.permute.xlu0 %5387
    %5389 = vrot.lane.b32.xlu0 %v4365, 96
    %v5390 = vpop.permute.xlu0 %5389
    %5391 = vrot.lane.b32.xlu0 %v4366, 96
    %v5392 = vpop.permute.xlu0 %5391
    %5393 = vrot.lane.b32.xlu0 %v4367, 96
    %v5394 = vpop.permute.xlu0 %5393
    %5395 = vrot.lane.b32.xlu0 %v4369, 96
    %v5396 = vpop.permute.xlu0 %5395
    %5397 = vrot.lane.b32.xlu0 %v4370, 96
    %v5398 = vpop.permute.xlu0 %5397
    %5399 = vrot.lane.b32.xlu0 %v4371, 96
    %v5400 = vpop.permute.xlu0 %5399
    %5401 = vrot.lane.b32.xlu0 %v4372, 96
    %v5402 = vpop.permute.xlu0 %5401
    %5403 = vrot.lane.b32.xlu0 %v4373, 96
    %v5404 = vpop.permute.xlu0 %5403
    %5405 = vrot.lane.b32.xlu0 %v4374, 96
    %v5406 = vpop.permute.xlu0 %5405
    %5407 = vrot.lane.b32.xlu0 %v4376, 96
    %v5408 = vpop.permute.xlu0 %5407
    %5409 = vrot.lane.b32.xlu0 %v4377, 96
    %v5410 = vpop.permute.xlu0 %5409
    %5411 = vrot.lane.b32.xlu0 %v4378, 96
    %v5412 = vpop.permute.xlu0 %5411
    %5413 = vrot.lane.b32.xlu0 %v4379, 96
    %v5414 = vpop.permute.xlu0 %5413
    %5415 = vrot.lane.b32.xlu0 %v4380, 96
    %v5416 = vpop.permute.xlu0 %5415
    %5417 = vrot.lane.b32.xlu0 %v4381, 96
    %v5418 = vpop.permute.xlu0 %5417
    %5419 = vrot.lane.b32.xlu0 %v4383, 96
    %v5420 = vpop.permute.xlu0 %5419
    %5421 = vrot.lane.b32.xlu0 %v4384, 96
    %v5422 = vpop.permute.xlu0 %5421
    %5423 = vrot.lane.b32.xlu0 %v4385, 96
    %v5424 = vpop.permute.xlu0 %5423
    %5425 = vrot.lane.b32.xlu0 %v4386, 96
    %v5426 = vpop.permute.xlu0 %5425
    %5427 = vrot.lane.b32.xlu0 %v4387, 96
    %v5428 = vpop.permute.xlu0 %5427
    %5429 = vrot.lane.b32.xlu0 %v4388, 96
    %v5430 = vpop.permute.xlu0 %5429
    %5473 = vrot.lane.b32.xlu0 %v4349, 32
    %v5474 = vpop.permute.xlu0 %5473
    %5475 = vrot.lane.b32.xlu0 %v4350, 32
    %v5476 = vpop.permute.xlu0 %5475
    %5477 = vrot.lane.b32.xlu0 %v4351, 32
    %v5478 = vpop.permute.xlu0 %5477
    %5479 = vrot.lane.b32.xlu0 %v4352, 32
    %v5480 = vpop.permute.xlu0 %5479
    %5481 = vrot.lane.b32.xlu0 %v4353, 32
    %v5482 = vpop.permute.xlu0 %5481
    %5483 = vrot.lane.b32.xlu0 %v4354, 32
    %v5484 = vpop.permute.xlu0 %5483
    %5485 = vrot.lane.b32.xlu0 %v4356, 32
    %v5486 = vpop.permute.xlu0 %5485
    %5487 = vrot.lane.b32.xlu0 %v4357, 32
    %v5488 = vpop.permute.xlu0 %5487
    %5489 = vrot.lane.b32.xlu0 %v4358, 32
    %v5490 = vpop.permute.xlu0 %5489
    %5491 = vrot.lane.b32.xlu0 %v4359, 32
    %v5492 = vpop.permute.xlu0 %5491
    %5493 = vrot.lane.b32.xlu0 %v4360, 32
    %v5494 = vpop.permute.xlu0 %5493
    %5495 = vrot.lane.b32.xlu0 %v4361, 32
    %v5496 = vpop.permute.xlu0 %5495
    %5497 = vrot.lane.b32.xlu0 %v4363, 32
    %v5498 = vpop.permute.xlu0 %5497
    %5499 = vrot.lane.b32.xlu0 %v4364, 32
    %v5500 = vpop.permute.xlu0 %5499
    %5501 = vrot.lane.b32.xlu0 %v4365, 32
    %v5502 = vpop.permute.xlu0 %5501
    %5503 = vrot.lane.b32.xlu0 %v4366, 32
    %v5504 = vpop.permute.xlu0 %5503
    %5505 = vrot.lane.b32.xlu0 %v4367, 32
    %v5506 = vpop.permute.xlu0 %5505
    %5507 = vrot.lane.b32.xlu0 %v4368, 32
    %v5508 = vpop.permute.xlu0 %5507
    %5509 = vrot.lane.b32.xlu0 %v4370, 32
    %v5510 = vpop.permute.xlu0 %5509
    %5511 = vrot.lane.b32.xlu0 %v4371, 32
    %v5512 = vpop.permute.xlu0 %5511
    %5513 = vrot.lane.b32.xlu0 %v4372, 32
    %v5514 = vpop.permute.xlu0 %5513
    %5515 = vrot.lane.b32.xlu0 %v4373, 32
    %v5516 = vpop.permute.xlu0 %5515
    %5517 = vrot.lane.b32.xlu0 %v4374, 32
    %v5518 = vpop.permute.xlu0 %5517
    %5519 = vrot.lane.b32.xlu0 %v4375, 32
    %v5520 = vpop.permute.xlu0 %5519
    %5521 = vrot.lane.b32.xlu0 %v4377, 32
    %v5522 = vpop.permute.xlu0 %5521
    %5523 = vrot.lane.b32.xlu0 %v4378, 32
    %v5524 = vpop.permute.xlu0 %5523
    %5525 = vrot.lane.b32.xlu0 %v4379, 32
    %v5526 = vpop.permute.xlu0 %5525
    %5527 = vrot.lane.b32.xlu0 %v4380, 32
    %v5528 = vpop.permute.xlu0 %5527
    %5529 = vrot.lane.b32.xlu0 %v4381, 32
    %v5530 = vpop.permute.xlu0 %5529
    %5531 = vrot.lane.b32.xlu0 %v4382, 32
    %v5532 = vpop.permute.xlu0 %5531
    %5533 = vrot.lane.b32.xlu0 %v4384, 32
    %v5534 = vpop.permute.xlu0 %5533
    %5535 = vrot.lane.b32.xlu0 %v4385, 32
    %v5536 = vpop.permute.xlu0 %5535
    %5537 = vrot.lane.b32.xlu0 %v4386, 32
    %v5538 = vpop.permute.xlu0 %5537
    %5539 = vrot.lane.b32.xlu0 %v4387, 32
    %v5540 = vpop.permute.xlu0 %5539
    %5541 = vrot.lane.b32.xlu0 %v4388, 32
    %v5542 = vpop.permute.xlu0 %5541
    %5543 = vrot.lane.b32.xlu0 %v4389, 32
    %v5544 = vpop.permute.xlu0 %5543
    %5592 = vrot.lane.b32.xlu0 %v4257, 64
    %v5593 = vpop.permute.xlu0 %5592
    %5594 = vrot.lane.b32.xlu0 %v4264, 64
    %v5595 = vpop.permute.xlu0 %5594
    %5596 = vrot.lane.b32.xlu0 %v4271, 64
    %v5597 = vpop.permute.xlu0 %5596
    %5598 = vrot.lane.b32.xlu0 %v4278, 64
    %v5599 = vpop.permute.xlu0 %5598
    %5600 = vrot.lane.b32.xlu0 %v4285, 64
    %v5601 = vpop.permute.xlu0 %5600
    %5602 = vrot.lane.b32.xlu0 %v4292, 64
    %v5603 = vpop.permute.xlu0 %5602
    %5604 = vrot.lane.b32.xlu0 %v4293, 64
    %v5605 = vpop.permute.xlu0 %5604
    %5606 = vrot.lane.b32.xlu0 %v4294, 64
    %v5607 = vpop.permute.xlu0 %5606
    %5608 = vrot.lane.b32.xlu0 %v4295, 64
    %v5609 = vpop.permute.xlu0 %5608
    %5610 = vrot.lane.b32.xlu0 %v4296, 64
    %v5611 = vpop.permute.xlu0 %5610
    %5612 = vrot.lane.b32.xlu0 %v4297, 64
    %v5613 = vpop.permute.xlu0 %5612
    %5631 = vrot.lane.b32.xlu0 %v4306, 96
    %v5632 = vpop.permute.xlu0 %5631
    %5633 = vrot.lane.b32.xlu0 %v4307, 96
    %v5634 = vpop.permute.xlu0 %5633
    %5635 = vrot.lane.b32.xlu0 %v4308, 96
    %v5636 = vpop.permute.xlu0 %5635
    %5637 = vrot.lane.b32.xlu0 %v4309, 96
    %v5638 = vpop.permute.xlu0 %5637
    %5639 = vrot.lane.b32.xlu0 %v4310, 96
    %v5640 = vpop.permute.xlu0 %5639
    %5641 = vrot.lane.b32.xlu0 %v4311, 96
    %v5642 = vpop.permute.xlu0 %5641
    %5643 = vrot.lane.b32.xlu0 %v4313, 96
    %v5644 = vpop.permute.xlu0 %5643
    %5645 = vrot.lane.b32.xlu0 %v4314, 96
    %v5646 = vpop.permute.xlu0 %5645
    %5647 = vrot.lane.b32.xlu0 %v4315, 96
    %v5648 = vpop.permute.xlu0 %5647
    %5649 = vrot.lane.b32.xlu0 %v4316, 96
    %v5650 = vpop.permute.xlu0 %5649
    %5651 = vrot.lane.b32.xlu0 %v4317, 96
    %v5652 = vpop.permute.xlu0 %5651
    %5653 = vrot.lane.b32.xlu0 %v4318, 96
    %v5654 = vpop.permute.xlu0 %5653
    %5655 = vrot.lane.b32.xlu0 %v4320, 96
    %v5656 = vpop.permute.xlu0 %5655
    %5657 = vrot.lane.b32.xlu0 %v4321, 96
    %v5658 = vpop.permute.xlu0 %5657
    %5659 = vrot.lane.b32.xlu0 %v4322, 96
    %v5660 = vpop.permute.xlu0 %5659
    %5661 = vrot.lane.b32.xlu0 %v4323, 96
    %v5662 = vpop.permute.xlu0 %5661
    %5663 = vrot.lane.b32.xlu0 %v4324, 96
    %v5664 = vpop.permute.xlu0 %5663
    %5665 = vrot.lane.b32.xlu0 %v4325, 96
    %v5666 = vpop.permute.xlu0 %5665
    %5667 = vrot.lane.b32.xlu0 %v4327, 96
    %v5668 = vpop.permute.xlu0 %5667
    %5669 = vrot.lane.b32.xlu0 %v4328, 96
    %v5670 = vpop.permute.xlu0 %5669
    %5671 = vrot.lane.b32.xlu0 %v4329, 96
    %v5672 = vpop.permute.xlu0 %5671
    %5673 = vrot.lane.b32.xlu0 %v4330, 96
    %v5674 = vpop.permute.xlu0 %5673
    %5675 = vrot.lane.b32.xlu0 %v4331, 96
    %v5676 = vpop.permute.xlu0 %5675
    %5677 = vrot.lane.b32.xlu0 %v4332, 96
    %v5678 = vpop.permute.xlu0 %5677
    %5679 = vrot.lane.b32.xlu0 %v4334, 96
    %v5680 = vpop.permute.xlu0 %5679
    %5681 = vrot.lane.b32.xlu0 %v4335, 96
    %v5682 = vpop.permute.xlu0 %5681
    %5683 = vrot.lane.b32.xlu0 %v4336, 96
    %v5684 = vpop.permute.xlu0 %5683
    %5685 = vrot.lane.b32.xlu0 %v4337, 96
    %v5686 = vpop.permute.xlu0 %5685
    %5687 = vrot.lane.b32.xlu0 %v4338, 96
    %v5688 = vpop.permute.xlu0 %5687
    %5689 = vrot.lane.b32.xlu0 %v4339, 96
    %v5690 = vpop.permute.xlu0 %5689
    %5691 = vrot.lane.b32.xlu0 %v4341, 96
    %v5692 = vpop.permute.xlu0 %5691
    %5693 = vrot.lane.b32.xlu0 %v4342, 96
    %v5694 = vpop.permute.xlu0 %5693
    %5695 = vrot.lane.b32.xlu0 %v4343, 96
    %v5696 = vpop.permute.xlu0 %5695
    %5697 = vrot.lane.b32.xlu0 %v4344, 96
    %v5698 = vpop.permute.xlu0 %5697
    %5699 = vrot.lane.b32.xlu0 %v4345, 96
    %v5700 = vpop.permute.xlu0 %5699
    %5701 = vrot.lane.b32.xlu0 %v4346, 96
    %v5702 = vpop.permute.xlu0 %5701
    %v5739 = vsel %vm4446, %v4250, %v5072
    %v5740 = vsel %vm4446, %v4251, %v5074
    %v5741 = vsel %vm4446, %v4252, %v5076
    %v5742 = vsel %vm4446, %v4253, %v5078
    %v5743 = vsel %vm4446, %v4254, %v5080
    %v5744 = vsel %vm4446, %v4255, %v5082
    %v5745 = vsel %vm4446, %v4257, %v5084
    %v5746 = vsel %vm4446, %v4258, %v5086
    %v5747 = vsel %vm4446, %v4259, %v5088
    %v5748 = vsel %vm4446, %v4260, %v5090
    %v5749 = vsel %vm4446, %v4261, %v5092
    %v5750 = vsel %vm4446, %v4262, %v5094
    %v5751 = vsel %vm4446, %v4264, %v5096
    %v5752 = vsel %vm4446, %v4265, %v5098
    %v5753 = vsel %vm4446, %v4266, %v5100
    %v5754 = vsel %vm4446, %v4267, %v5102
    %v5755 = vsel %vm4446, %v4268, %v5104
    %v5756 = vsel %vm4446, %v4269, %v5106
    %v5757 = vsel %vm4446, %v4271, %v5108
    %v5758 = vsel %vm4446, %v4272, %v5110
    %v5759 = vsel %vm4446, %v4273, %v5112
    %v5760 = vsel %vm4446, %v4274, %v5114
    %v5761 = vsel %vm4446, %v4275, %v5116
    %v5762 = vsel %vm4446, %v4276, %v5118
    %v5763 = vsel %vm4446, %v4278, %v5120
    %v5764 = vsel %vm4446, %v4279, %v5122
    %v5765 = vsel %vm4446, %v4280, %v5124
    %v5766 = vsel %vm4446, %v4281, %v5126
    %v5767 = vsel %vm4446, %v4282, %v5128
    %v5768 = vsel %vm4446, %v4283, %v5130
    %v5769 = vsel %vm4446, %v4285, %v5132
    %v5770 = vsel %vm4446, %v4286, %v5134
    %v5771 = vsel %vm4446, %v4287, %v5136
    %v5772 = vsel %vm4446, %v4288, %v5138
    %v5773 = vsel %vm4446, %v4289, %v5140
    %v5774 = vsel %vm4446, %v4290, %v5142
    %vm5775 = vcmask 523264
    %v5776 = vsel %vm5775, %v5739, %v5216
    %v5777 = vsel %vm5775, %v5740, %v5218
    %v5778 = vsel %vm5775, %v5741, %v5220
    %v5779 = vsel %vm5775, %v5742, %v5222
    %v5780 = vsel %vm5775, %v5743, %v5224
    %v5781 = vsel %vm5775, %v5744, %v5226
    %v5782 = vsel %vm5775, %v5745, %v5228
    %v5783 = vsel %vm5775, %v5746, %v5230
    %v5784 = vsel %vm5775, %v5747, %v5232
    %v5785 = vsel %vm5775, %v5748, %v5234
    %v5786 = vsel %vm5775, %v5749, %v5236
    %v5787 = vsel %vm5775, %v5750, %v5238
    %v5788 = vsel %vm5775, %v5751, %v5240
    %v5789 = vsel %vm5775, %v5752, %v5242
    %v5790 = vsel %vm5775, %v5753, %v5244
    %v5791 = vsel %vm5775, %v5754, %v5246
    %v5792 = vsel %vm5775, %v5755, %v5248
    %v5793 = vsel %vm5775, %v5756, %v5250
    %v5794 = vsel %vm5775, %v5757, %v5252
    %v5795 = vsel %vm5775, %v5758, %v5254
    %v5796 = vsel %vm5775, %v5759, %v5256
    %v5797 = vsel %vm5775, %v5760, %v5258
    %v5798 = vsel %vm5775, %v5761, %v5260
    %v5799 = vsel %vm5775, %v5762, %v5262
    %v5800 = vsel %vm5775, %v5763, %v5264
    %v5801 = vsel %vm5775, %v5764, %v5266
    %v5802 = vsel %vm5775, %v5765, %v5268
    %v5803 = vsel %vm5775, %v5766, %v5270
    %v5804 = vsel %vm5775, %v5767, %v5272
    %v5805 = vsel %vm5775, %v5768, %v5274
    %v5806 = vsel %vm5775, %v5769, %v5276
    %v5807 = vsel %vm5775, %v5770, %v5278
    %v5808 = vsel %vm5775, %v5771, %v5280
    %v5809 = vsel %vm5775, %v5772, %v5282
    %v5810 = vsel %vm5775, %v5773, %v5284
    %v5811 = vsel %vm5775, %v5774, %v5286
    %vm5812 = vcmask 785408
    %v5813 = vsel %vm5812, %v5776, %v5360
    %v5814 = vsel %vm5812, %v5777, %v5362
    %v5815 = vsel %vm5812, %v5778, %v5364
    %v5816 = vsel %vm5812, %v5779, %v5366
    %v5817 = vsel %vm5812, %v5780, %v5368
    %v5818 = vsel %vm5812, %v5781, %v5370
    %v5819 = vsel %vm5812, %v5782, %v5372
    %v5820 = vsel %vm5812, %v5783, %v5374
    %v5821 = vsel %vm5812, %v5784, %v5376
    %v5822 = vsel %vm5812, %v5785, %v5378
    %v5823 = vsel %vm5812, %v5786, %v5380
    %v5824 = vsel %vm5812, %v5787, %v5382
    %v5825 = vsel %vm5812, %v5788, %v5384
    %v5826 = vsel %vm5812, %v5789, %v5386
    %v5827 = vsel %vm5812, %v5790, %v5388
    %v5828 = vsel %vm5812, %v5791, %v5390
    %v5829 = vsel %vm5812, %v5792, %v5392
    %v5830 = vsel %vm5812, %v5793, %v5394
    %v5831 = vsel %vm5812, %v5794, %v5396
    %v5832 = vsel %vm5812, %v5795, %v5398
    %v5833 = vsel %vm5812, %v5796, %v5400
    %v5834 = vsel %vm5812, %v5797, %v5402
    %v5835 = vsel %vm5812, %v5798, %v5404
    %v5836 = vsel %vm5812, %v5799, %v5406
    %v5837 = vsel %vm5812, %v5800, %v5408
    %v5838 = vsel %vm5812, %v5801, %v5410
    %v5839 = vsel %vm5812, %v5802, %v5412
    %v5840 = vsel %vm5812, %v5803, %v5414
    %v5841 = vsel %vm5812, %v5804, %v5416
    %v5842 = vsel %vm5812, %v5805, %v5418
    %v5843 = vsel %vm5812, %v5806, %v5420
    %v5844 = vsel %vm5812, %v5807, %v5422
    %v5845 = vsel %vm5812, %v5808, %v5424
    %v5846 = vsel %vm5812, %v5809, %v5426
    %v5847 = vsel %vm5812, %v5810, %v5428
    %v5848 = vsel %vm5812, %v5811, %v5430
    %v5849 = vsel %vm4446, %v4397, %v5474
    %v5850 = vsel %vm4446, %v4398, %v5476
    %v5851 = vsel %vm4446, %v4399, %v5478
    %v5852 = vsel %vm4446, %v4400, %v5480
    %v5853 = vsel %vm4446, %v4401, %v5482
    %v5854 = vsel %vm4446, %v4402, %v5484
    %v5855 = vsel %vm4446, %v4404, %v5486
    %v5856 = vsel %vm4446, %v4405, %v5488
    %v5857 = vsel %vm4446, %v4406, %v5490
    %v5858 = vsel %vm4446, %v4407, %v5492
    %v5859 = vsel %vm4446, %v4408, %v5494
    %v5860 = vsel %vm4446, %v4409, %v5496
    %v5861 = vsel %vm4446, %v4411, %v5498
    %v5862 = vsel %vm4446, %v4412, %v5500
    %v5863 = vsel %vm4446, %v4413, %v5502
    %v5864 = vsel %vm4446, %v4414, %v5504
    %v5865 = vsel %vm4446, %v4415, %v5506
    %v5866 = vsel %vm4446, %v4416, %v5508
    %v5867 = vsel %vm4446, %v4418, %v5510
    %v5868 = vsel %vm4446, %v4419, %v5512
    %v5869 = vsel %vm4446, %v4420, %v5514
    %v5870 = vsel %vm4446, %v4421, %v5516
    %v5871 = vsel %vm4446, %v4422, %v5518
    %v5872 = vsel %vm4446, %v4423, %v5520
    %v5873 = vsel %vm4446, %v4425, %v5522
    %v5874 = vsel %vm4446, %v4426, %v5524
    %v5875 = vsel %vm4446, %v4427, %v5526
    %v5876 = vsel %vm4446, %v4428, %v5528
    %v5877 = vsel %vm4446, %v4429, %v5530
    %v5878 = vsel %vm4446, %v4430, %v5532
    %v5879 = vsel %vm4446, %v4432, %v5534
    %v5880 = vsel %vm4446, %v4433, %v5536
    %v5881 = vsel %vm4446, %v4434, %v5538
    %v5882 = vsel %vm4446, %v4435, %v5540
    %v5883 = vsel %vm4446, %v4436, %v5542
    %v5884 = vsel %vm4446, %v4437, %v5544
    %v5885 = vsel %vm5775, %v5849, %v5593
    %v5886 = vsel %vm5775, %v5850, %v5228
    %v5887 = vsel %vm5775, %v5851, %v5230
    %v5888 = vsel %vm5775, %v5852, %v5232
    %v5889 = vsel %vm5775, %v5853, %v5234
    %v5890 = vsel %vm5775, %v5854, %v5236
    %v5891 = vsel %vm5775, %v5855, %v5595
    %v5892 = vsel %vm5775, %v5856, %v5240
    %v5893 = vsel %vm5775, %v5857, %v5242
    %v5894 = vsel %vm5775, %v5858, %v5244
    %v5895 = vsel %vm5775, %v5859, %v5246
    %v5896 = vsel %vm5775, %v5860, %v5248
    %v5897 = vsel %vm5775, %v5861, %v5597
    %v5898 = vsel %vm5775, %v5862, %v5252
    %v5899 = vsel %vm5775, %v5863, %v5254
    %v5900 = vsel %vm5775, %v5864, %v5256
    %v5901 = vsel %vm5775, %v5865, %v5258
    %v5902 = vsel %vm5775, %v5866, %v5260
    %v5903 = vsel %vm5775, %v5867, %v5599
    %v5904 = vsel %vm5775, %v5868, %v5264
    %v5905 = vsel %vm5775, %v5869, %v5266
    %v5906 = vsel %vm5775, %v5870, %v5268
    %v5907 = vsel %vm5775, %v5871, %v5270
    %v5908 = vsel %vm5775, %v5872, %v5272
    %v5909 = vsel %vm5775, %v5873, %v5601
    %v5910 = vsel %vm5775, %v5874, %v5276
    %v5911 = vsel %vm5775, %v5875, %v5278
    %v5912 = vsel %vm5775, %v5876, %v5280
    %v5913 = vsel %vm5775, %v5877, %v5282
    %v5914 = vsel %vm5775, %v5878, %v5284
    %v5915 = vsel %vm5775, %v5879, %v5603
    %v5916 = vsel %vm5775, %v5880, %v5605
    %v5917 = vsel %vm5775, %v5881, %v5607
    %v5918 = vsel %vm5775, %v5882, %v5609
    %v5919 = vsel %vm5775, %v5883, %v5611
    %v5920 = vsel %vm5775, %v5884, %v5613
    %v5921 = vsel %vm5812, %v5885, %v5632
    %v5922 = vsel %vm5812, %v5886, %v5634
    %v5923 = vsel %vm5812, %v5887, %v5636
    %v5924 = vsel %vm5812, %v5888, %v5638
    %v5925 = vsel %vm5812, %v5889, %v5640
    %v5926 = vsel %vm5812, %v5890, %v5642
    %v5927 = vsel %vm5812, %v5891, %v5644
    %v5928 = vsel %vm5812, %v5892, %v5646
    %v5929 = vsel %vm5812, %v5893, %v5648
    %v5930 = vsel %vm5812, %v5894, %v5650
    %v5931 = vsel %vm5812, %v5895, %v5652
    %v5932 = vsel %vm5812, %v5896, %v5654
    %v5933 = vsel %vm5812, %v5897, %v5656
    %v5934 = vsel %vm5812, %v5898, %v5658
    %v5935 = vsel %vm5812, %v5899, %v5660
    %v5936 = vsel %vm5812, %v5900, %v5662
    %v5937 = vsel %vm5812, %v5901, %v5664
    %v5938 = vsel %vm5812, %v5902, %v5666
    %v5939 = vsel %vm5812, %v5903, %v5668
    %v5940 = vsel %vm5812, %v5904, %v5670
    %v5941 = vsel %vm5812, %v5905, %v5672
    %v5942 = vsel %vm5812, %v5906, %v5674
    %v5943 = vsel %vm5812, %v5907, %v5676
    %v5944 = vsel %vm5812, %v5908, %v5678
    %v5945 = vsel %vm5812, %v5909, %v5680
    %v5946 = vsel %vm5812, %v5910, %v5682
    %v5947 = vsel %vm5812, %v5911, %v5684
    %v5948 = vsel %vm5812, %v5912, %v5686
    %v5949 = vsel %vm5812, %v5913, %v5688
    %v5950 = vsel %vm5812, %v5914, %v5690
    %v5951 = vsel %vm5812, %v5915, %v5692
    %v5952 = vsel %vm5812, %v5916, %v5694
    %v5953 = vsel %vm5812, %v5917, %v5696
    %v5954 = vsel %vm5812, %v5918, %v5698
    %v5955 = vsel %vm5812, %v5919, %v5700
    %v5956 = vsel %vm5812, %v5920, %v5702
    %v5957 = vpack.c.bf16 %v5814, %v5813
    %v5958 = vpack.c.bf16 %v5922, %v5921
    %v5959 = vpack.c.bf16 %v4259, %v4258
    %v5960 = vpack.c.bf16 %v5816, %v5815
    %v5961 = vpack.c.bf16 %v5924, %v5923
    %v5962 = vpack.c.bf16 %v4261, %v4260
    %v5963 = vpack.c.bf16 %v5818, %v5817
    %v5964 = vpack.c.bf16 %v5926, %v5925
    %v5965 = vpack.c.bf16 %v4263, %v4262
    %v5966 = vpack.c.bf16 %v5820, %v5819
    %v5967 = vpack.c.bf16 %v5928, %v5927
    %v5968 = vpack.c.bf16 %v4266, %v4265
    %v5969 = vpack.c.bf16 %v5822, %v5821
    %v5970 = vpack.c.bf16 %v5930, %v5929
    %v5971 = vpack.c.bf16 %v4268, %v4267
    %v5972 = vpack.c.bf16 %v5824, %v5823
    %v5973 = vpack.c.bf16 %v5932, %v5931
    %v5974 = vpack.c.bf16 %v4270, %v4269
    %v5975 = vpack.c.bf16 %v5826, %v5825
    %v5976 = vpack.c.bf16 %v5934, %v5933
    %v5977 = vpack.c.bf16 %v4273, %v4272
    %v5978 = vpack.c.bf16 %v5828, %v5827
    %v5979 = vpack.c.bf16 %v5936, %v5935
    %v5980 = vpack.c.bf16 %v4275, %v4274
    %v5981 = vpack.c.bf16 %v5830, %v5829
    %v5982 = vpack.c.bf16 %v5938, %v5937
    %v5983 = vpack.c.bf16 %v4277, %v4276
    %v5984 = vpack.c.bf16 %v5832, %v5831
    %v5985 = vpack.c.bf16 %v5940, %v5939
    %v5986 = vpack.c.bf16 %v4280, %v4279
    %v5987 = vpack.c.bf16 %v5834, %v5833
    %v5988 = vpack.c.bf16 %v5942, %v5941
    %v5989 = vpack.c.bf16 %v4282, %v4281
    %v5990 = vpack.c.bf16 %v5836, %v5835
    %v5991 = vpack.c.bf16 %v5944, %v5943
    %v5992 = vpack.c.bf16 %v4284, %v4283
    %v5993 = vpack.c.bf16 %v5838, %v5837
    %v5994 = vpack.c.bf16 %v5946, %v5945
    %v5995 = vpack.c.bf16 %v4287, %v4286
    %v5996 = vpack.c.bf16 %v5840, %v5839
    %v5997 = vpack.c.bf16 %v5948, %v5947
    %v5998 = vpack.c.bf16 %v4289, %v4288
    %v5999 = vpack.c.bf16 %v5842, %v5841
    %v6000 = vpack.c.bf16 %v5950, %v5949
    %v6001 = vpack.c.bf16 %v4291, %v4290
    %v6002 = vpack.c.bf16 %v5844, %v5843
    %v6003 = vpack.c.bf16 %v5952, %v5951
    %v6004 = vpack.c.bf16 %v4294, %v4293
    %v6005 = vpack.c.bf16 %v5846, %v5845
    %v6006 = vpack.c.bf16 %v5954, %v5953
    %v6007 = vpack.c.bf16 %v4296, %v4295
    %v6008 = vpack.c.bf16 %v5848, %v5847
    %v6009 = vpack.c.bf16 %v5956, %v5955
    %v6010 = vpack.c.bf16 %v4298, %v4297
    %v6011 = vld [vmem:[%s6] sm:$0xf]
    %v6012 = vld [vmem:[%s6 + $0x4] sm:$0xf]
    %v6013 = vld [vmem:[%s6 + $0x8] sm:$0xf]
    %v6014 = vld [vmem:[%s6 + $0xc] sm:$0xf]
    %v6015 = vld [vmem:[%s6 + $0x10] sm:$0xf]
    %v6016 = vld [vmem:[%s6 + $0x14] sm:$0xf]
    %v6017 = vld [vmem:[%s6 + $0x18] sm:$0xf]
    %v6018 = vld [vmem:[%s6 + $0x1c] sm:$0xf]
    %v6019 = vld [vmem:[%s6 + $0x20] sm:$0xf]
    %v6020 = vld [vmem:[%s6 + $0x24] sm:$0xf]
    %v6021 = vld [vmem:[%s6 + $0x28] sm:$0xf]
    %v6022 = vld [vmem:[%s6 + $0x2c] sm:$0xf]
    %v6023 = vld [vmem:[%s6 + $0x30] sm:$0xf]
    %v6024 = vld [vmem:[%s6 + $0x34] sm:$0xf]
    %v6025 = vld [vmem:[%s6 + $0x38] sm:$0xf]
    %v6026 = vld [vmem:[%s6 + $0x3c] sm:$0xf]
    %v6027 = vld [vmem:[%s6 + $0x40] sm:$0xf]
    %v6028 = vld [vmem:[%s6 + $0x44] sm:$0xf]
    %v6029 = vld [vmem:[%s6 + $0x48] sm:$0xf]
    %v6030 = vld [vmem:[%s6 + $0x4c] sm:$0xf]
    %v6031 = vld [vmem:[%s6 + $0x50] sm:$0xf]
    %v6032 = vld [vmem:[%s6 + $0x54] sm:$0xf]
    %v6033 = vld [vmem:[%s6 + $0x58] sm:$0xf]
    %v6034 = vld [vmem:[%s6 + $0x5c] sm:$0xf]
    %v6035 = vld [vmem:[%s6 + $0x60] sm:$0xf]
    %v6036 = vld [vmem:[%s6 + $0x64] sm:$0xf]
    %v6037 = vld [vmem:[%s6 + $0x68] sm:$0xf]
    %v6038 = vld [vmem:[%s6 + $0x6c] sm:$0xf]
    %v6039 = vld [vmem:[%s6 + $0x70] sm:$0xf]
    %v6040 = vld [vmem:[%s6 + $0x74] sm:$0xf]
    %v6041 = vld [vmem:[%s6 + $0x78] sm:$0xf]
    %v6042 = vld [vmem:[%s6 + $0x7c] sm:$0xf]
    %v6043 = vld [vmem:[%s6 + $0x80] sm:$0xf]
    %v6044 = vld [vmem:[%s6 + $0x84] sm:$0xf]
    %v6045 = vld [vmem:[%s6 + $0x88] sm:$0xf]
    %v6046 = vld [vmem:[%s6 + $0x8c] sm:$0xf]
    %v6083 = vunpack.c.l.b16 %v6011
    %v6084 = vunpack.c.l.b16 %v6012
    %v6085 = vunpack.c.l.b16 %v6013
    %v6086 = vunpack.c.l.b16 %v6014
    %v6087 = vunpack.c.l.b16 %v6015
    %v6088 = vunpack.c.l.b16 %v6016
    %v6089 = vunpack.c.l.b16 %v6017
    %v6090 = vunpack.c.l.b16 %v6018
    %v6091 = vunpack.c.l.b16 %v6019
    %v6092 = vunpack.c.l.b16 %v6020
    %v6093 = vunpack.c.l.b16 %v6021
    %v6094 = vunpack.c.l.b16 %v6022
    %v6095 = vunpack.c.l.b16 %v6023
    %v6096 = vunpack.c.l.b16 %v6024
    %v6097 = vunpack.c.l.b16 %v6025
    %v6098 = vunpack.c.l.b16 %v6026
    %v6099 = vunpack.c.l.b16 %v6027
    %v6100 = vunpack.c.l.b16 %v6028
    %v6101 = vunpack.c.l.b16 %v6029
    %v6102 = vunpack.c.l.b16 %v6030
    %v6103 = vunpack.c.l.b16 %v6031
    %v6104 = vunpack.c.l.b16 %v6032
    %v6105 = vunpack.c.l.b16 %v6033
    %v6106 = vunpack.c.l.b16 %v6034
    %v6107 = vunpack.c.l.b16 %v6035
    %v6108 = vunpack.c.l.b16 %v6036
    %v6109 = vunpack.c.l.b16 %v6037
    %v6110 = vunpack.c.l.b16 %v6038
    %v6111 = vunpack.c.l.b16 %v6039
    %v6112 = vunpack.c.l.b16 %v6040
    %v6113 = vunpack.c.l.b16 %v6041
    %v6114 = vunpack.c.l.b16 %v6042
    %v6115 = vunpack.c.l.b16 %v6043
    %v6116 = vunpack.c.l.b16 %v6044
    %v6117 = vunpack.c.l.b16 %v6045
    %v6118 = vunpack.c.l.b16 %v6046
    %v6119 = vpack.c.b16 %v6084, %v6083
    %v6120 = vpack.c.b16 %v6086, %v6085
    %v6121 = vpack.c.b16 %v6088, %v6087
    %v6122 = vpack.c.b16 %v6090, %v6089
    %v6123 = vpack.c.b16 %v6092, %v6091
    %v6124 = vpack.c.b16 %v6094, %v6093
    %v6125 = vpack.c.b16 %v6096, %v6095
    %v6126 = vpack.c.b16 %v6098, %v6097
    %v6127 = vpack.c.b16 %v6100, %v6099
    %v6128 = vpack.c.b16 %v6102, %v6101
    %v6129 = vpack.c.b16 %v6104, %v6103
    %v6130 = vpack.c.b16 %v6106, %v6105
    %v6131 = vpack.c.b16 %v6108, %v6107
    %v6132 = vpack.c.b16 %v6110, %v6109
    %v6133 = vpack.c.b16 %v6112, %v6111
    %v6134 = vpack.c.b16 %v6114, %v6113
    %v6135 = vpack.c.b16 %v6116, %v6115
    %v6136 = vpack.c.b16 %v6118, %v6117
    %v6156 = vsel %vm4446, %v5959, 0
    %v6159 = vsel %vm4446, %v5962, 0
    %v6162 = vsel %vm4446, %v5965, 0
    %v6165 = vsel %vm4446, %v5968, 0
    %v6168 = vsel %vm4446, %v5971, 0
    %v6171 = vsel %vm4446, %v5974, 0
    %v6174 = vsel %vm4446, %v5977, 0
    %v6177 = vsel %vm4446, %v5980, 0
    %v6180 = vsel %vm4446, %v5983, 0
    %v6183 = vsel %vm4446, %v5986, 0
    %v6186 = vsel %vm4446, %v5989, 0
    %v6189 = vsel %vm4446, %v5992, 0
    %v6192 = vsel %vm4446, %v5995, 0
    %v6195 = vsel %vm4446, %v5998, 0
    %v6198 = vsel %vm4446, %v6001, 0
    %v6201 = vsel %vm4446, %v6004, 0
    %v6204 = vsel %vm4446, %v6007, 0
    %v6207 = vsel %vm4446, %v6010, 0
    %6209 = vmatprep.subr.bf16.mxu0 0
    %6210 = vmatpush1.bf16.msra.mxu0 %v6119
    %6211 = vmatprep.subr.bf16.mxu0 0
    %6212 = vmatpush1.bf16.msra.mxu0 %v6120
    %6213 = vmatprep.subr.bf16.mxu0 0
    %6214 = vmatpush1.bf16.msra.mxu0 %v6121
    %6215 = vmatprep.subr.bf16.mxu0 0
    %6216 = vmatpush1.bf16.msra.mxu0 %v6122
    %6217 = vmatprep.subr.bf16.mxu0 0
    %6218 = vmatpush1.bf16.msra.mxu0 %v6123
    %6219 = vmatprep.subr.bf16.mxu0 0
    %6220 = vmatpush1.bf16.msra.mxu0 %v6124
    %6221 = vmatprep.subr.bf16.mxu0 0
    %6222 = vmatpush1.bf16.msra.mxu0 %v6125
    %6223 = vmatprep.subr.bf16.mxu0 0
    %6224 = vmatpush1.bf16.msra.mxu0 %v6126
    %6225 = vmatprep.subr.bf16.mxu0 0
    %6226 = vmatpush1.bf16.msra.mxu0 %v6127
    %6227 = vmatprep.subr.bf16.mxu0 0
    %6228 = vmatpush1.bf16.msra.mxu0 %v6128
    %6229 = vmatprep.subr.bf16.mxu0 0
    %6230 = vmatpush1.bf16.msra.mxu0 %v6129
    %6231 = vmatprep.subr.bf16.mxu0 0
    %6232 = vmatpush1.bf16.msra.mxu0 %v6130
    %6233 = vmatprep.subr.bf16.mxu0 0
    %6234 = vmatpush1.bf16.msra.mxu0 %v6131
    %6235 = vmatprep.subr.bf16.mxu0 0
    %6236 = vmatpush1.bf16.msra.mxu0 %v6132
    %6237 = vmatprep.subr.bf16.mxu0 0
    %6238 = vmatpush1.bf16.msra.mxu0 %v6133
    %6239 = vmatprep.subr.bf16.mxu0 0
    %6240 = vmatpush1.bf16.msra.mxu0 %v6134
    %6241 = vmatprep.mubr.bf16.mxu0 %v5958
    %6242 = vmatmul.mubr.bf16.gmra.mrb[0].mxu0 %v5957
    %v6243 = vpop.f32.mrb[0].mxu0
    %v6244 = vadd.f32 0.0, %v6243
    %v6245 = vpop.f32.mrb[0].mxu0
    %v6246 = vpop.f32.mrb[0].mxu0
    %v6247 = vadd.f32 0.0, %v6246
    %v6248 = vpop.f32.mrb[0].mxu0
    %6249 = vmatprep.mubr.bf16.mxu0 %v5961
    %6250 = vmatmul.mubr.bf16.gmra.mrb[0].mxu0 %v5960
    %v6251 = vpop.f32.mrb[0].mxu0
    %v6252 = vadd.f32 0.0, %v6251
    %v6253 = vpop.f32.mrb[0].mxu0
    %v6254 = vpop.f32.mrb[0].mxu0
    %v6255 = vadd.f32 0.0, %v6254
    %v6256 = vpop.f32.mrb[0].mxu0
    %6257 = vmatprep.mubr.bf16.mxu0 %v5964
    %6258 = vmatmul.mubr.bf16.gmra.mrb[0].mxu0 %v5963
    %v6259 = vpop.f32.mrb[0].mxu0
    %v6260 = vadd.f32 0.0, %v6259
    %v6261 = vpop.f32.mrb[0].mxu0
    %v6262 = vpop.f32.mrb[0].mxu0
    %v6263 = vadd.f32 0.0, %v6262
    %v6264 = vpop.f32.mrb[0].mxu0
    %6265 = vmatprep.mubr.bf16.mxu0 %v5967
    %6266 = vmatmul.mubr.bf16.gmra.mrb[0].mxu0 %v5966
    %v6267 = vpop.f32.mrb[0].mxu0
    %v6268 = vadd.f32 0.0, %v6267
    %v6269 = vpop.f32.mrb[0].mxu0
    %v6270 = vpop.f32.mrb[0].mxu0
    %v6271 = vadd.f32 0.0, %v6270
    %v6272 = vpop.f32.mrb[0].mxu0
    %6273 = vmatprep.mubr.bf16.mxu0 %v5970
    %6274 = vmatmul.mubr.bf16.gmra.mrb[0].mxu0 %v5969
    %v6275 = vpop.f32.mrb[0].mxu0
    %v6276 = vadd.f32 0.0, %v6275
    %v6277 = vpop.f32.mrb[0].mxu0
    %v6278 = vpop.f32.mrb[0].mxu0
    %v6279 = vadd.f32 0.0, %v6278
    %v6280 = vpop.f32.mrb[0].mxu0
    %6281 = vmatprep.mubr.bf16.mxu0 %v5973
    %6282 = vmatmul.mubr.bf16.gmra.mrb[0].mxu0 %v5972
    %v6283 = vpop.f32.mrb[0].mxu0
    %v6284 = vadd.f32 0.0, %v6283
    %v6285 = vpop.f32.mrb[0].mxu0
    %v6286 = vpop.f32.mrb[0].mxu0
    %v6287 = vadd.f32 0.0, %v6286
    %v6288 = vpop.f32.mrb[0].mxu0
    %6289 = vmatprep.mubr.bf16.mxu0 %v5976
    %6290 = vmatmul.mubr.bf16.gmra.mrb[0].mxu0 %v5975
    %v6291 = vpop.f32.mrb[0].mxu0
    %v6292 = vadd.f32 0.0, %v6291
    %v6293 = vpop.f32.mrb[0].mxu0
    %v6294 = vpop.f32.mrb[0].mxu0
    %v6295 = vadd.f32 0.0, %v6294
    %v6296 = vpop.f32.mrb[0].mxu0
    %6297 = vmatprep.mubr.bf16.mxu0 %v5979
    %6298 = vmatmul.mubr.bf16.gmra.mrb[0].mxu0 %v5978
    %v6299 = vpop.f32.mrb[0].mxu0
    %v6300 = vadd.f32 0.0, %v6299
    %v6301 = vpop.f32.mrb[0].mxu0
    %v6302 = vpop.f32.mrb[0].mxu0
    %v6303 = vadd.f32 0.0, %v6302
    %v6304 = vpop.f32.mrb[0].mxu0
    %6305 = vmatprep.mubr.bf16.mxu0 %v5982
    %6306 = vmatmul.mubr.bf16.gmra.mrb[0].mxu0 %v5981
    %v6307 = vpop.f32.mrb[0].mxu0
    %v6308 = vadd.f32 0.0, %v6307
    %v6309 = vpop.f32.mrb[0].mxu0
    %v6310 = vpop.f32.mrb[0].mxu0
    %v6311 = vadd.f32 0.0, %v6310
    %v6312 = vpop.f32.mrb[0].mxu0
    %6313 = vmatprep.mubr.bf16.mxu0 %v5985
    %6314 = vmatmul.mubr.bf16.gmra.mrb[0].mxu0 %v5984
    %v6315 = vpop.f32.mrb[0].mxu0
    %v6316 = vadd.f32 0.0, %v6315
    %v6317 = vpop.f32.mrb[0].mxu0
    %v6318 = vpop.f32.mrb[0].mxu0
    %v6319 = vadd.f32 0.0, %v6318
    %v6320 = vpop.f32.mrb[0].mxu0
    %6321 = vmatprep.mubr.bf16.mxu0 %v5988
    %6322 = vmatmul.mubr.bf16.gmra.mrb[0].mxu0 %v5987
    %v6323 = vpop.f32.mrb[0].mxu0
    %v6324 = vadd.f32 0.0, %v6323
    %v6325 = vpop.f32.mrb[0].mxu0
    %v6326 = vpop.f32.mrb[0].mxu0
    %v6327 = vadd.f32 0.0, %v6326
    %v6328 = vpop.f32.mrb[0].mxu0
    %6329 = vmatprep.mubr.bf16.mxu0 %v5991
    %6330 = vmatmul.mubr.bf16.gmra.mrb[0].mxu0 %v5990
    %v6331 = vpop.f32.mrb[0].mxu0
    %v6332 = vadd.f32 0.0, %v6331
    %v6333 = vpop.f32.mrb[0].mxu0
    %v6334 = vpop.f32.mrb[0].mxu0
    %v6335 = vadd.f32 0.0, %v6334
    %v6336 = vpop.f32.mrb[0].mxu0
    %6337 = vmatprep.mubr.bf16.mxu0 %v5994
    %6338 = vmatmul.mubr.bf16.gmra.mrb[0].mxu0 %v5993
    %v6339 = vpop.f32.mrb[0].mxu0
    %v6340 = vadd.f32 0.0, %v6339
    %v6341 = vpop.f32.mrb[0].mxu0
    %v6342 = vpop.f32.mrb[0].mxu0
    %v6343 = vadd.f32 0.0, %v6342
    %v6344 = vpop.f32.mrb[0].mxu0
    %6345 = vmatprep.mubr.bf16.mxu0 %v5997
    %6346 = vmatmul.mubr.bf16.gmra.mrb[0].mxu0 %v5996
    %v6347 = vpop.f32.mrb[0].mxu0
    %v6348 = vadd.f32 0.0, %v6347
    %v6349 = vpop.f32.mrb[0].mxu0
    %v6350 = vpop.f32.mrb[0].mxu0
    %v6351 = vadd.f32 0.0, %v6350
    %v6352 = vpop.f32.mrb[0].mxu0
    %6353 = vmatprep.mubr.bf16.mxu0 %v6000
    %6354 = vmatmul.mubr.bf16.gmra.mrb[0].mxu0 %v5999
    %v6355 = vpop.f32.mrb[0].mxu0
    %v6356 = vadd.f32 0.0, %v6355
    %v6357 = vpop.f32.mrb[0].mxu0
    %v6358 = vpop.f32.mrb[0].mxu0
    %v6359 = vadd.f32 0.0, %v6358
    %v6360 = vpop.f32.mrb[0].mxu0
    %6361 = vmatprep.mubr.bf16.mxu0 %v6003
    %6362 = vmatmul.mubr.bf16.gmra.mrb[0].mxu0 %v6002
    %v6363 = vpop.f32.mrb[0].mxu0
    %v6364 = vadd.f32 0.0, %v6363
    %v6365 = vpop.f32.mrb[0].mxu0
    %v6366 = vpop.f32.mrb[0].mxu0
    %v6367 = vadd.f32 0.0, %v6366
    %v6368 = vpop.f32.mrb[0].mxu0
    %6369 = vmatprep.mubr.bf16.mxu0 %v6006
    %6370 = vmatmul.mubr.bf16.gmra.mrb[0].mxu0 %v6005
    %v6371 = vpop.f32.mrb[0].mxu0
    %v6372 = vadd.f32 0.0, %v6371
    %v6373 = vpop.f32.mrb[0].mxu0
    %v6374 = vpop.f32.mrb[0].mxu0
    %v6375 = vadd.f32 0.0, %v6374
    %v6376 = vpop.f32.mrb[0].mxu0
    %6377 = vmatprep.mubr.bf16.mxu0 %v6009
    %6378 = vmatmul.mubr.bf16.gmra.mrb[0].mxu0 %v6008
    %v6379 = vpop.f32.mrb[0].mxu0
    %v6380 = vadd.f32 0.0, %v6379
    %v6381 = vpop.f32.mrb[0].mxu0
    %v6382 = vpop.f32.mrb[0].mxu0
    %v6383 = vadd.f32 0.0, %v6382
    %v6384 = vpop.f32.mrb[0].mxu0
    %6385 = vdwg.mxu0
    %6386 = vmatprep.subr.bf16.mxu0 0
    %6387 = vmatpush1.bf16.msra.mxu0 %v6135
    %6388 = vmatprep.subr.bf16.mxu0 0
    %6389 = vmatpush1.bf16.msra.mxu0 %v6136
    %6390 = vmatprep.subr.bf16.mxu0 0
    %6391 = vmatpush1.bf16.msra.mxu0 0
    %6392 = vmatprep.subr.bf16.mxu0 0
    %6393 = vmatpush1.bf16.msra.mxu0 0
    %6394 = vmatprep.subr.bf16.mxu0 0
    %6395 = vmatpush1.bf16.msra.mxu0 0
    %6396 = vmatprep.subr.bf16.mxu0 0
    %6397 = vmatpush1.bf16.msra.mxu0 0
    %6398 = vmatprep.subr.bf16.mxu0 0
    %6399 = vmatpush1.bf16.msra.mxu0 0
    %6400 = vmatprep.subr.bf16.mxu0 0
    %6401 = vmatpush1.bf16.msra.mxu0 0
    %6402 = vmatprep.subr.bf16.mxu0 0
    %6403 = vmatpush1.bf16.msra.mxu0 0
    %6404 = vmatprep.subr.bf16.mxu0 0
    %6405 = vmatpush1.bf16.msra.mxu0 0
    %6406 = vmatprep.subr.bf16.mxu0 0
    %6407 = vmatpush1.bf16.msra.mxu0 0
    %6408 = vmatprep.subr.bf16.mxu0 0
    %6409 = vmatpush1.bf16.msra.mxu0 0
    %6410 = vmatprep.subr.bf16.mxu0 0
    %6411 = vmatpush1.bf16.msra.mxu0 0
    %6412 = vmatprep.subr.bf16.mxu0 0
    %6413 = vmatpush1.bf16.msra.mxu0 0
    %6414 = vmatprep.subr.bf16.mxu0 0
    %6415 = vmatpush1.bf16.msra.mxu0 0
    %6416 = vmatprep.subr.bf16.mxu0 0
    %6417 = vmatpush1.bf16.msra.mxu0 0
    %6418 = vmatprep.mubr.bf16.mxu0 0
    %6419 = vmatmul.mubr.bf16.gmra.mrb[0].mxu0 %v6156
    %v6420 = vpop.f32.mrb[0].mxu0
    %v6421 = vadd.f32 %v6244, %v6420
    %v6422 = vpop.f32.mrb[0].mxu0
    %v6423 = vpop.f32.mrb[0].mxu0
    %v6424 = vadd.f32 %v6247, %v6423
    %v6425 = vpop.f32.mrb[0].mxu0
    %6426 = vmatprep.mubr.bf16.mxu0 0
    %6427 = vmatmul.mubr.bf16.gmra.mrb[0].mxu0 %v6159
    %v6428 = vpop.f32.mrb[0].mxu0
    %v6429 = vadd.f32 %v6252, %v6428
    %v6430 = vpop.f32.mrb[0].mxu0
    %v6431 = vpop.f32.mrb[0].mxu0
    %v6432 = vadd.f32 %v6255, %v6431
    %v6433 = vpop.f32.mrb[0].mxu0
    %6434 = vmatprep.mubr.bf16.mxu0 0
    %6435 = vmatmul.mubr.bf16.gmra.mrb[0].mxu0 %v6162
    %v6436 = vpop.f32.mrb[0].mxu0
    %v6437 = vadd.f32 %v6260, %v6436
    %v6438 = vpop.f32.mrb[0].mxu0
    %v6439 = vpop.f32.mrb[0].mxu0
    %v6440 = vadd.f32 %v6263, %v6439
    %v6441 = vpop.f32.mrb[0].mxu0
    %6442 = vmatprep.mubr.bf16.mxu0 0
    %6443 = vmatmul.mubr.bf16.gmra.mrb[0].mxu0 %v6165
    %v6444 = vpop.f32.mrb[0].mxu0
    %v6445 = vadd.f32 %v6268, %v6444
    %v6446 = vpop.f32.mrb[0].mxu0
    %v6447 = vpop.f32.mrb[0].mxu0
    %v6448 = vadd.f32 %v6271, %v6447
    %v6449 = vpop.f32.mrb[0].mxu0
    %6450 = vmatprep.mubr.bf16.mxu0 0
    %6451 = vmatmul.mubr.bf16.gmra.mrb[0].mxu0 %v6168
    %v6452 = vpop.f32.mrb[0].mxu0
    %v6453 = vadd.f32 %v6276, %v6452
    %v6454 = vpop.f32.mrb[0].mxu0
    %v6455 = vpop.f32.mrb[0].mxu0
    %v6456 = vadd.f32 %v6279, %v6455
    %v6457 = vpop.f32.mrb[0].mxu0
    %6458 = vmatprep.mubr.bf16.mxu0 0
    %6459 = vmatmul.mubr.bf16.gmra.mrb[0].mxu0 %v6171
    %v6460 = vpop.f32.mrb[0].mxu0
    %v6461 = vadd.f32 %v6284, %v6460
    %v6462 = vpop.f32.mrb[0].mxu0
    %v6463 = vpop.f32.mrb[0].mxu0
    %v6464 = vadd.f32 %v6287, %v6463
    %v6465 = vpop.f32.mrb[0].mxu0
    %6466 = vmatprep.mubr.bf16.mxu0 0
    %6467 = vmatmul.mubr.bf16.gmra.mrb[0].mxu0 %v6174
    %v6468 = vpop.f32.mrb[0].mxu0
    %v6469 = vadd.f32 %v6292, %v6468
    %v6470 = vpop.f32.mrb[0].mxu0
    %v6471 = vpop.f32.mrb[0].mxu0
    %v6472 = vadd.f32 %v6295, %v6471
    %v6473 = vpop.f32.mrb[0].mxu0
    %6474 = vmatprep.mubr.bf16.mxu0 0
    %6475 = vmatmul.mubr.bf16.gmra.mrb[0].mxu0 %v6177
    %v6476 = vpop.f32.mrb[0].mxu0
    %v6477 = vadd.f32 %v6300, %v6476
    %v6478 = vpop.f32.mrb[0].mxu0
    %v6479 = vpop.f32.mrb[0].mxu0
    %v6480 = vadd.f32 %v6303, %v6479
    %v6481 = vpop.f32.mrb[0].mxu0
    %6482 = vmatprep.mubr.bf16.mxu0 0
    %6483 = vmatmul.mubr.bf16.gmra.mrb[0].mxu0 %v6180
    %v6484 = vpop.f32.mrb[0].mxu0
    %v6485 = vadd.f32 %v6308, %v6484
    %v6486 = vpop.f32.mrb[0].mxu0
    %v6487 = vpop.f32.mrb[0].mxu0
    %v6488 = vadd.f32 %v6311, %v6487
    %v6489 = vpop.f32.mrb[0].mxu0
    %6490 = vmatprep.mubr.bf16.mxu0 0
    %6491 = vmatmul.mubr.bf16.gmra.mrb[0].mxu0 %v6183
    %v6492 = vpop.f32.mrb[0].mxu0
    %v6493 = vadd.f32 %v6316, %v6492
    %v6494 = vpop.f32.mrb[0].mxu0
    %v6495 = vpop.f32.mrb[0].mxu0
    %v6496 = vadd.f32 %v6319, %v6495
    %v6497 = vpop.f32.mrb[0].mxu0
    %6498 = vmatprep.mubr.bf16.mxu0 0
    %6499 = vmatmul.mubr.bf16.gmra.mrb[0].mxu0 %v6186
    %v6500 = vpop.f32.mrb[0].mxu0
    %v6501 = vadd.f32 %v6324, %v6500
    %v6502 = vpop.f32.mrb[0].mxu0
    %v6503 = vpop.f32.mrb[0].mxu0
    %v6504 = vadd.f32 %v6327, %v6503
    %v6505 = vpop.f32.mrb[0].mxu0
    %6506 = vmatprep.mubr.bf16.mxu0 0
    %6507 = vmatmul.mubr.bf16.gmra.mrb[0].mxu0 %v6189
    %v6508 = vpop.f32.mrb[0].mxu0
    %v6509 = vadd.f32 %v6332, %v6508
    %v6510 = vpop.f32.mrb[0].mxu0
    %v6511 = vpop.f32.mrb[0].mxu0
    %v6512 = vadd.f32 %v6335, %v6511
    %v6513 = vpop.f32.mrb[0].mxu0
    %6514 = vmatprep.mubr.bf16.mxu0 0
    %6515 = vmatmul.mubr.bf16.gmra.mrb[0].mxu0 %v6192
    %v6516 = vpop.f32.mrb[0].mxu0
    %v6517 = vadd.f32 %v6340, %v6516
    %v6518 = vpop.f32.mrb[0].mxu0
    %v6519 = vpop.f32.mrb[0].mxu0
    %v6520 = vadd.f32 %v6343, %v6519
    %v6521 = vpop.f32.mrb[0].mxu0
    %6522 = vmatprep.mubr.bf16.mxu0 0
    %6523 = vmatmul.mubr.bf16.gmra.mrb[0].mxu0 %v6195
    %v6524 = vpop.f32.mrb[0].mxu0
    %v6525 = vadd.f32 %v6348, %v6524
    %v6526 = vpop.f32.mrb[0].mxu0
    %v6527 = vpop.f32.mrb[0].mxu0
    %v6528 = vadd.f32 %v6351, %v6527
    %v6529 = vpop.f32.mrb[0].mxu0
    %6530 = vmatprep.mubr.bf16.mxu0 0
    %6531 = vmatmul.mubr.bf16.gmra.mrb[0].mxu0 %v6198
    %v6532 = vpop.f32.mrb[0].mxu0
    %v6533 = vadd.f32 %v6356, %v6532
    %v6534 = vpop.f32.mrb[0].mxu0
    %v6535 = vpop.f32.mrb[0].mxu0
    %v6536 = vadd.f32 %v6359, %v6535
    %v6537 = vpop.f32.mrb[0].mxu0
    %6538 = vmatprep.mubr.bf16.mxu0 0
    %6539 = vmatmul.mubr.bf16.gmra.mrb[0].mxu0 %v6201
    %v6540 = vpop.f32.mrb[0].mxu0
    %v6541 = vadd.f32 %v6364, %v6540
    %v6542 = vpop.f32.mrb[0].mxu0
    %v6543 = vpop.f32.mrb[0].mxu0
    %v6544 = vadd.f32 %v6367, %v6543
    %v6545 = vpop.f32.mrb[0].mxu0
    %6546 = vmatprep.mubr.bf16.mxu0 0
    %6547 = vmatmul.mubr.bf16.gmra.mrb[0].mxu0 %v6204
    %v6548 = vpop.f32.mrb[0].mxu0
    %v6549 = vadd.f32 %v6372, %v6548
    %v6550 = vpop.f32.mrb[0].mxu0
    %v6551 = vpop.f32.mrb[0].mxu0
    %v6552 = vadd.f32 %v6375, %v6551
    %v6553 = vpop.f32.mrb[0].mxu0
    %6554 = vmatprep.mubr.bf16.mxu0 0
    %6555 = vmatmul.mubr.bf16.gmra.mrb[0].mxu0 %v6207
    %v6556 = vpop.f32.mrb[0].mxu0
    %v6557 = vadd.f32 %v6380, %v6556
    %v6558 = vpop.f32.mrb[0].mxu0
    %v6559 = vpop.f32.mrb[0].mxu0
    %v6560 = vadd.f32 %v6383, %v6559
    %v6561 = vpop.f32.mrb[0].mxu0
    %6562 = vdwg.mxu0
    %v6563 = vld [vmem:[%s7] sm:$0x1]
    %v6564 = vld [vmem:[%s2] sm:$0xff]
    %v6565 = vld [vmem:[%s2 + $0x8] sm:$0xff]
    %v6566 = vld [vmem:[%s2 + $0x10] sm:$0xff]
    %v6567 = vld [vmem:[%s2 + $0x18] sm:$0xff]
    %v6568 = vld [vmem:[%s2 + $0x20] sm:$0xff]
    %v6569 = vld [vmem:[%s2 + $0x28] sm:$0xff]
    %v6570 = vld [vmem:[%s2 + $0x30] sm:$0xff]
    %v6571 = vld [vmem:[%s2 + $0x38] sm:$0xff]
    %v6572 = vld [vmem:[%s2 + $0x40] sm:$0xff]
    %v6573 = vld [vmem:[%s2 + $0x48] sm:$0xff]
    %v6574 = vld [vmem:[%s2 + $0x50] sm:$0xff]
    %v6575 = vld [vmem:[%s2 + $0x58] sm:$0xff]
    %v6576 = vld [vmem:[%s2 + $0x60] sm:$0xff]
    %v6577 = vld [vmem:[%s2 + $0x68] sm:$0xff]
    %v6578 = vld [vmem:[%s2 + $0x70] sm:$0xff]
    %v6579 = vld [vmem:[%s2 + $0x78] sm:$0xff]
    %v6580 = vld [vmem:[%s2 + $0x80] sm:$0xff]
    %v6581 = vld [vmem:[%s2 + $0x88] sm:$0xff]
    %v6582 = vld [vmem:[%s2 + $0x90] sm:$0xff]
    %v6583 = vld [vmem:[%s2 + $0x98] sm:$0xff]
    %v6584 = vld [vmem:[%s2 + $0xa0] sm:$0xff]
    %v6585 = vld [vmem:[%s2 + $0xa8] sm:$0xff]
    %v6586 = vld [vmem:[%s2 + $0xb0] sm:$0xff]
    %v6587 = vld [vmem:[%s2 + $0xb8] sm:$0xff]
    %v6588 = vld [vmem:[%s2 + $0xc0] sm:$0xff]
    %v6589 = vld [vmem:[%s2 + $0xc8] sm:$0xff]
    %v6590 = vld [vmem:[%s2 + $0xd0] sm:$0xff]
    %v6591 = vld [vmem:[%s2 + $0xd8] sm:$0xff]
    %v6592 = vld [vmem:[%s2 + $0xe0] sm:$0xff]
    %v6593 = vld [vmem:[%s2 + $0xe8] sm:$0xff]
    %v6594 = vld [vmem:[%s2 + $0xf0] sm:$0xff]
    %v6595 = vld [vmem:[%s2 + $0xf8] sm:$0xff]
    %v6596 = vld [vmem:[%s2 + $0x100] sm:$0xff]
    %v6597 = vld [vmem:[%s2 + $0x108] sm:$0xff]
    %v6598 = vld [vmem:[%s2 + $0x110] sm:$0xff]
    %v6599 = vld [vmem:[%s2 + $0x118] sm:$0xff]
    %v6600 = vlaneseq
    %v6601 = vshrl.u32 %v6600, 7
    %v6602 = vsub.s32 0, %v6601
    %v6603 = vrot.slane %v6563, %v6602
    %v6604 = vmul.f32 %v6603, %v6564
    %v6605 = vmul.f32 %v6603, %v6565
    %v6606 = vmul.f32 %v6603, %v6566
    %v6607 = vmul.f32 %v6603, %v6567
    %v6608 = vmul.f32 %v6603, %v6568
    %v6609 = vmul.f32 %v6603, %v6569
    %v6610 = vmul.f32 %v6603, %v6570
    %v6611 = vmul.f32 %v6603, %v6571
    %v6612 = vmul.f32 %v6603, %v6572
    %v6613 = vmul.f32 %v6603, %v6573
    %v6614 = vmul.f32 %v6603, %v6574
    %v6615 = vmul.f32 %v6603, %v6575
    %v6616 = vmul.f32 %v6603, %v6576
    %v6617 = vmul.f32 %v6603, %v6577
    %v6618 = vmul.f32 %v6603, %v6578
    %v6619 = vmul.f32 %v6603, %v6579
    %v6620 = vmul.f32 %v6603, %v6580
    %v6621 = vmul.f32 %v6603, %v6581
    %v6622 = vmul.f32 %v6603, %v6582
    %v6623 = vmul.f32 %v6603, %v6583
    %v6624 = vmul.f32 %v6603, %v6584
    %v6625 = vmul.f32 %v6603, %v6585
    %v6626 = vmul.f32 %v6603, %v6586
    %v6627 = vmul.f32 %v6603, %v6587
    %v6628 = vmul.f32 %v6603, %v6588
    %v6629 = vmul.f32 %v6603, %v6589
    %v6630 = vmul.f32 %v6603, %v6590
    %v6631 = vmul.f32 %v6603, %v6591
    %v6632 = vmul.f32 %v6603, %v6592
    %v6633 = vmul.f32 %v6603, %v6593
    %v6634 = vmul.f32 %v6603, %v6594
    %v6635 = vmul.f32 %v6603, %v6595
    %v6636 = vmul.f32 %v6603, %v6596
    %v6637 = vmul.f32 %v6603, %v6597
    %v6638 = vmul.f32 %v6603, %v6598
    %v6639 = vmul.f32 %v6603, %v6599
    %v6640 = vadd.f32 %v6604, %v6421
    %v6641 = vadd.f32 %v6605, %v6424
    %v6642 = vadd.f32 %v6606, %v6429
    %v6643 = vadd.f32 %v6607, %v6432
    %v6644 = vadd.f32 %v6608, %v6437
    %v6645 = vadd.f32 %v6609, %v6440
    %v6646 = vadd.f32 %v6610, %v6445
    %v6647 = vadd.f32 %v6611, %v6448
    %v6648 = vadd.f32 %v6612, %v6453
    %v6649 = vadd.f32 %v6613, %v6456
    %v6650 = vadd.f32 %v6614, %v6461
    %v6651 = vadd.f32 %v6615, %v6464
    %v6652 = vadd.f32 %v6616, %v6469
    %v6653 = vadd.f32 %v6617, %v6472
    %v6654 = vadd.f32 %v6618, %v6477
    %v6655 = vadd.f32 %v6619, %v6480
    %v6656 = vadd.f32 %v6620, %v6485
    %v6657 = vadd.f32 %v6621, %v6488
    %v6658 = vadd.f32 %v6622, %v6493
    %v6659 = vadd.f32 %v6623, %v6496
    %v6660 = vadd.f32 %v6624, %v6501
    %v6661 = vadd.f32 %v6625, %v6504
    %v6662 = vadd.f32 %v6626, %v6509
    %v6663 = vadd.f32 %v6627, %v6512
    %v6664 = vadd.f32 %v6628, %v6517
    %v6665 = vadd.f32 %v6629, %v6520
    %v6666 = vadd.f32 %v6630, %v6525
    %v6667 = vadd.f32 %v6631, %v6528
    %v6668 = vadd.f32 %v6632, %v6533
    %v6669 = vadd.f32 %v6633, %v6536
    %v6670 = vadd.f32 %v6634, %v6541
    %v6671 = vadd.f32 %v6635, %v6544
    %v6672 = vadd.f32 %v6636, %v6549
    %v6673 = vadd.f32 %v6637, %v6552
    %v6674 = vadd.f32 %v6638, %v6557
    %v6675 = vadd.f32 %v6639, %v6560
    %v6676 = vld [vmem:[%s7 + $0x1] sm:$0x1]
    %v6677 = vld [vmem:[%s2 + $0x120] sm:$0xff]
    %v6678 = vld [vmem:[%s2 + $0x128] sm:$0xff]
    %v6679 = vld [vmem:[%s2 + $0x130] sm:$0xff]
    %v6680 = vld [vmem:[%s2 + $0x138] sm:$0xff]
    %v6681 = vld [vmem:[%s2 + $0x140] sm:$0xff]
    %v6682 = vld [vmem:[%s2 + $0x148] sm:$0xff]
    %v6683 = vld [vmem:[%s2 + $0x150] sm:$0xff]
    %v6684 = vld [vmem:[%s2 + $0x158] sm:$0xff]
    %v6685 = vld [vmem:[%s2 + $0x160] sm:$0xff]
    %v6686 = vld [vmem:[%s2 + $0x168] sm:$0xff]
    %v6687 = vld [vmem:[%s2 + $0x170] sm:$0xff]
    %v6688 = vld [vmem:[%s2 + $0x178] sm:$0xff]
    %v6689 = vld [vmem:[%s2 + $0x180] sm:$0xff]
    %v6690 = vld [vmem:[%s2 + $0x188] sm:$0xff]
    %v6691 = vld [vmem:[%s2 + $0x190] sm:$0xff]
    %v6692 = vld [vmem:[%s2 + $0x198] sm:$0xff]
    %v6693 = vld [vmem:[%s2 + $0x1a0] sm:$0xff]
    %v6694 = vld [vmem:[%s2 + $0x1a8] sm:$0xff]
    %v6695 = vld [vmem:[%s2 + $0x1b0] sm:$0xff]
    %v6696 = vld [vmem:[%s2 + $0x1b8] sm:$0xff]
    %v6697 = vld [vmem:[%s2 + $0x1c0] sm:$0xff]
    %v6698 = vld [vmem:[%s2 + $0x1c8] sm:$0xff]
    %v6699 = vld [vmem:[%s2 + $0x1d0] sm:$0xff]
    %v6700 = vld [vmem:[%s2 + $0x1d8] sm:$0xff]
    %v6701 = vld [vmem:[%s2 + $0x1e0] sm:$0xff]
    %v6702 = vld [vmem:[%s2 + $0x1e8] sm:$0xff]
    %v6703 = vld [vmem:[%s2 + $0x1f0] sm:$0xff]
    %v6704 = vld [vmem:[%s2 + $0x1f8] sm:$0xff]
    %v6705 = vld [vmem:[%s2 + $0x200] sm:$0xff]
    %v6706 = vld [vmem:[%s2 + $0x208] sm:$0xff]
    %v6707 = vld [vmem:[%s2 + $0x210] sm:$0xff]
    %v6708 = vld [vmem:[%s2 + $0x218] sm:$0xff]
    %v6709 = vld [vmem:[%s2 + $0x220] sm:$0xff]
    %v6710 = vld [vmem:[%s2 + $0x228] sm:$0xff]
    %v6711 = vld [vmem:[%s2 + $0x230] sm:$0xff]
    %v6712 = vld [vmem:[%s2 + $0x238] sm:$0xff]
    %v6713 = vlaneseq
    %v6714 = vshrl.u32 %v6713, 7
    %v6715 = vsub.s32 0, %v6714
    %v6716 = vrot.slane %v6676, %v6715
    %v6717 = vmul.f32 %v6716, %v6677
    %v6718 = vmul.f32 %v6716, %v6678
    %v6719 = vmul.f32 %v6716, %v6679
    %v6720 = vmul.f32 %v6716, %v6680
    %v6721 = vmul.f32 %v6716, %v6681
    %v6722 = vmul.f32 %v6716, %v6682
    %v6723 = vmul.f32 %v6716, %v6683
    %v6724 = vmul.f32 %v6716, %v6684
    %v6725 = vmul.f32 %v6716, %v6685
    %v6726 = vmul.f32 %v6716, %v6686
    %v6727 = vmul.f32 %v6716, %v6687
    %v6728 = vmul.f32 %v6716, %v6688
    %v6729 = vmul.f32 %v6716, %v6689
    %v6730 = vmul.f32 %v6716, %v6690
    %v6731 = vmul.f32 %v6716, %v6691
    %v6732 = vmul.f32 %v6716, %v6692
    %v6733 = vmul.f32 %v6716, %v6693
    %v6734 = vmul.f32 %v6716, %v6694
    %v6735 = vmul.f32 %v6716, %v6695
    %v6736 = vmul.f32 %v6716, %v6696
    %v6737 = vmul.f32 %v6716, %v6697
    %v6738 = vmul.f32 %v6716, %v6698
    %v6739 = vmul.f32 %v6716, %v6699
    %v6740 = vmul.f32 %v6716, %v6700
    %v6741 = vmul.f32 %v6716, %v6701
    %v6742 = vmul.f32 %v6716, %v6702
    %v6743 = vmul.f32 %v6716, %v6703
    %v6744 = vmul.f32 %v6716, %v6704
    %v6745 = vmul.f32 %v6716, %v6705
    %v6746 = vmul.f32 %v6716, %v6706
    %v6747 = vmul.f32 %v6716, %v6707
    %v6748 = vmul.f32 %v6716, %v6708
    %v6749 = vmul.f32 %v6716, %v6709
    %v6750 = vmul.f32 %v6716, %v6710
    %v6751 = vmul.f32 %v6716, %v6711
    %v6752 = vmul.f32 %v6716, %v6712
    %v6753 = vld [vmem:[%s2 + $0x240] sm:$0xff]
    %v6754 = vld [vmem:[%s2 + $0x248] sm:$0xff]
    %v6755 = vld [vmem:[%s2 + $0x250] sm:$0xff]
    %v6756 = vld [vmem:[%s2 + $0x258] sm:$0xff]
    %v6757 = vld [vmem:[%s2 + $0x260] sm:$0xff]
    %v6758 = vld [vmem:[%s2 + $0x268] sm:$0xff]
    %v6759 = vld [vmem:[%s2 + $0x270] sm:$0xff]
    %v6760 = vld [vmem:[%s2 + $0x278] sm:$0xff]
    %v6761 = vld [vmem:[%s2 + $0x280] sm:$0xff]
    %v6762 = vld [vmem:[%s2 + $0x288] sm:$0xff]
    %v6763 = vld [vmem:[%s2 + $0x290] sm:$0xff]
    %v6764 = vld [vmem:[%s2 + $0x298] sm:$0xff]
    %v6765 = vld [vmem:[%s2 + $0x2a0] sm:$0xff]
    %v6766 = vld [vmem:[%s2 + $0x2a8] sm:$0xff]
    %v6767 = vld [vmem:[%s2 + $0x2b0] sm:$0xff]
    %v6768 = vld [vmem:[%s2 + $0x2b8] sm:$0xff]
    %v6769 = vld [vmem:[%s2 + $0x2c0] sm:$0xff]
    %v6770 = vld [vmem:[%s2 + $0x2c8] sm:$0xff]
    %v6771 = vld [vmem:[%s2 + $0x2d0] sm:$0xff]
    %v6772 = vld [vmem:[%s2 + $0x2d8] sm:$0xff]
    %v6773 = vld [vmem:[%s2 + $0x2e0] sm:$0xff]
    %v6774 = vld [vmem:[%s2 + $0x2e8] sm:$0xff]
    %v6775 = vld [vmem:[%s2 + $0x2f0] sm:$0xff]
    %v6776 = vld [vmem:[%s2 + $0x2f8] sm:$0xff]
    %v6777 = vld [vmem:[%s2 + $0x300] sm:$0xff]
    %v6778 = vld [vmem:[%s2 + $0x308] sm:$0xff]
    %v6779 = vld [vmem:[%s2 + $0x310] sm:$0xff]
    %v6780 = vld [vmem:[%s2 + $0x318] sm:$0xff]
    %v6781 = vld [vmem:[%s2 + $0x320] sm:$0xff]
    %v6782 = vld [vmem:[%s2 + $0x328] sm:$0xff]
    %v6783 = vld [vmem:[%s2 + $0x330] sm:$0xff]
    %v6784 = vld [vmem:[%s2 + $0x338] sm:$0xff]
    %v6785 = vld [vmem:[%s2 + $0x340] sm:$0xff]
    %v6786 = vld [vmem:[%s2 + $0x348] sm:$0xff]
    %v6787 = vld [vmem:[%s2 + $0x350] sm:$0xff]
    %v6788 = vld [vmem:[%s2 + $0x358] sm:$0xff]
    %v6789 = vsub.f32 1.0, %v6753
    %v6790 = vsub.f32 1.0, %v6754
    %v6791 = vsub.f32 1.0, %v6755
    %v6792 = vsub.f32 1.0, %v6756
    %v6793 = vsub.f32 1.0, %v6757
    %v6794 = vsub.f32 1.0, %v6758
    %v6795 = vsub.f32 1.0, %v6759
    %v6796 = vsub.f32 1.0, %v6760
    %v6797 = vsub.f32 1.0, %v6761
    %v6798 = vsub.f32 1.0, %v6762
    %v6799 = vsub.f32 1.0, %v6763
    %v6800 = vsub.f32 1.0, %v6764
    %v6801 = vsub.f32 1.0, %v6765
    %v6802 = vsub.f32 1.0, %v6766
    %v6803 = vsub.f32 1.0, %v6767
    %v6804 = vsub.f32 1.0, %v6768
    %v6805 = vsub.f32 1.0, %v6769
    %v6806 = vsub.f32 1.0, %v6770
    %v6807 = vsub.f32 1.0, %v6771
    %v6808 = vsub.f32 1.0, %v6772
    %v6809 = vsub.f32 1.0, %v6773
    %v6810 = vsub.f32 1.0, %v6774
    %v6811 = vsub.f32 1.0, %v6775
    %v6812 = vsub.f32 1.0, %v6776
    %v6813 = vsub.f32 1.0, %v6777
    %v6814 = vsub.f32 1.0, %v6778
    %v6815 = vsub.f32 1.0, %v6779
    %v6816 = vsub.f32 1.0, %v6780
    %v6817 = vsub.f32 1.0, %v6781
    %v6818 = vsub.f32 1.0, %v6782
    %v6819 = vsub.f32 1.0, %v6783
    %v6820 = vsub.f32 1.0, %v6784
    %v6821 = vsub.f32 1.0, %v6785
    %v6822 = vsub.f32 1.0, %v6786
    %v6823 = vsub.f32 1.0, %v6787
    %v6824 = vsub.f32 1.0, %v6788
    %v6825 = vmul.f32 %v6717, %v6789
    %v6826 = vmul.f32 %v6718, %v6790
    %v6827 = vmul.f32 %v6719, %v6791
    %v6828 = vmul.f32 %v6720, %v6792
    %v6829 = vmul.f32 %v6721, %v6793
    %v6830 = vmul.f32 %v6722, %v6794
    %v6831 = vmul.f32 %v6723, %v6795
    %v6832 = vmul.f32 %v6724, %v6796
    %v6833 = vmul.f32 %v6725, %v6797
    %v6834 = vmul.f32 %v6726, %v6798
    %v6835 = vmul.f32 %v6727, %v6799
    %v6836 = vmul.f32 %v6728, %v6800
    %v6837 = vmul.f32 %v6729, %v6801
    %v6838 = vmul.f32 %v6730, %v6802
    %v6839 = vmul.f32 %v6731, %v6803
    %v6840 = vmul.f32 %v6732, %v6804
    %v6841 = vmul.f32 %v6733, %v6805
    %v6842 = vmul.f32 %v6734, %v6806
    %v6843 = vmul.f32 %v6735, %v6807
    %v6844 = vmul.f32 %v6736, %v6808
    %v6845 = vmul.f32 %v6737, %v6809
    %v6846 = vmul.f32 %v6738, %v6810
    %v6847 = vmul.f32 %v6739, %v6811
    %v6848 = vmul.f32 %v6740, %v6812
    %v6849 = vmul.f32 %v6741, %v6813
    %v6850 = vmul.f32 %v6742, %v6814
    %v6851 = vmul.f32 %v6743, %v6815
    %v6852 = vmul.f32 %v6744, %v6816
    %v6853 = vmul.f32 %v6745, %v6817
    %v6854 = vmul.f32 %v6746, %v6818
    %v6855 = vmul.f32 %v6747, %v6819
    %v6856 = vmul.f32 %v6748, %v6820
    %v6857 = vmul.f32 %v6749, %v6821
    %v6858 = vmul.f32 %v6750, %v6822
    %v6859 = vmul.f32 %v6751, %v6823
    %v6860 = vmul.f32 %v6752, %v6824
    %v6861 = vadd.f32 %v6825, %v6640
    %v6862 = vadd.f32 %v6826, %v6641
    %v6863 = vadd.f32 %v6827, %v6642
    %v6864 = vadd.f32 %v6828, %v6643
    %v6865 = vadd.f32 %v6829, %v6644
    %v6866 = vadd.f32 %v6830, %v6645
    %v6867 = vadd.f32 %v6831, %v6646
    %v6868 = vadd.f32 %v6832, %v6647
    %v6869 = vadd.f32 %v6833, %v6648
    %v6870 = vadd.f32 %v6834, %v6649
    %v6871 = vadd.f32 %v6835, %v6650
    %v6872 = vadd.f32 %v6836, %v6651
    %v6873 = vadd.f32 %v6837, %v6652
    %v6874 = vadd.f32 %v6838, %v6653
    %v6875 = vadd.f32 %v6839, %v6654
    %v6876 = vadd.f32 %v6840, %v6655
    %v6877 = vadd.f32 %v6841, %v6656
    %v6878 = vadd.f32 %v6842, %v6657
    %v6879 = vadd.f32 %v6843, %v6658
    %v6880 = vadd.f32 %v6844, %v6659
    %v6881 = vadd.f32 %v6845, %v6660
    %v6882 = vadd.f32 %v6846, %v6661
    %v6883 = vadd.f32 %v6847, %v6662
    %v6884 = vadd.f32 %v6848, %v6663
    %v6885 = vadd.f32 %v6849, %v6664
    %v6886 = vadd.f32 %v6850, %v6665
    %v6887 = vadd.f32 %v6851, %v6666
    %v6888 = vadd.f32 %v6852, %v6667
    %v6889 = vadd.f32 %v6853, %v6668
    %v6890 = vadd.f32 %v6854, %v6669
    %v6891 = vadd.f32 %v6855, %v6670
    %v6892 = vadd.f32 %v6856, %v6671
    %v6893 = vadd.f32 %v6857, %v6672
    %v6894 = vadd.f32 %v6858, %v6673
    %v6895 = vadd.f32 %v6859, %v6674
    %v6896 = vadd.f32 %v6860, %v6675
    %v6897 = vld [vmem:[%s7 + $0x2] sm:$0x1]
    %v6898 = vlaneseq
    %v6899 = vshrl.u32 %v6898, 7
    %v6900 = vsub.s32 0, %v6899
    %v6901 = vrot.slane %v6897, %v6900
    %v6902 = vsub.f32 %v6861, %v6901
    %v6903 = vsub.f32 %v6862, %v6901
    %v6904 = vsub.f32 %v6863, %v6901
    %v6905 = vsub.f32 %v6864, %v6901
    %v6906 = vsub.f32 %v6865, %v6901
    %v6907 = vsub.f32 %v6866, %v6901
    %v6908 = vsub.f32 %v6867, %v6901
    %v6909 = vsub.f32 %v6868, %v6901
    %v6910 = vsub.f32 %v6869, %v6901
    %v6911 = vsub.f32 %v6870, %v6901
    %v6912 = vsub.f32 %v6871, %v6901
    %v6913 = vsub.f32 %v6872, %v6901
    %v6914 = vsub.f32 %v6873, %v6901
    %v6915 = vsub.f32 %v6874, %v6901
    %v6916 = vsub.f32 %v6875, %v6901
    %v6917 = vsub.f32 %v6876, %v6901
    %v6918 = vsub.f32 %v6877, %v6901
    %v6919 = vsub.f32 %v6878, %v6901
    %v6920 = vsub.f32 %v6879, %v6901
    %v6921 = vsub.f32 %v6880, %v6901
    %v6922 = vsub.f32 %v6881, %v6901
    %v6923 = vsub.f32 %v6882, %v6901
    %v6924 = vsub.f32 %v6883, %v6901
    %v6925 = vsub.f32 %v6884, %v6901
    %v6926 = vsub.f32 %v6885, %v6901
    %v6927 = vsub.f32 %v6886, %v6901
    %v6928 = vsub.f32 %v6887, %v6901
    %v6929 = vsub.f32 %v6888, %v6901
    %v6930 = vsub.f32 %v6889, %v6901
    %v6931 = vsub.f32 %v6890, %v6901
    %v6932 = vsub.f32 %v6891, %v6901
    %v6933 = vsub.f32 %v6892, %v6901
    %v6934 = vsub.f32 %v6893, %v6901
    %v6935 = vsub.f32 %v6894, %v6901
    %v6936 = vsub.f32 %v6895, %v6901
    %v6937 = vsub.f32 %v6896, %v6901
    %vm6938 = vcmp.gt.f32.partialorder %v6902, 0.0
    %vm6939 = vcmp.gt.f32.partialorder %v6903, 0.0
    %vm6940 = vcmp.gt.f32.partialorder %v6904, 0.0
    %vm6941 = vcmp.gt.f32.partialorder %v6905, 0.0
    %vm6942 = vcmp.gt.f32.partialorder %v6906, 0.0
    %vm6943 = vcmp.gt.f32.partialorder %v6907, 0.0
    %vm6944 = vcmp.gt.f32.partialorder %v6908, 0.0
    %vm6945 = vcmp.gt.f32.partialorder %v6909, 0.0
    %vm6946 = vcmp.gt.f32.partialorder %v6910, 0.0
    %vm6947 = vcmp.gt.f32.partialorder %v6911, 0.0
    %vm6948 = vcmp.gt.f32.partialorder %v6912, 0.0
    %vm6949 = vcmp.gt.f32.partialorder %v6913, 0.0
    %vm6950 = vcmp.gt.f32.partialorder %v6914, 0.0
    %vm6951 = vcmp.gt.f32.partialorder %v6915, 0.0
    %vm6952 = vcmp.gt.f32.partialorder %v6916, 0.0
    %vm6953 = vcmp.gt.f32.partialorder %v6917, 0.0
    %vm6954 = vcmp.gt.f32.partialorder %v6918, 0.0
    %vm6955 = vcmp.gt.f32.partialorder %v6919, 0.0
    %vm6956 = vcmp.gt.f32.partialorder %v6920, 0.0
    %vm6957 = vcmp.gt.f32.partialorder %v6921, 0.0
    %vm6958 = vcmp.gt.f32.partialorder %v6922, 0.0
    %vm6959 = vcmp.gt.f32.partialorder %v6923, 0.0
    %vm6960 = vcmp.gt.f32.partialorder %v6924, 0.0
    %vm6961 = vcmp.gt.f32.partialorder %v6925, 0.0
    %vm6962 = vcmp.gt.f32.partialorder %v6926, 0.0
    %vm6963 = vcmp.gt.f32.partialorder %v6927, 0.0
    %vm6964 = vcmp.gt.f32.partialorder %v6928, 0.0
    %vm6965 = vcmp.gt.f32.partialorder %v6929, 0.0
    %vm6966 = vcmp.gt.f32.partialorder %v6930, 0.0
    %vm6967 = vcmp.gt.f32.partialorder %v6931, 0.0
    %vm6968 = vcmp.gt.f32.partialorder %v6932, 0.0
    %vm6969 = vcmp.gt.f32.partialorder %v6933, 0.0
    %vm6970 = vcmp.gt.f32.partialorder %v6934, 0.0
    %vm6971 = vcmp.gt.f32.partialorder %v6935, 0.0
    %vm6972 = vcmp.gt.f32.partialorder %v6936, 0.0
    %vm6973 = vcmp.gt.f32.partialorder %v6937, 0.0
    %v6974 = vsel %vm6938, 1, 0
    %v6975 = vsel %vm6939, 1, 0
    %v6976 = vsel %vm6940, 1, 0
    %v6977 = vsel %vm6941, 1, 0
    %v6978 = vsel %vm6942, 1, 0
    %v6979 = vsel %vm6943, 1, 0
    %v6980 = vsel %vm6944, 1, 0
    %v6981 = vsel %vm6945, 1, 0
    %v6982 = vsel %vm6946, 1, 0
    %v6983 = vsel %vm6947, 1, 0
    %v6984 = vsel %vm6948, 1, 0
    %v6985 = vsel %vm6949, 1, 0
    %v6986 = vsel %vm6950, 1, 0
    %v6987 = vsel %vm6951, 1, 0
    %v6988 = vsel %vm6952, 1, 0
    %v6989 = vsel %vm6953, 1, 0
    %v6990 = vsel %vm6954, 1, 0
    %v6991 = vsel %vm6955, 1, 0
    %v6992 = vsel %vm6956, 1, 0
    %v6993 = vsel %vm6957, 1, 0
    %v6994 = vsel %vm6958, 1, 0
    %v6995 = vsel %vm6959, 1, 0
    %v6996 = vsel %vm6960, 1, 0
    %v6997 = vsel %vm6961, 1, 0
    %v6998 = vsel %vm6962, 1, 0
    %v6999 = vsel %vm6963, 1, 0
    %v7000 = vsel %vm6964, 1, 0
    %v7001 = vsel %vm6965, 1, 0
    %v7002 = vsel %vm6966, 1, 0
    %v7003 = vsel %vm6967, 1, 0
    %v7004 = vsel %vm6968, 1, 0
    %v7005 = vsel %vm6969, 1, 0
    %v7006 = vsel %vm6970, 1, 0
    %v7007 = vsel %vm6971, 1, 0
    %v7008 = vsel %vm6972, 1, 0
    %v7009 = vsel %vm6973, 1, 0
    %v7010 = vcvt.s32.f32 %v6974
    %v7011 = vcvt.s32.f32 %v6975
    %v7012 = vcvt.s32.f32 %v6976
    %v7013 = vcvt.s32.f32 %v6977
    %v7014 = vcvt.s32.f32 %v6978
    %v7015 = vcvt.s32.f32 %v6979
    %v7016 = vcvt.s32.f32 %v6980
    %v7017 = vcvt.s32.f32 %v6981
    %v7018 = vcvt.s32.f32 %v6982
    %v7019 = vcvt.s32.f32 %v6983
    %v7020 = vcvt.s32.f32 %v6984
    %v7021 = vcvt.s32.f32 %v6985
    %v7022 = vcvt.s32.f32 %v6986
    %v7023 = vcvt.s32.f32 %v6987
    %v7024 = vcvt.s32.f32 %v6988
    %v7025 = vcvt.s32.f32 %v6989
    %v7026 = vcvt.s32.f32 %v6990
    %v7027 = vcvt.s32.f32 %v6991
    %v7028 = vcvt.s32.f32 %v6992
    %v7029 = vcvt.s32.f32 %v6993
    %v7030 = vcvt.s32.f32 %v6994
    %v7031 = vcvt.s32.f32 %v6995
    %v7032 = vcvt.s32.f32 %v6996
    %v7033 = vcvt.s32.f32 %v6997
    %v7034 = vcvt.s32.f32 %v6998
    %v7035 = vcvt.s32.f32 %v6999
    %v7036 = vcvt.s32.f32 %v7000
    %v7037 = vcvt.s32.f32 %v7001
    %v7038 = vcvt.s32.f32 %v7002
    %v7039 = vcvt.s32.f32 %v7003
    %v7040 = vcvt.s32.f32 %v7004
    %v7041 = vcvt.s32.f32 %v7005
    %v7042 = vcvt.s32.f32 %v7006
    %v7043 = vcvt.s32.f32 %v7007
    %v7044 = vcvt.s32.f32 %v7008
    %v7045 = vcvt.s32.f32 %v7009
    %7046 = vst.msk [vmem:[%s13] sm:$0xff] %vm5775, %v6640
    %7047 = vst.msk [vmem:[%s13 + $0x8] sm:$0xff] %vm5775, %v6641
    %7048 = vst.msk [vmem:[%s13 + $0x10] sm:$0xff] %vm5775, %v6642
    %7049 = vst.msk [vmem:[%s13 + $0x18] sm:$0xff] %vm5775, %v6643
    %7050 = vst.msk [vmem:[%s13 + $0x20] sm:$0xff] %vm5775, %v6644
    %7051 = vst.msk [vmem:[%s13 + $0x28] sm:$0xff] %vm5775, %v6645
    %7052 = vst.msk [vmem:[%s13 + $0x30] sm:$0xff] %vm5775, %v6646
    %7053 = vst.msk [vmem:[%s13 + $0x38] sm:$0xff] %vm5775, %v6647
    %7054 = vst.msk [vmem:[%s13 + $0x40] sm:$0xff] %vm5775, %v6648
    %7055 = vst.msk [vmem:[%s13 + $0x48] sm:$0xff] %vm5775, %v6649
    %7056 = vst.msk [vmem:[%s13 + $0x50] sm:$0xff] %vm5775, %v6650
    %7057 = vst.msk [vmem:[%s13 + $0x58] sm:$0xff] %vm5775, %v6651
    %7058 = vst.msk [vmem:[%s13 + $0x60] sm:$0xff] %vm5775, %v6652
    %7059 = vst.msk [vmem:[%s13 + $0x68] sm:$0xff] %vm5775, %v6653
    %7060 = vst.msk [vmem:[%s13 + $0x70] sm:$0xff] %vm5775, %v6654
    %7061 = vst.msk [vmem:[%s13 + $0x78] sm:$0xff] %vm5775, %v6655
    %7062 = vst.msk [vmem:[%s13 + $0x80] sm:$0xff] %vm5775, %v6656
    %7063 = vst.msk [vmem:[%s13 + $0x88] sm:$0xff] %vm5775, %v6657
    %7064 = vst.msk [vmem:[%s13 + $0x90] sm:$0xff] %vm5775, %v6658
    %7065 = vst.msk [vmem:[%s13 + $0x98] sm:$0xff] %vm5775, %v6659
    %7066 = vst.msk [vmem:[%s13 + $0xa0] sm:$0xff] %vm5775, %v6660
    %7067 = vst.msk [vmem:[%s13 + $0xa8] sm:$0xff] %vm5775, %v6661
    %7068 = vst.msk [vmem:[%s13 + $0xb0] sm:$0xff] %vm5775, %v6662
    %7069 = vst.msk [vmem:[%s13 + $0xb8] sm:$0xff] %vm5775, %v6663
    %7070 = vst.msk [vmem:[%s13 + $0xc0] sm:$0xff] %vm5775, %v6664
    %7071 = vst.msk [vmem:[%s13 + $0xc8] sm:$0xff] %vm5775, %v6665
    %7072 = vst.msk [vmem:[%s13 + $0xd0] sm:$0xff] %vm5775, %v6666
    %7073 = vst.msk [vmem:[%s13 + $0xd8] sm:$0xff] %vm5775, %v6667
    %7074 = vst.msk [vmem:[%s13 + $0xe0] sm:$0xff] %vm5775, %v6668
    %7075 = vst.msk [vmem:[%s13 + $0xe8] sm:$0xff] %vm5775, %v6669
    %7076 = vst.msk [vmem:[%s13 + $0xf0] sm:$0xff] %vm5775, %v6670
    %7077 = vst.msk [vmem:[%s13 + $0xf8] sm:$0xff] %vm5775, %v6671
    %7078 = vst.msk [vmem:[%s13 + $0x100] sm:$0xff] %vm5775, %v6672
    %7079 = vst.msk [vmem:[%s13 + $0x108] sm:$0xff] %vm5775, %v6673
    %7080 = vst.msk [vmem:[%s13 + $0x110] sm:$0xff] %vm5775, %v6674
    %7081 = vst.msk [vmem:[%s13 + $0x118] sm:$0xff] %vm5775, %v6675
    %7082 = vst.msk [vmem:[%s13 + $0x120] sm:$0xff] %vm5775, %v6861
    %7083 = vst.msk [vmem:[%s13 + $0x128] sm:$0xff] %vm5775, %v6862
    %7084 = vst.msk [vmem:[%s13 + $0x130] sm:$0xff] %vm5775, %v6863
    %7085 = vst.msk [vmem:[%s13 + $0x138] sm:$0xff] %vm5775, %v6864
    %7086 = vst.msk [vmem:[%s13 + $0x140] sm:$0xff] %vm5775, %v6865
    %7087 = vst.msk [vmem:[%s13 + $0x148] sm:$0xff] %vm5775, %v6866
    %7088 = vst.msk [vmem:[%s13 + $0x150] sm:$0xff] %vm5775, %v6867
    %7089 = vst.msk [vmem:[%s13 + $0x158] sm:$0xff] %vm5775, %v6868
    %7090 = vst.msk [vmem:[%s13 + $0x160] sm:$0xff] %vm5775, %v6869
    %7091 = vst.msk [vmem:[%s13 + $0x168] sm:$0xff] %vm5775, %v6870
    %7092 = vst.msk [vmem:[%s13 + $0x170] sm:$0xff] %vm5775, %v6871
    %7093 = vst.msk [vmem:[%s13 + $0x178] sm:$0xff] %vm5775, %v6872
    %7094 = vst.msk [vmem:[%s13 + $0x180] sm:$0xff] %vm5775, %v6873
    %7095 = vst.msk [vmem:[%s13 + $0x188] sm:$0xff] %vm5775, %v6874
    %7096 = vst.msk [vmem:[%s13 + $0x190] sm:$0xff] %vm5775, %v6875
    %7097 = vst.msk [vmem:[%s13 + $0x198] sm:$0xff] %vm5775, %v6876
    %7098 = vst.msk [vmem:[%s13 + $0x1a0] sm:$0xff] %vm5775, %v6877
    %7099 = vst.msk [vmem:[%s13 + $0x1a8] sm:$0xff] %vm5775, %v6878
    %7100 = vst.msk [vmem:[%s13 + $0x1b0] sm:$0xff] %vm5775, %v6879
    %7101 = vst.msk [vmem:[%s13 + $0x1b8] sm:$0xff] %vm5775, %v6880
    %7102 = vst.msk [vmem:[%s13 + $0x1c0] sm:$0xff] %vm5775, %v6881
    %7103 = vst.msk [vmem:[%s13 + $0x1c8] sm:$0xff] %vm5775, %v6882
    %7104 = vst.msk [vmem:[%s13 + $0x1d0] sm:$0xff] %vm5775, %v6883
    %7105 = vst.msk [vmem:[%s13 + $0x1d8] sm:$0xff] %vm5775, %v6884
    %7106 = vst.msk [vmem:[%s13 + $0x1e0] sm:$0xff] %vm5775, %v6885
    %7107 = vst.msk [vmem:[%s13 + $0x1e8] sm:$0xff] %vm5775, %v6886
    %7108 = vst.msk [vmem:[%s13 + $0x1f0] sm:$0xff] %vm5775, %v6887
    %7109 = vst.msk [vmem:[%s13 + $0x1f8] sm:$0xff] %vm5775, %v6888
    %7110 = vst.msk [vmem:[%s13 + $0x200] sm:$0xff] %vm5775, %v6889
    %7111 = vst.msk [vmem:[%s13 + $0x208] sm:$0xff] %vm5775, %v6890
    %7112 = vst.msk [vmem:[%s13 + $0x210] sm:$0xff] %vm5775, %v6891
    %7113 = vst.msk [vmem:[%s13 + $0x218] sm:$0xff] %vm5775, %v6892
    %7114 = vst.msk [vmem:[%s13 + $0x220] sm:$0xff] %vm5775, %v6893
    %7115 = vst.msk [vmem:[%s13 + $0x228] sm:$0xff] %vm5775, %v6894
    %7116 = vst.msk [vmem:[%s13 + $0x230] sm:$0xff] %vm5775, %v6895
    %7117 = vst.msk [vmem:[%s13 + $0x238] sm:$0xff] %vm5775, %v6896
    %7118 = vst.msk [vmem:[%s13 + $0x240] sm:$0xff] %vm5775, %v7010
    %7119 = vst.msk [vmem:[%s13 + $0x248] sm:$0xff] %vm5775, %v7011
    %7120 = vst.msk [vmem:[%s13 + $0x250] sm:$0xff] %vm5775, %v7012
    %7121 = vst.msk [vmem:[%s13 + $0x258] sm:$0xff] %vm5775, %v7013
    %7122 = vst.msk [vmem:[%s13 + $0x260] sm:$0xff] %vm5775, %v7014
    %7123 = vst.msk [vmem:[%s13 + $0x268] sm:$0xff] %vm5775, %v7015
    %7124 = vst.msk [vmem:[%s13 + $0x270] sm:$0xff] %vm5775, %v7016
    %7125 = vst.msk [vmem:[%s13 + $0x278] sm:$0xff] %vm5775, %v7017
    %7126 = vst.msk [vmem:[%s13 + $0x280] sm:$0xff] %vm5775, %v7018
    %7127 = vst.msk [vmem:[%s13 + $0x288] sm:$0xff] %vm5775, %v7019
    %7128 = vst.msk [vmem:[%s13 + $0x290] sm:$0xff] %vm5775, %v7020
    %7129 = vst.msk [vmem:[%s13 + $0x298] sm:$0xff] %vm5775, %v7021
    %7130 = vst.msk [vmem:[%s13 + $0x2a0] sm:$0xff] %vm5775, %v7022
    %7131 = vst.msk [vmem:[%s13 + $0x2a8] sm:$0xff] %vm5775, %v7023
    %7132 = vst.msk [vmem:[%s13 + $0x2b0] sm:$0xff] %vm5775, %v7024
    %7133 = vst.msk [vmem:[%s13 + $0x2b8] sm:$0xff] %vm5775, %v7025
    %7134 = vst.msk [vmem:[%s13 + $0x2c0] sm:$0xff] %vm5775, %v7026
    %7135 = vst.msk [vmem:[%s13 + $0x2c8] sm:$0xff] %vm5775, %v7027
    %7136 = vst.msk [vmem:[%s13 + $0x2d0] sm:$0xff] %vm5775, %v7028
    %7137 = vst.msk [vmem:[%s13 + $0x2d8] sm:$0xff] %vm5775, %v7029
    %7138 = vst.msk [vmem:[%s13 + $0x2e0] sm:$0xff] %vm5775, %v7030
    %7139 = vst.msk [vmem:[%s13 + $0x2e8] sm:$0xff] %vm5775, %v7031
    %7140 = vst.msk [vmem:[%s13 + $0x2f0] sm:$0xff] %vm5775, %v7032
    %7141 = vst.msk [vmem:[%s13 + $0x2f8] sm:$0xff] %vm5775, %v7033
    %7142 = vst.msk [vmem:[%s13 + $0x300] sm:$0xff] %vm5775, %v7034
    %7143 = vst.msk [vmem:[%s13 + $0x308] sm:$0xff] %vm5775, %v7035
    %7144 = vst.msk [vmem:[%s13 + $0x310] sm:$0xff] %vm5775, %v7036
    %7145 = vst.msk [vmem:[%s13 + $0x318] sm:$0xff] %vm5775, %v7037
    %7146 = vst.msk [vmem:[%s13 + $0x320] sm:$0xff] %vm5775, %v7038
    %7147 = vst.msk [vmem:[%s13 + $0x328] sm:$0xff] %vm5775, %v7039
    %7148 = vst.msk [vmem:[%s13 + $0x330] sm:$0xff] %vm5775, %v7040
    %7149 = vst.msk [vmem:[%s13 + $0x338] sm:$0xff] %vm5775, %v7041
    %7150 = vst.msk [vmem:[%s13 + $0x340] sm:$0xff] %vm5775, %v7042
    %7151 = vst.msk [vmem:[%s13 + $0x348] sm:$0xff] %vm5775, %v7043
    %7152 = vst.msk [vmem:[%s13 + $0x350] sm:$0xff] %vm5775, %v7044
    %7153 = vst.msk [vmem:[%s13 + $0x358] sm:$0xff] %vm5775, %v7045
    %7155 = vrot.lane.b32.xlu0 %v7011, 64
    %v7156 = vpop.permute.xlu0 %7155
    %7159 = vrot.lane.b32.xlu0 %v7013, 64
    %v7160 = vpop.permute.xlu0 %7159
    %7163 = vrot.lane.b32.xlu0 %v7015, 64
    %v7164 = vpop.permute.xlu0 %7163
    %7167 = vrot.lane.b32.xlu0 %v7017, 64
    %v7168 = vpop.permute.xlu0 %7167
    %7171 = vrot.lane.b32.xlu0 %v7019, 64
    %v7172 = vpop.permute.xlu0 %7171
    %7175 = vrot.lane.b32.xlu0 %v7021, 64
    %v7176 = vpop.permute.xlu0 %7175
    %7179 = vrot.lane.b32.xlu0 %v7023, 64
    %v7180 = vpop.permute.xlu0 %7179
    %7183 = vrot.lane.b32.xlu0 %v7025, 64
    %v7184 = vpop.permute.xlu0 %7183
    %v7186 = vsel %vm5775, %v7010, %v7156
    %v7187 = vsel %vm5775, %v7012, %v7160
    %v7188 = vsel %vm5775, %v7014, %v7164
    %v7189 = vsel %vm5775, %v7016, %v7168
    %v7190 = vsel %vm5775, %v7018, %v7172
    %v7191 = vsel %vm5775, %v7020, %v7176
    %v7192 = vsel %vm5775, %v7022, %v7180
    %v7193 = vsel %vm5775, %v7024, %v7184
    %7195 = vrot.lane.b32.xlu0 %v7027, 64
    %v7196 = vpop.permute.xlu0 %7195
    %7199 = vrot.lane.b32.xlu0 %v7029, 64
    %v7200 = vpop.permute.xlu0 %7199
    %7203 = vrot.lane.b32.xlu0 %v7031, 64
    %v7204 = vpop.permute.xlu0 %7203
    %7207 = vrot.lane.b32.xlu0 %v7033, 64
    %v7208 = vpop.permute.xlu0 %7207
    %7211 = vrot.lane.b32.xlu0 %v7035, 64
    %v7212 = vpop.permute.xlu0 %7211
    %7215 = vrot.lane.b32.xlu0 %v7037, 64
    %v7216 = vpop.permute.xlu0 %7215
    %7219 = vrot.lane.b32.xlu0 %v7039, 64
    %v7220 = vpop.permute.xlu0 %7219
    %7223 = vrot.lane.b32.xlu0 %v7041, 64
    %v7224 = vpop.permute.xlu0 %7223
    %v7226 = vsel %vm5775, %v7026, %v7196
    %v7227 = vsel %vm5775, %v7028, %v7200
    %v7228 = vsel %vm5775, %v7030, %v7204
    %v7229 = vsel %vm5775, %v7032, %v7208
    %v7230 = vsel %vm5775, %v7034, %v7212
    %v7231 = vsel %vm5775, %v7036, %v7216
    %v7232 = vsel %vm5775, %v7038, %v7220
    %v7233 = vsel %vm5775, %v7040, %v7224
    %7235 = vrot.lane.b32.xlu0 %v7043, 64
    %v7236 = vpop.permute.xlu0 %7235
    %7239 = vrot.lane.b32.xlu0 %v7045, 64
    %v7240 = vpop.permute.xlu0 %7239
    %v7242 = vsel %vm5775, %v7042, %v7236
    %v7243 = vsel %vm5775, %v7044, %v7240
    %v7244 = vpack.c.bf16 %v7186, %v7186
    %v7245 = vpack.c.bf16 %v7187, %v7187
    %v7246 = vpack.c.bf16 %v7188, %v7188
    %v7247 = vpack.c.bf16 %v7189, %v7189
    %v7248 = vpack.c.bf16 %v7190, %v7190
    %v7249 = vpack.c.bf16 %v7191, %v7191
    %v7250 = vpack.c.bf16 %v7192, %v7192
    %v7251 = vpack.c.bf16 %v7193, %v7193
    %v7252 = vpack.c.bf16 %v7226, %v7226
    %v7253 = vpack.c.bf16 %v7227, %v7227
    %v7254 = vpack.c.bf16 %v7228, %v7228
    %v7255 = vpack.c.bf16 %v7229, %v7229
    %v7256 = vpack.c.bf16 %v7230, %v7230
    %v7257 = vpack.c.bf16 %v7231, %v7231
    %v7258 = vpack.c.bf16 %v7232, %v7232
    %v7259 = vpack.c.bf16 %v7233, %v7233
    %v7260 = vpack.c.bf16 %v7242, %v7242
    %v7261 = vpack.c.bf16 %v7243, %v7243
    %v7262 = vld [vmem:[%s8] sm:$0xff]
    %v7263 = vld [vmem:[%s8 + $0x8] sm:$0xff]
    %v7264 = vld [vmem:[%s8 + $0x10] sm:$0xff]
    %v7265 = vld [vmem:[%s8 + $0x18] sm:$0xff]
    %v7266 = vld [vmem:[%s8 + $0x20] sm:$0xff]
    %v7267 = vld [vmem:[%s8 + $0x28] sm:$0xff]
    %v7268 = vld [vmem:[%s8 + $0x30] sm:$0xff]
    %v7269 = vld [vmem:[%s8 + $0x38] sm:$0xff]
    %v7270 = vld [vmem:[%s8 + $0x40] sm:$0xff]
    %v7271 = vld [vmem:[%s8 + $0x48] sm:$0xff]
    %v7272 = vld [vmem:[%s8 + $0x50] sm:$0xff]
    %v7273 = vld [vmem:[%s8 + $0x58] sm:$0xff]
    %v7274 = vld [vmem:[%s8 + $0x60] sm:$0xff]
    %v7275 = vld [vmem:[%s8 + $0x68] sm:$0xff]
    %v7276 = vld [vmem:[%s8 + $0x70] sm:$0xff]
    %v7277 = vld [vmem:[%s8 + $0x78] sm:$0xff]
    %v7278 = vld [vmem:[%s8 + $0x80] sm:$0xff]
    %v7279 = vld [vmem:[%s8 + $0x88] sm:$0xff]
    %v7280 = vld [vmem:[%s8 + $0x90] sm:$0xff]
    %v7281 = vld [vmem:[%s8 + $0x98] sm:$0xff]
    %v7282 = vld [vmem:[%s8 + $0xa0] sm:$0xff]
    %v7283 = vld [vmem:[%s8 + $0xa8] sm:$0xff]
    %v7284 = vld [vmem:[%s8 + $0xb0] sm:$0xff]
    %v7285 = vld [vmem:[%s8 + $0xb8] sm:$0xff]
    %v7286 = vld [vmem:[%s8 + $0xc0] sm:$0xff]
    %v7287 = vld [vmem:[%s8 + $0xc8] sm:$0xff]
    %v7288 = vld [vmem:[%s8 + $0xd0] sm:$0xff]
    %v7289 = vld [vmem:[%s8 + $0xd8] sm:$0xff]
    %v7290 = vld [vmem:[%s8 + $0xe0] sm:$0xff]
    %v7291 = vld [vmem:[%s8 + $0xe8] sm:$0xff]
    %v7292 = vld [vmem:[%s8 + $0xf0] sm:$0xff]
    %v7293 = vld [vmem:[%s8 + $0xf8] sm:$0xff]
    %v7294 = vld [vmem:[%s8 + $0x100] sm:$0xff]
    %v7295 = vld [vmem:[%s8 + $0x108] sm:$0xff]
    %v7296 = vld [vmem:[%s8 + $0x110] sm:$0xff]
    %v7297 = vld [vmem:[%s8 + $0x118] sm:$0xff]
    %v7298 = vld [vmem:[%s8 + $0x120] sm:$0xff]
    %v7299 = vld [vmem:[%s8 + $0x128] sm:$0xff]
    %v7300 = vld [vmem:[%s8 + $0x130] sm:$0xff]
    %v7301 = vld [vmem:[%s8 + $0x138] sm:$0xff]
    %v7302 = vld [vmem:[%s8 + $0x140] sm:$0xff]
    %v7303 = vld [vmem:[%s8 + $0x148] sm:$0xff]
    %v7304 = vld [vmem:[%s8 + $0x150] sm:$0xff]
    %v7305 = vld [vmem:[%s8 + $0x158] sm:$0xff]
    %v7306 = vld [vmem:[%s8 + $0x160] sm:$0xff]
    %v7307 = vld [vmem:[%s8 + $0x168] sm:$0xff]
    %v7308 = vld [vmem:[%s8 + $0x170] sm:$0xff]
    %v7309 = vld [vmem:[%s8 + $0x178] sm:$0xff]
    %v7310 = vld [vmem:[%s8 + $0x180] sm:$0xff]
    %v7311 = vld [vmem:[%s8 + $0x188] sm:$0xff]
    %v7312 = vld [vmem:[%s8 + $0x190] sm:$0xff]
    %v7313 = vld [vmem:[%s8 + $0x198] sm:$0xff]
    %v7314 = vld [vmem:[%s8 + $0x1a0] sm:$0xff]
    %v7315 = vld [vmem:[%s8 + $0x1a8] sm:$0xff]
    %v7316 = vld [vmem:[%s8 + $0x1b0] sm:$0xff]
    %v7317 = vld [vmem:[%s8 + $0x1b8] sm:$0xff]
    %v7318 = vld [vmem:[%s8 + $0x1c0] sm:$0xff]
    %v7319 = vld [vmem:[%s8 + $0x1c8] sm:$0xff]
    %v7320 = vld [vmem:[%s8 + $0x1d0] sm:$0xff]
    %v7321 = vld [vmem:[%s8 + $0x1d8] sm:$0xff]
    %v7322 = vld [vmem:[%s8 + $0x1e0] sm:$0xff]
    %v7323 = vld [vmem:[%s8 + $0x1e8] sm:$0xff]
    %v7324 = vld [vmem:[%s8 + $0x1f0] sm:$0xff]
    %v7325 = vld [vmem:[%s8 + $0x1f8] sm:$0xff]
    %v7326 = vld [vmem:[%s8 + $0x200] sm:$0xff]
    %v7327 = vld [vmem:[%s8 + $0x208] sm:$0xff]
    %v7328 = vld [vmem:[%s8 + $0x210] sm:$0xff]
    %v7329 = vld [vmem:[%s8 + $0x218] sm:$0xff]
    %v7330 = vld [vmem:[%s8 + $0x220] sm:$0xff]
    %v7331 = vld [vmem:[%s8 + $0x228] sm:$0xff]
    %v7332 = vld [vmem:[%s8 + $0x230] sm:$0xff]
    %v7333 = vld [vmem:[%s8 + $0x238] sm:$0xff]
    %v7334 = vld [vmem:[%s8 + $0x240] sm:$0xff]
    %v7335 = vld [vmem:[%s8 + $0x248] sm:$0xff]
    %v7336 = vld [vmem:[%s8 + $0x250] sm:$0xff]
    %v7337 = vld [vmem:[%s8 + $0x258] sm:$0xff]
    %v7338 = vld [vmem:[%s8 + $0x260] sm:$0xff]
    %v7339 = vld [vmem:[%s8 + $0x268] sm:$0xff]
    %v7340 = vld [vmem:[%s8 + $0x270] sm:$0xff]
    %v7341 = vld [vmem:[%s8 + $0x278] sm:$0xff]
    %v7342 = vld [vmem:[%s8 + $0x280] sm:$0xff]
    %v7343 = vld [vmem:[%s8 + $0x288] sm:$0xff]
    %v7344 = vld [vmem:[%s8 + $0x290] sm:$0xff]
    %v7345 = vld [vmem:[%s8 + $0x298] sm:$0xff]
    %v7346 = vld [vmem:[%s8 + $0x2a0] sm:$0xff]
    %v7347 = vld [vmem:[%s8 + $0x2a8] sm:$0xff]
    %v7348 = vld [vmem:[%s8 + $0x2b0] sm:$0xff]
    %v7349 = vld [vmem:[%s8 + $0x2b8] sm:$0xff]
    %v7350 = vld [vmem:[%s8 + $0x2c0] sm:$0xff]
    %v7351 = vld [vmem:[%s8 + $0x2c8] sm:$0xff]
    %v7352 = vld [vmem:[%s8 + $0x2d0] sm:$0xff]
    %v7353 = vld [vmem:[%s8 + $0x2d8] sm:$0xff]
    %v7354 = vld [vmem:[%s8 + $0x2e0] sm:$0xff]
    %v7355 = vld [vmem:[%s8 + $0x2e8] sm:$0xff]
    %v7356 = vld [vmem:[%s8 + $0x2f0] sm:$0xff]
    %v7357 = vld [vmem:[%s8 + $0x2f8] sm:$0xff]
    %v7358 = vld [vmem:[%s8 + $0x300] sm:$0xff]
    %v7359 = vld [vmem:[%s8 + $0x308] sm:$0xff]
    %v7360 = vld [vmem:[%s8 + $0x310] sm:$0xff]
    %v7361 = vld [vmem:[%s8 + $0x318] sm:$0xff]
    %v7362 = vld [vmem:[%s8 + $0x320] sm:$0xff]
    %v7363 = vld [vmem:[%s8 + $0x328] sm:$0xff]
    %v7364 = vld [vmem:[%s8 + $0x330] sm:$0xff]
    %v7365 = vld [vmem:[%s8 + $0x338] sm:$0xff]
    %v7366 = vld [vmem:[%s8 + $0x340] sm:$0xff]
    %v7367 = vld [vmem:[%s8 + $0x348] sm:$0xff]
    %v7368 = vld [vmem:[%s8 + $0x350] sm:$0xff]
    %v7369 = vld [vmem:[%s8 + $0x358] sm:$0xff]
    %v7370 = vld [vmem:[%s8 + $0x360] sm:$0xff]
    %v7371 = vld [vmem:[%s8 + $0x368] sm:$0xff]
    %v7372 = vld [vmem:[%s8 + $0x370] sm:$0xff]
    %v7373 = vld [vmem:[%s8 + $0x378] sm:$0xff]
    %v7374 = vld [vmem:[%s8 + $0x380] sm:$0xff]
    %v7375 = vld [vmem:[%s8 + $0x388] sm:$0xff]
    %v7376 = vld [vmem:[%s8 + $0x390] sm:$0xff]
    %v7377 = vld [vmem:[%s8 + $0x398] sm:$0xff]
    %v7378 = vld [vmem:[%s8 + $0x3a0] sm:$0xff]
    %v7379 = vld [vmem:[%s8 + $0x3a8] sm:$0xff]
    %v7380 = vld [vmem:[%s8 + $0x3b0] sm:$0xff]
    %v7381 = vld [vmem:[%s8 + $0x3b8] sm:$0xff]
    %v7382 = vld [vmem:[%s8 + $0x3c0] sm:$0xff]
    %v7383 = vld [vmem:[%s8 + $0x3c8] sm:$0xff]
    %v7384 = vld [vmem:[%s8 + $0x3d0] sm:$0xff]
    %v7385 = vld [vmem:[%s8 + $0x3d8] sm:$0xff]
    %v7386 = vld [vmem:[%s8 + $0x3e0] sm:$0xff]
    %v7387 = vld [vmem:[%s8 + $0x3e8] sm:$0xff]
    %v7388 = vld [vmem:[%s8 + $0x3f0] sm:$0xff]
    %v7389 = vld [vmem:[%s8 + $0x3f8] sm:$0xff]
    %v7390 = vld [vmem:[%s8 + $0x400] sm:$0xff]
    %v7391 = vld [vmem:[%s8 + $0x408] sm:$0xff]
    %v7392 = vld [vmem:[%s8 + $0x410] sm:$0xff]
    %v7393 = vld [vmem:[%s8 + $0x418] sm:$0xff]
    %v7394 = vld [vmem:[%s8 + $0x420] sm:$0xff]
    %v7395 = vld [vmem:[%s8 + $0x428] sm:$0xff]
    %v7396 = vld [vmem:[%s8 + $0x430] sm:$0xff]
    %v7397 = vld [vmem:[%s8 + $0x438] sm:$0xff]
    %v7398 = vld [vmem:[%s8 + $0x440] sm:$0xff]
    %v7399 = vld [vmem:[%s8 + $0x448] sm:$0xff]
    %v7400 = vld [vmem:[%s8 + $0x450] sm:$0xff]
    %v7401 = vld [vmem:[%s8 + $0x458] sm:$0xff]
    %v7402 = vld [vmem:[%s8 + $0x460] sm:$0xff]
    %v7403 = vld [vmem:[%s8 + $0x468] sm:$0xff]
    %v7404 = vld [vmem:[%s8 + $0x470] sm:$0xff]
    %v7405 = vld [vmem:[%s8 + $0x478] sm:$0xff]
    %v7406 = vld [vmem:[%s8 + $0x480] sm:$0xff]
    %v7407 = vld [vmem:[%s8 + $0x488] sm:$0xff]
    %v7408 = vld [vmem:[%s8 + $0x490] sm:$0xff]
    %v7409 = vld [vmem:[%s8 + $0x498] sm:$0xff]
    %v7410 = vld [vmem:[%s8 + $0x4a0] sm:$0xff]
    %v7411 = vld [vmem:[%s8 + $0x4a8] sm:$0xff]
    %v7412 = vld [vmem:[%s8 + $0x4b0] sm:$0xff]
    %v7413 = vld [vmem:[%s8 + $0x4b8] sm:$0xff]
    %v7414 = vld [vmem:[%s8 + $0x4c0] sm:$0xff]
    %v7415 = vld [vmem:[%s8 + $0x4c8] sm:$0xff]
    %v7416 = vld [vmem:[%s8 + $0x4d0] sm:$0xff]
    %v7417 = vld [vmem:[%s8 + $0x4d8] sm:$0xff]
    %v7418 = vld [vmem:[%s8 + $0x4e0] sm:$0xff]
    %v7419 = vld [vmem:[%s8 + $0x4e8] sm:$0xff]
    %v7420 = vld [vmem:[%s8 + $0x4f0] sm:$0xff]
    %v7421 = vld [vmem:[%s8 + $0x4f8] sm:$0xff]
    %v7422 = vld [vmem:[%s8 + $0x500] sm:$0xff]
    %v7423 = vld [vmem:[%s8 + $0x508] sm:$0xff]
    %v7424 = vld [vmem:[%s8 + $0x510] sm:$0xff]
    %v7425 = vld [vmem:[%s8 + $0x518] sm:$0xff]
    %v7426 = vld [vmem:[%s8 + $0x520] sm:$0xff]
    %v7427 = vld [vmem:[%s8 + $0x528] sm:$0xff]
    %v7428 = vld [vmem:[%s8 + $0x530] sm:$0xff]
    %v7429 = vld [vmem:[%s8 + $0x538] sm:$0xff]
    %v7430 = vld [vmem:[%s8 + $0x540] sm:$0xff]
    %v7431 = vld [vmem:[%s8 + $0x548] sm:$0xff]
    %v7432 = vld [vmem:[%s8 + $0x550] sm:$0xff]
    %v7433 = vld [vmem:[%s8 + $0x558] sm:$0xff]
    %v7434 = vld [vmem:[%s8 + $0x560] sm:$0xff]
    %v7435 = vld [vmem:[%s8 + $0x568] sm:$0xff]
    %v7436 = vld [vmem:[%s8 + $0x570] sm:$0xff]
    %v7437 = vld [vmem:[%s8 + $0x578] sm:$0xff]
    %v7438 = vld [vmem:[%s8 + $0x580] sm:$0xff]
    %v7439 = vld [vmem:[%s8 + $0x588] sm:$0xff]
    %v7440 = vld [vmem:[%s8 + $0x590] sm:$0xff]
    %v7441 = vld [vmem:[%s8 + $0x598] sm:$0xff]
    %v7442 = vld [vmem:[%s8 + $0x5a0] sm:$0xff]
    %v7443 = vld [vmem:[%s8 + $0x5a8] sm:$0xff]
    %v7444 = vld [vmem:[%s8 + $0x5b0] sm:$0xff]
    %v7445 = vld [vmem:[%s8 + $0x5b8] sm:$0xff]
    %v7446 = vld [vmem:[%s8 + $0x5c0] sm:$0xff]
    %v7447 = vld [vmem:[%s8 + $0x5c8] sm:$0xff]
    %v7448 = vld [vmem:[%s8 + $0x5d0] sm:$0xff]
    %v7449 = vld [vmem:[%s8 + $0x5d8] sm:$0xff]
    %v7450 = vld [vmem:[%s8 + $0x5e0] sm:$0xff]
    %v7451 = vld [vmem:[%s8 + $0x5e8] sm:$0xff]
    %v7452 = vld [vmem:[%s8 + $0x5f0] sm:$0xff]
    %v7453 = vld [vmem:[%s8 + $0x5f8] sm:$0xff]
    %v7454 = vld [vmem:[%s8 + $0x600] sm:$0xff]
    %v7455 = vld [vmem:[%s8 + $0x608] sm:$0xff]
    %v7456 = vld [vmem:[%s8 + $0x610] sm:$0xff]
    %v7457 = vld [vmem:[%s8 + $0x618] sm:$0xff]
    %v7458 = vld [vmem:[%s8 + $0x620] sm:$0xff]
    %v7459 = vld [vmem:[%s8 + $0x628] sm:$0xff]
    %v7460 = vld [vmem:[%s8 + $0x630] sm:$0xff]
    %v7461 = vld [vmem:[%s8 + $0x638] sm:$0xff]
    %v7462 = vld [vmem:[%s8 + $0x640] sm:$0xff]
    %v7463 = vld [vmem:[%s8 + $0x648] sm:$0xff]
    %v7464 = vld [vmem:[%s8 + $0x650] sm:$0xff]
    %v7465 = vld [vmem:[%s8 + $0x658] sm:$0xff]
    %v7466 = vld [vmem:[%s8 + $0x660] sm:$0xff]
    %v7467 = vld [vmem:[%s8 + $0x668] sm:$0xff]
    %v7468 = vld [vmem:[%s8 + $0x670] sm:$0xff]
    %v7469 = vld [vmem:[%s8 + $0x678] sm:$0xff]
    %v7470 = vld [vmem:[%s8 + $0x680] sm:$0xff]
    %v7471 = vld [vmem:[%s8 + $0x688] sm:$0xff]
    %v7472 = vld [vmem:[%s8 + $0x690] sm:$0xff]
    %v7473 = vld [vmem:[%s8 + $0x698] sm:$0xff]
    %v7474 = vld [vmem:[%s8 + $0x6a0] sm:$0xff]
    %v7475 = vld [vmem:[%s8 + $0x6a8] sm:$0xff]
    %v7476 = vld [vmem:[%s8 + $0x6b0] sm:$0xff]
    %v7477 = vld [vmem:[%s8 + $0x6b8] sm:$0xff]
    %v7478 = vld [vmem:[%s8 + $0x6c0] sm:$0xff]
    %v7479 = vld [vmem:[%s8 + $0x6c8] sm:$0xff]
    %v7480 = vld [vmem:[%s8 + $0x6d0] sm:$0xff]
    %v7481 = vld [vmem:[%s8 + $0x6d8] sm:$0xff]
    %v7482 = vld [vmem:[%s8 + $0x6e0] sm:$0xff]
    %v7483 = vld [vmem:[%s8 + $0x6e8] sm:$0xff]
    %v7484 = vld [vmem:[%s8 + $0x6f0] sm:$0xff]
    %v7485 = vld [vmem:[%s8 + $0x6f8] sm:$0xff]
    %v7486 = vld [vmem:[%s8 + $0x700] sm:$0xff]
    %v7487 = vld [vmem:[%s8 + $0x708] sm:$0xff]
    %v7488 = vld [vmem:[%s8 + $0x710] sm:$0xff]
    %v7489 = vld [vmem:[%s8 + $0x718] sm:$0xff]
    %v7490 = vld [vmem:[%s8 + $0x720] sm:$0xff]
    %v7491 = vld [vmem:[%s8 + $0x728] sm:$0xff]
    %v7492 = vld [vmem:[%s8 + $0x730] sm:$0xff]
    %v7493 = vld [vmem:[%s8 + $0x738] sm:$0xff]
    %v7494 = vld [vmem:[%s8 + $0x740] sm:$0xff]
    %v7495 = vld [vmem:[%s8 + $0x748] sm:$0xff]
    %v7496 = vld [vmem:[%s8 + $0x750] sm:$0xff]
    %v7497 = vld [vmem:[%s8 + $0x758] sm:$0xff]
    %v7498 = vld [vmem:[%s8 + $0x760] sm:$0xff]
    %v7499 = vld [vmem:[%s8 + $0x768] sm:$0xff]
    %v7500 = vld [vmem:[%s8 + $0x770] sm:$0xff]
    %v7501 = vld [vmem:[%s8 + $0x778] sm:$0xff]
    %v7502 = vld [vmem:[%s8 + $0x780] sm:$0xff]
    %v7503 = vld [vmem:[%s8 + $0x788] sm:$0xff]
    %v7504 = vld [vmem:[%s8 + $0x790] sm:$0xff]
    %v7505 = vld [vmem:[%s8 + $0x798] sm:$0xff]
    %v7506 = vld [vmem:[%s8 + $0x7a0] sm:$0xff]
    %v7507 = vld [vmem:[%s8 + $0x7a8] sm:$0xff]
    %v7508 = vld [vmem:[%s8 + $0x7b0] sm:$0xff]
    %v7509 = vld [vmem:[%s8 + $0x7b8] sm:$0xff]
    %v7510 = vld [vmem:[%s8 + $0x7c0] sm:$0xff]
    %v7511 = vld [vmem:[%s8 + $0x7c8] sm:$0xff]
    %v7512 = vld [vmem:[%s8 + $0x7d0] sm:$0xff]
    %v7513 = vld [vmem:[%s8 + $0x7d8] sm:$0xff]
    %v7514 = vld [vmem:[%s8 + $0x7e0] sm:$0xff]
    %v7515 = vld [vmem:[%s8 + $0x7e8] sm:$0xff]
    %v7516 = vld [vmem:[%s8 + $0x7f0] sm:$0xff]
    %v7517 = vld [vmem:[%s8 + $0x7f8] sm:$0xff]
    %v7518 = vld [vmem:[%s8 + $0x800] sm:$0xff]
    %v7519 = vld [vmem:[%s8 + $0x808] sm:$0xff]
    %v7520 = vld [vmem:[%s8 + $0x810] sm:$0xff]
    %v7521 = vld [vmem:[%s8 + $0x818] sm:$0xff]
    %v7522 = vld [vmem:[%s8 + $0x820] sm:$0xff]
    %v7523 = vld [vmem:[%s8 + $0x828] sm:$0xff]
    %v7524 = vld [vmem:[%s8 + $0x830] sm:$0xff]
    %v7525 = vld [vmem:[%s8 + $0x838] sm:$0xff]
    %v7526 = vld [vmem:[%s8 + $0x840] sm:$0xff]
    %v7527 = vld [vmem:[%s8 + $0x848] sm:$0xff]
    %v7528 = vld [vmem:[%s8 + $0x850] sm:$0xff]
    %v7529 = vld [vmem:[%s8 + $0x858] sm:$0xff]
    %v7530 = vld [vmem:[%s8 + $0x860] sm:$0xff]
    %v7531 = vld [vmem:[%s8 + $0x868] sm:$0xff]
    %v7532 = vld [vmem:[%s8 + $0x870] sm:$0xff]
    %v7533 = vld [vmem:[%s8 + $0x878] sm:$0xff]
    %v7534 = vld [vmem:[%s8 + $0x880] sm:$0xff]
    %v7535 = vld [vmem:[%s8 + $0x888] sm:$0xff]
    %v7536 = vld [vmem:[%s8 + $0x890] sm:$0xff]
    %v7537 = vld [vmem:[%s8 + $0x898] sm:$0xff]
    %v7538 = vld [vmem:[%s8 + $0x8a0] sm:$0xff]
    %v7539 = vld [vmem:[%s8 + $0x8a8] sm:$0xff]
    %v7540 = vld [vmem:[%s8 + $0x8b0] sm:$0xff]
    %v7541 = vld [vmem:[%s8 + $0x8b8] sm:$0xff]
    %v7542 = vld [vmem:[%s8 + $0x8c0] sm:$0xff]
    %v7543 = vld [vmem:[%s8 + $0x8c8] sm:$0xff]
    %v7544 = vld [vmem:[%s8 + $0x8d0] sm:$0xff]
    %v7545 = vld [vmem:[%s8 + $0x8d8] sm:$0xff]
    %v7546 = vld [vmem:[%s8 + $0x8e0] sm:$0xff]
    %v7547 = vld [vmem:[%s8 + $0x8e8] sm:$0xff]
    %v7548 = vld [vmem:[%s8 + $0x8f0] sm:$0xff]
    %v7549 = vld [vmem:[%s8 + $0x8f8] sm:$0xff]
    %v7838 = vunpack.c.l.b16 %v7262
    %v7839 = vunpack.c.h.b16 %v7262
    %v7840 = vunpack.c.l.b16 %v7263
    %v7841 = vunpack.c.h.b16 %v7263
    %v7842 = vunpack.c.l.b16 %v7264
    %v7843 = vunpack.c.h.b16 %v7264
    %v7844 = vunpack.c.l.b16 %v7265
    %v7845 = vunpack.c.h.b16 %v7265
    %v7846 = vunpack.c.l.b16 %v7266
    %v7847 = vunpack.c.h.b16 %v7266
    %v7848 = vunpack.c.l.b16 %v7267
    %v7849 = vunpack.c.h.b16 %v7267
    %v7850 = vunpack.c.l.b16 %v7268
    %v7851 = vunpack.c.h.b16 %v7268
    %v7852 = vunpack.c.l.b16 %v7269
    %v7853 = vunpack.c.h.b16 %v7269
    %v7854 = vunpack.c.l.b16 %v7270
    %v7855 = vunpack.c.h.b16 %v7270
    %v7856 = vunpack.c.l.b16 %v7271
    %v7857 = vunpack.c.h.b16 %v7271
    %v7858 = vunpack.c.l.b16 %v7272
    %v7859 = vunpack.c.h.b16 %v7272
    %v7860 = vunpack.c.l.b16 %v7273
    %v7861 = vunpack.c.h.b16 %v7273
    %v7862 = vunpack.c.l.b16 %v7274
    %v7863 = vunpack.c.h.b16 %v7274
    %v7864 = vunpack.c.l.b16 %v7275
    %v7865 = vunpack.c.h.b16 %v7275
    %v7866 = vunpack.c.l.b16 %v7276
    %v7867 = vunpack.c.h.b16 %v7276
    %v7868 = vunpack.c.l.b16 %v7277
    %v7869 = vunpack.c.h.b16 %v7277
    %v7870 = vunpack.c.l.b16 %v7278
    %v7871 = vunpack.c.h.b16 %v7278
    %v7872 = vunpack.c.l.b16 %v7279
    %v7873 = vunpack.c.h.b16 %v7279
    %v7874 = vunpack.c.l.b16 %v7280
    %v7875 = vunpack.c.h.b16 %v7280
    %v7876 = vunpack.c.l.b16 %v7281
    %v7877 = vunpack.c.h.b16 %v7281
    %v7878 = vunpack.c.l.b16 %v7282
    %v7879 = vunpack.c.h.b16 %v7282
    %v7880 = vunpack.c.l.b16 %v7283
    %v7881 = vunpack.c.h.b16 %v7283
    %v7882 = vunpack.c.l.b16 %v7284
    %v7883 = vunpack.c.h.b16 %v7284
    %v7884 = vunpack.c.l.b16 %v7285
    %v7885 = vunpack.c.h.b16 %v7285
    %v7886 = vunpack.c.l.b16 %v7286
    %v7887 = vunpack.c.h.b16 %v7286
    %v7888 = vunpack.c.l.b16 %v7287
    %v7889 = vunpack.c.h.b16 %v7287
    %v7890 = vunpack.c.l.b16 %v7288
    %v7891 = vunpack.c.h.b16 %v7288
    %v7892 = vunpack.c.l.b16 %v7289
    %v7893 = vunpack.c.h.b16 %v7289
    %v7894 = vunpack.c.l.b16 %v7290
    %v7895 = vunpack.c.h.b16 %v7290
    %v7896 = vunpack.c.l.b16 %v7291
    %v7897 = vunpack.c.h.b16 %v7291
    %v7898 = vunpack.c.l.b16 %v7292
    %v7899 = vunpack.c.h.b16 %v7292
    %v7900 = vunpack.c.l.b16 %v7293
    %v7901 = vunpack.c.h.b16 %v7293
    %v7902 = vunpack.c.l.b16 %v7294
    %v7903 = vunpack.c.h.b16 %v7294
    %v7904 = vunpack.c.l.b16 %v7295
    %v7905 = vunpack.c.h.b16 %v7295
    %v7906 = vunpack.c.l.b16 %v7296
    %v7907 = vunpack.c.h.b16 %v7296
    %v7908 = vunpack.c.l.b16 %v7297
    %v7909 = vunpack.c.h.b16 %v7297
    %v7910 = vunpack.c.l.b16 %v7298
    %v7911 = vunpack.c.h.b16 %v7298
    %v7912 = vunpack.c.l.b16 %v7299
    %v7913 = vunpack.c.h.b16 %v7299
    %v7914 = vunpack.c.l.b16 %v7300
    %v7915 = vunpack.c.h.b16 %v7300
    %v7916 = vunpack.c.l.b16 %v7301
    %v7917 = vunpack.c.h.b16 %v7301
    %v7918 = vunpack.c.l.b16 %v7302
    %v7919 = vunpack.c.h.b16 %v7302
    %v7920 = vunpack.c.l.b16 %v7303
    %v7921 = vunpack.c.h.b16 %v7303
    %v7922 = vunpack.c.l.b16 %v7304
    %v7923 = vunpack.c.h.b16 %v7304
    %v7924 = vunpack.c.l.b16 %v7305
    %v7925 = vunpack.c.h.b16 %v7305
    %v7926 = vunpack.c.l.b16 %v7306
    %v7927 = vunpack.c.h.b16 %v7306
    %v7928 = vunpack.c.l.b16 %v7307
    %v7929 = vunpack.c.h.b16 %v7307
    %v7930 = vunpack.c.l.b16 %v7308
    %v7931 = vunpack.c.h.b16 %v7308
    %v7932 = vunpack.c.l.b16 %v7309
    %v7933 = vunpack.c.h.b16 %v7309
    %v7934 = vunpack.c.l.b16 %v7310
    %v7935 = vunpack.c.h.b16 %v7310
    %v7936 = vunpack.c.l.b16 %v7311
    %v7937 = vunpack.c.h.b16 %v7311
    %v7938 = vunpack.c.l.b16 %v7312
    %v7939 = vunpack.c.h.b16 %v7312
    %v7940 = vunpack.c.l.b16 %v7313
    %v7941 = vunpack.c.h.b16 %v7313
    %v7942 = vunpack.c.l.b16 %v7314
    %v7943 = vunpack.c.h.b16 %v7314
    %v7944 = vunpack.c.l.b16 %v7315
    %v7945 = vunpack.c.h.b16 %v7315
    %v7946 = vunpack.c.l.b16 %v7316
    %v7947 = vunpack.c.h.b16 %v7316
    %v7948 = vunpack.c.l.b16 %v7317
    %v7949 = vunpack.c.h.b16 %v7317
    %v7950 = vunpack.c.l.b16 %v7318
    %v7951 = vunpack.c.h.b16 %v7318
    %v7952 = vunpack.c.l.b16 %v7319
    %v7953 = vunpack.c.h.b16 %v7319
    %v7954 = vunpack.c.l.b16 %v7320
    %v7955 = vunpack.c.h.b16 %v7320
    %v7956 = vunpack.c.l.b16 %v7321
    %v7957 = vunpack.c.h.b16 %v7321
    %v7958 = vunpack.c.l.b16 %v7322
    %v7959 = vunpack.c.h.b16 %v7322
    %v7960 = vunpack.c.l.b16 %v7323
    %v7961 = vunpack.c.h.b16 %v7323
    %v7962 = vunpack.c.l.b16 %v7324
    %v7963 = vunpack.c.h.b16 %v7324
    %v7964 = vunpack.c.l.b16 %v7325
    %v7965 = vunpack.c.h.b16 %v7325
    %v7966 = vunpack.c.l.b16 %v7326
    %v7967 = vunpack.c.h.b16 %v7326
    %v7968 = vunpack.c.l.b16 %v7327
    %v7969 = vunpack.c.h.b16 %v7327
    %v7970 = vunpack.c.l.b16 %v7328
    %v7971 = vunpack.c.h.b16 %v7328
    %v7972 = vunpack.c.l.b16 %v7329
    %v7973 = vunpack.c.h.b16 %v7329
    %v7974 = vunpack.c.l.b16 %v7330
    %v7975 = vunpack.c.h.b16 %v7330
    %v7976 = vunpack.c.l.b16 %v7331
    %v7977 = vunpack.c.h.b16 %v7331
    %v7978 = vunpack.c.l.b16 %v7332
    %v7979 = vunpack.c.h.b16 %v7332
    %v7980 = vunpack.c.l.b16 %v7333
    %v7981 = vunpack.c.h.b16 %v7333
    %v7982 = vunpack.c.l.b16 %v7334
    %v7983 = vunpack.c.h.b16 %v7334
    %v7984 = vunpack.c.l.b16 %v7335
    %v7985 = vunpack.c.h.b16 %v7335
    %v7986 = vunpack.c.l.b16 %v7336
    %v7987 = vunpack.c.h.b16 %v7336
    %v7988 = vunpack.c.l.b16 %v7337
    %v7989 = vunpack.c.h.b16 %v7337
    %v7990 = vunpack.c.l.b16 %v7338
    %v7991 = vunpack.c.h.b16 %v7338
    %v7992 = vunpack.c.l.b16 %v7339
    %v7993 = vunpack.c.h.b16 %v7339
    %v7994 = vunpack.c.l.b16 %v7340
    %v7995 = vunpack.c.h.b16 %v7340
    %v7996 = vunpack.c.l.b16 %v7341
    %v7997 = vunpack.c.h.b16 %v7341
    %v7998 = vunpack.c.l.b16 %v7342
    %v7999 = vunpack.c.h.b16 %v7342
    %v8000 = vunpack.c.l.b16 %v7343
    %v8001 = vunpack.c.h.b16 %v7343
    %v8002 = vunpack.c.l.b16 %v7344
    %v8003 = vunpack.c.h.b16 %v7344
    %v8004 = vunpack.c.l.b16 %v7345
    %v8005 = vunpack.c.h.b16 %v7345
    %v8006 = vunpack.c.l.b16 %v7346
    %v8007 = vunpack.c.h.b16 %v7346
    %v8008 = vunpack.c.l.b16 %v7347
    %v8009 = vunpack.c.h.b16 %v7347
    %v8010 = vunpack.c.l.b16 %v7348
    %v8011 = vunpack.c.h.b16 %v7348
    %v8012 = vunpack.c.l.b16 %v7349
    %v8013 = vunpack.c.h.b16 %v7349
    %v8014 = vunpack.c.l.b16 %v7350
    %v8015 = vunpack.c.h.b16 %v7350
    %v8016 = vunpack.c.l.b16 %v7351
    %v8017 = vunpack.c.h.b16 %v7351
    %v8018 = vunpack.c.l.b16 %v7352
    %v8019 = vunpack.c.h.b16 %v7352
    %v8020 = vunpack.c.l.b16 %v7353
    %v8021 = vunpack.c.h.b16 %v7353
    %v8022 = vunpack.c.l.b16 %v7354
    %v8023 = vunpack.c.h.b16 %v7354
    %v8024 = vunpack.c.l.b16 %v7355
    %v8025 = vunpack.c.h.b16 %v7355
    %v8026 = vunpack.c.l.b16 %v7356
    %v8027 = vunpack.c.h.b16 %v7356
    %v8028 = vunpack.c.l.b16 %v7357
    %v8029 = vunpack.c.h.b16 %v7357
    %v8030 = vunpack.c.l.b16 %v7358
    %v8031 = vunpack.c.h.b16 %v7358
    %v8032 = vunpack.c.l.b16 %v7359
    %v8033 = vunpack.c.h.b16 %v7359
    %v8034 = vunpack.c.l.b16 %v7360
    %v8035 = vunpack.c.h.b16 %v7360
    %v8036 = vunpack.c.l.b16 %v7361
    %v8037 = vunpack.c.h.b16 %v7361
    %v8038 = vunpack.c.l.b16 %v7362
    %v8039 = vunpack.c.h.b16 %v7362
    %v8040 = vunpack.c.l.b16 %v7363
    %v8041 = vunpack.c.h.b16 %v7363
    %v8042 = vunpack.c.l.b16 %v7364
    %v8043 = vunpack.c.h.b16 %v7364
    %v8044 = vunpack.c.l.b16 %v7365
    %v8045 = vunpack.c.h.b16 %v7365
    %v8046 = vunpack.c.l.b16 %v7366
    %v8047 = vunpack.c.h.b16 %v7366
    %v8048 = vunpack.c.l.b16 %v7367
    %v8049 = vunpack.c.h.b16 %v7367
    %v8050 = vunpack.c.l.b16 %v7368
    %v8051 = vunpack.c.h.b16 %v7368
    %v8052 = vunpack.c.l.b16 %v7369
    %v8053 = vunpack.c.h.b16 %v7369
    %v8054 = vunpack.c.l.b16 %v7370
    %v8055 = vunpack.c.h.b16 %v7370
    %v8056 = vunpack.c.l.b16 %v7371
    %v8057 = vunpack.c.h.b16 %v7371
    %v8058 = vunpack.c.l.b16 %v7372
    %v8059 = vunpack.c.h.b16 %v7372
    %v8060 = vunpack.c.l.b16 %v7373
    %v8061 = vunpack.c.h.b16 %v7373
    %v8062 = vunpack.c.l.b16 %v7374
    %v8063 = vunpack.c.h.b16 %v7374
    %v8064 = vunpack.c.l.b16 %v7375
    %v8065 = vunpack.c.h.b16 %v7375
    %v8066 = vunpack.c.l.b16 %v7376
    %v8067 = vunpack.c.h.b16 %v7376
    %v8068 = vunpack.c.l.b16 %v7377
    %v8069 = vunpack.c.h.b16 %v7377
    %v8070 = vunpack.c.l.b16 %v7378
    %v8071 = vunpack.c.h.b16 %v7378
    %v8072 = vunpack.c.l.b16 %v7379
    %v8073 = vunpack.c.h.b16 %v7379
    %v8074 = vunpack.c.l.b16 %v7380
    %v8075 = vunpack.c.h.b16 %v7380
    %v8076 = vunpack.c.l.b16 %v7381
    %v8077 = vunpack.c.h.b16 %v7381
    %v8078 = vunpack.c.l.b16 %v7382
    %v8079 = vunpack.c.h.b16 %v7382
    %v8080 = vunpack.c.l.b16 %v7383
    %v8081 = vunpack.c.h.b16 %v7383
    %v8082 = vunpack.c.l.b16 %v7384
    %v8083 = vunpack.c.h.b16 %v7384
    %v8084 = vunpack.c.l.b16 %v7385
    %v8085 = vunpack.c.h.b16 %v7385
    %v8086 = vunpack.c.l.b16 %v7386
    %v8087 = vunpack.c.h.b16 %v7386
    %v8088 = vunpack.c.l.b16 %v7387
    %v8089 = vunpack.c.h.b16 %v7387
    %v8090 = vunpack.c.l.b16 %v7388
    %v8091 = vunpack.c.h.b16 %v7388
    %v8092 = vunpack.c.l.b16 %v7389
    %v8093 = vunpack.c.h.b16 %v7389
    %v8094 = vunpack.c.l.b16 %v7390
    %v8095 = vunpack.c.h.b16 %v7390
    %v8096 = vunpack.c.l.b16 %v7391
    %v8097 = vunpack.c.h.b16 %v7391
    %v8098 = vunpack.c.l.b16 %v7392
    %v8099 = vunpack.c.h.b16 %v7392
    %v8100 = vunpack.c.l.b16 %v7393
    %v8101 = vunpack.c.h.b16 %v7393
    %v8102 = vunpack.c.l.b16 %v7394
    %v8103 = vunpack.c.h.b16 %v7394
    %v8104 = vunpack.c.l.b16 %v7395
    %v8105 = vunpack.c.h.b16 %v7395
    %v8106 = vunpack.c.l.b16 %v7396
    %v8107 = vunpack.c.h.b16 %v7396
    %v8108 = vunpack.c.l.b16 %v7397
    %v8109 = vunpack.c.h.b16 %v7397
    %v8110 = vunpack.c.l.b16 %v7398
    %v8111 = vunpack.c.h.b16 %v7398
    %v8112 = vunpack.c.l.b16 %v7399
    %v8113 = vunpack.c.h.b16 %v7399
    %v8114 = vunpack.c.l.b16 %v7400
    %v8115 = vunpack.c.h.b16 %v7400
    %v8116 = vunpack.c.l.b16 %v7401
    %v8117 = vunpack.c.h.b16 %v7401
    %v8118 = vunpack.c.l.b16 %v7402
    %v8119 = vunpack.c.h.b16 %v7402
    %v8120 = vunpack.c.l.b16 %v7403
    %v8121 = vunpack.c.h.b16 %v7403
    %v8122 = vunpack.c.l.b16 %v7404
    %v8123 = vunpack.c.h.b16 %v7404
    %v8124 = vunpack.c.l.b16 %v7405
    %v8125 = vunpack.c.h.b16 %v7405
    %v8126 = vunpack.c.l.b16 %v7406
    %v8127 = vunpack.c.h.b16 %v7406
    %v8128 = vunpack.c.l.b16 %v7407
    %v8129 = vunpack.c.h.b16 %v7407
    %v8130 = vunpack.c.l.b16 %v7408
    %v8131 = vunpack.c.h.b16 %v7408
    %v8132 = vunpack.c.l.b16 %v7409
    %v8133 = vunpack.c.h.b16 %v7409
    %v8134 = vunpack.c.l.b16 %v7410
    %v8135 = vunpack.c.h.b16 %v7410
    %v8136 = vunpack.c.l.b16 %v7411
    %v8137 = vunpack.c.h.b16 %v7411
    %v8138 = vunpack.c.l.b16 %v7412
    %v8139 = vunpack.c.h.b16 %v7412
    %v8140 = vunpack.c.l.b16 %v7413
    %v8141 = vunpack.c.h.b16 %v7413
    %v8142 = vunpack.c.l.b16 %v7414
    %v8143 = vunpack.c.h.b16 %v7414
    %v8144 = vunpack.c.l.b16 %v7415
    %v8145 = vunpack.c.h.b16 %v7415
    %v8146 = vunpack.c.l.b16 %v7416
    %v8147 = vunpack.c.h.b16 %v7416
    %v8148 = vunpack.c.l.b16 %v7417
    %v8149 = vunpack.c.h.b16 %v7417
    %v8150 = vunpack.c.l.b16 %v7418
    %v8151 = vunpack.c.h.b16 %v7418
    %v8152 = vunpack.c.l.b16 %v7419
    %v8153 = vunpack.c.h.b16 %v7419
    %v8154 = vunpack.c.l.b16 %v7420
    %v8155 = vunpack.c.h.b16 %v7420
    %v8156 = vunpack.c.l.b16 %v7421
    %v8157 = vunpack.c.h.b16 %v7421
    %v8158 = vunpack.c.l.b16 %v7422
    %v8159 = vunpack.c.h.b16 %v7422
    %v8160 = vunpack.c.l.b16 %v7423
    %v8161 = vunpack.c.h.b16 %v7423
    %v8162 = vunpack.c.l.b16 %v7424
    %v8163 = vunpack.c.h.b16 %v7424
    %v8164 = vunpack.c.l.b16 %v7425
    %v8165 = vunpack.c.h.b16 %v7425
    %v8166 = vunpack.c.l.b16 %v7426
    %v8167 = vunpack.c.h.b16 %v7426
    %v8168 = vunpack.c.l.b16 %v7427
    %v8169 = vunpack.c.h.b16 %v7427
    %v8170 = vunpack.c.l.b16 %v7428
    %v8171 = vunpack.c.h.b16 %v7428
    %v8172 = vunpack.c.l.b16 %v7429
    %v8173 = vunpack.c.h.b16 %v7429
    %v8174 = vunpack.c.l.b16 %v7430
    %v8175 = vunpack.c.h.b16 %v7430
    %v8176 = vunpack.c.l.b16 %v7431
    %v8177 = vunpack.c.h.b16 %v7431
    %v8178 = vunpack.c.l.b16 %v7432
    %v8179 = vunpack.c.h.b16 %v7432
    %v8180 = vunpack.c.l.b16 %v7433
    %v8181 = vunpack.c.h.b16 %v7433
    %v8182 = vunpack.c.l.b16 %v7434
    %v8183 = vunpack.c.h.b16 %v7434
    %v8184 = vunpack.c.l.b16 %v7435
    %v8185 = vunpack.c.h.b16 %v7435
    %v8186 = vunpack.c.l.b16 %v7436
    %v8187 = vunpack.c.h.b16 %v7436
    %v8188 = vunpack.c.l.b16 %v7437
    %v8189 = vunpack.c.h.b16 %v7437
    %v8190 = vunpack.c.l.b16 %v7438
    %v8191 = vunpack.c.h.b16 %v7438
    %v8192 = vunpack.c.l.b16 %v7439
    %v8193 = vunpack.c.h.b16 %v7439
    %v8194 = vunpack.c.l.b16 %v7440
    %v8195 = vunpack.c.h.b16 %v7440
    %v8196 = vunpack.c.l.b16 %v7441
    %v8197 = vunpack.c.h.b16 %v7441
    %v8198 = vunpack.c.l.b16 %v7442
    %v8199 = vunpack.c.h.b16 %v7442
    %v8200 = vunpack.c.l.b16 %v7443
    %v8201 = vunpack.c.h.b16 %v7443
    %v8202 = vunpack.c.l.b16 %v7444
    %v8203 = vunpack.c.h.b16 %v7444
    %v8204 = vunpack.c.l.b16 %v7445
    %v8205 = vunpack.c.h.b16 %v7445
    %v8206 = vunpack.c.l.b16 %v7446
    %v8207 = vunpack.c.h.b16 %v7446
    %v8208 = vunpack.c.l.b16 %v7447
    %v8209 = vunpack.c.h.b16 %v7447
    %v8210 = vunpack.c.l.b16 %v7448
    %v8211 = vunpack.c.h.b16 %v7448
    %v8212 = vunpack.c.l.b16 %v7449
    %v8213 = vunpack.c.h.b16 %v7449
    %v8214 = vunpack.c.l.b16 %v7450
    %v8215 = vunpack.c.h.b16 %v7450
    %v8216 = vunpack.c.l.b16 %v7451
    %v8217 = vunpack.c.h.b16 %v7451
    %v8218 = vunpack.c.l.b16 %v7452
    %v8219 = vunpack.c.h.b16 %v7452
    %v8220 = vunpack.c.l.b16 %v7453
    %v8221 = vunpack.c.h.b16 %v7453
    %v8222 = vunpack.c.l.b16 %v7454
    %v8223 = vunpack.c.h.b16 %v7454
    %v8224 = vunpack.c.l.b16 %v7455
    %v8225 = vunpack.c.h.b16 %v7455
    %v8226 = vunpack.c.l.b16 %v7456
    %v8227 = vunpack.c.h.b16 %v7456
    %v8228 = vunpack.c.l.b16 %v7457
    %v8229 = vunpack.c.h.b16 %v7457
    %v8230 = vunpack.c.l.b16 %v7458
    %v8231 = vunpack.c.h.b16 %v7458
    %v8232 = vunpack.c.l.b16 %v7459
    %v8233 = vunpack.c.h.b16 %v7459
    %v8234 = vunpack.c.l.b16 %v7460
    %v8235 = vunpack.c.h.b16 %v7460
    %v8236 = vunpack.c.l.b16 %v7461
    %v8237 = vunpack.c.h.b16 %v7461
    %v8238 = vunpack.c.l.b16 %v7462
    %v8239 = vunpack.c.h.b16 %v7462
    %v8240 = vunpack.c.l.b16 %v7463
    %v8241 = vunpack.c.h.b16 %v7463
    %v8242 = vunpack.c.l.b16 %v7464
    %v8243 = vunpack.c.h.b16 %v7464
    %v8244 = vunpack.c.l.b16 %v7465
    %v8245 = vunpack.c.h.b16 %v7465
    %v8246 = vunpack.c.l.b16 %v7466
    %v8247 = vunpack.c.h.b16 %v7466
    %v8248 = vunpack.c.l.b16 %v7467
    %v8249 = vunpack.c.h.b16 %v7467
    %v8250 = vunpack.c.l.b16 %v7468
    %v8251 = vunpack.c.h.b16 %v7468
    %v8252 = vunpack.c.l.b16 %v7469
    %v8253 = vunpack.c.h.b16 %v7469
    %v8254 = vunpack.c.l.b16 %v7470
    %v8255 = vunpack.c.h.b16 %v7470
    %v8256 = vunpack.c.l.b16 %v7471
    %v8257 = vunpack.c.h.b16 %v7471
    %v8258 = vunpack.c.l.b16 %v7472
    %v8259 = vunpack.c.h.b16 %v7472
    %v8260 = vunpack.c.l.b16 %v7473
    %v8261 = vunpack.c.h.b16 %v7473
    %v8262 = vunpack.c.l.b16 %v7474
    %v8263 = vunpack.c.h.b16 %v7474
    %v8264 = vunpack.c.l.b16 %v7475
    %v8265 = vunpack.c.h.b16 %v7475
    %v8266 = vunpack.c.l.b16 %v7476
    %v8267 = vunpack.c.h.b16 %v7476
    %v8268 = vunpack.c.l.b16 %v7477
    %v8269 = vunpack.c.h.b16 %v7477
    %v8270 = vunpack.c.l.b16 %v7478
    %v8271 = vunpack.c.h.b16 %v7478
    %v8272 = vunpack.c.l.b16 %v7479
    %v8273 = vunpack.c.h.b16 %v7479
    %v8274 = vunpack.c.l.b16 %v7480
    %v8275 = vunpack.c.h.b16 %v7480
    %v8276 = vunpack.c.l.b16 %v7481
    %v8277 = vunpack.c.h.b16 %v7481
    %v8278 = vunpack.c.l.b16 %v7482
    %v8279 = vunpack.c.h.b16 %v7482
    %v8280 = vunpack.c.l.b16 %v7483
    %v8281 = vunpack.c.h.b16 %v7483
    %v8282 = vunpack.c.l.b16 %v7484
    %v8283 = vunpack.c.h.b16 %v7484
    %v8284 = vunpack.c.l.b16 %v7485
    %v8285 = vunpack.c.h.b16 %v7485
    %v8286 = vunpack.c.l.b16 %v7486
    %v8287 = vunpack.c.h.b16 %v7486
    %v8288 = vunpack.c.l.b16 %v7487
    %v8289 = vunpack.c.h.b16 %v7487
    %v8290 = vunpack.c.l.b16 %v7488
    %v8291 = vunpack.c.h.b16 %v7488
    %v8292 = vunpack.c.l.b16 %v7489
    %v8293 = vunpack.c.h.b16 %v7489
    %v8294 = vunpack.c.l.b16 %v7490
    %v8295 = vunpack.c.h.b16 %v7490
    %v8296 = vunpack.c.l.b16 %v7491
    %v8297 = vunpack.c.h.b16 %v7491
    %v8298 = vunpack.c.l.b16 %v7492
    %v8299 = vunpack.c.h.b16 %v7492
    %v8300 = vunpack.c.l.b16 %v7493
    %v8301 = vunpack.c.h.b16 %v7493
    %v8302 = vunpack.c.l.b16 %v7494
    %v8303 = vunpack.c.h.b16 %v7494
    %v8304 = vunpack.c.l.b16 %v7495
    %v8305 = vunpack.c.h.b16 %v7495
    %v8306 = vunpack.c.l.b16 %v7496
    %v8307 = vunpack.c.h.b16 %v7496
    %v8308 = vunpack.c.l.b16 %v7497
    %v8309 = vunpack.c.h.b16 %v7497
    %v8310 = vunpack.c.l.b16 %v7498
    %v8311 = vunpack.c.h.b16 %v7498
    %v8312 = vunpack.c.l.b16 %v7499
    %v8313 = vunpack.c.h.b16 %v7499
    %v8314 = vunpack.c.l.b16 %v7500
    %v8315 = vunpack.c.h.b16 %v7500
    %v8316 = vunpack.c.l.b16 %v7501
    %v8317 = vunpack.c.h.b16 %v7501
    %v8318 = vunpack.c.l.b16 %v7502
    %v8319 = vunpack.c.h.b16 %v7502
    %v8320 = vunpack.c.l.b16 %v7503
    %v8321 = vunpack.c.h.b16 %v7503
    %v8322 = vunpack.c.l.b16 %v7504
    %v8323 = vunpack.c.h.b16 %v7504
    %v8324 = vunpack.c.l.b16 %v7505
    %v8325 = vunpack.c.h.b16 %v7505
    %v8326 = vunpack.c.l.b16 %v7506
    %v8327 = vunpack.c.h.b16 %v7506
    %v8328 = vunpack.c.l.b16 %v7507
    %v8329 = vunpack.c.h.b16 %v7507
    %v8330 = vunpack.c.l.b16 %v7508
    %v8331 = vunpack.c.h.b16 %v7508
    %v8332 = vunpack.c.l.b16 %v7509
    %v8333 = vunpack.c.h.b16 %v7509
    %v8334 = vunpack.c.l.b16 %v7510
    %v8335 = vunpack.c.h.b16 %v7510
    %v8336 = vunpack.c.l.b16 %v7511
    %v8337 = vunpack.c.h.b16 %v7511
    %v8338 = vunpack.c.l.b16 %v7512
    %v8339 = vunpack.c.h.b16 %v7512
    %v8340 = vunpack.c.l.b16 %v7513
    %v8341 = vunpack.c.h.b16 %v7513
    %v8342 = vunpack.c.l.b16 %v7514
    %v8343 = vunpack.c.h.b16 %v7514
    %v8344 = vunpack.c.l.b16 %v7515
    %v8345 = vunpack.c.h.b16 %v7515
    %v8346 = vunpack.c.l.b16 %v7516
    %v8347 = vunpack.c.h.b16 %v7516
    %v8348 = vunpack.c.l.b16 %v7517
    %v8349 = vunpack.c.h.b16 %v7517
    %v8350 = vunpack.c.l.b16 %v7518
    %v8351 = vunpack.c.h.b16 %v7518
    %v8352 = vunpack.c.l.b16 %v7519
    %v8353 = vunpack.c.h.b16 %v7519
    %v8354 = vunpack.c.l.b16 %v7520
    %v8355 = vunpack.c.h.b16 %v7520
    %v8356 = vunpack.c.l.b16 %v7521
    %v8357 = vunpack.c.h.b16 %v7521
    %v8358 = vunpack.c.l.b16 %v7522
    %v8359 = vunpack.c.h.b16 %v7522
    %v8360 = vunpack.c.l.b16 %v7523
    %v8361 = vunpack.c.h.b16 %v7523
    %v8362 = vunpack.c.l.b16 %v7524
    %v8363 = vunpack.c.h.b16 %v7524
    %v8364 = vunpack.c.l.b16 %v7525
    %v8365 = vunpack.c.h.b16 %v7525
    %v8366 = vunpack.c.l.b16 %v7526
    %v8367 = vunpack.c.h.b16 %v7526
    %v8368 = vunpack.c.l.b16 %v7527
    %v8369 = vunpack.c.h.b16 %v7527
    %v8370 = vunpack.c.l.b16 %v7528
    %v8371 = vunpack.c.h.b16 %v7528
    %v8372 = vunpack.c.l.b16 %v7529
    %v8373 = vunpack.c.h.b16 %v7529
    %v8374 = vunpack.c.l.b16 %v7530
    %v8375 = vunpack.c.h.b16 %v7530
    %v8376 = vunpack.c.l.b16 %v7531
    %v8377 = vunpack.c.h.b16 %v7531
    %v8378 = vunpack.c.l.b16 %v7532
    %v8379 = vunpack.c.h.b16 %v7532
    %v8380 = vunpack.c.l.b16 %v7533
    %v8381 = vunpack.c.h.b16 %v7533
    %v8382 = vunpack.c.l.b16 %v7534
    %v8383 = vunpack.c.h.b16 %v7534
    %v8384 = vunpack.c.l.b16 %v7535
    %v8385 = vunpack.c.h.b16 %v7535
    %v8386 = vunpack.c.l.b16 %v7536
    %v8387 = vunpack.c.h.b16 %v7536
    %v8388 = vunpack.c.l.b16 %v7537
    %v8389 = vunpack.c.h.b16 %v7537
    %v8390 = vunpack.c.l.b16 %v7538
    %v8391 = vunpack.c.h.b16 %v7538
    %v8392 = vunpack.c.l.b16 %v7539
    %v8393 = vunpack.c.h.b16 %v7539
    %v8394 = vunpack.c.l.b16 %v7540
    %v8395 = vunpack.c.h.b16 %v7540
    %v8396 = vunpack.c.l.b16 %v7541
    %v8397 = vunpack.c.h.b16 %v7541
    %v8398 = vunpack.c.l.b16 %v7542
    %v8399 = vunpack.c.h.b16 %v7542
    %v8400 = vunpack.c.l.b16 %v7543
    %v8401 = vunpack.c.h.b16 %v7543
    %v8402 = vunpack.c.l.b16 %v7544
    %v8403 = vunpack.c.h.b16 %v7544
    %v8404 = vunpack.c.l.b16 %v7545
    %v8405 = vunpack.c.h.b16 %v7545
    %v8406 = vunpack.c.l.b16 %v7546
    %v8407 = vunpack.c.h.b16 %v7546
    %v8408 = vunpack.c.l.b16 %v7547
    %v8409 = vunpack.c.h.b16 %v7547
    %v8410 = vunpack.c.l.b16 %v7548
    %v8411 = vunpack.c.h.b16 %v7548
    %v8412 = vunpack.c.l.b16 %v7549
    %v8413 = vunpack.c.h.b16 %v7549
    %v8414 = vpack.c.b16 %v7840, %v7838
    %v8415 = vpack.c.b16 %v7841, %v7839
    %v8416 = vpack.c.b16 %v7844, %v7842
    %v8417 = vpack.c.b16 %v7845, %v7843
    %v8418 = vpack.c.b16 %v7848, %v7846
    %v8419 = vpack.c.b16 %v7849, %v7847
    %v8420 = vpack.c.b16 %v7852, %v7850
    %v8421 = vpack.c.b16 %v7853, %v7851
    %v8422 = vpack.c.b16 %v7856, %v7854
    %v8423 = vpack.c.b16 %v7857, %v7855
    %v8424 = vpack.c.b16 %v7860, %v7858
    %v8425 = vpack.c.b16 %v7861, %v7859
    %v8426 = vpack.c.b16 %v7864, %v7862
    %v8427 = vpack.c.b16 %v7865, %v7863
    %v8428 = vpack.c.b16 %v7868, %v7866
    %v8429 = vpack.c.b16 %v7869, %v7867
    %v8430 = vpack.c.b16 %v7872, %v7870
    %v8431 = vpack.c.b16 %v7873, %v7871
    %v8432 = vpack.c.b16 %v7876, %v7874
    %v8433 = vpack.c.b16 %v7877, %v7875
    %v8434 = vpack.c.b16 %v7880, %v7878
    %v8435 = vpack.c.b16 %v7881, %v7879
    %v8436 = vpack.c.b16 %v7884, %v7882
    %v8437 = vpack.c.b16 %v7885, %v7883
    %v8438 = vpack.c.b16 %v7888, %v7886
    %v8439 = vpack.c.b16 %v7889, %v7887
    %v8440 = vpack.c.b16 %v7892, %v7890
    %v8441 = vpack.c.b16 %v7893, %v7891
    %v8442 = vpack.c.b16 %v7896, %v7894
    %v8443 = vpack.c.b16 %v7897, %v7895
    %v8444 = vpack.c.b16 %v7900, %v7898
    %v8445 = vpack.c.b16 %v7901, %v7899
    %v8446 = vpack.c.b16 %v7904, %v7902
    %v8447 = vpack.c.b16 %v7905, %v7903
    %v8448 = vpack.c.b16 %v7908, %v7906
    %v8449 = vpack.c.b16 %v7909, %v7907
    %v8450 = vpack.c.b16 %v7912, %v7910
    %v8451 = vpack.c.b16 %v7913, %v7911
    %v8452 = vpack.c.b16 %v7916, %v7914
    %v8453 = vpack.c.b16 %v7917, %v7915
    %v8454 = vpack.c.b16 %v7920, %v7918
    %v8455 = vpack.c.b16 %v7921, %v7919
    %v8456 = vpack.c.b16 %v7924, %v7922
    %v8457 = vpack.c.b16 %v7925, %v7923
    %v8458 = vpack.c.b16 %v7928, %v7926
    %v8459 = vpack.c.b16 %v7929, %v7927
    %v8460 = vpack.c.b16 %v7932, %v7930
    %v8461 = vpack.c.b16 %v7933, %v7931
    %v8462 = vpack.c.b16 %v7936, %v7934
    %v8463 = vpack.c.b16 %v7937, %v7935
    %v8464 = vpack.c.b16 %v7940, %v7938
    %v8465 = vpack.c.b16 %v7941, %v7939
    %v8466 = vpack.c.b16 %v7944, %v7942
    %v8467 = vpack.c.b16 %v7945, %v7943
    %v8468 = vpack.c.b16 %v7948, %v7946
    %v8469 = vpack.c.b16 %v7949, %v7947
    %v8470 = vpack.c.b16 %v7952, %v7950
    %v8471 = vpack.c.b16 %v7953, %v7951
    %v8472 = vpack.c.b16 %v7956, %v7954
    %v8473 = vpack.c.b16 %v7957, %v7955
    %v8474 = vpack.c.b16 %v7960, %v7958
    %v8475 = vpack.c.b16 %v7961, %v7959
    %v8476 = vpack.c.b16 %v7964, %v7962
    %v8477 = vpack.c.b16 %v7965, %v7963
    %v8478 = vpack.c.b16 %v7968, %v7966
    %v8479 = vpack.c.b16 %v7969, %v7967
    %v8480 = vpack.c.b16 %v7972, %v7970
    %v8481 = vpack.c.b16 %v7973, %v7971
    %v8482 = vpack.c.b16 %v7976, %v7974
    %v8483 = vpack.c.b16 %v7977, %v7975
    %v8484 = vpack.c.b16 %v7980, %v7978
    %v8485 = vpack.c.b16 %v7981, %v7979
    %v8486 = vpack.c.b16 %v7984, %v7982
    %v8487 = vpack.c.b16 %v7985, %v7983
    %v8488 = vpack.c.b16 %v7988, %v7986
    %v8489 = vpack.c.b16 %v7989, %v7987
    %v8490 = vpack.c.b16 %v7992, %v7990
    %v8491 = vpack.c.b16 %v7993, %v7991
    %v8492 = vpack.c.b16 %v7996, %v7994
    %v8493 = vpack.c.b16 %v7997, %v7995
    %v8494 = vpack.c.b16 %v8000, %v7998
    %v8495 = vpack.c.b16 %v8001, %v7999
    %v8496 = vpack.c.b16 %v8004, %v8002
    %v8497 = vpack.c.b16 %v8005, %v8003
    %v8498 = vpack.c.b16 %v8008, %v8006
    %v8499 = vpack.c.b16 %v8009, %v8007
    %v8500 = vpack.c.b16 %v8012, %v8010
    %v8501 = vpack.c.b16 %v8013, %v8011
    %v8502 = vpack.c.b16 %v8016, %v8014
    %v8503 = vpack.c.b16 %v8017, %v8015
    %v8504 = vpack.c.b16 %v8020, %v8018
    %v8505 = vpack.c.b16 %v8021, %v8019
    %v8506 = vpack.c.b16 %v8024, %v8022
    %v8507 = vpack.c.b16 %v8025, %v8023
    %v8508 = vpack.c.b16 %v8028, %v8026
    %v8509 = vpack.c.b16 %v8029, %v8027
    %v8510 = vpack.c.b16 %v8032, %v8030
    %v8511 = vpack.c.b16 %v8033, %v8031
    %v8512 = vpack.c.b16 %v8036, %v8034
    %v8513 = vpack.c.b16 %v8037, %v8035
    %v8514 = vpack.c.b16 %v8040, %v8038
    %v8515 = vpack.c.b16 %v8041, %v8039
    %v8516 = vpack.c.b16 %v8044, %v8042
    %v8517 = vpack.c.b16 %v8045, %v8043
    %v8518 = vpack.c.b16 %v8048, %v8046
    %v8519 = vpack.c.b16 %v8049, %v8047
    %v8520 = vpack.c.b16 %v8052, %v8050
    %v8521 = vpack.c.b16 %v8053, %v8051
    %v8522 = vpack.c.b16 %v8056, %v8054
    %v8523 = vpack.c.b16 %v8057, %v8055
    %v8524 = vpack.c.b16 %v8060, %v8058
    %v8525 = vpack.c.b16 %v8061, %v8059
    %v8526 = vpack.c.b16 %v8064, %v8062
    %v8527 = vpack.c.b16 %v8065, %v8063
    %v8528 = vpack.c.b16 %v8068, %v8066
    %v8529 = vpack.c.b16 %v8069, %v8067
    %v8530 = vpack.c.b16 %v8072, %v8070
    %v8531 = vpack.c.b16 %v8073, %v8071
    %v8532 = vpack.c.b16 %v8076, %v8074
    %v8533 = vpack.c.b16 %v8077, %v8075
    %v8534 = vpack.c.b16 %v8080, %v8078
    %v8535 = vpack.c.b16 %v8081, %v8079
    %v8536 = vpack.c.b16 %v8084, %v8082
    %v8537 = vpack.c.b16 %v8085, %v8083
    %v8538 = vpack.c.b16 %v8088, %v8086
    %v8539 = vpack.c.b16 %v8089, %v8087
    %v8540 = vpack.c.b16 %v8092, %v8090
    %v8541 = vpack.c.b16 %v8093, %v8091
    %v8542 = vpack.c.b16 %v8096, %v8094
    %v8543 = vpack.c.b16 %v8097, %v8095
    %v8544 = vpack.c.b16 %v8100, %v8098
    %v8545 = vpack.c.b16 %v8101, %v8099
    %v8546 = vpack.c.b16 %v8104, %v8102
    %v8547 = vpack.c.b16 %v8105, %v8103
    %v8548 = vpack.c.b16 %v8108, %v8106
    %v8549 = vpack.c.b16 %v8109, %v8107
    %v8550 = vpack.c.b16 %v8112, %v8110
    %v8551 = vpack.c.b16 %v8113, %v8111
    %v8552 = vpack.c.b16 %v8116, %v8114
    %v8553 = vpack.c.b16 %v8117, %v8115
    %v8554 = vpack.c.b16 %v8120, %v8118
    %v8555 = vpack.c.b16 %v8121, %v8119
    %v8556 = vpack.c.b16 %v8124, %v8122
    %v8557 = vpack.c.b16 %v8125, %v8123
    %v8558 = vpack.c.b16 %v8128, %v8126
    %v8559 = vpack.c.b16 %v8129, %v8127
    %v8560 = vpack.c.b16 %v8132, %v8130
    %v8561 = vpack.c.b16 %v8133, %v8131
    %v8562 = vpack.c.b16 %v8136, %v8134
    %v8563 = vpack.c.b16 %v8137, %v8135
    %v8564 = vpack.c.b16 %v8140, %v8138
    %v8565 = vpack.c.b16 %v8141, %v8139
    %v8566 = vpack.c.b16 %v8144, %v8142
    %v8567 = vpack.c.b16 %v8145, %v8143
    %v8568 = vpack.c.b16 %v8148, %v8146
    %v8569 = vpack.c.b16 %v8149, %v8147
    %v8570 = vpack.c.b16 %v8152, %v8150
    %v8571 = vpack.c.b16 %v8153, %v8151
    %v8572 = vpack.c.b16 %v8156, %v8154
    %v8573 = vpack.c.b16 %v8157, %v8155
    %v8574 = vpack.c.b16 %v8160, %v8158
    %v8575 = vpack.c.b16 %v8161, %v8159
    %v8576 = vpack.c.b16 %v8164, %v8162
    %v8577 = vpack.c.b16 %v8165, %v8163
    %v8578 = vpack.c.b16 %v8168, %v8166
    %v8579 = vpack.c.b16 %v8169, %v8167
    %v8580 = vpack.c.b16 %v8172, %v8170
    %v8581 = vpack.c.b16 %v8173, %v8171
    %v8582 = vpack.c.b16 %v8176, %v8174
    %v8583 = vpack.c.b16 %v8177, %v8175
    %v8584 = vpack.c.b16 %v8180, %v8178
    %v8585 = vpack.c.b16 %v8181, %v8179
    %v8586 = vpack.c.b16 %v8184, %v8182
    %v8587 = vpack.c.b16 %v8185, %v8183
    %v8588 = vpack.c.b16 %v8188, %v8186
    %v8589 = vpack.c.b16 %v8189, %v8187
    %v8590 = vpack.c.b16 %v8192, %v8190
    %v8591 = vpack.c.b16 %v8193, %v8191
    %v8592 = vpack.c.b16 %v8196, %v8194
    %v8593 = vpack.c.b16 %v8197, %v8195
    %v8594 = vpack.c.b16 %v8200, %v8198
    %v8595 = vpack.c.b16 %v8201, %v8199
    %v8596 = vpack.c.b16 %v8204, %v8202
    %v8597 = vpack.c.b16 %v8205, %v8203
    %v8598 = vpack.c.b16 %v8208, %v8206
    %v8599 = vpack.c.b16 %v8209, %v8207
    %v8600 = vpack.c.b16 %v8212, %v8210
    %v8601 = vpack.c.b16 %v8213, %v8211
    %v8602 = vpack.c.b16 %v8216, %v8214
    %v8603 = vpack.c.b16 %v8217, %v8215
    %v8604 = vpack.c.b16 %v8220, %v8218
    %v8605 = vpack.c.b16 %v8221, %v8219
    %v8606 = vpack.c.b16 %v8224, %v8222
    %v8607 = vpack.c.b16 %v8225, %v8223
    %v8608 = vpack.c.b16 %v8228, %v8226
    %v8609 = vpack.c.b16 %v8229, %v8227
    %v8610 = vpack.c.b16 %v8232, %v8230
    %v8611 = vpack.c.b16 %v8233, %v8231
    %v8612 = vpack.c.b16 %v8236, %v8234
    %v8613 = vpack.c.b16 %v8237, %v8235
    %v8614 = vpack.c.b16 %v8240, %v8238
    %v8615 = vpack.c.b16 %v8241, %v8239
    %v8616 = vpack.c.b16 %v8244, %v8242
    %v8617 = vpack.c.b16 %v8245, %v8243
    %v8618 = vpack.c.b16 %v8248, %v8246
    %v8619 = vpack.c.b16 %v8249, %v8247
    %v8620 = vpack.c.b16 %v8252, %v8250
    %v8621 = vpack.c.b16 %v8253, %v8251
    %v8622 = vpack.c.b16 %v8256, %v8254
    %v8623 = vpack.c.b16 %v8257, %v8255
    %v8624 = vpack.c.b16 %v8260, %v8258
    %v8625 = vpack.c.b16 %v8261, %v8259
    %v8626 = vpack.c.b16 %v8264, %v8262
    %v8627 = vpack.c.b16 %v8265, %v8263
    %v8628 = vpack.c.b16 %v8268, %v8266
    %v8629 = vpack.c.b16 %v8269, %v8267
    %v8630 = vpack.c.b16 %v8272, %v8270
    %v8631 = vpack.c.b16 %v8273, %v8271
    %v8632 = vpack.c.b16 %v8276, %v8274
    %v8633 = vpack.c.b16 %v8277, %v8275
    %v8634 = vpack.c.b16 %v8280, %v8278
    %v8635 = vpack.c.b16 %v8281, %v8279
    %v8636 = vpack.c.b16 %v8284, %v8282
    %v8637 = vpack.c.b16 %v8285, %v8283
    %v8638 = vpack.c.b16 %v8288, %v8286
    %v8639 = vpack.c.b16 %v8289, %v8287
    %v8640 = vpack.c.b16 %v8292, %v8290
    %v8641 = vpack.c.b16 %v8293, %v8291
    %v8642 = vpack.c.b16 %v8296, %v8294
    %v8643 = vpack.c.b16 %v8297, %v8295
    %v8644 = vpack.c.b16 %v8300, %v8298
    %v8645 = vpack.c.b16 %v8301, %v8299
    %v8646 = vpack.c.b16 %v8304, %v8302
    %v8647 = vpack.c.b16 %v8305, %v8303
    %v8648 = vpack.c.b16 %v8308, %v8306
    %v8649 = vpack.c.b16 %v8309, %v8307
    %v8650 = vpack.c.b16 %v8312, %v8310
    %v8651 = vpack.c.b16 %v8313, %v8311
    %v8652 = vpack.c.b16 %v8316, %v8314
    %v8653 = vpack.c.b16 %v8317, %v8315
    %v8654 = vpack.c.b16 %v8320, %v8318
    %v8655 = vpack.c.b16 %v8321, %v8319
    %v8656 = vpack.c.b16 %v8324, %v8322
    %v8657 = vpack.c.b16 %v8325, %v8323
    %v8658 = vpack.c.b16 %v8328, %v8326
    %v8659 = vpack.c.b16 %v8329, %v8327
    %v8660 = vpack.c.b16 %v8332, %v8330
    %v8661 = vpack.c.b16 %v8333, %v8331
    %v8662 = vpack.c.b16 %v8336, %v8334
    %v8663 = vpack.c.b16 %v8337, %v8335
    %v8664 = vpack.c.b16 %v8340, %v8338
    %v8665 = vpack.c.b16 %v8341, %v8339
    %v8666 = vpack.c.b16 %v8344, %v8342
    %v8667 = vpack.c.b16 %v8345, %v8343
    %v8668 = vpack.c.b16 %v8348, %v8346
    %v8669 = vpack.c.b16 %v8349, %v8347
    %v8670 = vpack.c.b16 %v8352, %v8350
    %v8671 = vpack.c.b16 %v8353, %v8351
    %v8672 = vpack.c.b16 %v8356, %v8354
    %v8673 = vpack.c.b16 %v8357, %v8355
    %v8674 = vpack.c.b16 %v8360, %v8358
    %v8675 = vpack.c.b16 %v8361, %v8359
    %v8676 = vpack.c.b16 %v8364, %v8362
    %v8677 = vpack.c.b16 %v8365, %v8363
    %v8678 = vpack.c.b16 %v8368, %v8366
    %v8679 = vpack.c.b16 %v8369, %v8367
    %v8680 = vpack.c.b16 %v8372, %v8370
    %v8681 = vpack.c.b16 %v8373, %v8371
    %v8682 = vpack.c.b16 %v8376, %v8374
    %v8683 = vpack.c.b16 %v8377, %v8375
    %v8684 = vpack.c.b16 %v8380, %v8378
    %v8685 = vpack.c.b16 %v8381, %v8379
    %v8686 = vpack.c.b16 %v8384, %v8382
    %v8687 = vpack.c.b16 %v8385, %v8383
    %v8688 = vpack.c.b16 %v8388, %v8386
    %v8689 = vpack.c.b16 %v8389, %v8387
    %v8690 = vpack.c.b16 %v8392, %v8390
    %v8691 = vpack.c.b16 %v8393, %v8391
    %v8692 = vpack.c.b16 %v8396, %v8394
    %v8693 = vpack.c.b16 %v8397, %v8395
    %v8694 = vpack.c.b16 %v8400, %v8398
    %v8695 = vpack.c.b16 %v8401, %v8399
    %v8696 = vpack.c.b16 %v8404, %v8402
    %v8697 = vpack.c.b16 %v8405, %v8403
    %v8698 = vpack.c.b16 %v8408, %v8406
    %v8699 = vpack.c.b16 %v8409, %v8407
    %v8700 = vpack.c.b16 %v8412, %v8410
    %v8701 = vpack.c.b16 %v8413, %v8411
    %8990 = vmatprep.subr.bf16.mxu0 %v8415
    %8991 = vmatpush1.bf16.msra.mxu0 %v8414
    %8992 = vmatprep.subr.bf16.mxu0 %v8417
    %8993 = vmatpush1.bf16.msra.mxu0 %v8416
    %8994 = vmatprep.subr.bf16.mxu0 %v8419
    %8995 = vmatpush1.bf16.msra.mxu0 %v8418
    %8996 = vmatprep.subr.bf16.mxu0 %v8421
    %8997 = vmatpush1.bf16.msra.mxu0 %v8420
    %8998 = vmatprep.subr.bf16.mxu0 %v8423
    %8999 = vmatpush1.bf16.msra.mxu0 %v8422
    %9000 = vmatprep.subr.bf16.mxu0 %v8425
    %9001 = vmatpush1.bf16.msra.mxu0 %v8424
    %9002 = vmatprep.subr.bf16.mxu0 %v8427
    %9003 = vmatpush1.bf16.msra.mxu0 %v8426
    %9004 = vmatprep.subr.bf16.mxu0 %v8429
    %9005 = vmatpush1.bf16.msra.mxu0 %v8428
    %9006 = vmatprep.subr.bf16.mxu0 %v8431
    %9007 = vmatpush1.bf16.msra.mxu0 %v8430
    %9008 = vmatprep.subr.bf16.mxu0 %v8433
    %9009 = vmatpush1.bf16.msra.mxu0 %v8432
    %9010 = vmatprep.subr.bf16.mxu0 %v8435
    %9011 = vmatpush1.bf16.msra.mxu0 %v8434
    %9012 = vmatprep.subr.bf16.mxu0 %v8437
    %9013 = vmatpush1.bf16.msra.mxu0 %v8436
    %9014 = vmatprep.subr.bf16.mxu0 %v8439
    %9015 = vmatpush1.bf16.msra.mxu0 %v8438
    %9016 = vmatprep.subr.bf16.mxu0 %v8441
    %9017 = vmatpush1.bf16.msra.mxu0 %v8440
    %9018 = vmatprep.subr.bf16.mxu0 %v8443
    %9019 = vmatpush1.bf16.msra.mxu0 %v8442
    %9020 = vmatprep.subr.bf16.mxu0 %v8445
    %9021 = vmatpush1.bf16.msra.mxu0 %v8444
    %9022 = vmatprep.mubr.bf16.mxu0 %v7245
    %9023 = vmatmul.mubr.bf16.gmra.mrb[0].mxu0 %v7244
    %v9024 = vpop.f32.mrb[0].mxu0
    %v9025 = vadd.f32 0.0, %v9024
    %v9026 = vpop.f32.mrb[0].mxu0
    %v9027 = vadd.f32 0.0, %v9026
    %v9028 = vpop.f32.mrb[0].mxu0
    %v9029 = vpop.f32.mrb[0].mxu0
    %9030 = vdwg.mxu0
    %9031 = vmatprep.subr.bf16.mxu0 %v8447
    %9032 = vmatpush1.bf16.msra.mxu0 %v8446
    %9033 = vmatprep.subr.bf16.mxu0 %v8449
    %9034 = vmatpush1.bf16.msra.mxu0 %v8448
    %9035 = vmatprep.subr.bf16.mxu0 %v8451
    %9036 = vmatpush1.bf16.msra.mxu0 %v8450
    %9037 = vmatprep.subr.bf16.mxu0 %v8453
    %9038 = vmatpush1.bf16.msra.mxu0 %v8452
    %9039 = vmatprep.subr.bf16.mxu0 %v8455
    %9040 = vmatpush1.bf16.msra.mxu0 %v8454
    %9041 = vmatprep.subr.bf16.mxu0 %v8457
    %9042 = vmatpush1.bf16.msra.mxu0 %v8456
    %9043 = vmatprep.subr.bf16.mxu0 %v8459
    %9044 = vmatpush1.bf16.msra.mxu0 %v8458
    %9045 = vmatprep.subr.bf16.mxu0 %v8461
    %9046 = vmatpush1.bf16.msra.mxu0 %v8460
    %9047 = vmatprep.subr.bf16.mxu0 %v8463
    %9048 = vmatpush1.bf16.msra.mxu0 %v8462
    %9049 = vmatprep.subr.bf16.mxu0 %v8465
    %9050 = vmatpush1.bf16.msra.mxu0 %v8464
    %9051 = vmatprep.subr.bf16.mxu0 %v8467
    %9052 = vmatpush1.bf16.msra.mxu0 %v8466
    %9053 = vmatprep.subr.bf16.mxu0 %v8469
    %9054 = vmatpush1.bf16.msra.mxu0 %v8468
    %9055 = vmatprep.subr.bf16.mxu0 %v8471
    %9056 = vmatpush1.bf16.msra.mxu0 %v8470
    %9057 = vmatprep.subr.bf16.mxu0 %v8473
    %9058 = vmatpush1.bf16.msra.mxu0 %v8472
    %9059 = vmatprep.subr.bf16.mxu0 %v8475
    %9060 = vmatpush1.bf16.msra.mxu0 %v8474
    %9061 = vmatprep.subr.bf16.mxu0 %v8477
    %9062 = vmatpush1.bf16.msra.mxu0 %v8476
    %9063 = vmatprep.mubr.bf16.mxu0 %v7247
    %9064 = vmatmul.mubr.bf16.gmra.mrb[0].mxu0 %v7246
    %v9065 = vpop.f32.mrb[0].mxu0
    %v9066 = vadd.f32 %v9025, %v9065
    %v9067 = vpop.f32.mrb[0].mxu0
    %v9068 = vadd.f32 %v9027, %v9067
    %v9069 = vpop.f32.mrb[0].mxu0
    %v9070 = vpop.f32.mrb[0].mxu0
    %9071 = vdwg.mxu0
    %9072 = vmatprep.subr.bf16.mxu0 %v8479
    %9073 = vmatpush1.bf16.msra.mxu0 %v8478
    %9074 = vmatprep.subr.bf16.mxu0 %v8481
    %9075 = vmatpush1.bf16.msra.mxu0 %v8480
    %9076 = vmatprep.subr.bf16.mxu0 %v8483
    %9077 = vmatpush1.bf16.msra.mxu0 %v8482
    %9078 = vmatprep.subr.bf16.mxu0 %v8485
    %9079 = vmatpush1.bf16.msra.mxu0 %v8484
    %9080 = vmatprep.subr.bf16.mxu0 %v8487
    %9081 = vmatpush1.bf16.msra.mxu0 %v8486
    %9082 = vmatprep.subr.bf16.mxu0 %v8489
    %9083 = vmatpush1.bf16.msra.mxu0 %v8488
    %9084 = vmatprep.subr.bf16.mxu0 %v8491
    %9085 = vmatpush1.bf16.msra.mxu0 %v8490
    %9086 = vmatprep.subr.bf16.mxu0 %v8493
    %9087 = vmatpush1.bf16.msra.mxu0 %v8492
    %9088 = vmatprep.subr.bf16.mxu0 %v8495
    %9089 = vmatpush1.bf16.msra.mxu0 %v8494
    %9090 = vmatprep.subr.bf16.mxu0 %v8497
    %9091 = vmatpush1.bf16.msra.mxu0 %v8496
    %9092 = vmatprep.subr.bf16.mxu0 %v8499
    %9093 = vmatpush1.bf16.msra.mxu0 %v8498
    %9094 = vmatprep.subr.bf16.mxu0 %v8501
    %9095 = vmatpush1.bf16.msra.mxu0 %v8500
    %9096 = vmatprep.subr.bf16.mxu0 %v8503
    %9097 = vmatpush1.bf16.msra.mxu0 %v8502
    %9098 = vmatprep.subr.bf16.mxu0 %v8505
    %9099 = vmatpush1.bf16.msra.mxu0 %v8504
    %9100 = vmatprep.subr.bf16.mxu0 %v8507
    %9101 = vmatpush1.bf16.msra.mxu0 %v8506
    %9102 = vmatprep.subr.bf16.mxu0 %v8509
    %9103 = vmatpush1.bf16.msra.mxu0 %v8508
    %9104 = vmatprep.mubr.bf16.mxu0 %v7249
    %9105 = vmatmul.mubr.bf16.gmra.mrb[0].mxu0 %v7248
    %v9106 = vpop.f32.mrb[0].mxu0
    %v9107 = vadd.f32 %v9066, %v9106
    %v9108 = vpop.f32.mrb[0].mxu0
    %v9109 = vadd.f32 %v9068, %v9108
    %v9110 = vpop.f32.mrb[0].mxu0
    %v9111 = vpop.f32.mrb[0].mxu0
    %9112 = vdwg.mxu0
    %9113 = vmatprep.subr.bf16.mxu0 %v8511
    %9114 = vmatpush1.bf16.msra.mxu0 %v8510
    %9115 = vmatprep.subr.bf16.mxu0 %v8513
    %9116 = vmatpush1.bf16.msra.mxu0 %v8512
    %9117 = vmatprep.subr.bf16.mxu0 %v8515
    %9118 = vmatpush1.bf16.msra.mxu0 %v8514
    %9119 = vmatprep.subr.bf16.mxu0 %v8517
    %9120 = vmatpush1.bf16.msra.mxu0 %v8516
    %9121 = vmatprep.subr.bf16.mxu0 %v8519
    %9122 = vmatpush1.bf16.msra.mxu0 %v8518
    %9123 = vmatprep.subr.bf16.mxu0 %v8521
    %9124 = vmatpush1.bf16.msra.mxu0 %v8520
    %9125 = vmatprep.subr.bf16.mxu0 %v8523
    %9126 = vmatpush1.bf16.msra.mxu0 %v8522
    %9127 = vmatprep.subr.bf16.mxu0 %v8525
    %9128 = vmatpush1.bf16.msra.mxu0 %v8524
    %9129 = vmatprep.subr.bf16.mxu0 %v8527
    %9130 = vmatpush1.bf16.msra.mxu0 %v8526
    %9131 = vmatprep.subr.bf16.mxu0 %v8529
    %9132 = vmatpush1.bf16.msra.mxu0 %v8528
    %9133 = vmatprep.subr.bf16.mxu0 %v8531
    %9134 = vmatpush1.bf16.msra.mxu0 %v8530
    %9135 = vmatprep.subr.bf16.mxu0 %v8533
    %9136 = vmatpush1.bf16.msra.mxu0 %v8532
    %9137 = vmatprep.subr.bf16.mxu0 %v8535
    %9138 = vmatpush1.bf16.msra.mxu0 %v8534
    %9139 = vmatprep.subr.bf16.mxu0 %v8537
    %9140 = vmatpush1.bf16.msra.mxu0 %v8536
    %9141 = vmatprep.subr.bf16.mxu0 %v8539
    %9142 = vmatpush1.bf16.msra.mxu0 %v8538
    %9143 = vmatprep.subr.bf16.mxu0 %v8541
    %9144 = vmatpush1.bf16.msra.mxu0 %v8540
    %9145 = vmatprep.mubr.bf16.mxu0 %v7251
    %9146 = vmatmul.mubr.bf16.gmra.mrb[0].mxu0 %v7250
    %v9147 = vpop.f32.mrb[0].mxu0
    %v9148 = vadd.f32 %v9107, %v9147
    %v9149 = vpop.f32.mrb[0].mxu0
    %v9150 = vadd.f32 %v9109, %v9149
    %v9151 = vpop.f32.mrb[0].mxu0
    %v9152 = vpop.f32.mrb[0].mxu0
    %9153 = vdwg.mxu0
    %9154 = vmatprep.subr.bf16.mxu0 %v8543
    %9155 = vmatpush1.bf16.msra.mxu0 %v8542
    %9156 = vmatprep.subr.bf16.mxu0 %v8545
    %9157 = vmatpush1.bf16.msra.mxu0 %v8544
    %9158 = vmatprep.subr.bf16.mxu0 %v8547
    %9159 = vmatpush1.bf16.msra.mxu0 %v8546
    %9160 = vmatprep.subr.bf16.mxu0 %v8549
    %9161 = vmatpush1.bf16.msra.mxu0 %v8548
    %9162 = vmatprep.subr.bf16.mxu0 %v8551
    %9163 = vmatpush1.bf16.msra.mxu0 %v8550
    %9164 = vmatprep.subr.bf16.mxu0 %v8553
    %9165 = vmatpush1.bf16.msra.mxu0 %v8552
    %9166 = vmatprep.subr.bf16.mxu0 %v8555
    %9167 = vmatpush1.bf16.msra.mxu0 %v8554
    %9168 = vmatprep.subr.bf16.mxu0 %v8557
    %9169 = vmatpush1.bf16.msra.mxu0 %v8556
    %9170 = vmatprep.subr.bf16.mxu0 %v8559
    %9171 = vmatpush1.bf16.msra.mxu0 %v8558
    %9172 = vmatprep.subr.bf16.mxu0 %v8561
    %9173 = vmatpush1.bf16.msra.mxu0 %v8560
    %9174 = vmatprep.subr.bf16.mxu0 %v8563
    %9175 = vmatpush1.bf16.msra.mxu0 %v8562
    %9176 = vmatprep.subr.bf16.mxu0 %v8565
    %9177 = vmatpush1.bf16.msra.mxu0 %v8564
    %9178 = vmatprep.subr.bf16.mxu0 %v8567
    %9179 = vmatpush1.bf16.msra.mxu0 %v8566
    %9180 = vmatprep.subr.bf16.mxu0 %v8569
    %9181 = vmatpush1.bf16.msra.mxu0 %v8568
    %9182 = vmatprep.subr.bf16.mxu0 %v8571
    %9183 = vmatpush1.bf16.msra.mxu0 %v8570
    %9184 = vmatprep.subr.bf16.mxu0 %v8573
    %9185 = vmatpush1.bf16.msra.mxu0 %v8572
    %9186 = vmatprep.mubr.bf16.mxu0 %v7253
    %9187 = vmatmul.mubr.bf16.gmra.mrb[0].mxu0 %v7252
    %v9188 = vpop.f32.mrb[0].mxu0
    %v9189 = vadd.f32 %v9148, %v9188
    %v9190 = vpop.f32.mrb[0].mxu0
    %v9191 = vadd.f32 %v9150, %v9190
    %v9192 = vpop.f32.mrb[0].mxu0
    %v9193 = vpop.f32.mrb[0].mxu0
    %9194 = vdwg.mxu0
    %9195 = vmatprep.subr.bf16.mxu0 %v8575
    %9196 = vmatpush1.bf16.msra.mxu0 %v8574
    %9197 = vmatprep.subr.bf16.mxu0 %v8577
    %9198 = vmatpush1.bf16.msra.mxu0 %v8576
    %9199 = vmatprep.subr.bf16.mxu0 %v8579
    %9200 = vmatpush1.bf16.msra.mxu0 %v8578
    %9201 = vmatprep.subr.bf16.mxu0 %v8581
    %9202 = vmatpush1.bf16.msra.mxu0 %v8580
    %9203 = vmatprep.subr.bf16.mxu0 %v8583
    %9204 = vmatpush1.bf16.msra.mxu0 %v8582
    %9205 = vmatprep.subr.bf16.mxu0 %v8585
    %9206 = vmatpush1.bf16.msra.mxu0 %v8584
    %9207 = vmatprep.subr.bf16.mxu0 %v8587
    %9208 = vmatpush1.bf16.msra.mxu0 %v8586
    %9209 = vmatprep.subr.bf16.mxu0 %v8589
    %9210 = vmatpush1.bf16.msra.mxu0 %v8588
    %9211 = vmatprep.subr.bf16.mxu0 %v8591
    %9212 = vmatpush1.bf16.msra.mxu0 %v8590
    %9213 = vmatprep.subr.bf16.mxu0 %v8593
    %9214 = vmatpush1.bf16.msra.mxu0 %v8592
    %9215 = vmatprep.subr.bf16.mxu0 %v8595
    %9216 = vmatpush1.bf16.msra.mxu0 %v8594
    %9217 = vmatprep.subr.bf16.mxu0 %v8597
    %9218 = vmatpush1.bf16.msra.mxu0 %v8596
    %9219 = vmatprep.subr.bf16.mxu0 %v8599
    %9220 = vmatpush1.bf16.msra.mxu0 %v8598
    %9221 = vmatprep.subr.bf16.mxu0 %v8601
    %9222 = vmatpush1.bf16.msra.mxu0 %v8600
    %9223 = vmatprep.subr.bf16.mxu0 %v8603
    %9224 = vmatpush1.bf16.msra.mxu0 %v8602
    %9225 = vmatprep.subr.bf16.mxu0 %v8605
    %9226 = vmatpush1.bf16.msra.mxu0 %v8604
    %9227 = vmatprep.mubr.bf16.mxu0 %v7255
    %9228 = vmatmul.mubr.bf16.gmra.mrb[0].mxu0 %v7254
    %v9229 = vpop.f32.mrb[0].mxu0
    %v9230 = vadd.f32 %v9189, %v9229
    %v9231 = vpop.f32.mrb[0].mxu0
    %v9232 = vadd.f32 %v9191, %v9231
    %v9233 = vpop.f32.mrb[0].mxu0
    %v9234 = vpop.f32.mrb[0].mxu0
    %9235 = vdwg.mxu0
    %9236 = vmatprep.subr.bf16.mxu0 %v8607
    %9237 = vmatpush1.bf16.msra.mxu0 %v8606
    %9238 = vmatprep.subr.bf16.mxu0 %v8609
    %9239 = vmatpush1.bf16.msra.mxu0 %v8608
    %9240 = vmatprep.subr.bf16.mxu0 %v8611
    %9241 = vmatpush1.bf16.msra.mxu0 %v8610
    %9242 = vmatprep.subr.bf16.mxu0 %v8613
    %9243 = vmatpush1.bf16.msra.mxu0 %v8612
    %9244 = vmatprep.subr.bf16.mxu0 %v8615
    %9245 = vmatpush1.bf16.msra.mxu0 %v8614
    %9246 = vmatprep.subr.bf16.mxu0 %v8617
    %9247 = vmatpush1.bf16.msra.mxu0 %v8616
    %9248 = vmatprep.subr.bf16.mxu0 %v8619
    %9249 = vmatpush1.bf16.msra.mxu0 %v8618
    %9250 = vmatprep.subr.bf16.mxu0 %v8621
    %9251 = vmatpush1.bf16.msra.mxu0 %v8620
    %9252 = vmatprep.subr.bf16.mxu0 %v8623
    %9253 = vmatpush1.bf16.msra.mxu0 %v8622
    %9254 = vmatprep.subr.bf16.mxu0 %v8625
    %9255 = vmatpush1.bf16.msra.mxu0 %v8624
    %9256 = vmatprep.subr.bf16.mxu0 %v8627
    %9257 = vmatpush1.bf16.msra.mxu0 %v8626
    %9258 = vmatprep.subr.bf16.mxu0 %v8629
    %9259 = vmatpush1.bf16.msra.mxu0 %v8628
    %9260 = vmatprep.subr.bf16.mxu0 %v8631
    %9261 = vmatpush1.bf16.msra.mxu0 %v8630
    %9262 = vmatprep.subr.bf16.mxu0 %v8633
    %9263 = vmatpush1.bf16.msra.mxu0 %v8632
    %9264 = vmatprep.subr.bf16.mxu0 %v8635
    %9265 = vmatpush1.bf16.msra.mxu0 %v8634
    %9266 = vmatprep.subr.bf16.mxu0 %v8637
    %9267 = vmatpush1.bf16.msra.mxu0 %v8636
    %9268 = vmatprep.mubr.bf16.mxu0 %v7257
    %9269 = vmatmul.mubr.bf16.gmra.mrb[0].mxu0 %v7256
    %v9270 = vpop.f32.mrb[0].mxu0
    %v9271 = vadd.f32 %v9230, %v9270
    %v9272 = vpop.f32.mrb[0].mxu0
    %v9273 = vadd.f32 %v9232, %v9272
    %v9274 = vpop.f32.mrb[0].mxu0
    %v9275 = vpop.f32.mrb[0].mxu0
    %9276 = vdwg.mxu0
    %9277 = vmatprep.subr.bf16.mxu0 %v8639
    %9278 = vmatpush1.bf16.msra.mxu0 %v8638
    %9279 = vmatprep.subr.bf16.mxu0 %v8641
    %9280 = vmatpush1.bf16.msra.mxu0 %v8640
    %9281 = vmatprep.subr.bf16.mxu0 %v8643
    %9282 = vmatpush1.bf16.msra.mxu0 %v8642
    %9283 = vmatprep.subr.bf16.mxu0 %v8645
    %9284 = vmatpush1.bf16.msra.mxu0 %v8644
    %9285 = vmatprep.subr.bf16.mxu0 %v8647
    %9286 = vmatpush1.bf16.msra.mxu0 %v8646
    %9287 = vmatprep.subr.bf16.mxu0 %v8649
    %9288 = vmatpush1.bf16.msra.mxu0 %v8648
    %9289 = vmatprep.subr.bf16.mxu0 %v8651
    %9290 = vmatpush1.bf16.msra.mxu0 %v8650
    %9291 = vmatprep.subr.bf16.mxu0 %v8653
    %9292 = vmatpush1.bf16.msra.mxu0 %v8652
    %9293 = vmatprep.subr.bf16.mxu0 %v8655
    %9294 = vmatpush1.bf16.msra.mxu0 %v8654
    %9295 = vmatprep.subr.bf16.mxu0 %v8657
    %9296 = vmatpush1.bf16.msra.mxu0 %v8656
    %9297 = vmatprep.subr.bf16.mxu0 %v8659
    %9298 = vmatpush1.bf16.msra.mxu0 %v8658
    %9299 = vmatprep.subr.bf16.mxu0 %v8661
    %9300 = vmatpush1.bf16.msra.mxu0 %v8660
    %9301 = vmatprep.subr.bf16.mxu0 %v8663
    %9302 = vmatpush1.bf16.msra.mxu0 %v8662
    %9303 = vmatprep.subr.bf16.mxu0 %v8665
    %9304 = vmatpush1.bf16.msra.mxu0 %v8664
    %9305 = vmatprep.subr.bf16.mxu0 %v8667
    %9306 = vmatpush1.bf16.msra.mxu0 %v8666
    %9307 = vmatprep.subr.bf16.mxu0 %v8669
    %9308 = vmatpush1.bf16.msra.mxu0 %v8668
    %9309 = vmatprep.mubr.bf16.mxu0 %v7259
    %9310 = vmatmul.mubr.bf16.gmra.mrb[0].mxu0 %v7258
    %v9311 = vpop.f32.mrb[0].mxu0
    %v9312 = vadd.f32 %v9271, %v9311
    %v9313 = vpop.f32.mrb[0].mxu0
    %v9314 = vadd.f32 %v9273, %v9313
    %v9315 = vpop.f32.mrb[0].mxu0
    %v9316 = vpop.f32.mrb[0].mxu0
    %9317 = vdwg.mxu0
    %9318 = vmatprep.subr.bf16.mxu0 %v8671
    %9319 = vmatpush1.bf16.msra.mxu0 %v8670
    %9320 = vmatprep.subr.bf16.mxu0 %v8673
    %9321 = vmatpush1.bf16.msra.mxu0 %v8672
    %9322 = vmatprep.subr.bf16.mxu0 %v8675
    %9323 = vmatpush1.bf16.msra.mxu0 %v8674
    %9324 = vmatprep.subr.bf16.mxu0 %v8677
    %9325 = vmatpush1.bf16.msra.mxu0 %v8676
    %9326 = vmatprep.subr.bf16.mxu0 %v8679
    %9327 = vmatpush1.bf16.msra.mxu0 %v8678
    %9328 = vmatprep.subr.bf16.mxu0 %v8681
    %9329 = vmatpush1.bf16.msra.mxu0 %v8680
    %9330 = vmatprep.subr.bf16.mxu0 %v8683
    %9331 = vmatpush1.bf16.msra.mxu0 %v8682
    %9332 = vmatprep.subr.bf16.mxu0 %v8685
    %9333 = vmatpush1.bf16.msra.mxu0 %v8684
    %9334 = vmatprep.subr.bf16.mxu0 %v8687
    %9335 = vmatpush1.bf16.msra.mxu0 %v8686
    %9336 = vmatprep.subr.bf16.mxu0 %v8689
    %9337 = vmatpush1.bf16.msra.mxu0 %v8688
    %9338 = vmatprep.subr.bf16.mxu0 %v8691
    %9339 = vmatpush1.bf16.msra.mxu0 %v8690
    %9340 = vmatprep.subr.bf16.mxu0 %v8693
    %9341 = vmatpush1.bf16.msra.mxu0 %v8692
    %9342 = vmatprep.subr.bf16.mxu0 %v8695
    %9343 = vmatpush1.bf16.msra.mxu0 %v8694
    %9344 = vmatprep.subr.bf16.mxu0 %v8697
    %9345 = vmatpush1.bf16.msra.mxu0 %v8696
    %9346 = vmatprep.subr.bf16.mxu0 %v8699
    %9347 = vmatpush1.bf16.msra.mxu0 %v8698
    %9348 = vmatprep.subr.bf16.mxu0 %v8701
    %9349 = vmatpush1.bf16.msra.mxu0 %v8700
    %9350 = vmatprep.mubr.bf16.mxu0 %v7261
    %9351 = vmatmul.mubr.bf16.gmra.mrb[0].mxu0 %v7260
    %v9352 = vpop.f32.mrb[0].mxu0
    %v9353 = vadd.f32 %v9312, %v9352
    %v9354 = vpop.f32.mrb[0].mxu0
    %v9355 = vadd.f32 %v9314, %v9354
    %v9356 = vpop.f32.mrb[0].mxu0
    %v9357 = vpop.f32.mrb[0].mxu0
    %9358 = vdwg.mxu0
    %v9359 = vld [vmem:[%s9] ss:$4 sm:$0x3]
    %v9360 = vld [vmem:[%s3] sm:$0xff]
    %v9361 = vld [vmem:[%s3 + $0x8] sm:$0xff]
    %v9363 = vlaneseq
    %v9364 = vshrl.u32 %v9363, 7
    %v9365 = vsub.s32 0, %v9364
    %v9366 = vrot.slane %v9359, %v9365
    %v9367 = vlaneseq
    %v9368 = vshrl.u32 %v9367, 7
    %v9369 = vsub.s32 1, %v9368
    %v9370 = vrot.slane %v9359, %v9369
    %v9373 = vmul.f32 %v9366, %v9360
    %v9374 = vmul.f32 %v9370, %v9361
    %v9375 = vadd.f32 %v9373, %v9353
    %v9376 = vadd.f32 %v9374, %v9355
    %s9377 = scalar_lea.vmem %s9, 1
    %v9378 = vld [vmem:[%s9377] ss:$4 sm:$0x3]
    %v9379 = vld [vmem:[%s3 + $0x10] sm:$0xff]
    %v9380 = vld [vmem:[%s3 + $0x18] sm:$0xff]
    %v9382 = vlaneseq
    %v9383 = vshrl.u32 %v9382, 7
    %v9384 = vsub.s32 0, %v9383
    %v9385 = vrot.slane %v9378, %v9384
    %v9386 = vlaneseq
    %v9387 = vshrl.u32 %v9386, 7
    %v9388 = vsub.s32 1, %v9387
    %v9389 = vrot.slane %v9378, %v9388
    %v9392 = vmul.f32 %v9385, %v9379
    %v9393 = vmul.f32 %v9389, %v9380
    %v9394 = vld [vmem:[%s3 + $0x20] sm:$0xff]
    %v9395 = vld [vmem:[%s3 + $0x28] sm:$0xff]
    %v9396 = vsub.f32 1.0, %v9394
    %v9397 = vsub.f32 1.0, %v9395
    %v9398 = vmul.f32 %v9392, %v9396
    %v9399 = vmul.f32 %v9393, %v9397
    %v9400 = vadd.f32 %v9398, %v9375
    %v9401 = vadd.f32 %v9399, %v9376
    %s9402 = scalar_lea.vmem %s9, 2
    %v9403 = vld [vmem:[%s9402] ss:$4 sm:$0x3]
    %v9405 = vlaneseq
    %v9406 = vshrl.u32 %v9405, 7
    %v9407 = vsub.s32 0, %v9406
    %v9408 = vrot.slane %v9403, %v9407
    %v9409 = vlaneseq
    %v9410 = vshrl.u32 %v9409, 7
    %v9411 = vsub.s32 1, %v9410
    %v9412 = vrot.slane %v9403, %v9411
    %v9415 = vsub.f32 %v9400, %v9408
    %v9416 = vsub.f32 %v9401, %v9412
    %vm9417 = vcmp.gt.f32.partialorder %v9415, 0.0
    %vm9418 = vcmp.gt.f32.partialorder %v9416, 0.0
    %v9419 = vsel %vm9417, 1, 0
    %v9420 = vsel %vm9418, 1, 0
    %v9421 = vcvt.s32.f32 %v9419
    %v9422 = vcvt.s32.f32 %v9420
    %9423 = vst [vmem:[#allocation2] sm:$0xff] %v9375
    %9424 = vst [vmem:[#allocation2 + $0x8] sm:$0xff] %v9376
    %9425 = vst [vmem:[#allocation2 + $0x10] sm:$0xff] %v9400
    %9426 = vst [vmem:[#allocation2 + $0x18] sm:$0xff] %v9401
    %9427 = vst [vmem:[#allocation2 + $0x20] sm:$0xff] %v9421
    %9428 = vst [vmem:[#allocation2 + $0x28] sm:$0xff] %v9422
    %v9429 = vpack.c.bf16 %v9421, %v9421
    %v9430 = vpack.c.bf16 %v9422, %v9422
    %v9431 = vld [vmem:[%s10] sm:$0xf]
    %v9432 = vld [vmem:[%s10 + $0x4] sm:$0xf]
    %v9433 = vld [vmem:[%s10 + $0x8] sm:$0xf]
    %v9434 = vld [vmem:[%s10 + $0xc] sm:$0xf]
    %v9435 = vld [vmem:[%s10 + $0x10] sm:$0xf]
    %v9436 = vld [vmem:[%s10 + $0x14] sm:$0xf]
    %v9437 = vld [vmem:[%s10 + $0x18] sm:$0xf]
    %v9438 = vld [vmem:[%s10 + $0x1c] sm:$0xf]
    %v9439 = vld [vmem:[%s10 + $0x20] sm:$0xf]
    %v9440 = vld [vmem:[%s10 + $0x24] sm:$0xf]
    %v9441 = vld [vmem:[%s10 + $0x28] sm:$0xf]
    %v9442 = vld [vmem:[%s10 + $0x2c] sm:$0xf]
    %v9443 = vld [vmem:[%s10 + $0x30] sm:$0xf]
    %v9444 = vld [vmem:[%s10 + $0x34] sm:$0xf]
    %v9445 = vld [vmem:[%s10 + $0x38] sm:$0xf]
    %v9446 = vld [vmem:[%s10 + $0x3c] sm:$0xf]
    %v9447 = vld [vmem:[%s10 + $0x40] sm:$0xf]
    %v9448 = vld [vmem:[%s10 + $0x44] sm:$0xf]
    %v9449 = vld [vmem:[%s10 + $0x48] sm:$0xf]
    %v9450 = vld [vmem:[%s10 + $0x4c] sm:$0xf]
    %v9451 = vld [vmem:[%s10 + $0x50] sm:$0xf]
    %v9452 = vld [vmem:[%s10 + $0x54] sm:$0xf]
    %v9453 = vld [vmem:[%s10 + $0x58] sm:$0xf]
    %v9454 = vld [vmem:[%s10 + $0x5c] sm:$0xf]
    %v9455 = vld [vmem:[%s10 + $0x60] sm:$0xf]
    %v9456 = vld [vmem:[%s10 + $0x64] sm:$0xf]
    %v9457 = vld [vmem:[%s10 + $0x68] sm:$0xf]
    %v9458 = vld [vmem:[%s10 + $0x6c] sm:$0xf]
    %v9459 = vld [vmem:[%s10 + $0x70] sm:$0xf]
    %v9460 = vld [vmem:[%s10 + $0x74] sm:$0xf]
    %v9461 = vld [vmem:[%s10 + $0x78] sm:$0xf]
    %v9462 = vld [vmem:[%s10 + $0x7c] sm:$0xf]
    %v9463 = vld [vmem:[%s11] sm:$0x1]
    %v9465 = vlaneseq
    %v9466 = vshrl.u32 %v9465, 7
    %v9467 = vsub.s32 0, %v9466
    %v9468 = vrot.slane %v9463, %v9467
    %v9502 = vunpack.c.l.b16 %v9431
    %v9503 = vunpack.c.l.b16 %v9432
    %v9504 = vunpack.c.l.b16 %v9433
    %v9505 = vunpack.c.l.b16 %v9434
    %v9506 = vunpack.c.l.b16 %v9435
    %v9507 = vunpack.c.l.b16 %v9436
    %v9508 = vunpack.c.l.b16 %v9437
    %v9509 = vunpack.c.l.b16 %v9438
    %v9510 = vunpack.c.l.b16 %v9439
    %v9511 = vunpack.c.l.b16 %v9440
    %v9512 = vunpack.c.l.b16 %v9441
    %v9513 = vunpack.c.l.b16 %v9442
    %v9514 = vunpack.c.l.b16 %v9443
    %v9515 = vunpack.c.l.b16 %v9444
    %v9516 = vunpack.c.l.b16 %v9445
    %v9517 = vunpack.c.l.b16 %v9446
    %v9518 = vunpack.c.l.b16 %v9447
    %v9519 = vunpack.c.l.b16 %v9448
    %v9520 = vunpack.c.l.b16 %v9449
    %v9521 = vunpack.c.l.b16 %v9450
    %v9522 = vunpack.c.l.b16 %v9451
    %v9523 = vunpack.c.l.b16 %v9452
    %v9524 = vunpack.c.l.b16 %v9453
    %v9525 = vunpack.c.l.b16 %v9454
    %v9526 = vunpack.c.l.b16 %v9455
    %v9527 = vunpack.c.l.b16 %v9456
    %v9528 = vunpack.c.l.b16 %v9457
    %v9529 = vunpack.c.l.b16 %v9458
    %v9530 = vunpack.c.l.b16 %v9459
    %v9531 = vunpack.c.l.b16 %v9460
    %v9532 = vunpack.c.l.b16 %v9461
    %v9533 = vunpack.c.l.b16 %v9462
    %v9534 = vpack.c.b16 %v9503, %v9502
    %v9535 = vpack.c.b16 %v9505, %v9504
    %v9536 = vpack.c.b16 %v9507, %v9506
    %v9537 = vpack.c.b16 %v9509, %v9508
    %v9538 = vpack.c.b16 %v9511, %v9510
    %v9539 = vpack.c.b16 %v9513, %v9512
    %v9540 = vpack.c.b16 %v9515, %v9514
    %v9541 = vpack.c.b16 %v9517, %v9516
    %v9542 = vpack.c.b16 %v9519, %v9518
    %v9543 = vpack.c.b16 %v9521, %v9520
    %v9544 = vpack.c.b16 %v9523, %v9522
    %v9545 = vpack.c.b16 %v9525, %v9524
    %v9546 = vpack.c.b16 %v9527, %v9526
    %v9547 = vpack.c.b16 %v9529, %v9528
    %v9548 = vpack.c.b16 %v9531, %v9530
    %v9549 = vpack.c.b16 %v9533, %v9532
    %9566 = vmatprep.subr.bf16.mxu0 0
    %9567 = vmatpush1.bf16.msra.mxu0 %v9534
    %9568 = vmatprep.subr.bf16.mxu0 0
    %9569 = vmatpush1.bf16.msra.mxu0 %v9535
    %9570 = vmatprep.subr.bf16.mxu0 0
    %9571 = vmatpush1.bf16.msra.mxu0 %v9536
    %9572 = vmatprep.subr.bf16.mxu0 0
    %9573 = vmatpush1.bf16.msra.mxu0 %v9537
    %9574 = vmatprep.subr.bf16.mxu0 0
    %9575 = vmatpush1.bf16.msra.mxu0 %v9538
    %9576 = vmatprep.subr.bf16.mxu0 0
    %9577 = vmatpush1.bf16.msra.mxu0 %v9539
    %9578 = vmatprep.subr.bf16.mxu0 0
    %9579 = vmatpush1.bf16.msra.mxu0 %v9540
    %9580 = vmatprep.subr.bf16.mxu0 0
    %9581 = vmatpush1.bf16.msra.mxu0 %v9541
    %9582 = vmatprep.subr.bf16.mxu0 0
    %9583 = vmatpush1.bf16.msra.mxu0 %v9542
    %9584 = vmatprep.subr.bf16.mxu0 0
    %9585 = vmatpush1.bf16.msra.mxu0 %v9543
    %9586 = vmatprep.subr.bf16.mxu0 0
    %9587 = vmatpush1.bf16.msra.mxu0 %v9544
    %9588 = vmatprep.subr.bf16.mxu0 0
    %9589 = vmatpush1.bf16.msra.mxu0 %v9545
    %9590 = vmatprep.subr.bf16.mxu0 0
    %9591 = vmatpush1.bf16.msra.mxu0 %v9546
    %9592 = vmatprep.subr.bf16.mxu0 0
    %9593 = vmatpush1.bf16.msra.mxu0 %v9547
    %9594 = vmatprep.subr.bf16.mxu0 0
    %9595 = vmatpush1.bf16.msra.mxu0 %v9548
    %9596 = vmatprep.subr.bf16.mxu0 0
    %9597 = vmatpush1.bf16.msra.mxu0 %v9549
    %9598 = vmatprep.mubr.bf16.mxu0 %v9430
    %9599 = vmatmul.mubr.bf16.gmra.mrb[0].mxu0 %v9429
    %v9600 = vpop.f32.mrb[0].mxu0
    %v9601 = vadd.f32 %v9468, %v9600
    %v9602 = vpop.f32.mrb[0].mxu0
    %v9603 = vpop.f32.mrb[0].mxu0
    %v9604 = vpop.f32.mrb[0].mxu0
    %9605 = vdwg.mxu0
    %9606 = vst [vmem:[%s15] sm:$0xff] %v9601
    // Predicated region
    $region50: #{_model_forward.1} parent=1 // pred_check
      _
    $region51: #{_model_forward.1} parent=1 // pred_check_branch
      %9608 = sbr.rel (0) target = $region53
    $region52: #{_model_forward.1} parent=1 // pred_region
      _
    $region53: #{_model_forward.1} parent=1 // pred_fallthru
      _
    // Predicated region
    $region54: #{_model_forward.1} parent=1 // pred_check
      _
    $region55: #{_model_forward.1} parent=1 // pred_check_branch
      %9610 = sbr.rel (0) target = $region57
    $region56: #{_model_forward.1} parent=1 // pred_region
      _
    $region57: #{_model_forward.1} parent=1 // pred_fallthru
      _
    // Predicated region
    $region58: #{_model_forward.1} parent=1 // pred_check
      _
    $region59: #{_model_forward.1} parent=1 // pred_check_branch
      %9612 = sbr.rel (0) target = $region61
    $region60: #{_model_forward.1} parent=1 // pred_region
      %s9614 = ssub.s32 768, 768
      %9615 = vsyncadd [#allocation3], %s9614
      %s9616 = sshll.u32 [#allocation2], 4
      %s9617 = int_to_ptr.vmem [resolvable:$true] %s9616
      %9622 = dma.vmem_to_hbm [thread:$0]  %s9617, 768, %s14, [#allocation3], 256, 256, 16
    $region61: #{_model_forward.1} parent=1 // pred_fallthru
      _
    // Predicated region
    $region62: #{_model_forward.1} parent=1 // pred_check
      _
    $region63: #{_model_forward.1} parent=1 // pred_check_branch
      %9624 = sbr.rel (0) target = $region65
    $region64: #{_model_forward.1} parent=1 // pred_region
      _
    $region65: #{_model_forward.1} parent=1 // pred_fallthru
      _
    // Predicated region
    $region66: #{_model_forward.1} parent=1 // pred_check
      _
    $region67: #{_model_forward.1} parent=1 // pred_check_branch
      %9626 = sbr.rel (0) target = $region69
    $region68: #{_model_forward.1} parent=1 // pred_region
      _
    $region69: #{_model_forward.1} parent=1 // pred_fallthru
      _
    // Predicated region
    $region70: #{_model_forward.1} parent=1 // pred_check
      _
    $region71: #{_model_forward.1} parent=1 // pred_check_branch
      %9628 = sbr.rel (0) target = $region73
    $region72: #{_model_forward.1} parent=1 // pred_region
      _
    $region73: #{_model_forward.1} parent=1 // pred_fallthru
      _
    // Predicated region
    $region74: #{_model_forward.1} parent=1 // pred_check
      _
    $region75: #{_model_forward.1} parent=1 // pred_check_branch
      %9630 = sbr.rel (0) target = $region77
    $region76: #{_model_forward.1} parent=1 // pred_region
      %9631 = dma.done [#allocation3], 768
    $region77: #{_model_forward.1} parent=1 // pred_fallthru
      _
    // Predicated region
    $region78: #{_model_forward.1} parent=1 // pred_check
      _
    $region79: #{_model_forward.1} parent=1 // pred_check_branch
      %9633 = sbr.rel (0) target = $region81
    $region80: #{_model_forward.1} parent=1 // pred_region
      _
    $region81: #{_model_forward.1} parent=1 // pred_fallthru
      _
    %9634 = vsyncpa [#allocation3], 1

</llo_original>
